<compile_context>
chip_gen: v5e
topology: v5e:2x2
jax: 0.10.0
libtpu: 0.0.40
codegen_flags: <defaults>
</compile_context>

<pallas_src>
import math

import jax
import jax.numpy as jnp
from jax import lax
from jax.experimental import pallas as pl
from jax.experimental.pallas import tpu as pltpu

HIDDEN = 102                      # hidden_size
NUM_HEADS = 6                     # num_heads
HEAD_DIM = HIDDEN // NUM_HEADS    # 17
NUM_LAYERS = 2                    # num_layers
DIM_FF = 2048                     # nn.TransformerDecoderLayer default dim_feedforward
VOCAB = 28                        # stands in for len(char_to_idx)
LN_EPS = 1e-5
NEG_INF = -1e30

D_PAD = 128                       # feature dim padded to a full lane
HEAD_PAD = 32                     # per-head dim padded (cols/rows 17..31 are zero)
HP_ALL = NUM_HEADS * HEAD_PAD     # 192
V_PAD = 128                       # vocab padded for a lane-dense output store

ATTN_SCALE = 1.0 / math.sqrt(HEAD_DIM)

# ---- vector-slab row layout (one f32 [1,128] row per bias / LayerNorm vector) ----
ROWS_PER_LAYER = 9
(R_BO_SA, R_BO_CA, R_B2,
 R_LN1G, R_LN1B, R_LN2G, R_LN2B, R_LN3G, R_LN3B) = range(ROWS_PER_LAYER)
R_BOUT = NUM_LAYERS * ROWS_PER_LAYER          # 18
N_VEC = R_BOUT + 1                            # 19 rows total


# ---------------- fused Pallas kernel ----------------

def fused_decoder_kernel(tgt_ref, mem_ref, sa_mask_ref, ca_mask_ref,
                         awq_ref, awkv_ref, awo_ref, bq_ref, bkv_ref,
                         w1_ref, b1_ref, w2_ref, wout_ref, vecs_ref,
                         out_ref):
    x = tgt_ref[...]                                 # [Mt, 128] f32, padded lanes exactly 0
    mem_b = mem_ref[...].astype(jnp.bfloat16)        # [Ms, 128] (only ever used as cross-attn K/V)
    sa_mask = sa_mask_ref[...]                       # [H*Mt, Mt]  additive (0 / -1e30)
    ca_mask = ca_mask_ref[...]                       # [H*Mt, Ms]

    feat = lax.broadcasted_iota(jnp.int32, (1, D_PAD), 1)
    feat_mask = (feat < HIDDEN).astype(jnp.float32)
    inv_d = jnp.float32(1.0 / HIDDEN)

    def vrow(i):                                     # [1, 128] f32 bias / LN vector
        return vecs_ref[i]

    def add_layernorm(a, r, gi, bi):
        y = a + r                                    # padded lanes stay 0
        mu = jnp.sum(y, axis=-1, keepdims=True) * inv_d
        yc = (y - mu) * feat_mask
        var = jnp.sum(yc * yc, axis=-1, keepdims=True) * inv_d
        return yc * lax.rsqrt(var + LN_EPS) * vrow(gi) + vrow(bi)

    def mha(q_b, kv_b, l, a, mask, bo_row):
        # fused projections: one N=192 dot for Q, one N=384 dot for K|V
        q = jnp.dot(q_b, awq_ref[l, a], preferred_element_type=jnp.float32) + bq_ref[l, a]
        kv = jnp.dot(kv_b, awkv_ref[l, a], preferred_element_type=jnp.float32) + bkv_ref[l, a]
        mq = q_b.shape[0]

        # per-head scores, stacked along sublanes -> ONE softmax chain for all heads
        scores = []
        for h in range(NUM_HEADS):                   # static unroll, H = 6
            qh = q[:, h * HEAD_PAD:(h + 1) * HEAD_PAD]
            kh = kv[:, h * HEAD_PAD:(h + 1) * HEAD_PAD]
            scores.append(lax.dot_general(qh, kh, (((1,), (1,)), ((), ())),
                                          preferred_element_type=jnp.float32))
        s_all = jnp.concatenate(scores, axis=0) * ATTN_SCALE + mask      # [H*mq, Sk]

        m = jnp.max(s_all, axis=-1, keepdims=True)
        e = jnp.exp(s_all - m)
        pr = e * pl.reciprocal(jnp.sum(e, axis=-1, keepdims=True), approx=True)

        # per-head contexts, lane-concatenated -> ONE wide output-projection dot
        ctxs = []
        for h in range(NUM_HEADS):
            ph = pr[h * mq:(h + 1) * mq, :]
            vh = kv[:, HP_ALL + h * HEAD_PAD: HP_ALL + (h + 1) * HEAD_PAD]
            ctxs.append(jnp.dot(ph, vh, preferred_element_type=jnp.float32))
        ctx = jnp.concatenate(ctxs, axis=-1).astype(jnp.bfloat16)        # [mq, 192]

        return jnp.dot(ctx, awo_ref[l, a], preferred_element_type=jnp.float32) + vrow(bo_row)

    for l in range(NUM_LAYERS):                      # static unroll, L = 2
        base = l * ROWS_PER_LAYER

        xb = x.astype(jnp.bfloat16)
        sa = mha(xb, xb, l, 0, sa_mask, base + R_BO_SA)
        x = add_layernorm(x, sa, base + R_LN1G, base + R_LN1B)

        ca = mha(x.astype(jnp.bfloat16), mem_b, l, 1, ca_mask, base + R_BO_CA)
        x = add_layernorm(x, ca, base + R_LN2G, base + R_LN2B)

        xb = x.astype(jnp.bfloat16)
        h1 = jnp.dot(xb, w1_ref[l], preferred_element_type=jnp.float32) + b1_ref[l]
        h1 = jnp.maximum(h1, 0.0).astype(jnp.bfloat16)   # early bf16: halves [M,2048] vreg footprint
        ff = jnp.dot(h1, w2_ref[l], preferred_element_type=jnp.float32) + vrow(base + R_B2)
        x = add_layernorm(x, ff, base + R_LN3G, base + R_LN3B)

    logits = jnp.dot(x.astype(jnp.bfloat16), wout_ref[...],
                     preferred_element_type=jnp.float32) + vrow(R_BOUT)
    out_ref[...] = logits                            # lane-dense [Mt, 128] store


def _full_spec(a):
    nd = a.ndim
    return pl.BlockSpec(a.shape, lambda i, _n=nd: (0,) * _n)


@jax.jit
def fused_forward(packed, src, tgt):
    B, S_tgt = tgt.shape
    S_src = src.shape[1]
    Mt, Ms = B * S_tgt, B * S_src

    emb, pe = packed["emb"], packed["pe"]            # pre-scaled / pre-padded at pack time
    tgt_emb = (jnp.take(emb, tgt, axis=0) + pe[:S_tgt][None]).reshape(Mt, D_PAD)
    src_emb = (jnp.take(emb, src, axis=0) + pe[:S_src][None]).reshape(Ms, D_PAD)

    # Block-diagonal (per-batch) + causal additive masks for the head-stacked scores.
    # Constant-folded by XLA (depend only on static shapes); no integer div inside the kernel.
    r = jnp.arange(NUM_HEADS * Mt, dtype=jnp.int32)[:, None]
    qi = r % Mt                                      # query row within the head block
    qb, qp = qi // S_tgt, qi % S_tgt                 # query batch / position
    ct = jnp.arange(Mt, dtype=jnp.int32)[None, :]
    sa_mask = jnp.where((qb == ct // S_tgt) & (ct % S_tgt <= qp),
                        0.0, NEG_INF).astype(jnp.float32)
    cs = jnp.arange(Ms, dtype=jnp.int32)[None, :]
    ca_mask = jnp.where(qb == cs // S_src, 0.0, NEG_INF).astype(jnp.float32)

    operands = (tgt_emb, src_emb, sa_mask, ca_mask,
                packed["aw_q"], packed["aw_kv"], packed["aw_o"],
                packed["b_q"], packed["b_kv"],
                packed["w1"], packed["b1"], packed["w2"],
                packed["w_out"], packed["vecs"])

    out = pl.pallas_call(
        fused_decoder_kernel,
        out_shape=jax.ShapeDtypeStruct((Mt, V_PAD), jnp.float32),
        grid=(1,),                                   # single step: batch folded into M
        in_specs=[_full_spec(a) for a in operands],
        out_specs=pl.BlockSpec((Mt, V_PAD), lambda i: (0, 0)),
        compiler_params=pltpu.CompilerParams(dimension_semantics=("arbitrary",)),
    )(*operands)
    return out.reshape(B, S_tgt, V_PAD)[..., :VOCAB]


# ---------------- params (natural layout) + packing into the kernel layout ----------------

def positional_encoding(max_len, d_model):
    position = jnp.arange(max_len, dtype=jnp.float32)[:, None]
    div_term = jnp.exp(jnp.arange(0, d_model, 2, dtype=jnp.float32)
                       * (-math.log(10000.0) / d_model))
    pe = jnp.zeros((max_len, d_model), jnp.float32)
    pe = pe.at[:, 0::2].set(jnp.sin(position * div_term))
    pe = pe.at[:, 1::2].set(jnp.cos(position * div_term))
    return pe


def init_params(key):
    keys = jax.random.split(key, 64)
    it = iter(keys)

    def w(shape, scale=0.02):
        return (scale * jax.random.normal(next(it), shape)).astype(jnp.float32)

    def attn_params():
        return dict(
            wq=w((HIDDEN, HIDDEN)), bq=jnp.zeros((HIDDEN,), jnp.float32),
            wk=w((HIDDEN, HIDDEN)), bk=jnp.zeros((HIDDEN,), jnp.float32),
            wv=w((HIDDEN, HIDDEN)), bv=jnp.zeros((HIDDEN,), jnp.float32),
            wo=w((HIDDEN, HIDDEN)), bo=jnp.zeros((HIDDEN,), jnp.float32),
        )

    layers = []
    for _ in range(NUM_LAYERS):
        layers.append(dict(
            self_attn=attn_params(),
            cross_attn=attn_params(),
            w1=w((HIDDEN, DIM_FF)), b1=jnp.zeros((DIM_FF,), jnp.float32),
            w2=w((DIM_FF, HIDDEN)), b2=jnp.zeros((HIDDEN,), jnp.float32),
            ln1_g=jnp.ones((HIDDEN,), jnp.float32), ln1_b=jnp.zeros((HIDDEN,), jnp.float32),
            ln2_g=jnp.ones((HIDDEN,), jnp.float32), ln2_b=jnp.zeros((HIDDEN,), jnp.float32),
            ln3_g=jnp.ones((HIDDEN,), jnp.float32), ln3_b=jnp.zeros((HIDDEN,), jnp.float32),
        ))

    return dict(
        embedding=w((VOCAB, HIDDEN), scale=1.0),
        pe=positional_encoding(5000, HIDDEN),
        layers=layers,
        w_out=w((HIDDEN, VOCAB)), b_out=jnp.zeros((VOCAB,), jnp.float32),
    )


def pack_params(params):
    """Pad + consolidate natural-layout params into the fused kernel's slabs (bf16 matmul weights)."""
    layers = params["layers"]

    def pad2(a, rows, cols):
        return jnp.pad(a, ((0, rows - a.shape[0]), (0, cols - a.shape[1])))

    def heads_out(wm):   # [HIDDEN, HIDDEN] -> [D_PAD, H*HEAD_PAD]   (head h = output cols)
        return jnp.concatenate(
            [pad2(wm[:, h * HEAD_DIM:(h + 1) * HEAD_DIM], D_PAD, HEAD_PAD)
             for h in range(NUM_HEADS)], axis=1)

    def heads_in(wm):    # [HIDDEN, HIDDEN] -> [H*HEAD_PAD, D_PAD]   (head h = input rows)
        return jnp.concatenate(
            [pad2(wm[h * HEAD_DIM:(h + 1) * HEAD_DIM, :], HEAD_PAD, D_PAD)
             for h in range(NUM_HEADS)], axis=0)

    def heads_bias(bv):  # [HIDDEN] -> [1, H*HEAD_PAD]
        return jnp.concatenate(
            [jnp.pad(bv[h * HEAD_DIM:(h + 1) * HEAD_DIM], (0, HEAD_PAD - HEAD_DIM))
             for h in range(NUM_HEADS)])[None, :]

    def vec128(v):       # [d] -> [1, 128]
        return jnp.pad(v, (0, D_PAD - v.shape[0]))[None, :]

    aw_q, aw_kv, aw_o, b_q, b_kv = [], [], [], [], []
    w1, b1, w2 = [], [], []
    vec_rows = []
    for lp in layers:
        per_q, per_kv, per_o, per_bq, per_bkv = [], [], [], [], []
        for key in ("self_attn", "cross_attn"):
            p = lp[key]
            per_q.append(heads_out(p["wq"]))
            per_kv.append(jnp.concatenate([heads_out(p["wk"]), heads_out(p["wv"])], axis=1))
            per_o.append(heads_in(p["wo"]))
            per_bq.append(heads_bias(p["bq"]))
            per_bkv.append(jnp.concatenate([heads_bias(p["bk"]), heads_bias(p["bv"])], axis=1))
        aw_q.append(jnp.stack(per_q))
        aw_kv.append(jnp.stack(per_kv))
        aw_o.append(jnp.stack(per_o))
        b_q.append(jnp.stack(per_bq))
        b_kv.append(jnp.stack(per_bkv))
        w1.append(pad2(lp["w1"], D_PAD, DIM_FF))
        b1.append(lp["b1"][None, :])
        w2.append(pad2(lp["w2"], DIM_FF, D_PAD))
        vec_rows += [vec128(lp["self_attn"]["bo"]), vec128(lp["cross_attn"]["bo"]),
                     vec128(lp["b2"]),
                     vec128(lp["ln1_g"]), vec128(lp["ln1_b"]),
                     vec128(lp["ln2_g"]), vec128(lp["ln2_b"]),
                     vec128(lp["ln3_g"]), vec128(lp["ln3_b"])]
    vec_rows.append(vec128(params["b_out"]))
    assert len(vec_rows) == N_VEC

    return dict(
        # embedding pre-scaled by sqrt(hidden) and pre-padded to 128 lanes
        emb=jnp.pad(params["embedding"] * math.sqrt(HIDDEN), ((0, 0), (0, D_PAD - HIDDEN))),
        pe=jnp.pad(params["pe"], ((0, 0), (0, D_PAD - HIDDEN))),
        aw_q=jnp.stack(aw_q).astype(jnp.bfloat16),     # [L, 2, 128, 192]
        aw_kv=jnp.stack(aw_kv).astype(jnp.bfloat16),   # [L, 2, 128, 384]
        aw_o=jnp.stack(aw_o).astype(jnp.bfloat16),     # [L, 2, 192, 128]
        b_q=jnp.stack(b_q),                            # [L, 2, 1, 192] f32
        b_kv=jnp.stack(b_kv),                          # [L, 2, 1, 384] f32
        w1=jnp.stack(w1).astype(jnp.bfloat16),         # [L, 128, 2048]
        b1=jnp.stack(b1),                              # [L, 1, 2048] f32
        w2=jnp.stack(w2).astype(jnp.bfloat16),         # [L, 2048, 128]
        w_out=pad2(params["w_out"], D_PAD, V_PAD).astype(jnp.bfloat16),   # [128, 128]
        vecs=jnp.stack(vec_rows),                      # [19, 1, 128] f32
    )


# ---------------- plain-JAX reference (same bf16 matmul quantization) ----------------

def reference_forward(params, src, tgt):
    B, S_tgt = tgt.shape
    S_src = src.shape[1]
    emb_scale = math.sqrt(HIDDEN)
    src_emb = jnp.take(params["embedding"], src, axis=0) * emb_scale + params["pe"][:S_src][None]
    tgt_emb = jnp.take(params["embedding"], tgt, axis=0) * emb_scale + params["pe"][:S_tgt][None]
    mask = jnp.where(jnp.tril(jnp.ones((S_tgt, S_tgt), jnp.bool_)),
                     jnp.float32(0.0), jnp.float32(NEG_INF))

    def bdot(a, b):
        return jnp.dot(a.astype(jnp.bfloat16), b.astype(jnp.bfloat16),
                       preferred_element_type=jnp.float32)

    def mha(q_in, kv_in, p, m):
        Sq, Sk = q_in.shape[1], kv_in.shape[1]
        q = bdot(q_in.reshape(-1, HIDDEN), p["wq"]) + p["bq"]
        k = bdot(kv_in.reshape(-1, HIDDEN), p["wk"]) + p["bk"]
        v = bdot(kv_in.reshape(-1, HIDDEN), p["wv"]) + p["bv"]

        def split(t, S):
            return t.reshape(B, S, NUM_HEADS, HEAD_DIM).transpose(0, 2, 1, 3)

        qh, kh, vh = split(q, Sq), split(k, Sk), split(v, Sk)
        s = jnp.einsum("bhqd,bhkd->bhqk", qh, kh) / math.sqrt(HEAD_DIM)
        if m is not None:
            s = s + m
        w = jax.nn.softmax(s, axis=-1)
        ctx = jnp.einsum("bhqk,bhkd->bhqd", w, vh)
        ctx = ctx.transpose(0, 2, 1, 3).reshape(B * Sq, HIDDEN)
        return (bdot(ctx, p["wo"]) + p["bo"]).reshape(B, Sq, HIDDEN)

    def ln(x, g, b):
        mu = jnp.mean(x, axis=-1, keepdims=True)
        var = jnp.mean((x - mu) ** 2, axis=-1, keepdims=True)
        return (x - mu) * lax.rsqrt(var + LN_EPS) * g + b

    x, mem = tgt_emb, src_emb
    for lp in params["layers"]:
        x = ln(x + mha(x, x, lp["self_attn"], mask), lp["ln1_g"], lp["ln1_b"])
        x = ln(x + mha(x, mem, lp["cross_attn"], None), lp["ln2_g"], lp["ln2_b"])
        h = jnp.maximum(bdot(x.reshape(-1, HIDDEN), lp["w1"]) + lp["b1"], 0.0)
        ff = (bdot(h, lp["w2"]) + lp["b2"]).reshape(B, S_tgt, HIDDEN)
        x = ln(x + ff, lp["ln3_g"], lp["ln3_b"])
    logits = bdot(x.reshape(-1, HIDDEN), params["w_out"]) + params["b_out"]
    return logits.reshape(B, S_tgt, VOCAB)


# ---------------- main ----------------

if __name__ == "__main__":
    key = jax.random.PRNGKey(0)
    pkey, skey, tkey = jax.random.split(key, 3)
    params = init_params(pkey)
    packed = pack_params(params)

    B, S_SRC, S_TGT = 2, 10, 8
    src = jax.random.randint(skey, (B, S_SRC), 0, VOCAB, dtype=jnp.int32)
    tgt = jax.random.randint(tkey, (B, S_TGT), 0, VOCAB, dtype=jnp.int32)

    out = jax.block_until_ready(fused_forward(packed, src, tgt))
    assert out.shape == (B, S_TGT, VOCAB), out.shape
    assert bool(jnp.all(jnp.isfinite(out)))

    ref = jax.block_until_ready(jax.jit(reference_forward)(params, src, tgt))
    err = float(jnp.max(jnp.abs(out - ref)))
    assert err < 5e-2, f"max abs err vs reference: {err}"

    print("KERNEL_OK")
</pallas_src>

<mosaic_0001>
module attributes {stable_mosaic.version = 11 : i64} {
  func.func @fused_decoder_kernel(%arg0: i32, %arg1: memref<16x128xf32, #tpu.memory_space<vmem>>, %arg2: memref<20x128xf32, #tpu.memory_space<vmem>>, %arg3: memref<96x16xf32, #tpu.memory_space<vmem>>, %arg4: memref<96x20xf32, #tpu.memory_space<vmem>>, %arg5: memref<2x2x128x192xbf16, #tpu.memory_space<vmem>>, %arg6: memref<2x2x128x384xbf16, #tpu.memory_space<vmem>>, %arg7: memref<2x2x192x128xbf16, #tpu.memory_space<vmem>>, %arg8: memref<2x2x1x192xf32, #tpu.memory_space<vmem>>, %arg9: memref<2x2x1x384xf32, #tpu.memory_space<vmem>>, %arg10: memref<2x128x2048xbf16, #tpu.memory_space<vmem>>, %arg11: memref<2x1x2048xf32, #tpu.memory_space<vmem>>, %arg12: memref<2x2048x128xbf16, #tpu.memory_space<vmem>>, %arg13: memref<128x128xbf16, #tpu.memory_space<vmem>>, %arg14: memref<19x1x128xf32, #tpu.memory_space<vmem>>, %arg15: memref<16x128xf32, #tpu.memory_space<vmem>>) attributes {dimension_semantics = [#tpu.dimension_semantics<arbitrary>], iteration_bounds = array<i64: 1>, scalar_prefetch = 0 : i64, scratch_operands = 0 : i64, tpu.core_type = #tpu.core_type<tc>, window_params = [{pipeline_mode = #tpu.pipeline_mode<synchronous>, transform_indices = @transform_0, window_bounds = array<i64: 16, 128>}, {pipeline_mode = #tpu.pipeline_mode<synchronous>, transform_indices = @transform_1, window_bounds = array<i64: 20, 128>}, {pipeline_mode = #tpu.pipeline_mode<synchronous>, transform_indices = @transform_2, window_bounds = array<i64: 96, 16>}, {pipeline_mode = #tpu.pipeline_mode<synchronous>, transform_indices = @transform_3, window_bounds = array<i64: 96, 20>}, {pipeline_mode = #tpu.pipeline_mode<synchronous>, transform_indices = @transform_4, window_bounds = array<i64: 2, 2, 128, 192>}, {pipeline_mode = #tpu.pipeline_mode<synchronous>, transform_indices = @transform_5, window_bounds = array<i64: 2, 2, 128, 384>}, {pipeline_mode = #tpu.pipeline_mode<synchronous>, transform_indices = @transform_6, window_bounds = array<i64: 2, 2, 192, 128>}, {pipeline_mode = #tpu.pipeline_mode<synchronous>, transform_indices = @transform_7, window_bounds = array<i64: 2, 2, 1, 192>}, {pipeline_mode = #tpu.pipeline_mode<synchronous>, transform_indices = @transform_8, window_bounds = array<i64: 2, 2, 1, 384>}, {pipeline_mode = #tpu.pipeline_mode<synchronous>, transform_indices = @transform_9, window_bounds = array<i64: 2, 128, 2048>}, {pipeline_mode = #tpu.pipeline_mode<synchronous>, transform_indices = @transform_10, window_bounds = array<i64: 2, 1, 2048>}, {pipeline_mode = #tpu.pipeline_mode<synchronous>, transform_indices = @transform_11, window_bounds = array<i64: 2, 2048, 128>}, {pipeline_mode = #tpu.pipeline_mode<synchronous>, transform_indices = @transform_12, window_bounds = array<i64: 128, 128>}, {pipeline_mode = #tpu.pipeline_mode<synchronous>, transform_indices = @transform_13, window_bounds = array<i64: 19, 1, 128>}, {pipeline_mode = #tpu.pipeline_mode<synchronous>, transform_indices = @transform_14, window_bounds = array<i64: 16, 128>}]} {
    %c0 = arith.constant 0 : index
    %c0_0 = arith.constant 0 : index
    %0 = vector.load %arg1[%c0, %c0_0] : memref<16x128xf32, #tpu.memory_space<vmem>>, vector<16x128xf32>
    %c0_1 = arith.constant 0 : index
    %c0_2 = arith.constant 0 : index
    %1 = vector.load %arg2[%c0_1, %c0_2] : memref<20x128xf32, #tpu.memory_space<vmem>>, vector<20x128xf32>
    %2 = arith.truncf %1 : vector<20x128xf32> to vector<20x128xbf16>
    %c0_3 = arith.constant 0 : index
    %c0_4 = arith.constant 0 : index
    %3 = vector.load %arg3[%c0_3, %c0_4] : memref<96x16xf32, #tpu.memory_space<vmem>>, vector<96x16xf32>
    %c0_5 = arith.constant 0 : index
    %c0_6 = arith.constant 0 : index
    %4 = vector.load %arg4[%c0_5, %c0_6] : memref<96x20xf32, #tpu.memory_space<vmem>>, vector<96x20xf32>
    %5 = tpu.iota {dimensions = array<i32: 1>} : vector<1x128xi32>
    %c102_i32 = arith.constant 102 : i32
    %6 = vector.broadcast %c102_i32 : i32 to vector<1x128xi32>
    %7 = arith.cmpi slt, %5, %6 : vector<1x128xi32>
    %8 = arith.extui %7 : vector<1x128xi1> to vector<1x128xi32>
    %9 = arith.sitofp %8 : vector<1x128xi32> to vector<1x128xf32>
    %10 = arith.truncf %0 : vector<16x128xf32> to vector<16x128xbf16>
    %c0_7 = arith.constant 0 : index
    %c0_8 = arith.constant 0 : index
    %c0_9 = arith.constant 0 : index
    %c0_10 = arith.constant 0 : index
    %11 = vector.load %arg5[%c0_7, %c0_8, %c0_9, %c0_10] : memref<2x2x128x192xbf16, #tpu.memory_space<vmem>>, vector<1x1x128x192xbf16>
    %12 = vector.shape_cast %11 : vector<1x1x128x192xbf16> to vector<128x192xbf16>
    %cst = arith.constant dense<0.000000e+00> : vector<16x192xf32>
    %13 = tpu.matmul %10, %12, %cst {dimension_numbers = #tpu.dot_dimension_numbers<[1], [0], [0], [1], [0, 0, 1, 1], [], []>} : vector<16x128xbf16>, vector<128x192xbf16>, vector<16x192xf32> -> vector<16x192xf32>
    %c0_11 = arith.constant 0 : index
    %c0_12 = arith.constant 0 : index
    %c0_13 = arith.constant 0 : index
    %c0_14 = arith.constant 0 : index
    %14 = vector.load %arg8[%c0_11, %c0_12, %c0_13, %c0_14] : memref<2x2x1x192xf32, #tpu.memory_space<vmem>>, vector<1x1x1x192xf32>
    %15 = vector.shape_cast %14 : vector<1x1x1x192xf32> to vector<1x192xf32>
    %16 = vector.broadcast %15 : vector<1x192xf32> to vector<16x192xf32>
    %17 = arith.addf %13, %16 : vector<16x192xf32>
    %c0_15 = arith.constant 0 : index
    %c0_16 = arith.constant 0 : index
    %c0_17 = arith.constant 0 : index
    %c0_18 = arith.constant 0 : index
    %18 = vector.load %arg6[%c0_15, %c0_16, %c0_17, %c0_18] : memref<2x2x128x384xbf16, #tpu.memory_space<vmem>>, vector<1x1x128x384xbf16>
    %19 = vector.shape_cast %18 : vector<1x1x128x384xbf16> to vector<128x384xbf16>
    %cst_19 = arith.constant dense<0.000000e+00> : vector<16x384xf32>
    %20 = tpu.matmul %10, %19, %cst_19 {dimension_numbers = #tpu.dot_dimension_numbers<[1], [0], [0], [1], [0, 0, 1, 1], [], []>} : vector<16x128xbf16>, vector<128x384xbf16>, vector<16x384xf32> -> vector<16x384xf32>
    %c0_20 = arith.constant 0 : index
    %c0_21 = arith.constant 0 : index
    %c0_22 = arith.constant 0 : index
    %c0_23 = arith.constant 0 : index
    %21 = vector.load %arg9[%c0_20, %c0_21, %c0_22, %c0_23] : memref<2x2x1x384xf32, #tpu.memory_space<vmem>>, vector<1x1x1x384xf32>
    %22 = vector.shape_cast %21 : vector<1x1x1x384xf32> to vector<1x384xf32>
    %23 = vector.broadcast %22 : vector<1x384xf32> to vector<16x384xf32>
    %24 = arith.addf %20, %23 : vector<16x384xf32>
    %25 = vector.extract_strided_slice %17 {offsets = [0, 0], sizes = [16, 32], strides = [1, 1]} : vector<16x192xf32> to vector<16x32xf32>
    %26 = vector.extract_strided_slice %24 {offsets = [0, 0], sizes = [16, 32], strides = [1, 1]} : vector<16x384xf32> to vector<16x32xf32>
    %cst_24 = arith.constant dense<0.000000e+00> : vector<16x16xf32>
    %27 = tpu.matmul %25, %26, %cst_24 {dimension_numbers = #tpu.dot_dimension_numbers<[1], [1], [0], [0], [0, 0, 1, 0], [], []>} : vector<16x32xf32>, vector<16x32xf32>, vector<16x16xf32> -> vector<16x16xf32>
    %28 = vector.extract_strided_slice %17 {offsets = [0, 32], sizes = [16, 32], strides = [1, 1]} : vector<16x192xf32> to vector<16x32xf32>
    %29 = vector.extract_strided_slice %24 {offsets = [0, 32], sizes = [16, 32], strides = [1, 1]} : vector<16x384xf32> to vector<16x32xf32>
    %cst_25 = arith.constant dense<0.000000e+00> : vector<16x16xf32>
    %30 = tpu.matmul %28, %29, %cst_25 {dimension_numbers = #tpu.dot_dimension_numbers<[1], [1], [0], [0], [0, 0, 1, 0], [], []>} : vector<16x32xf32>, vector<16x32xf32>, vector<16x16xf32> -> vector<16x16xf32>
    %31 = vector.extract_strided_slice %17 {offsets = [0, 64], sizes = [16, 32], strides = [1, 1]} : vector<16x192xf32> to vector<16x32xf32>
    %32 = vector.extract_strided_slice %24 {offsets = [0, 64], sizes = [16, 32], strides = [1, 1]} : vector<16x384xf32> to vector<16x32xf32>
    %cst_26 = arith.constant dense<0.000000e+00> : vector<16x16xf32>
    %33 = tpu.matmul %31, %32, %cst_26 {dimension_numbers = #tpu.dot_dimension_numbers<[1], [1], [0], [0], [0, 0, 1, 0], [], []>} : vector<16x32xf32>, vector<16x32xf32>, vector<16x16xf32> -> vector<16x16xf32>
    %34 = vector.extract_strided_slice %17 {offsets = [0, 96], sizes = [16, 32], strides = [1, 1]} : vector<16x192xf32> to vector<16x32xf32>
    %35 = vector.extract_strided_slice %24 {offsets = [0, 96], sizes = [16, 32], strides = [1, 1]} : vector<16x384xf32> to vector<16x32xf32>
    %cst_27 = arith.constant dense<0.000000e+00> : vector<16x16xf32>
    %36 = tpu.matmul %34, %35, %cst_27 {dimension_numbers = #tpu.dot_dimension_numbers<[1], [1], [0], [0], [0, 0, 1, 0], [], []>} : vector<16x32xf32>, vector<16x32xf32>, vector<16x16xf32> -> vector<16x16xf32>
    %37 = vector.extract_strided_slice %17 {offsets = [0, 128], sizes = [16, 32], strides = [1, 1]} : vector<16x192xf32> to vector<16x32xf32>
    %38 = vector.extract_strided_slice %24 {offsets = [0, 128], sizes = [16, 32], strides = [1, 1]} : vector<16x384xf32> to vector<16x32xf32>
    %cst_28 = arith.constant dense<0.000000e+00> : vector<16x16xf32>
    %39 = tpu.matmul %37, %38, %cst_28 {dimension_numbers = #tpu.dot_dimension_numbers<[1], [1], [0], [0], [0, 0, 1, 0], [], []>} : vector<16x32xf32>, vector<16x32xf32>, vector<16x16xf32> -> vector<16x16xf32>
    %40 = vector.extract_strided_slice %17 {offsets = [0, 160], sizes = [16, 32], strides = [1, 1]} : vector<16x192xf32> to vector<16x32xf32>
    %41 = vector.extract_strided_slice %24 {offsets = [0, 160], sizes = [16, 32], strides = [1, 1]} : vector<16x384xf32> to vector<16x32xf32>
    %cst_29 = arith.constant dense<0.000000e+00> : vector<16x16xf32>
    %42 = tpu.matmul %40, %41, %cst_29 {dimension_numbers = #tpu.dot_dimension_numbers<[1], [1], [0], [0], [0, 0, 1, 0], [], []>} : vector<16x32xf32>, vector<16x32xf32>, vector<16x16xf32> -> vector<16x16xf32>
    %43 = tpu.concatenate %27, %30, %33, %36, %39, %42 in 0 : vector<16x16xf32>, vector<16x16xf32>, vector<16x16xf32>, vector<16x16xf32>, vector<16x16xf32>, vector<16x16xf32> -> vector<96x16xf32>
    %cst_30 = arith.constant 0.242535621 : f32
    %44 = vector.broadcast %cst_30 : f32 to vector<96x16xf32>
    %45 = arith.mulf %43, %44 : vector<96x16xf32>
    %46 = arith.addf %45, %3 : vector<96x16xf32>
    %cst_31 = arith.constant dense<0xFF800000> : vector<96xf32>
    %47 = vector.multi_reduction <maximumf>, %46, %cst_31 [1] : vector<96x16xf32> to vector<96xf32>
    %48 = vector.shape_cast %47 : vector<96xf32> to vector<96x1xf32>
    %49 = vector.broadcast %48 : vector<96x1xf32> to vector<96x16xf32>
    %50 = arith.subf %46, %49 : vector<96x16xf32>
    %51 = math.exp %50 : vector<96x16xf32>
    %cst_32 = arith.constant dense<0.000000e+00> : vector<96xf32>
    %52 = vector.multi_reduction <add>, %51, %cst_32 [1] : vector<96x16xf32> to vector<96xf32>
    %53 = vector.shape_cast %52 : vector<96xf32> to vector<96x1xf32>
    %54 = tpu.reciprocal %53 {approx = true} : vector<96x1xf32> -> vector<96x1xf32>
    %55 = vector.broadcast %54 : vector<96x1xf32> to vector<96x16xf32>
    %56 = arith.mulf %51, %55 : vector<96x16xf32>
    %57 = vector.extract_strided_slice %56 {offsets = [0, 0], sizes = [16, 16], strides = [1, 1]} : vector<96x16xf32> to vector<16x16xf32>
    %58 = vector.extract_strided_slice %24 {offsets = [0, 192], sizes = [16, 32], strides = [1, 1]} : vector<16x384xf32> to vector<16x32xf32>
    %cst_33 = arith.constant dense<0.000000e+00> : vector<16x32xf32>
    %59 = tpu.matmul %57, %58, %cst_33 {dimension_numbers = #tpu.dot_dimension_numbers<[1], [0], [0], [1], [0, 0, 1, 1], [], []>} : vector<16x16xf32>, vector<16x32xf32>, vector<16x32xf32> -> vector<16x32xf32>
    %60 = vector.extract_strided_slice %56 {offsets = [16, 0], sizes = [16, 16], strides = [1, 1]} : vector<96x16xf32> to vector<16x16xf32>
    %61 = vector.extract_strided_slice %24 {offsets = [0, 224], sizes = [16, 32], strides = [1, 1]} : vector<16x384xf32> to vector<16x32xf32>
    %cst_34 = arith.constant dense<0.000000e+00> : vector<16x32xf32>
    %62 = tpu.matmul %60, %61, %cst_34 {dimension_numbers = #tpu.dot_dimension_numbers<[1], [0], [0], [1], [0, 0, 1, 1], [], []>} : vector<16x16xf32>, vector<16x32xf32>, vector<16x32xf32> -> vector<16x32xf32>
    %63 = vector.extract_strided_slice %56 {offsets = [32, 0], sizes = [16, 16], strides = [1, 1]} : vector<96x16xf32> to vector<16x16xf32>
    %64 = vector.extract_strided_slice %24 {offsets = [0, 256], sizes = [16, 32], strides = [1, 1]} : vector<16x384xf32> to vector<16x32xf32>
    %cst_35 = arith.constant dense<0.000000e+00> : vector<16x32xf32>
    %65 = tpu.matmul %63, %64, %cst_35 {dimension_numbers = #tpu.dot_dimension_numbers<[1], [0], [0], [1], [0, 0, 1, 1], [], []>} : vector<16x16xf32>, vector<16x32xf32>, vector<16x32xf32> -> vector<16x32xf32>
    %66 = vector.extract_strided_slice %56 {offsets = [48, 0], sizes = [16, 16], strides = [1, 1]} : vector<96x16xf32> to vector<16x16xf32>
    %67 = vector.extract_strided_slice %24 {offsets = [0, 288], sizes = [16, 32], strides = [1, 1]} : vector<16x384xf32> to vector<16x32xf32>
    %cst_36 = arith.constant dense<0.000000e+00> : vector<16x32xf32>
    %68 = tpu.matmul %66, %67, %cst_36 {dimension_numbers = #tpu.dot_dimension_numbers<[1], [0], [0], [1], [0, 0, 1, 1], [], []>} : vector<16x16xf32>, vector<16x32xf32>, vector<16x32xf32> -> vector<16x32xf32>
    %69 = vector.extract_strided_slice %56 {offsets = [64, 0], sizes = [16, 16], strides = [1, 1]} : vector<96x16xf32> to vector<16x16xf32>
    %70 = vector.extract_strided_slice %24 {offsets = [0, 320], sizes = [16, 32], strides = [1, 1]} : vector<16x384xf32> to vector<16x32xf32>
    %cst_37 = arith.constant dense<0.000000e+00> : vector<16x32xf32>
    %71 = tpu.matmul %69, %70, %cst_37 {dimension_numbers = #tpu.dot_dimension_numbers<[1], [0], [0], [1], [0, 0, 1, 1], [], []>} : vector<16x16xf32>, vector<16x32xf32>, vector<16x32xf32> -> vector<16x32xf32>
    %72 = vector.extract_strided_slice %56 {offsets = [80, 0], sizes = [16, 16], strides = [1, 1]} : vector<96x16xf32> to vector<16x16xf32>
    %73 = vector.extract_strided_slice %24 {offsets = [0, 352], sizes = [16, 32], strides = [1, 1]} : vector<16x384xf32> to vector<16x32xf32>
    %cst_38 = arith.constant dense<0.000000e+00> : vector<16x32xf32>
    %74 = tpu.matmul %72, %73, %cst_38 {dimension_numbers = #tpu.dot_dimension_numbers<[1], [0], [0], [1], [0, 0, 1, 1], [], []>} : vector<16x16xf32>, vector<16x32xf32>, vector<16x32xf32> -> vector<16x32xf32>
    %75 = tpu.concatenate %59, %62, %65, %68, %71, %74 in 1 : vector<16x32xf32>, vector<16x32xf32>, vector<16x32xf32>, vector<16x32xf32>, vector<16x32xf32>, vector<16x32xf32> -> vector<16x192xf32>
    %76 = arith.truncf %75 : vector<16x192xf32> to vector<16x192xbf16>
    %c0_39 = arith.constant 0 : index
    %c0_40 = arith.constant 0 : index
    %c0_41 = arith.constant 0 : index
    %c0_42 = arith.constant 0 : index
    %77 = vector.load %arg7[%c0_39, %c0_40, %c0_41, %c0_42] : memref<2x2x192x128xbf16, #tpu.memory_space<vmem>>, vector<1x1x192x128xbf16>
    %78 = vector.shape_cast %77 : vector<1x1x192x128xbf16> to vector<192x128xbf16>
    %cst_43 = arith.constant dense<0.000000e+00> : vector<16x128xf32>
    %79 = tpu.matmul %76, %78, %cst_43 {dimension_numbers = #tpu.dot_dimension_numbers<[1], [0], [0], [1], [0, 0, 1, 1], [], []>} : vector<16x192xbf16>, vector<192x128xbf16>, vector<16x128xf32> -> vector<16x128xf32>
    %c0_44 = arith.constant 0 : index
    %c0_45 = arith.constant 0 : index
    %c0_46 = arith.constant 0 : index
    %80 = vector.load %arg14[%c0_44, %c0_45, %c0_46] : memref<19x1x128xf32, #tpu.memory_space<vmem>>, vector<1x1x128xf32>
    %81 = vector.shape_cast %80 : vector<1x1x128xf32> to vector<1x128xf32>
    %82 = vector.broadcast %81 : vector<1x128xf32> to vector<16x128xf32>
    %83 = arith.addf %79, %82 : vector<16x128xf32>
    %84 = arith.addf %0, %83 : vector<16x128xf32>
    %cst_47 = arith.constant dense<0.000000e+00> : vector<16xf32>
    %85 = vector.multi_reduction <add>, %84, %cst_47 [1] : vector<16x128xf32> to vector<16xf32>
    %86 = vector.shape_cast %85 : vector<16xf32> to vector<16x1xf32>
    %cst_48 = arith.constant 0.00980392192 : f32
    %87 = vector.broadcast %cst_48 : f32 to vector<16x1xf32>
    %88 = arith.mulf %86, %87 : vector<16x1xf32>
    %89 = vector.broadcast %88 : vector<16x1xf32> to vector<16x128xf32>
    %90 = arith.subf %84, %89 : vector<16x128xf32>
    %91 = vector.broadcast %9 : vector<1x128xf32> to vector<16x128xf32>
    %92 = arith.mulf %90, %91 : vector<16x128xf32>
    %93 = arith.mulf %92, %92 : vector<16x128xf32>
    %cst_49 = arith.constant dense<0.000000e+00> : vector<16xf32>
    %94 = vector.multi_reduction <add>, %93, %cst_49 [1] : vector<16x128xf32> to vector<16xf32>
    %95 = vector.shape_cast %94 : vector<16xf32> to vector<16x1xf32>
    %cst_50 = arith.constant 0.00980392192 : f32
    %96 = vector.broadcast %cst_50 : f32 to vector<16x1xf32>
    %97 = arith.mulf %95, %96 : vector<16x1xf32>
    %cst_51 = arith.constant 9.99999974E-6 : f32
    %98 = vector.broadcast %cst_51 : f32 to vector<16x1xf32>
    %99 = arith.addf %97, %98 : vector<16x1xf32>
    %100 = math.rsqrt %99 : vector<16x1xf32>
    %101 = vector.broadcast %100 : vector<16x1xf32> to vector<16x128xf32>
    %102 = arith.mulf %92, %101 : vector<16x128xf32>
    %c3 = arith.constant 3 : index
    %c0_52 = arith.constant 0 : index
    %c0_53 = arith.constant 0 : index
    %103 = vector.load %arg14[%c3, %c0_52, %c0_53] : memref<19x1x128xf32, #tpu.memory_space<vmem>>, vector<1x1x128xf32>
    %104 = vector.shape_cast %103 : vector<1x1x128xf32> to vector<1x128xf32>
    %105 = vector.broadcast %104 : vector<1x128xf32> to vector<16x128xf32>
    %106 = arith.mulf %102, %105 : vector<16x128xf32>
    %c4 = arith.constant 4 : index
    %c0_54 = arith.constant 0 : index
    %c0_55 = arith.constant 0 : index
    %107 = vector.load %arg14[%c4, %c0_54, %c0_55] : memref<19x1x128xf32, #tpu.memory_space<vmem>>, vector<1x1x128xf32>
    %108 = vector.shape_cast %107 : vector<1x1x128xf32> to vector<1x128xf32>
    %109 = vector.broadcast %108 : vector<1x128xf32> to vector<16x128xf32>
    %110 = arith.addf %106, %109 : vector<16x128xf32>
    %111 = arith.truncf %110 : vector<16x128xf32> to vector<16x128xbf16>
    %c0_56 = arith.constant 0 : index
    %c1 = arith.constant 1 : index
    %c0_57 = arith.constant 0 : index
    %c0_58 = arith.constant 0 : index
    %112 = vector.load %arg5[%c0_56, %c1, %c0_57, %c0_58] : memref<2x2x128x192xbf16, #tpu.memory_space<vmem>>, vector<1x1x128x192xbf16>
    %113 = vector.shape_cast %112 : vector<1x1x128x192xbf16> to vector<128x192xbf16>
    %cst_59 = arith.constant dense<0.000000e+00> : vector<16x192xf32>
    %114 = tpu.matmul %111, %113, %cst_59 {dimension_numbers = #tpu.dot_dimension_numbers<[1], [0], [0], [1], [0, 0, 1, 1], [], []>} : vector<16x128xbf16>, vector<128x192xbf16>, vector<16x192xf32> -> vector<16x192xf32>
    %c0_60 = arith.constant 0 : index
    %c1_61 = arith.constant 1 : index
    %c0_62 = arith.constant 0 : index
    %c0_63 = arith.constant 0 : index
    %115 = vector.load %arg8[%c0_60, %c1_61, %c0_62, %c0_63] : memref<2x2x1x192xf32, #tpu.memory_space<vmem>>, vector<1x1x1x192xf32>
    %116 = vector.shape_cast %115 : vector<1x1x1x192xf32> to vector<1x192xf32>
    %117 = vector.broadcast %116 : vector<1x192xf32> to vector<16x192xf32>
    %118 = arith.addf %114, %117 : vector<16x192xf32>
    %c0_64 = arith.constant 0 : index
    %c1_65 = arith.constant 1 : index
    %c0_66 = arith.constant 0 : index
    %c0_67 = arith.constant 0 : index
    %119 = vector.load %arg6[%c0_64, %c1_65, %c0_66, %c0_67] : memref<2x2x128x384xbf16, #tpu.memory_space<vmem>>, vector<1x1x128x384xbf16>
    %120 = vector.shape_cast %119 : vector<1x1x128x384xbf16> to vector<128x384xbf16>
    %cst_68 = arith.constant dense<0.000000e+00> : vector<20x384xf32>
    %121 = tpu.matmul %2, %120, %cst_68 {dimension_numbers = #tpu.dot_dimension_numbers<[1], [0], [0], [1], [0, 0, 1, 1], [], []>} : vector<20x128xbf16>, vector<128x384xbf16>, vector<20x384xf32> -> vector<20x384xf32>
    %c0_69 = arith.constant 0 : index
    %c1_70 = arith.constant 1 : index
    %c0_71 = arith.constant 0 : index
    %c0_72 = arith.constant 0 : index
    %122 = vector.load %arg9[%c0_69, %c1_70, %c0_71, %c0_72] : memref<2x2x1x384xf32, #tpu.memory_space<vmem>>, vector<1x1x1x384xf32>
    %123 = vector.shape_cast %122 : vector<1x1x1x384xf32> to vector<1x384xf32>
    %124 = vector.broadcast %123 : vector<1x384xf32> to vector<20x384xf32>
    %125 = arith.addf %121, %124 : vector<20x384xf32>
    %126 = vector.extract_strided_slice %118 {offsets = [0, 0], sizes = [16, 32], strides = [1, 1]} : vector<16x192xf32> to vector<16x32xf32>
    %127 = vector.extract_strided_slice %125 {offsets = [0, 0], sizes = [20, 32], strides = [1, 1]} : vector<20x384xf32> to vector<20x32xf32>
    %cst_73 = arith.constant dense<0.000000e+00> : vector<16x20xf32>
    %128 = tpu.matmul %126, %127, %cst_73 {dimension_numbers = #tpu.dot_dimension_numbers<[1], [1], [0], [0], [0, 0, 1, 0], [], []>} : vector<16x32xf32>, vector<20x32xf32>, vector<16x20xf32> -> vector<16x20xf32>
    %129 = vector.extract_strided_slice %118 {offsets = [0, 32], sizes = [16, 32], strides = [1, 1]} : vector<16x192xf32> to vector<16x32xf32>
    %130 = vector.extract_strided_slice %125 {offsets = [0, 32], sizes = [20, 32], strides = [1, 1]} : vector<20x384xf32> to vector<20x32xf32>
    %cst_74 = arith.constant dense<0.000000e+00> : vector<16x20xf32>
    %131 = tpu.matmul %129, %130, %cst_74 {dimension_numbers = #tpu.dot_dimension_numbers<[1], [1], [0], [0], [0, 0, 1, 0], [], []>} : vector<16x32xf32>, vector<20x32xf32>, vector<16x20xf32> -> vector<16x20xf32>
    %132 = vector.extract_strided_slice %118 {offsets = [0, 64], sizes = [16, 32], strides = [1, 1]} : vector<16x192xf32> to vector<16x32xf32>
    %133 = vector.extract_strided_slice %125 {offsets = [0, 64], sizes = [20, 32], strides = [1, 1]} : vector<20x384xf32> to vector<20x32xf32>
    %cst_75 = arith.constant dense<0.000000e+00> : vector<16x20xf32>
    %134 = tpu.matmul %132, %133, %cst_75 {dimension_numbers = #tpu.dot_dimension_numbers<[1], [1], [0], [0], [0, 0, 1, 0], [], []>} : vector<16x32xf32>, vector<20x32xf32>, vector<16x20xf32> -> vector<16x20xf32>
    %135 = vector.extract_strided_slice %118 {offsets = [0, 96], sizes = [16, 32], strides = [1, 1]} : vector<16x192xf32> to vector<16x32xf32>
    %136 = vector.extract_strided_slice %125 {offsets = [0, 96], sizes = [20, 32], strides = [1, 1]} : vector<20x384xf32> to vector<20x32xf32>
    %cst_76 = arith.constant dense<0.000000e+00> : vector<16x20xf32>
    %137 = tpu.matmul %135, %136, %cst_76 {dimension_numbers = #tpu.dot_dimension_numbers<[1], [1], [0], [0], [0, 0, 1, 0], [], []>} : vector<16x32xf32>, vector<20x32xf32>, vector<16x20xf32> -> vector<16x20xf32>
    %138 = vector.extract_strided_slice %118 {offsets = [0, 128], sizes = [16, 32], strides = [1, 1]} : vector<16x192xf32> to vector<16x32xf32>
    %139 = vector.extract_strided_slice %125 {offsets = [0, 128], sizes = [20, 32], strides = [1, 1]} : vector<20x384xf32> to vector<20x32xf32>
    %cst_77 = arith.constant dense<0.000000e+00> : vector<16x20xf32>
    %140 = tpu.matmul %138, %139, %cst_77 {dimension_numbers = #tpu.dot_dimension_numbers<[1], [1], [0], [0], [0, 0, 1, 0], [], []>} : vector<16x32xf32>, vector<20x32xf32>, vector<16x20xf32> -> vector<16x20xf32>
    %141 = vector.extract_strided_slice %118 {offsets = [0, 160], sizes = [16, 32], strides = [1, 1]} : vector<16x192xf32> to vector<16x32xf32>
    %142 = vector.extract_strided_slice %125 {offsets = [0, 160], sizes = [20, 32], strides = [1, 1]} : vector<20x384xf32> to vector<20x32xf32>
    %cst_78 = arith.constant dense<0.000000e+00> : vector<16x20xf32>
    %143 = tpu.matmul %141, %142, %cst_78 {dimension_numbers = #tpu.dot_dimension_numbers<[1], [1], [0], [0], [0, 0, 1, 0], [], []>} : vector<16x32xf32>, vector<20x32xf32>, vector<16x20xf32> -> vector<16x20xf32>
    %144 = tpu.concatenate %128, %131, %134, %137, %140, %143 in 0 : vector<16x20xf32>, vector<16x20xf32>, vector<16x20xf32>, vector<16x20xf32>, vector<16x20xf32>, vector<16x20xf32> -> vector<96x20xf32>
    %cst_79 = arith.constant 0.242535621 : f32
    %145 = vector.broadcast %cst_79 : f32 to vector<96x20xf32>
    %146 = arith.mulf %144, %145 : vector<96x20xf32>
    %147 = arith.addf %146, %4 : vector<96x20xf32>
    %cst_80 = arith.constant dense<0xFF800000> : vector<96xf32>
    %148 = vector.multi_reduction <maximumf>, %147, %cst_80 [1] : vector<96x20xf32> to vector<96xf32>
    %149 = vector.shape_cast %148 : vector<96xf32> to vector<96x1xf32>
    %150 = vector.broadcast %149 : vector<96x1xf32> to vector<96x20xf32>
    %151 = arith.subf %147, %150 : vector<96x20xf32>
    %152 = math.exp %151 : vector<96x20xf32>
    %cst_81 = arith.constant dense<0.000000e+00> : vector<96xf32>
    %153 = vector.multi_reduction <add>, %152, %cst_81 [1] : vector<96x20xf32> to vector<96xf32>
    %154 = vector.shape_cast %153 : vector<96xf32> to vector<96x1xf32>
    %155 = tpu.reciprocal %154 {approx = true} : vector<96x1xf32> -> vector<96x1xf32>
    %156 = vector.broadcast %155 : vector<96x1xf32> to vector<96x20xf32>
    %157 = arith.mulf %152, %156 : vector<96x20xf32>
    %158 = vector.extract_strided_slice %157 {offsets = [0, 0], sizes = [16, 20], strides = [1, 1]} : vector<96x20xf32> to vector<16x20xf32>
    %159 = vector.extract_strided_slice %125 {offsets = [0, 192], sizes = [20, 32], strides = [1, 1]} : vector<20x384xf32> to vector<20x32xf32>
    %cst_82 = arith.constant dense<0.000000e+00> : vector<16x32xf32>
    %160 = tpu.matmul %158, %159, %cst_82 {dimension_numbers = #tpu.dot_dimension_numbers<[1], [0], [0], [1], [0, 0, 1, 1], [], []>} : vector<16x20xf32>, vector<20x32xf32>, vector<16x32xf32> -> vector<16x32xf32>
    %161 = vector.extract_strided_slice %157 {offsets = [16, 0], sizes = [16, 20], strides = [1, 1]} : vector<96x20xf32> to vector<16x20xf32>
    %162 = vector.extract_strided_slice %125 {offsets = [0, 224], sizes = [20, 32], strides = [1, 1]} : vector<20x384xf32> to vector<20x32xf32>
    %cst_83 = arith.constant dense<0.000000e+00> : vector<16x32xf32>
    %163 = tpu.matmul %161, %162, %cst_83 {dimension_numbers = #tpu.dot_dimension_numbers<[1], [0], [0], [1], [0, 0, 1, 1], [], []>} : vector<16x20xf32>, vector<20x32xf32>, vector<16x32xf32> -> vector<16x32xf32>
    %164 = vector.extract_strided_slice %157 {offsets = [32, 0], sizes = [16, 20], strides = [1, 1]} : vector<96x20xf32> to vector<16x20xf32>
    %165 = vector.extract_strided_slice %125 {offsets = [0, 256], sizes = [20, 32], strides = [1, 1]} : vector<20x384xf32> to vector<20x32xf32>
    %cst_84 = arith.constant dense<0.000000e+00> : vector<16x32xf32>
    %166 = tpu.matmul %164, %165, %cst_84 {dimension_numbers = #tpu.dot_dimension_numbers<[1], [0], [0], [1], [0, 0, 1, 1], [], []>} : vector<16x20xf32>, vector<20x32xf32>, vector<16x32xf32> -> vector<16x32xf32>
    %167 = vector.extract_strided_slice %157 {offsets = [48, 0], sizes = [16, 20], strides = [1, 1]} : vector<96x20xf32> to vector<16x20xf32>
    %168 = vector.extract_strided_slice %125 {offsets = [0, 288], sizes = [20, 32], strides = [1, 1]} : vector<20x384xf32> to vector<20x32xf32>
    %cst_85 = arith.constant dense<0.000000e+00> : vector<16x32xf32>
    %169 = tpu.matmul %167, %168, %cst_85 {dimension_numbers = #tpu.dot_dimension_numbers<[1], [0], [0], [1], [0, 0, 1, 1], [], []>} : vector<16x20xf32>, vector<20x32xf32>, vector<16x32xf32> -> vector<16x32xf32>
    %170 = vector.extract_strided_slice %157 {offsets = [64, 0], sizes = [16, 20], strides = [1, 1]} : vector<96x20xf32> to vector<16x20xf32>
    %171 = vector.extract_strided_slice %125 {offsets = [0, 320], sizes = [20, 32], strides = [1, 1]} : vector<20x384xf32> to vector<20x32xf32>
    %cst_86 = arith.constant dense<0.000000e+00> : vector<16x32xf32>
    %172 = tpu.matmul %170, %171, %cst_86 {dimension_numbers = #tpu.dot_dimension_numbers<[1], [0], [0], [1], [0, 0, 1, 1], [], []>} : vector<16x20xf32>, vector<20x32xf32>, vector<16x32xf32> -> vector<16x32xf32>
    %173 = vector.extract_strided_slice %157 {offsets = [80, 0], sizes = [16, 20], strides = [1, 1]} : vector<96x20xf32> to vector<16x20xf32>
    %174 = vector.extract_strided_slice %125 {offsets = [0, 352], sizes = [20, 32], strides = [1, 1]} : vector<20x384xf32> to vector<20x32xf32>
    %cst_87 = arith.constant dense<0.000000e+00> : vector<16x32xf32>
    %175 = tpu.matmul %173, %174, %cst_87 {dimension_numbers = #tpu.dot_dimension_numbers<[1], [0], [0], [1], [0, 0, 1, 1], [], []>} : vector<16x20xf32>, vector<20x32xf32>, vector<16x32xf32> -> vector<16x32xf32>
    %176 = tpu.concatenate %160, %163, %166, %169, %172, %175 in 1 : vector<16x32xf32>, vector<16x32xf32>, vector<16x32xf32>, vector<16x32xf32>, vector<16x32xf32>, vector<16x32xf32> -> vector<16x192xf32>
    %177 = arith.truncf %176 : vector<16x192xf32> to vector<16x192xbf16>
    %c0_88 = arith.constant 0 : index
    %c1_89 = arith.constant 1 : index
    %c0_90 = arith.constant 0 : index
    %c0_91 = arith.constant 0 : index
    %178 = vector.load %arg7[%c0_88, %c1_89, %c0_90, %c0_91] : memref<2x2x192x128xbf16, #tpu.memory_space<vmem>>, vector<1x1x192x128xbf16>
    %179 = vector.shape_cast %178 : vector<1x1x192x128xbf16> to vector<192x128xbf16>
    %cst_92 = arith.constant dense<0.000000e+00> : vector<16x128xf32>
    %180 = tpu.matmul %177, %179, %cst_92 {dimension_numbers = #tpu.dot_dimension_numbers<[1], [0], [0], [1], [0, 0, 1, 1], [], []>} : vector<16x192xbf16>, vector<192x128xbf16>, vector<16x128xf32> -> vector<16x128xf32>
    %c1_93 = arith.constant 1 : index
    %c0_94 = arith.constant 0 : index
    %c0_95 = arith.constant 0 : index
    %181 = vector.load %arg14[%c1_93, %c0_94, %c0_95] : memref<19x1x128xf32, #tpu.memory_space<vmem>>, vector<1x1x128xf32>
    %182 = vector.shape_cast %181 : vector<1x1x128xf32> to vector<1x128xf32>
    %183 = vector.broadcast %182 : vector<1x128xf32> to vector<16x128xf32>
    %184 = arith.addf %180, %183 : vector<16x128xf32>
    %185 = arith.addf %110, %184 : vector<16x128xf32>
    %cst_96 = arith.constant dense<0.000000e+00> : vector<16xf32>
    %186 = vector.multi_reduction <add>, %185, %cst_96 [1] : vector<16x128xf32> to vector<16xf32>
    %187 = vector.shape_cast %186 : vector<16xf32> to vector<16x1xf32>
    %cst_97 = arith.constant 0.00980392192 : f32
    %188 = vector.broadcast %cst_97 : f32 to vector<16x1xf32>
    %189 = arith.mulf %187, %188 : vector<16x1xf32>
    %190 = vector.broadcast %189 : vector<16x1xf32> to vector<16x128xf32>
    %191 = arith.subf %185, %190 : vector<16x128xf32>
    %192 = vector.broadcast %9 : vector<1x128xf32> to vector<16x128xf32>
    %193 = arith.mulf %191, %192 : vector<16x128xf32>
    %194 = arith.mulf %193, %193 : vector<16x128xf32>
    %cst_98 = arith.constant dense<0.000000e+00> : vector<16xf32>
    %195 = vector.multi_reduction <add>, %194, %cst_98 [1] : vector<16x128xf32> to vector<16xf32>
    %196 = vector.shape_cast %195 : vector<16xf32> to vector<16x1xf32>
    %cst_99 = arith.constant 0.00980392192 : f32
    %197 = vector.broadcast %cst_99 : f32 to vector<16x1xf32>
    %198 = arith.mulf %196, %197 : vector<16x1xf32>
    %cst_100 = arith.constant 9.99999974E-6 : f32
    %199 = vector.broadcast %cst_100 : f32 to vector<16x1xf32>
    %200 = arith.addf %198, %199 : vector<16x1xf32>
    %201 = math.rsqrt %200 : vector<16x1xf32>
    %202 = vector.broadcast %201 : vector<16x1xf32> to vector<16x128xf32>
    %203 = arith.mulf %193, %202 : vector<16x128xf32>
    %c5 = arith.constant 5 : index
    %c0_101 = arith.constant 0 : index
    %c0_102 = arith.constant 0 : index
    %204 = vector.load %arg14[%c5, %c0_101, %c0_102] : memref<19x1x128xf32, #tpu.memory_space<vmem>>, vector<1x1x128xf32>
    %205 = vector.shape_cast %204 : vector<1x1x128xf32> to vector<1x128xf32>
    %206 = vector.broadcast %205 : vector<1x128xf32> to vector<16x128xf32>
    %207 = arith.mulf %203, %206 : vector<16x128xf32>
    %c6 = arith.constant 6 : index
    %c0_103 = arith.constant 0 : index
    %c0_104 = arith.constant 0 : index
    %208 = vector.load %arg14[%c6, %c0_103, %c0_104] : memref<19x1x128xf32, #tpu.memory_space<vmem>>, vector<1x1x128xf32>
    %209 = vector.shape_cast %208 : vector<1x1x128xf32> to vector<1x128xf32>
    %210 = vector.broadcast %209 : vector<1x128xf32> to vector<16x128xf32>
    %211 = arith.addf %207, %210 : vector<16x128xf32>
    %212 = arith.truncf %211 : vector<16x128xf32> to vector<16x128xbf16>
    %c0_105 = arith.constant 0 : index
    %c0_106 = arith.constant 0 : index
    %c0_107 = arith.constant 0 : index
    %213 = vector.load %arg10[%c0_105, %c0_106, %c0_107] : memref<2x128x2048xbf16, #tpu.memory_space<vmem>>, vector<1x128x2048xbf16>
    %214 = vector.shape_cast %213 : vector<1x128x2048xbf16> to vector<128x2048xbf16>
    %cst_108 = arith.constant dense<0.000000e+00> : vector<16x2048xf32>
    %215 = tpu.matmul %212, %214, %cst_108 {dimension_numbers = #tpu.dot_dimension_numbers<[1], [0], [0], [1], [0, 0, 1, 1], [], []>} : vector<16x128xbf16>, vector<128x2048xbf16>, vector<16x2048xf32> -> vector<16x2048xf32>
    %c0_109 = arith.constant 0 : index
    %c0_110 = arith.constant 0 : index
    %c0_111 = arith.constant 0 : index
    %216 = vector.load %arg11[%c0_109, %c0_110, %c0_111] : memref<2x1x2048xf32, #tpu.memory_space<vmem>>, vector<1x1x2048xf32>
    %217 = vector.shape_cast %216 : vector<1x1x2048xf32> to vector<1x2048xf32>
    %218 = vector.broadcast %217 : vector<1x2048xf32> to vector<16x2048xf32>
    %219 = arith.addf %215, %218 : vector<16x2048xf32>
    %cst_112 = arith.constant 0.000000e+00 : f32
    %220 = vector.broadcast %cst_112 : f32 to vector<16x2048xf32>
    %221 = arith.maximumf %219, %220 : vector<16x2048xf32>
    %222 = arith.truncf %221 : vector<16x2048xf32> to vector<16x2048xbf16>
    %c0_113 = arith.constant 0 : index
    %c0_114 = arith.constant 0 : index
    %c0_115 = arith.constant 0 : index
    %223 = vector.load %arg12[%c0_113, %c0_114, %c0_115] : memref<2x2048x128xbf16, #tpu.memory_space<vmem>>, vector<1x2048x128xbf16>
    %224 = vector.shape_cast %223 : vector<1x2048x128xbf16> to vector<2048x128xbf16>
    %cst_116 = arith.constant dense<0.000000e+00> : vector<16x128xf32>
    %225 = tpu.matmul %222, %224, %cst_116 {dimension_numbers = #tpu.dot_dimension_numbers<[1], [0], [0], [1], [0, 0, 1, 1], [], []>} : vector<16x2048xbf16>, vector<2048x128xbf16>, vector<16x128xf32> -> vector<16x128xf32>
    %c2 = arith.constant 2 : index
    %c0_117 = arith.constant 0 : index
    %c0_118 = arith.constant 0 : index
    %226 = vector.load %arg14[%c2, %c0_117, %c0_118] : memref<19x1x128xf32, #tpu.memory_space<vmem>>, vector<1x1x128xf32>
    %227 = vector.shape_cast %226 : vector<1x1x128xf32> to vector<1x128xf32>
    %228 = vector.broadcast %227 : vector<1x128xf32> to vector<16x128xf32>
    %229 = arith.addf %225, %228 : vector<16x128xf32>
    %230 = arith.addf %211, %229 : vector<16x128xf32>
    %cst_119 = arith.constant dense<0.000000e+00> : vector<16xf32>
    %231 = vector.multi_reduction <add>, %230, %cst_119 [1] : vector<16x128xf32> to vector<16xf32>
    %232 = vector.shape_cast %231 : vector<16xf32> to vector<16x1xf32>
    %cst_120 = arith.constant 0.00980392192 : f32
    %233 = vector.broadcast %cst_120 : f32 to vector<16x1xf32>
    %234 = arith.mulf %232, %233 : vector<16x1xf32>
    %235 = vector.broadcast %234 : vector<16x1xf32> to vector<16x128xf32>
    %236 = arith.subf %230, %235 : vector<16x128xf32>
    %237 = vector.broadcast %9 : vector<1x128xf32> to vector<16x128xf32>
    %238 = arith.mulf %236, %237 : vector<16x128xf32>
    %239 = arith.mulf %238, %238 : vector<16x128xf32>
    %cst_121 = arith.constant dense<0.000000e+00> : vector<16xf32>
    %240 = vector.multi_reduction <add>, %239, %cst_121 [1] : vector<16x128xf32> to vector<16xf32>
    %241 = vector.shape_cast %240 : vector<16xf32> to vector<16x1xf32>
    %cst_122 = arith.constant 0.00980392192 : f32
    %242 = vector.broadcast %cst_122 : f32 to vector<16x1xf32>
    %243 = arith.mulf %241, %242 : vector<16x1xf32>
    %cst_123 = arith.constant 9.99999974E-6 : f32
    %244 = vector.broadcast %cst_123 : f32 to vector<16x1xf32>
    %245 = arith.addf %243, %244 : vector<16x1xf32>
    %246 = math.rsqrt %245 : vector<16x1xf32>
    %247 = vector.broadcast %246 : vector<16x1xf32> to vector<16x128xf32>
    %248 = arith.mulf %238, %247 : vector<16x128xf32>
    %c7 = arith.constant 7 : index
    %c0_124 = arith.constant 0 : index
    %c0_125 = arith.constant 0 : index
    %249 = vector.load %arg14[%c7, %c0_124, %c0_125] : memref<19x1x128xf32, #tpu.memory_space<vmem>>, vector<1x1x128xf32>
    %250 = vector.shape_cast %249 : vector<1x1x128xf32> to vector<1x128xf32>
    %251 = vector.broadcast %250 : vector<1x128xf32> to vector<16x128xf32>
    %252 = arith.mulf %248, %251 : vector<16x128xf32>
    %c8 = arith.constant 8 : index
    %c0_126 = arith.constant 0 : index
    %c0_127 = arith.constant 0 : index
    %253 = vector.load %arg14[%c8, %c0_126, %c0_127] : memref<19x1x128xf32, #tpu.memory_space<vmem>>, vector<1x1x128xf32>
    %254 = vector.shape_cast %253 : vector<1x1x128xf32> to vector<1x128xf32>
    %255 = vector.broadcast %254 : vector<1x128xf32> to vector<16x128xf32>
    %256 = arith.addf %252, %255 : vector<16x128xf32>
    %257 = arith.truncf %256 : vector<16x128xf32> to vector<16x128xbf16>
    %c1_128 = arith.constant 1 : index
    %c0_129 = arith.constant 0 : index
    %c0_130 = arith.constant 0 : index
    %c0_131 = arith.constant 0 : index
    %258 = vector.load %arg5[%c1_128, %c0_129, %c0_130, %c0_131] : memref<2x2x128x192xbf16, #tpu.memory_space<vmem>>, vector<1x1x128x192xbf16>
    %259 = vector.shape_cast %258 : vector<1x1x128x192xbf16> to vector<128x192xbf16>
    %cst_132 = arith.constant dense<0.000000e+00> : vector<16x192xf32>
    %260 = tpu.matmul %257, %259, %cst_132 {dimension_numbers = #tpu.dot_dimension_numbers<[1], [0], [0], [1], [0, 0, 1, 1], [], []>} : vector<16x128xbf16>, vector<128x192xbf16>, vector<16x192xf32> -> vector<16x192xf32>
    %c1_133 = arith.constant 1 : index
    %c0_134 = arith.constant 0 : index
    %c0_135 = arith.constant 0 : index
    %c0_136 = arith.constant 0 : index
    %261 = vector.load %arg8[%c1_133, %c0_134, %c0_135, %c0_136] : memref<2x2x1x192xf32, #tpu.memory_space<vmem>>, vector<1x1x1x192xf32>
    %262 = vector.shape_cast %261 : vector<1x1x1x192xf32> to vector<1x192xf32>
    %263 = vector.broadcast %262 : vector<1x192xf32> to vector<16x192xf32>
    %264 = arith.addf %260, %263 : vector<16x192xf32>
    %c1_137 = arith.constant 1 : index
    %c0_138 = arith.constant 0 : index
    %c0_139 = arith.constant 0 : index
    %c0_140 = arith.constant 0 : index
    %265 = vector.load %arg6[%c1_137, %c0_138, %c0_139, %c0_140] : memref<2x2x128x384xbf16, #tpu.memory_space<vmem>>, vector<1x1x128x384xbf16>
    %266 = vector.shape_cast %265 : vector<1x1x128x384xbf16> to vector<128x384xbf16>
    %cst_141 = arith.constant dense<0.000000e+00> : vector<16x384xf32>
    %267 = tpu.matmul %257, %266, %cst_141 {dimension_numbers = #tpu.dot_dimension_numbers<[1], [0], [0], [1], [0, 0, 1, 1], [], []>} : vector<16x128xbf16>, vector<128x384xbf16>, vector<16x384xf32> -> vector<16x384xf32>
    %c1_142 = arith.constant 1 : index
    %c0_143 = arith.constant 0 : index
    %c0_144 = arith.constant 0 : index
    %c0_145 = arith.constant 0 : index
    %268 = vector.load %arg9[%c1_142, %c0_143, %c0_144, %c0_145] : memref<2x2x1x384xf32, #tpu.memory_space<vmem>>, vector<1x1x1x384xf32>
    %269 = vector.shape_cast %268 : vector<1x1x1x384xf32> to vector<1x384xf32>
    %270 = vector.broadcast %269 : vector<1x384xf32> to vector<16x384xf32>
    %271 = arith.addf %267, %270 : vector<16x384xf32>
    %272 = vector.extract_strided_slice %264 {offsets = [0, 0], sizes = [16, 32], strides = [1, 1]} : vector<16x192xf32> to vector<16x32xf32>
    %273 = vector.extract_strided_slice %271 {offsets = [0, 0], sizes = [16, 32], strides = [1, 1]} : vector<16x384xf32> to vector<16x32xf32>
    %cst_146 = arith.constant dense<0.000000e+00> : vector<16x16xf32>
    %274 = tpu.matmul %272, %273, %cst_146 {dimension_numbers = #tpu.dot_dimension_numbers<[1], [1], [0], [0], [0, 0, 1, 0], [], []>} : vector<16x32xf32>, vector<16x32xf32>, vector<16x16xf32> -> vector<16x16xf32>
    %275 = vector.extract_strided_slice %264 {offsets = [0, 32], sizes = [16, 32], strides = [1, 1]} : vector<16x192xf32> to vector<16x32xf32>
    %276 = vector.extract_strided_slice %271 {offsets = [0, 32], sizes = [16, 32], strides = [1, 1]} : vector<16x384xf32> to vector<16x32xf32>
    %cst_147 = arith.constant dense<0.000000e+00> : vector<16x16xf32>
    %277 = tpu.matmul %275, %276, %cst_147 {dimension_numbers = #tpu.dot_dimension_numbers<[1], [1], [0], [0], [0, 0, 1, 0], [], []>} : vector<16x32xf32>, vector<16x32xf32>, vector<16x16xf32> -> vector<16x16xf32>
    %278 = vector.extract_strided_slice %264 {offsets = [0, 64], sizes = [16, 32], strides = [1, 1]} : vector<16x192xf32> to vector<16x32xf32>
    %279 = vector.extract_strided_slice %271 {offsets = [0, 64], sizes = [16, 32], strides = [1, 1]} : vector<16x384xf32> to vector<16x32xf32>
    %cst_148 = arith.constant dense<0.000000e+00> : vector<16x16xf32>
    %280 = tpu.matmul %278, %279, %cst_148 {dimension_numbers = #tpu.dot_dimension_numbers<[1], [1], [0], [0], [0, 0, 1, 0], [], []>} : vector<16x32xf32>, vector<16x32xf32>, vector<16x16xf32> -> vector<16x16xf32>
    %281 = vector.extract_strided_slice %264 {offsets = [0, 96], sizes = [16, 32], strides = [1, 1]} : vector<16x192xf32> to vector<16x32xf32>
    %282 = vector.extract_strided_slice %271 {offsets = [0, 96], sizes = [16, 32], strides = [1, 1]} : vector<16x384xf32> to vector<16x32xf32>
    %cst_149 = arith.constant dense<0.000000e+00> : vector<16x16xf32>
    %283 = tpu.matmul %281, %282, %cst_149 {dimension_numbers = #tpu.dot_dimension_numbers<[1], [1], [0], [0], [0, 0, 1, 0], [], []>} : vector<16x32xf32>, vector<16x32xf32>, vector<16x16xf32> -> vector<16x16xf32>
    %284 = vector.extract_strided_slice %264 {offsets = [0, 128], sizes = [16, 32], strides = [1, 1]} : vector<16x192xf32> to vector<16x32xf32>
    %285 = vector.extract_strided_slice %271 {offsets = [0, 128], sizes = [16, 32], strides = [1, 1]} : vector<16x384xf32> to vector<16x32xf32>
    %cst_150 = arith.constant dense<0.000000e+00> : vector<16x16xf32>
    %286 = tpu.matmul %284, %285, %cst_150 {dimension_numbers = #tpu.dot_dimension_numbers<[1], [1], [0], [0], [0, 0, 1, 0], [], []>} : vector<16x32xf32>, vector<16x32xf32>, vector<16x16xf32> -> vector<16x16xf32>
    %287 = vector.extract_strided_slice %264 {offsets = [0, 160], sizes = [16, 32], strides = [1, 1]} : vector<16x192xf32> to vector<16x32xf32>
    %288 = vector.extract_strided_slice %271 {offsets = [0, 160], sizes = [16, 32], strides = [1, 1]} : vector<16x384xf32> to vector<16x32xf32>
    %cst_151 = arith.constant dense<0.000000e+00> : vector<16x16xf32>
    %289 = tpu.matmul %287, %288, %cst_151 {dimension_numbers = #tpu.dot_dimension_numbers<[1], [1], [0], [0], [0, 0, 1, 0], [], []>} : vector<16x32xf32>, vector<16x32xf32>, vector<16x16xf32> -> vector<16x16xf32>
    %290 = tpu.concatenate %274, %277, %280, %283, %286, %289 in 0 : vector<16x16xf32>, vector<16x16xf32>, vector<16x16xf32>, vector<16x16xf32>, vector<16x16xf32>, vector<16x16xf32> -> vector<96x16xf32>
    %cst_152 = arith.constant 0.242535621 : f32
    %291 = vector.broadcast %cst_152 : f32 to vector<96x16xf32>
    %292 = arith.mulf %290, %291 : vector<96x16xf32>
    %293 = arith.addf %292, %3 : vector<96x16xf32>
    %cst_153 = arith.constant dense<0xFF800000> : vector<96xf32>
    %294 = vector.multi_reduction <maximumf>, %293, %cst_153 [1] : vector<96x16xf32> to vector<96xf32>
    %295 = vector.shape_cast %294 : vector<96xf32> to vector<96x1xf32>
    %296 = vector.broadcast %295 : vector<96x1xf32> to vector<96x16xf32>
    %297 = arith.subf %293, %296 : vector<96x16xf32>
    %298 = math.exp %297 : vector<96x16xf32>
    %cst_154 = arith.constant dense<0.000000e+00> : vector<96xf32>
    %299 = vector.multi_reduction <add>, %298, %cst_154 [1] : vector<96x16xf32> to vector<96xf32>
    %300 = vector.shape_cast %299 : vector<96xf32> to vector<96x1xf32>
    %301 = tpu.reciprocal %300 {approx = true} : vector<96x1xf32> -> vector<96x1xf32>
    %302 = vector.broadcast %301 : vector<96x1xf32> to vector<96x16xf32>
    %303 = arith.mulf %298, %302 : vector<96x16xf32>
    %304 = vector.extract_strided_slice %303 {offsets = [0, 0], sizes = [16, 16], strides = [1, 1]} : vector<96x16xf32> to vector<16x16xf32>
    %305 = vector.extract_strided_slice %271 {offsets = [0, 192], sizes = [16, 32], strides = [1, 1]} : vector<16x384xf32> to vector<16x32xf32>
    %cst_155 = arith.constant dense<0.000000e+00> : vector<16x32xf32>
    %306 = tpu.matmul %304, %305, %cst_155 {dimension_numbers = #tpu.dot_dimension_numbers<[1], [0], [0], [1], [0, 0, 1, 1], [], []>} : vector<16x16xf32>, vector<16x32xf32>, vector<16x32xf32> -> vector<16x32xf32>
    %307 = vector.extract_strided_slice %303 {offsets = [16, 0], sizes = [16, 16], strides = [1, 1]} : vector<96x16xf32> to vector<16x16xf32>
    %308 = vector.extract_strided_slice %271 {offsets = [0, 224], sizes = [16, 32], strides = [1, 1]} : vector<16x384xf32> to vector<16x32xf32>
    %cst_156 = arith.constant dense<0.000000e+00> : vector<16x32xf32>
    %309 = tpu.matmul %307, %308, %cst_156 {dimension_numbers = #tpu.dot_dimension_numbers<[1], [0], [0], [1], [0, 0, 1, 1], [], []>} : vector<16x16xf32>, vector<16x32xf32>, vector<16x32xf32> -> vector<16x32xf32>
    %310 = vector.extract_strided_slice %303 {offsets = [32, 0], sizes = [16, 16], strides = [1, 1]} : vector<96x16xf32> to vector<16x16xf32>
    %311 = vector.extract_strided_slice %271 {offsets = [0, 256], sizes = [16, 32], strides = [1, 1]} : vector<16x384xf32> to vector<16x32xf32>
    %cst_157 = arith.constant dense<0.000000e+00> : vector<16x32xf32>
    %312 = tpu.matmul %310, %311, %cst_157 {dimension_numbers = #tpu.dot_dimension_numbers<[1], [0], [0], [1], [0, 0, 1, 1], [], []>} : vector<16x16xf32>, vector<16x32xf32>, vector<16x32xf32> -> vector<16x32xf32>
    %313 = vector.extract_strided_slice %303 {offsets = [48, 0], sizes = [16, 16], strides = [1, 1]} : vector<96x16xf32> to vector<16x16xf32>
    %314 = vector.extract_strided_slice %271 {offsets = [0, 288], sizes = [16, 32], strides = [1, 1]} : vector<16x384xf32> to vector<16x32xf32>
    %cst_158 = arith.constant dense<0.000000e+00> : vector<16x32xf32>
    %315 = tpu.matmul %313, %314, %cst_158 {dimension_numbers = #tpu.dot_dimension_numbers<[1], [0], [0], [1], [0, 0, 1, 1], [], []>} : vector<16x16xf32>, vector<16x32xf32>, vector<16x32xf32> -> vector<16x32xf32>
    %316 = vector.extract_strided_slice %303 {offsets = [64, 0], sizes = [16, 16], strides = [1, 1]} : vector<96x16xf32> to vector<16x16xf32>
    %317 = vector.extract_strided_slice %271 {offsets = [0, 320], sizes = [16, 32], strides = [1, 1]} : vector<16x384xf32> to vector<16x32xf32>
    %cst_159 = arith.constant dense<0.000000e+00> : vector<16x32xf32>
    %318 = tpu.matmul %316, %317, %cst_159 {dimension_numbers = #tpu.dot_dimension_numbers<[1], [0], [0], [1], [0, 0, 1, 1], [], []>} : vector<16x16xf32>, vector<16x32xf32>, vector<16x32xf32> -> vector<16x32xf32>
    %319 = vector.extract_strided_slice %303 {offsets = [80, 0], sizes = [16, 16], strides = [1, 1]} : vector<96x16xf32> to vector<16x16xf32>
    %320 = vector.extract_strided_slice %271 {offsets = [0, 352], sizes = [16, 32], strides = [1, 1]} : vector<16x384xf32> to vector<16x32xf32>
    %cst_160 = arith.constant dense<0.000000e+00> : vector<16x32xf32>
    %321 = tpu.matmul %319, %320, %cst_160 {dimension_numbers = #tpu.dot_dimension_numbers<[1], [0], [0], [1], [0, 0, 1, 1], [], []>} : vector<16x16xf32>, vector<16x32xf32>, vector<16x32xf32> -> vector<16x32xf32>
    %322 = tpu.concatenate %306, %309, %312, %315, %318, %321 in 1 : vector<16x32xf32>, vector<16x32xf32>, vector<16x32xf32>, vector<16x32xf32>, vector<16x32xf32>, vector<16x32xf32> -> vector<16x192xf32>
    %323 = arith.truncf %322 : vector<16x192xf32> to vector<16x192xbf16>
    %c1_161 = arith.constant 1 : index
    %c0_162 = arith.constant 0 : index
    %c0_163 = arith.constant 0 : index
    %c0_164 = arith.constant 0 : index
    %324 = vector.load %arg7[%c1_161, %c0_162, %c0_163, %c0_164] : memref<2x2x192x128xbf16, #tpu.memory_space<vmem>>, vector<1x1x192x128xbf16>
    %325 = vector.shape_cast %324 : vector<1x1x192x128xbf16> to vector<192x128xbf16>
    %cst_165 = arith.constant dense<0.000000e+00> : vector<16x128xf32>
    %326 = tpu.matmul %323, %325, %cst_165 {dimension_numbers = #tpu.dot_dimension_numbers<[1], [0], [0], [1], [0, 0, 1, 1], [], []>} : vector<16x192xbf16>, vector<192x128xbf16>, vector<16x128xf32> -> vector<16x128xf32>
    %c9 = arith.constant 9 : index
    %c0_166 = arith.constant 0 : index
    %c0_167 = arith.constant 0 : index
    %327 = vector.load %arg14[%c9, %c0_166, %c0_167] : memref<19x1x128xf32, #tpu.memory_space<vmem>>, vector<1x1x128xf32>
    %328 = vector.shape_cast %327 : vector<1x1x128xf32> to vector<1x128xf32>
    %329 = vector.broadcast %328 : vector<1x128xf32> to vector<16x128xf32>
    %330 = arith.addf %326, %329 : vector<16x128xf32>
    %331 = arith.addf %256, %330 : vector<16x128xf32>
    %cst_168 = arith.constant dense<0.000000e+00> : vector<16xf32>
    %332 = vector.multi_reduction <add>, %331, %cst_168 [1] : vector<16x128xf32> to vector<16xf32>
    %333 = vector.shape_cast %332 : vector<16xf32> to vector<16x1xf32>
    %cst_169 = arith.constant 0.00980392192 : f32
    %334 = vector.broadcast %cst_169 : f32 to vector<16x1xf32>
    %335 = arith.mulf %333, %334 : vector<16x1xf32>
    %336 = vector.broadcast %335 : vector<16x1xf32> to vector<16x128xf32>
    %337 = arith.subf %331, %336 : vector<16x128xf32>
    %338 = vector.broadcast %9 : vector<1x128xf32> to vector<16x128xf32>
    %339 = arith.mulf %337, %338 : vector<16x128xf32>
    %340 = arith.mulf %339, %339 : vector<16x128xf32>
    %cst_170 = arith.constant dense<0.000000e+00> : vector<16xf32>
    %341 = vector.multi_reduction <add>, %340, %cst_170 [1] : vector<16x128xf32> to vector<16xf32>
    %342 = vector.shape_cast %341 : vector<16xf32> to vector<16x1xf32>
    %cst_171 = arith.constant 0.00980392192 : f32
    %343 = vector.broadcast %cst_171 : f32 to vector<16x1xf32>
    %344 = arith.mulf %342, %343 : vector<16x1xf32>
    %cst_172 = arith.constant 9.99999974E-6 : f32
    %345 = vector.broadcast %cst_172 : f32 to vector<16x1xf32>
    %346 = arith.addf %344, %345 : vector<16x1xf32>
    %347 = math.rsqrt %346 : vector<16x1xf32>
    %348 = vector.broadcast %347 : vector<16x1xf32> to vector<16x128xf32>
    %349 = arith.mulf %339, %348 : vector<16x128xf32>
    %c12 = arith.constant 12 : index
    %c0_173 = arith.constant 0 : index
    %c0_174 = arith.constant 0 : index
    %350 = vector.load %arg14[%c12, %c0_173, %c0_174] : memref<19x1x128xf32, #tpu.memory_space<vmem>>, vector<1x1x128xf32>
    %351 = vector.shape_cast %350 : vector<1x1x128xf32> to vector<1x128xf32>
    %352 = vector.broadcast %351 : vector<1x128xf32> to vector<16x128xf32>
    %353 = arith.mulf %349, %352 : vector<16x128xf32>
    %c13 = arith.constant 13 : index
    %c0_175 = arith.constant 0 : index
    %c0_176 = arith.constant 0 : index
    %354 = vector.load %arg14[%c13, %c0_175, %c0_176] : memref<19x1x128xf32, #tpu.memory_space<vmem>>, vector<1x1x128xf32>
    %355 = vector.shape_cast %354 : vector<1x1x128xf32> to vector<1x128xf32>
    %356 = vector.broadcast %355 : vector<1x128xf32> to vector<16x128xf32>
    %357 = arith.addf %353, %356 : vector<16x128xf32>
    %358 = arith.truncf %357 : vector<16x128xf32> to vector<16x128xbf16>
    %c1_177 = arith.constant 1 : index
    %c1_178 = arith.constant 1 : index
    %c0_179 = arith.constant 0 : index
    %c0_180 = arith.constant 0 : index
    %359 = vector.load %arg5[%c1_177, %c1_178, %c0_179, %c0_180] : memref<2x2x128x192xbf16, #tpu.memory_space<vmem>>, vector<1x1x128x192xbf16>
    %360 = vector.shape_cast %359 : vector<1x1x128x192xbf16> to vector<128x192xbf16>
    %cst_181 = arith.constant dense<0.000000e+00> : vector<16x192xf32>
    %361 = tpu.matmul %358, %360, %cst_181 {dimension_numbers = #tpu.dot_dimension_numbers<[1], [0], [0], [1], [0, 0, 1, 1], [], []>} : vector<16x128xbf16>, vector<128x192xbf16>, vector<16x192xf32> -> vector<16x192xf32>
    %c1_182 = arith.constant 1 : index
    %c1_183 = arith.constant 1 : index
    %c0_184 = arith.constant 0 : index
    %c0_185 = arith.constant 0 : index
    %362 = vector.load %arg8[%c1_182, %c1_183, %c0_184, %c0_185] : memref<2x2x1x192xf32, #tpu.memory_space<vmem>>, vector<1x1x1x192xf32>
    %363 = vector.shape_cast %362 : vector<1x1x1x192xf32> to vector<1x192xf32>
    %364 = vector.broadcast %363 : vector<1x192xf32> to vector<16x192xf32>
    %365 = arith.addf %361, %364 : vector<16x192xf32>
    %c1_186 = arith.constant 1 : index
    %c1_187 = arith.constant 1 : index
    %c0_188 = arith.constant 0 : index
    %c0_189 = arith.constant 0 : index
    %366 = vector.load %arg6[%c1_186, %c1_187, %c0_188, %c0_189] : memref<2x2x128x384xbf16, #tpu.memory_space<vmem>>, vector<1x1x128x384xbf16>
    %367 = vector.shape_cast %366 : vector<1x1x128x384xbf16> to vector<128x384xbf16>
    %cst_190 = arith.constant dense<0.000000e+00> : vector<20x384xf32>
    %368 = tpu.matmul %2, %367, %cst_190 {dimension_numbers = #tpu.dot_dimension_numbers<[1], [0], [0], [1], [0, 0, 1, 1], [], []>} : vector<20x128xbf16>, vector<128x384xbf16>, vector<20x384xf32> -> vector<20x384xf32>
    %c1_191 = arith.constant 1 : index
    %c1_192 = arith.constant 1 : index
    %c0_193 = arith.constant 0 : index
    %c0_194 = arith.constant 0 : index
    %369 = vector.load %arg9[%c1_191, %c1_192, %c0_193, %c0_194] : memref<2x2x1x384xf32, #tpu.memory_space<vmem>>, vector<1x1x1x384xf32>
    %370 = vector.shape_cast %369 : vector<1x1x1x384xf32> to vector<1x384xf32>
    %371 = vector.broadcast %370 : vector<1x384xf32> to vector<20x384xf32>
    %372 = arith.addf %368, %371 : vector<20x384xf32>
    %373 = vector.extract_strided_slice %365 {offsets = [0, 0], sizes = [16, 32], strides = [1, 1]} : vector<16x192xf32> to vector<16x32xf32>
    %374 = vector.extract_strided_slice %372 {offsets = [0, 0], sizes = [20, 32], strides = [1, 1]} : vector<20x384xf32> to vector<20x32xf32>
    %cst_195 = arith.constant dense<0.000000e+00> : vector<16x20xf32>
    %375 = tpu.matmul %373, %374, %cst_195 {dimension_numbers = #tpu.dot_dimension_numbers<[1], [1], [0], [0], [0, 0, 1, 0], [], []>} : vector<16x32xf32>, vector<20x32xf32>, vector<16x20xf32> -> vector<16x20xf32>
    %376 = vector.extract_strided_slice %365 {offsets = [0, 32], sizes = [16, 32], strides = [1, 1]} : vector<16x192xf32> to vector<16x32xf32>
    %377 = vector.extract_strided_slice %372 {offsets = [0, 32], sizes = [20, 32], strides = [1, 1]} : vector<20x384xf32> to vector<20x32xf32>
    %cst_196 = arith.constant dense<0.000000e+00> : vector<16x20xf32>
    %378 = tpu.matmul %376, %377, %cst_196 {dimension_numbers = #tpu.dot_dimension_numbers<[1], [1], [0], [0], [0, 0, 1, 0], [], []>} : vector<16x32xf32>, vector<20x32xf32>, vector<16x20xf32> -> vector<16x20xf32>
    %379 = vector.extract_strided_slice %365 {offsets = [0, 64], sizes = [16, 32], strides = [1, 1]} : vector<16x192xf32> to vector<16x32xf32>
    %380 = vector.extract_strided_slice %372 {offsets = [0, 64], sizes = [20, 32], strides = [1, 1]} : vector<20x384xf32> to vector<20x32xf32>
    %cst_197 = arith.constant dense<0.000000e+00> : vector<16x20xf32>
    %381 = tpu.matmul %379, %380, %cst_197 {dimension_numbers = #tpu.dot_dimension_numbers<[1], [1], [0], [0], [0, 0, 1, 0], [], []>} : vector<16x32xf32>, vector<20x32xf32>, vector<16x20xf32> -> vector<16x20xf32>
    %382 = vector.extract_strided_slice %365 {offsets = [0, 96], sizes = [16, 32], strides = [1, 1]} : vector<16x192xf32> to vector<16x32xf32>
    %383 = vector.extract_strided_slice %372 {offsets = [0, 96], sizes = [20, 32], strides = [1, 1]} : vector<20x384xf32> to vector<20x32xf32>
    %cst_198 = arith.constant dense<0.000000e+00> : vector<16x20xf32>
    %384 = tpu.matmul %382, %383, %cst_198 {dimension_numbers = #tpu.dot_dimension_numbers<[1], [1], [0], [0], [0, 0, 1, 0], [], []>} : vector<16x32xf32>, vector<20x32xf32>, vector<16x20xf32> -> vector<16x20xf32>
    %385 = vector.extract_strided_slice %365 {offsets = [0, 128], sizes = [16, 32], strides = [1, 1]} : vector<16x192xf32> to vector<16x32xf32>
    %386 = vector.extract_strided_slice %372 {offsets = [0, 128], sizes = [20, 32], strides = [1, 1]} : vector<20x384xf32> to vector<20x32xf32>
    %cst_199 = arith.constant dense<0.000000e+00> : vector<16x20xf32>
    %387 = tpu.matmul %385, %386, %cst_199 {dimension_numbers = #tpu.dot_dimension_numbers<[1], [1], [0], [0], [0, 0, 1, 0], [], []>} : vector<16x32xf32>, vector<20x32xf32>, vector<16x20xf32> -> vector<16x20xf32>
    %388 = vector.extract_strided_slice %365 {offsets = [0, 160], sizes = [16, 32], strides = [1, 1]} : vector<16x192xf32> to vector<16x32xf32>
    %389 = vector.extract_strided_slice %372 {offsets = [0, 160], sizes = [20, 32], strides = [1, 1]} : vector<20x384xf32> to vector<20x32xf32>
    %cst_200 = arith.constant dense<0.000000e+00> : vector<16x20xf32>
    %390 = tpu.matmul %388, %389, %cst_200 {dimension_numbers = #tpu.dot_dimension_numbers<[1], [1], [0], [0], [0, 0, 1, 0], [], []>} : vector<16x32xf32>, vector<20x32xf32>, vector<16x20xf32> -> vector<16x20xf32>
    %391 = tpu.concatenate %375, %378, %381, %384, %387, %390 in 0 : vector<16x20xf32>, vector<16x20xf32>, vector<16x20xf32>, vector<16x20xf32>, vector<16x20xf32>, vector<16x20xf32> -> vector<96x20xf32>
    %cst_201 = arith.constant 0.242535621 : f32
    %392 = vector.broadcast %cst_201 : f32 to vector<96x20xf32>
    %393 = arith.mulf %391, %392 : vector<96x20xf32>
    %394 = arith.addf %393, %4 : vector<96x20xf32>
    %cst_202 = arith.constant dense<0xFF800000> : vector<96xf32>
    %395 = vector.multi_reduction <maximumf>, %394, %cst_202 [1] : vector<96x20xf32> to vector<96xf32>
    %396 = vector.shape_cast %395 : vector<96xf32> to vector<96x1xf32>
    %397 = vector.broadcast %396 : vector<96x1xf32> to vector<96x20xf32>
    %398 = arith.subf %394, %397 : vector<96x20xf32>
    %399 = math.exp %398 : vector<96x20xf32>
    %cst_203 = arith.constant dense<0.000000e+00> : vector<96xf32>
    %400 = vector.multi_reduction <add>, %399, %cst_203 [1] : vector<96x20xf32> to vector<96xf32>
    %401 = vector.shape_cast %400 : vector<96xf32> to vector<96x1xf32>
    %402 = tpu.reciprocal %401 {approx = true} : vector<96x1xf32> -> vector<96x1xf32>
    %403 = vector.broadcast %402 : vector<96x1xf32> to vector<96x20xf32>
    %404 = arith.mulf %399, %403 : vector<96x20xf32>
    %405 = vector.extract_strided_slice %404 {offsets = [0, 0], sizes = [16, 20], strides = [1, 1]} : vector<96x20xf32> to vector<16x20xf32>
    %406 = vector.extract_strided_slice %372 {offsets = [0, 192], sizes = [20, 32], strides = [1, 1]} : vector<20x384xf32> to vector<20x32xf32>
    %cst_204 = arith.constant dense<0.000000e+00> : vector<16x32xf32>
    %407 = tpu.matmul %405, %406, %cst_204 {dimension_numbers = #tpu.dot_dimension_numbers<[1], [0], [0], [1], [0, 0, 1, 1], [], []>} : vector<16x20xf32>, vector<20x32xf32>, vector<16x32xf32> -> vector<16x32xf32>
    %408 = vector.extract_strided_slice %404 {offsets = [16, 0], sizes = [16, 20], strides = [1, 1]} : vector<96x20xf32> to vector<16x20xf32>
    %409 = vector.extract_strided_slice %372 {offsets = [0, 224], sizes = [20, 32], strides = [1, 1]} : vector<20x384xf32> to vector<20x32xf32>
    %cst_205 = arith.constant dense<0.000000e+00> : vector<16x32xf32>
    %410 = tpu.matmul %408, %409, %cst_205 {dimension_numbers = #tpu.dot_dimension_numbers<[1], [0], [0], [1], [0, 0, 1, 1], [], []>} : vector<16x20xf32>, vector<20x32xf32>, vector<16x32xf32> -> vector<16x32xf32>
    %411 = vector.extract_strided_slice %404 {offsets = [32, 0], sizes = [16, 20], strides = [1, 1]} : vector<96x20xf32> to vector<16x20xf32>
    %412 = vector.extract_strided_slice %372 {offsets = [0, 256], sizes = [20, 32], strides = [1, 1]} : vector<20x384xf32> to vector<20x32xf32>
    %cst_206 = arith.constant dense<0.000000e+00> : vector<16x32xf32>
    %413 = tpu.matmul %411, %412, %cst_206 {dimension_numbers = #tpu.dot_dimension_numbers<[1], [0], [0], [1], [0, 0, 1, 1], [], []>} : vector<16x20xf32>, vector<20x32xf32>, vector<16x32xf32> -> vector<16x32xf32>
    %414 = vector.extract_strided_slice %404 {offsets = [48, 0], sizes = [16, 20], strides = [1, 1]} : vector<96x20xf32> to vector<16x20xf32>
    %415 = vector.extract_strided_slice %372 {offsets = [0, 288], sizes = [20, 32], strides = [1, 1]} : vector<20x384xf32> to vector<20x32xf32>
    %cst_207 = arith.constant dense<0.000000e+00> : vector<16x32xf32>
    %416 = tpu.matmul %414, %415, %cst_207 {dimension_numbers = #tpu.dot_dimension_numbers<[1], [0], [0], [1], [0, 0, 1, 1], [], []>} : vector<16x20xf32>, vector<20x32xf32>, vector<16x32xf32> -> vector<16x32xf32>
    %417 = vector.extract_strided_slice %404 {offsets = [64, 0], sizes = [16, 20], strides = [1, 1]} : vector<96x20xf32> to vector<16x20xf32>
    %418 = vector.extract_strided_slice %372 {offsets = [0, 320], sizes = [20, 32], strides = [1, 1]} : vector<20x384xf32> to vector<20x32xf32>
    %cst_208 = arith.constant dense<0.000000e+00> : vector<16x32xf32>
    %419 = tpu.matmul %417, %418, %cst_208 {dimension_numbers = #tpu.dot_dimension_numbers<[1], [0], [0], [1], [0, 0, 1, 1], [], []>} : vector<16x20xf32>, vector<20x32xf32>, vector<16x32xf32> -> vector<16x32xf32>
    %420 = vector.extract_strided_slice %404 {offsets = [80, 0], sizes = [16, 20], strides = [1, 1]} : vector<96x20xf32> to vector<16x20xf32>
    %421 = vector.extract_strided_slice %372 {offsets = [0, 352], sizes = [20, 32], strides = [1, 1]} : vector<20x384xf32> to vector<20x32xf32>
    %cst_209 = arith.constant dense<0.000000e+00> : vector<16x32xf32>
    %422 = tpu.matmul %420, %421, %cst_209 {dimension_numbers = #tpu.dot_dimension_numbers<[1], [0], [0], [1], [0, 0, 1, 1], [], []>} : vector<16x20xf32>, vector<20x32xf32>, vector<16x32xf32> -> vector<16x32xf32>
    %423 = tpu.concatenate %407, %410, %413, %416, %419, %422 in 1 : vector<16x32xf32>, vector<16x32xf32>, vector<16x32xf32>, vector<16x32xf32>, vector<16x32xf32>, vector<16x32xf32> -> vector<16x192xf32>
    %424 = arith.truncf %423 : vector<16x192xf32> to vector<16x192xbf16>
    %c1_210 = arith.constant 1 : index
    %c1_211 = arith.constant 1 : index
    %c0_212 = arith.constant 0 : index
    %c0_213 = arith.constant 0 : index
    %425 = vector.load %arg7[%c1_210, %c1_211, %c0_212, %c0_213] : memref<2x2x192x128xbf16, #tpu.memory_space<vmem>>, vector<1x1x192x128xbf16>
    %426 = vector.shape_cast %425 : vector<1x1x192x128xbf16> to vector<192x128xbf16>
    %cst_214 = arith.constant dense<0.000000e+00> : vector<16x128xf32>
    %427 = tpu.matmul %424, %426, %cst_214 {dimension_numbers = #tpu.dot_dimension_numbers<[1], [0], [0], [1], [0, 0, 1, 1], [], []>} : vector<16x192xbf16>, vector<192x128xbf16>, vector<16x128xf32> -> vector<16x128xf32>
    %c10 = arith.constant 10 : index
    %c0_215 = arith.constant 0 : index
    %c0_216 = arith.constant 0 : index
    %428 = vector.load %arg14[%c10, %c0_215, %c0_216] : memref<19x1x128xf32, #tpu.memory_space<vmem>>, vector<1x1x128xf32>
    %429 = vector.shape_cast %428 : vector<1x1x128xf32> to vector<1x128xf32>
    %430 = vector.broadcast %429 : vector<1x128xf32> to vector<16x128xf32>
    %431 = arith.addf %427, %430 : vector<16x128xf32>
    %432 = arith.addf %357, %431 : vector<16x128xf32>
    %cst_217 = arith.constant dense<0.000000e+00> : vector<16xf32>
    %433 = vector.multi_reduction <add>, %432, %cst_217 [1] : vector<16x128xf32> to vector<16xf32>
    %434 = vector.shape_cast %433 : vector<16xf32> to vector<16x1xf32>
    %cst_218 = arith.constant 0.00980392192 : f32
    %435 = vector.broadcast %cst_218 : f32 to vector<16x1xf32>
    %436 = arith.mulf %434, %435 : vector<16x1xf32>
    %437 = vector.broadcast %436 : vector<16x1xf32> to vector<16x128xf32>
    %438 = arith.subf %432, %437 : vector<16x128xf32>
    %439 = vector.broadcast %9 : vector<1x128xf32> to vector<16x128xf32>
    %440 = arith.mulf %438, %439 : vector<16x128xf32>
    %441 = arith.mulf %440, %440 : vector<16x128xf32>
    %cst_219 = arith.constant dense<0.000000e+00> : vector<16xf32>
    %442 = vector.multi_reduction <add>, %441, %cst_219 [1] : vector<16x128xf32> to vector<16xf32>
    %443 = vector.shape_cast %442 : vector<16xf32> to vector<16x1xf32>
    %cst_220 = arith.constant 0.00980392192 : f32
    %444 = vector.broadcast %cst_220 : f32 to vector<16x1xf32>
    %445 = arith.mulf %443, %444 : vector<16x1xf32>
    %cst_221 = arith.constant 9.99999974E-6 : f32
    %446 = vector.broadcast %cst_221 : f32 to vector<16x1xf32>
    %447 = arith.addf %445, %446 : vector<16x1xf32>
    %448 = math.rsqrt %447 : vector<16x1xf32>
    %449 = vector.broadcast %448 : vector<16x1xf32> to vector<16x128xf32>
    %450 = arith.mulf %440, %449 : vector<16x128xf32>
    %c14 = arith.constant 14 : index
    %c0_222 = arith.constant 0 : index
    %c0_223 = arith.constant 0 : index
    %451 = vector.load %arg14[%c14, %c0_222, %c0_223] : memref<19x1x128xf32, #tpu.memory_space<vmem>>, vector<1x1x128xf32>
    %452 = vector.shape_cast %451 : vector<1x1x128xf32> to vector<1x128xf32>
    %453 = vector.broadcast %452 : vector<1x128xf32> to vector<16x128xf32>
    %454 = arith.mulf %450, %453 : vector<16x128xf32>
    %c15 = arith.constant 15 : index
    %c0_224 = arith.constant 0 : index
    %c0_225 = arith.constant 0 : index
    %455 = vector.load %arg14[%c15, %c0_224, %c0_225] : memref<19x1x128xf32, #tpu.memory_space<vmem>>, vector<1x1x128xf32>
    %456 = vector.shape_cast %455 : vector<1x1x128xf32> to vector<1x128xf32>
    %457 = vector.broadcast %456 : vector<1x128xf32> to vector<16x128xf32>
    %458 = arith.addf %454, %457 : vector<16x128xf32>
    %459 = arith.truncf %458 : vector<16x128xf32> to vector<16x128xbf16>
    %c1_226 = arith.constant 1 : index
    %c0_227 = arith.constant 0 : index
    %c0_228 = arith.constant 0 : index
    %460 = vector.load %arg10[%c1_226, %c0_227, %c0_228] : memref<2x128x2048xbf16, #tpu.memory_space<vmem>>, vector<1x128x2048xbf16>
    %461 = vector.shape_cast %460 : vector<1x128x2048xbf16> to vector<128x2048xbf16>
    %cst_229 = arith.constant dense<0.000000e+00> : vector<16x2048xf32>
    %462 = tpu.matmul %459, %461, %cst_229 {dimension_numbers = #tpu.dot_dimension_numbers<[1], [0], [0], [1], [0, 0, 1, 1], [], []>} : vector<16x128xbf16>, vector<128x2048xbf16>, vector<16x2048xf32> -> vector<16x2048xf32>
    %c1_230 = arith.constant 1 : index
    %c0_231 = arith.constant 0 : index
    %c0_232 = arith.constant 0 : index
    %463 = vector.load %arg11[%c1_230, %c0_231, %c0_232] : memref<2x1x2048xf32, #tpu.memory_space<vmem>>, vector<1x1x2048xf32>
    %464 = vector.shape_cast %463 : vector<1x1x2048xf32> to vector<1x2048xf32>
    %465 = vector.broadcast %464 : vector<1x2048xf32> to vector<16x2048xf32>
    %466 = arith.addf %462, %465 : vector<16x2048xf32>
    %cst_233 = arith.constant 0.000000e+00 : f32
    %467 = vector.broadcast %cst_233 : f32 to vector<16x2048xf32>
    %468 = arith.maximumf %466, %467 : vector<16x2048xf32>
    %469 = arith.truncf %468 : vector<16x2048xf32> to vector<16x2048xbf16>
    %c1_234 = arith.constant 1 : index
    %c0_235 = arith.constant 0 : index
    %c0_236 = arith.constant 0 : index
    %470 = vector.load %arg12[%c1_234, %c0_235, %c0_236] : memref<2x2048x128xbf16, #tpu.memory_space<vmem>>, vector<1x2048x128xbf16>
    %471 = vector.shape_cast %470 : vector<1x2048x128xbf16> to vector<2048x128xbf16>
    %cst_237 = arith.constant dense<0.000000e+00> : vector<16x128xf32>
    %472 = tpu.matmul %469, %471, %cst_237 {dimension_numbers = #tpu.dot_dimension_numbers<[1], [0], [0], [1], [0, 0, 1, 1], [], []>} : vector<16x2048xbf16>, vector<2048x128xbf16>, vector<16x128xf32> -> vector<16x128xf32>
    %c11 = arith.constant 11 : index
    %c0_238 = arith.constant 0 : index
    %c0_239 = arith.constant 0 : index
    %473 = vector.load %arg14[%c11, %c0_238, %c0_239] : memref<19x1x128xf32, #tpu.memory_space<vmem>>, vector<1x1x128xf32>
    %474 = vector.shape_cast %473 : vector<1x1x128xf32> to vector<1x128xf32>
    %475 = vector.broadcast %474 : vector<1x128xf32> to vector<16x128xf32>
    %476 = arith.addf %472, %475 : vector<16x128xf32>
    %477 = arith.addf %458, %476 : vector<16x128xf32>
    %cst_240 = arith.constant dense<0.000000e+00> : vector<16xf32>
    %478 = vector.multi_reduction <add>, %477, %cst_240 [1] : vector<16x128xf32> to vector<16xf32>
    %479 = vector.shape_cast %478 : vector<16xf32> to vector<16x1xf32>
    %cst_241 = arith.constant 0.00980392192 : f32
    %480 = vector.broadcast %cst_241 : f32 to vector<16x1xf32>
    %481 = arith.mulf %479, %480 : vector<16x1xf32>
    %482 = vector.broadcast %481 : vector<16x1xf32> to vector<16x128xf32>
    %483 = arith.subf %477, %482 : vector<16x128xf32>
    %484 = vector.broadcast %9 : vector<1x128xf32> to vector<16x128xf32>
    %485 = arith.mulf %483, %484 : vector<16x128xf32>
    %486 = arith.mulf %485, %485 : vector<16x128xf32>
    %cst_242 = arith.constant dense<0.000000e+00> : vector<16xf32>
    %487 = vector.multi_reduction <add>, %486, %cst_242 [1] : vector<16x128xf32> to vector<16xf32>
    %488 = vector.shape_cast %487 : vector<16xf32> to vector<16x1xf32>
    %cst_243 = arith.constant 0.00980392192 : f32
    %489 = vector.broadcast %cst_243 : f32 to vector<16x1xf32>
    %490 = arith.mulf %488, %489 : vector<16x1xf32>
    %cst_244 = arith.constant 9.99999974E-6 : f32
    %491 = vector.broadcast %cst_244 : f32 to vector<16x1xf32>
    %492 = arith.addf %490, %491 : vector<16x1xf32>
    %493 = math.rsqrt %492 : vector<16x1xf32>
    %494 = vector.broadcast %493 : vector<16x1xf32> to vector<16x128xf32>
    %495 = arith.mulf %485, %494 : vector<16x128xf32>
    %c16 = arith.constant 16 : index
    %c0_245 = arith.constant 0 : index
    %c0_246 = arith.constant 0 : index
    %496 = vector.load %arg14[%c16, %c0_245, %c0_246] : memref<19x1x128xf32, #tpu.memory_space<vmem>>, vector<1x1x128xf32>
    %497 = vector.shape_cast %496 : vector<1x1x128xf32> to vector<1x128xf32>
    %498 = vector.broadcast %497 : vector<1x128xf32> to vector<16x128xf32>
    %499 = arith.mulf %495, %498 : vector<16x128xf32>
    %c17 = arith.constant 17 : index
    %c0_247 = arith.constant 0 : index
    %c0_248 = arith.constant 0 : index
    %500 = vector.load %arg14[%c17, %c0_247, %c0_248] : memref<19x1x128xf32, #tpu.memory_space<vmem>>, vector<1x1x128xf32>
    %501 = vector.shape_cast %500 : vector<1x1x128xf32> to vector<1x128xf32>
    %502 = vector.broadcast %501 : vector<1x128xf32> to vector<16x128xf32>
    %503 = arith.addf %499, %502 : vector<16x128xf32>
    %504 = arith.truncf %503 : vector<16x128xf32> to vector<16x128xbf16>
    %c0_249 = arith.constant 0 : index
    %c0_250 = arith.constant 0 : index
    %505 = vector.load %arg13[%c0_249, %c0_250] : memref<128x128xbf16, #tpu.memory_space<vmem>>, vector<128x128xbf16>
    %cst_251 = arith.constant dense<0.000000e+00> : vector<16x128xf32>
    %506 = tpu.matmul %504, %505, %cst_251 {dimension_numbers = #tpu.dot_dimension_numbers<[1], [0], [0], [1], [0, 0, 1, 1], [], []>} : vector<16x128xbf16>, vector<128x128xbf16>, vector<16x128xf32> -> vector<16x128xf32>
    %c18 = arith.constant 18 : index
    %c0_252 = arith.constant 0 : index
    %c0_253 = arith.constant 0 : index
    %507 = vector.load %arg14[%c18, %c0_252, %c0_253] : memref<19x1x128xf32, #tpu.memory_space<vmem>>, vector<1x1x128xf32>
    %508 = vector.shape_cast %507 : vector<1x1x128xf32> to vector<1x128xf32>
    %509 = vector.broadcast %508 : vector<1x128xf32> to vector<16x128xf32>
    %510 = arith.addf %506, %509 : vector<16x128xf32>
    %c0_254 = arith.constant 0 : index
    %c0_255 = arith.constant 0 : index
    %511 = vector.load %arg15[%c0_254, %c0_255] : memref<16x128xf32, #tpu.memory_space<vmem>>, vector<16x128xf32>
    tpu.vector_store %arg15[%c0_254, %c0_255], %510 {strides = array<i32>} : memref<16x128xf32, #tpu.memory_space<vmem>>, vector<16x128xf32>,
    return
  }
  func.func @transform_0(%arg0: i32) -> (i32, i32) {
    %c0_i32 = arith.constant 0 : i32
    %c0_i32_0 = arith.constant 0 : i32
    %c0_i32_1 = arith.constant 0 : i32
    return %c0_i32, %c0_i32_0 : i32, i32
  }
  func.func @transform_1(%arg0: i32) -> (i32, i32) {
    %c0_i32 = arith.constant 0 : i32
    %c0_i32_0 = arith.constant 0 : i32
    %c0_i32_1 = arith.constant 0 : i32
    return %c0_i32, %c0_i32_0 : i32, i32
  }
  func.func @transform_2(%arg0: i32) -> (i32, i32) {
    %c0_i32 = arith.constant 0 : i32
    %c0_i32_0 = arith.constant 0 : i32
    %c0_i32_1 = arith.constant 0 : i32
    return %c0_i32, %c0_i32_0 : i32, i32
  }
  func.func @transform_3(%arg0: i32) -> (i32, i32) {
    %c0_i32 = arith.constant 0 : i32
    %c0_i32_0 = arith.constant 0 : i32
    %c0_i32_1 = arith.constant 0 : i32
    return %c0_i32, %c0_i32_0 : i32, i32
  }
  func.func @transform_4(%arg0: i32) -> (i32, i32, i32, i32) {
    %c0_i32 = arith.constant 0 : i32
    %c0_i32_0 = arith.constant 0 : i32
    %c0_i32_1 = arith.constant 0 : i32
    %c0_i32_2 = arith.constant 0 : i32
    %c0_i32_3 = arith.constant 0 : i32
    return %c0_i32, %c0_i32_0, %c0_i32_1, %c0_i32_2 : i32, i32, i32, i32
  }
  func.func @transform_5(%arg0: i32) -> (i32, i32, i32, i32) {
    %c0_i32 = arith.constant 0 : i32
    %c0_i32_0 = arith.constant 0 : i32
    %c0_i32_1 = arith.constant 0 : i32
    %c0_i32_2 = arith.constant 0 : i32
    %c0_i32_3 = arith.constant 0 : i32
    return %c0_i32, %c0_i32_0, %c0_i32_1, %c0_i32_2 : i32, i32, i32, i32
  }
  func.func @transform_6(%arg0: i32) -> (i32, i32, i32, i32) {
    %c0_i32 = arith.constant 0 : i32
    %c0_i32_0 = arith.constant 0 : i32
    %c0_i32_1 = arith.constant 0 : i32
    %c0_i32_2 = arith.constant 0 : i32
    %c0_i32_3 = arith.constant 0 : i32
    return %c0_i32, %c0_i32_0, %c0_i32_1, %c0_i32_2 : i32, i32, i32, i32
  }
  func.func @transform_7(%arg0: i32) -> (i32, i32, i32, i32) {
    %c0_i32 = arith.constant 0 : i32
    %c0_i32_0 = arith.constant 0 : i32
    %c0_i32_1 = arith.constant 0 : i32
    %c0_i32_2 = arith.constant 0 : i32
    %c0_i32_3 = arith.constant 0 : i32
    return %c0_i32, %c0_i32_0, %c0_i32_1, %c0_i32_2 : i32, i32, i32, i32
  }
  func.func @transform_8(%arg0: i32) -> (i32, i32, i32, i32) {
    %c0_i32 = arith.constant 0 : i32
    %c0_i32_0 = arith.constant 0 : i32
    %c0_i32_1 = arith.constant 0 : i32
    %c0_i32_2 = arith.constant 0 : i32
    %c0_i32_3 = arith.constant 0 : i32
    return %c0_i32, %c0_i32_0, %c0_i32_1, %c0_i32_2 : i32, i32, i32, i32
  }
  func.func @transform_9(%arg0: i32) -> (i32, i32, i32) {
    %c0_i32 = arith.constant 0 : i32
    %c0_i32_0 = arith.constant 0 : i32
    %c0_i32_1 = arith.constant 0 : i32
    %c0_i32_2 = arith.constant 0 : i32
    return %c0_i32, %c0_i32_0, %c0_i32_1 : i32, i32, i32
  }
  func.func @transform_10(%arg0: i32) -> (i32, i32, i32) {
    %c0_i32 = arith.constant 0 : i32
    %c0_i32_0 = arith.constant 0 : i32
    %c0_i32_1 = arith.constant 0 : i32
    %c0_i32_2 = arith.constant 0 : i32
    return %c0_i32, %c0_i32_0, %c0_i32_1 : i32, i32, i32
  }
  func.func @transform_11(%arg0: i32) -> (i32, i32, i32) {
    %c0_i32 = arith.constant 0 : i32
    %c0_i32_0 = arith.constant 0 : i32
    %c0_i32_1 = arith.constant 0 : i32
    %c0_i32_2 = arith.constant 0 : i32
    return %c0_i32, %c0_i32_0, %c0_i32_1 : i32, i32, i32
  }
  func.func @transform_12(%arg0: i32) -> (i32, i32) {
    %c0_i32 = arith.constant 0 : i32
    %c0_i32_0 = arith.constant 0 : i32
    %c0_i32_1 = arith.constant 0 : i32
    return %c0_i32, %c0_i32_0 : i32, i32
  }
  func.func @transform_13(%arg0: i32) -> (i32, i32, i32) {
    %c0_i32 = arith.constant 0 : i32
    %c0_i32_0 = arith.constant 0 : i32
    %c0_i32_1 = arith.constant 0 : i32
    %c0_i32_2 = arith.constant 0 : i32
    return %c0_i32, %c0_i32_0, %c0_i32_1 : i32, i32, i32
  }
  func.func @transform_14(%arg0: i32) -> (i32, i32) {
    %c0_i32 = arith.constant 0 : i32
    %c0_i32_0 = arith.constant 0 : i32
    %c0_i32_1 = arith.constant 0 : i32
    return %c0_i32, %c0_i32_0 : i32, i32
  }
}

</mosaic_0001>

<llo_original>
// kernel: fused_forward.1
$region0: #{fused_forward.1}
  #allocation0 [shape = 'u32[]', space=smem, size = 0x4, offset = 0x4, fixed_abs, tag = 'smem constant byte address 0x4 - core index']
  #allocation1 [shape = 'u32[72,128]{1,0:T(1,128)}', space=vmem, size = 0x9000, scoped, tag = 'internal scratch']
  %s0 = inlined_call_operand.vmem [shape: f32[16,128], index: 0, kind: input, shape index: {}]
  %s1 = inlined_call_operand.vmem [shape: f32[20,128], index: 1, kind: input, shape index: {}]
  %s2 = inlined_call_operand.vmem [shape: f32[96,16], index: 2, kind: input, shape index: {}]
  %s3 = inlined_call_operand.vmem [shape: f32[96,20], index: 3, kind: input, shape index: {}]
  %s4 = inlined_call_operand.vmem [shape: bf16[2,2,128,192], index: 4, kind: input, shape index: {}]
  %s5 = inlined_call_operand.hbm [shape: bf16[2,2,128,384], index: 5, kind: input, shape index: {}]
  %s6 = inlined_call_operand.hbm [shape: bf16[2,2,192,128], index: 6, kind: input, shape index: {}]
  %s7 = inlined_call_operand.hbm [shape: f32[2,2,1,192], index: 7, kind: input, shape index: {}]
  %s8 = inlined_call_operand.hbm [shape: f32[2,2,1,384], index: 8, kind: input, shape index: {}]
  %s9 = inlined_call_operand.hbm [shape: bf16[2,128,2048], index: 9, kind: input, shape index: {}]
  %s10 = inlined_call_operand.hbm [shape: f32[2,1,2048], index: 10, kind: input, shape index: {}]
  %s11 = inlined_call_operand.hbm [shape: bf16[2,2048,128], index: 11, kind: input, shape index: {}]
  %s12 = inlined_call_operand.hbm [shape: bf16[128,128], index: 12, kind: input, shape index: {}]
  %s13 = inlined_call_operand.hbm [shape: f32[19,1,128], index: 13, kind: input, shape index: {}]
  %s14 = inlined_call_operand.hbm [shape: f32[16,128], index: 14, kind: output, shape index: {}]
  %s15 = sld [smem:[#allocation0]]
  $region102: #{fused_forward.1} parent=0
    _
  %s17 = ssub.s32 1, %s15
  %s18 = scalar_select 0, %s17, %s15
  $region1: #{fused_forward.1} parent=0
    #allocation2 [shape = 'u8[393216]{0}', space=vmem, size = 0x60000, scoped, tag = 'input window, operand 5, single buffered']
    #allocation3 [shape = 's32[1]{0}', space=sflag, size = 0x4, scoped, tag = 'scoped memory for fused_forward.1']
    #allocation4 [shape = 's32[1]{0}', space=sflag, size = 0x4, scoped, tag = 'scoped memory for fused_forward.1']
    #allocation5 [shape = 'u8[196608]{0}', space=vmem, size = 0x30000, scoped, tag = 'input window, operand 6, single buffered']
    #allocation6 [shape = 's32[1]{0}', space=sflag, size = 0x4, scoped, tag = 'scoped memory for fused_forward.1']
    #allocation7 [shape = 'u8[4096]{0}', space=vmem, size = 0x1000, scoped, tag = 'input window, operand 7, single buffered']
    #allocation8 [shape = 'u8[6144]{0}', space=vmem, size = 0x1800, scoped, tag = 'input window, operand 8, single buffered']
    #allocation9 [shape = 's32[1]{0}', space=sflag, size = 0x4, scoped, tag = 'scoped memory for fused_forward.1']
    #allocation10 [shape = 'u8[1048576]{0}', space=vmem, size = 0x100000, scoped, tag = 'input window, operand 9, single buffered']
    #allocation11 [shape = 'u8[16384]{0}', space=vmem, size = 0x4000, scoped, tag = 'input window, operand 10, single buffered']
    #allocation12 [shape = 's32[1]{0}', space=sflag, size = 0x4, scoped, tag = 'scoped memory for fused_forward.1']
    #allocation13 [shape = 'u8[1048576]{0}', space=vmem, size = 0x100000, scoped, tag = 'input window, operand 11, single buffered']
    #allocation14 [shape = 'u8[32768]{0}', space=vmem, size = 0x8000, scoped, tag = 'input window, operand 12, single buffered']
    #allocation15 [shape = 's32[1]{0}', space=sflag, size = 0x4, scoped, tag = 'scoped memory for fused_forward.1']
    #allocation16 [shape = 'u8[9728]{0}', space=vmem, size = 0x2800, scoped, tag = 'input window, operand 13, single buffered']
    #allocation17 [shape = 'u8[8192]{0}', space=vmem, size = 0x2000, scoped, tag = 'output window, operand 0, single buffered']
    %19 = vsyncpa [#allocation3], 0
    %20 = vsyncpa [#allocation6], 0
    %21 = vsyncpa [#allocation9], 0
    %22 = vsyncpa [#allocation12], 0
    %23 = vsyncpa [#allocation15], 0
    %24 = vsyncpa [#allocation4], 0
    // Predicated region
    $region2: #{fused_forward.1} parent=1 // pred_check
      _
    $region3: #{fused_forward.1} parent=1 // pred_check_branch
      %26 = sbr.rel (0) target = $region5
    $region4: #{fused_forward.1} parent=1 // pred_region
      _
    $region5: #{fused_forward.1} parent=1 // pred_fallthru
      _
    // Predicated region
    $region6: #{fused_forward.1} parent=1 // pred_check
      _
    $region7: #{fused_forward.1} parent=1 // pred_check_branch
      %28 = sbr.rel (0) target = $region9
    $region8: #{fused_forward.1} parent=1 // pred_region
      _
    $region9: #{fused_forward.1} parent=1 // pred_fallthru
      _
    // Predicated region
    $region10: #{fused_forward.1} parent=1 // pred_check
      _
    $region11: #{fused_forward.1} parent=1 // pred_check_branch
      %30 = sbr.rel (0) target = $region13
    $region12: #{fused_forward.1} parent=1 // pred_region
      _
    $region13: #{fused_forward.1} parent=1 // pred_fallthru
      _
    // Predicated region
    $region14: #{fused_forward.1} parent=1 // pred_check
      _
    $region15: #{fused_forward.1} parent=1 // pred_check_branch
      %32 = sbr.rel (0) target = $region17
    $region16: #{fused_forward.1} parent=1 // pred_region
      _
    $region17: #{fused_forward.1} parent=1 // pred_fallthru
      _
    // Predicated region
    $region18: #{fused_forward.1} parent=1 // pred_check
      _
    $region19: #{fused_forward.1} parent=1 // pred_check_branch
      %34 = sbr.rel (0) target = $region21
    $region20: #{fused_forward.1} parent=1 // pred_region
      _
    $region21: #{fused_forward.1} parent=1 // pred_fallthru
      _
    // Predicated region
    $region22: #{fused_forward.1} parent=1 // pred_check
      _
    $region23: #{fused_forward.1} parent=1 // pred_check_branch
      %36 = sbr.rel (0) target = $region25
    $region24: #{fused_forward.1} parent=1 // pred_region
      %38 = vsyncadd [#allocation3], 0
      %s39 = sshll.u32 %s5, 4
      %s40 = int_to_ptr.hbm [resolvable:$true] %s39
      %s41 = sshll.u32 [#allocation2], 4
      %s42 = int_to_ptr.vmem [resolvable:$true] %s41
      %47 = dma.hbm_to_vmem [thread:$0]  %s40, 12288, %s42, [#allocation3], 192, 192, 12
    $region25: #{fused_forward.1} parent=1 // pred_fallthru
      _
    // Predicated region
    $region26: #{fused_forward.1} parent=1 // pred_check
      _
    $region27: #{fused_forward.1} parent=1 // pred_check_branch
      %49 = sbr.rel (0) target = $region29
    $region28: #{fused_forward.1} parent=1 // pred_region
      %51 = vsyncadd [#allocation6], 0
      %s52 = sshll.u32 %s6, 4
      %s53 = int_to_ptr.hbm [resolvable:$true] %s52
      %s54 = sshll.u32 [#allocation5], 4
      %s55 = int_to_ptr.vmem [resolvable:$true] %s54
      %60 = dma.hbm_to_vmem [thread:$0]  %s53, 6144, %s55, [#allocation6], 64, 64, 4
    $region29: #{fused_forward.1} parent=1 // pred_fallthru
      _
    // Predicated region
    $region30: #{fused_forward.1} parent=1 // pred_check
      _
    $region31: #{fused_forward.1} parent=1 // pred_check_branch
      %62 = sbr.rel (0) target = $region33
    $region32: #{fused_forward.1} parent=1 // pred_region
      %64 = vsyncadd [#allocation6], 0
      %s65 = sshll.u32 %s7, 4
      %s66 = int_to_ptr.hbm [resolvable:$true] %s65
      %s67 = sshll.u32 [#allocation7], 4
      %s68 = int_to_ptr.vmem [resolvable:$true] %s67
      %73 = dma.hbm_to_vmem [thread:$0]  %s66, 128, %s68, [#allocation6], 32, 32, 2
    $region33: #{fused_forward.1} parent=1 // pred_fallthru
      _
    // Predicated region
    $region34: #{fused_forward.1} parent=1 // pred_check
      _
    $region35: #{fused_forward.1} parent=1 // pred_check_branch
      %75 = sbr.rel (0) target = $region37
    $region36: #{fused_forward.1} parent=1 // pred_region
      %77 = vsyncadd [#allocation9], 0
      %s78 = sshll.u32 %s8, 4
      %s79 = int_to_ptr.hbm [resolvable:$true] %s78
      %s80 = sshll.u32 [#allocation8], 4
      %s81 = int_to_ptr.vmem [resolvable:$true] %s80
      %86 = dma.hbm_to_vmem [thread:$0]  %s79, 192, %s81, [#allocation9], 48, 48, 3
    $region37: #{fused_forward.1} parent=1 // pred_fallthru
      _
    // Predicated region
    $region38: #{fused_forward.1} parent=1 // pred_check
      _
    $region39: #{fused_forward.1} parent=1 // pred_check_branch
      %88 = sbr.rel (0) target = $region41
    $region40: #{fused_forward.1} parent=1 // pred_region
      %90 = vsyncadd [#allocation9], 0
      %s91 = sshll.u32 %s9, 4
      %s92 = int_to_ptr.hbm [resolvable:$true] %s91
      %s93 = sshll.u32 [#allocation10], 4
      %s94 = int_to_ptr.vmem [resolvable:$true] %s93
      %99 = dma.hbm_to_vmem [thread:$0]  %s92, 32768, %s94, [#allocation9], 1024, 1024, 64
    $region41: #{fused_forward.1} parent=1 // pred_fallthru
      _
    // Predicated region
    $region42: #{fused_forward.1} parent=1 // pred_check
      _
    $region43: #{fused_forward.1} parent=1 // pred_check_branch
      %101 = sbr.rel (0) target = $region45
    $region44: #{fused_forward.1} parent=1 // pred_region
      %103 = vsyncadd [#allocation12], 0
      %s104 = sshll.u32 %s10, 4
      %s105 = int_to_ptr.hbm [resolvable:$true] %s104
      %s106 = sshll.u32 [#allocation11], 4
      %s107 = int_to_ptr.vmem [resolvable:$true] %s106
      %112 = dma.hbm_to_vmem [thread:$0]  %s105, 512, %s107, [#allocation12], 256, 256, 16
    $region45: #{fused_forward.1} parent=1 // pred_fallthru
      _
    // Predicated region
    $region46: #{fused_forward.1} parent=1 // pred_check
      _
    $region47: #{fused_forward.1} parent=1 // pred_check_branch
      %114 = sbr.rel (0) target = $region49
    $region48: #{fused_forward.1} parent=1 // pred_region
      %116 = vsyncadd [#allocation12], 0
      %s117 = sshll.u32 %s11, 4
      %s118 = int_to_ptr.hbm [resolvable:$true] %s117
      %s119 = sshll.u32 [#allocation13], 4
      %s120 = int_to_ptr.vmem [resolvable:$true] %s119
      %125 = dma.hbm_to_vmem [thread:$0]  %s118, 32768, %s120, [#allocation12], 64, 64, 4
    $region49: #{fused_forward.1} parent=1 // pred_fallthru
      _
    // Predicated region
    $region50: #{fused_forward.1} parent=1 // pred_check
      _
    $region51: #{fused_forward.1} parent=1 // pred_check_branch
      %127 = sbr.rel (0) target = $region53
    $region52: #{fused_forward.1} parent=1 // pred_region
      %129 = vsyncadd [#allocation15], 0
      %s130 = sshll.u32 %s12, 4
      %s131 = int_to_ptr.hbm [resolvable:$true] %s130
      %s132 = sshll.u32 [#allocation14], 4
      %s133 = int_to_ptr.vmem [resolvable:$true] %s132
      %138 = dma.hbm_to_vmem [thread:$0]  %s131, 1024, %s133, [#allocation15], 64, 64, 4
    $region53: #{fused_forward.1} parent=1 // pred_fallthru
      _
    // Predicated region
    $region54: #{fused_forward.1} parent=1 // pred_check
      _
    $region55: #{fused_forward.1} parent=1 // pred_check_branch
      %140 = sbr.rel (0) target = $region57
    $region56: #{fused_forward.1} parent=1 // pred_region
      %142 = vsyncadd [#allocation15], 0
      %s143 = sshll.u32 %s13, 4
      %s144 = int_to_ptr.hbm [resolvable:$true] %s143
      %s145 = sshll.u32 [#allocation16], 4
      %s146 = int_to_ptr.vmem [resolvable:$true] %s145
      %151 = dma.hbm_to_vmem [thread:$0]  %s144, 304, %s146, [#allocation15], 16, 16, 1
    $region57: #{fused_forward.1} parent=1 // pred_fallthru
      _
    // Predicated region
    $region58: #{fused_forward.1} parent=1 // pred_check
      _
    $region59: #{fused_forward.1} parent=1 // pred_check_branch
      %153 = sbr.rel (0) target = $region61
    $region60: #{fused_forward.1} parent=1 // pred_region
      %155 = dma.done [#allocation3], 12288
    $region61: #{fused_forward.1} parent=1 // pred_fallthru
      _
    // Predicated region
    $region62: #{fused_forward.1} parent=1 // pred_check
      _
    $region63: #{fused_forward.1} parent=1 // pred_check_branch
      %157 = sbr.rel (0) target = $region65
    $region64: #{fused_forward.1} parent=1 // pred_region
      %159 = dma.done [#allocation6], 6144
    $region65: #{fused_forward.1} parent=1 // pred_fallthru
      _
    // Predicated region
    $region66: #{fused_forward.1} parent=1 // pred_check
      _
    $region67: #{fused_forward.1} parent=1 // pred_check_branch
      %161 = sbr.rel (0) target = $region69
    $region68: #{fused_forward.1} parent=1 // pred_region
      %163 = dma.done [#allocation6], 128
    $region69: #{fused_forward.1} parent=1 // pred_fallthru
      _
    // Predicated region
    $region70: #{fused_forward.1} parent=1 // pred_check
      _
    $region71: #{fused_forward.1} parent=1 // pred_check_branch
      %165 = sbr.rel (0) target = $region73
    $region72: #{fused_forward.1} parent=1 // pred_region
      %167 = dma.done [#allocation9], 192
    $region73: #{fused_forward.1} parent=1 // pred_fallthru
      _
    // Predicated region
    $region74: #{fused_forward.1} parent=1 // pred_check
      _
    $region75: #{fused_forward.1} parent=1 // pred_check_branch
      %169 = sbr.rel (0) target = $region77
    $region76: #{fused_forward.1} parent=1 // pred_region
      %171 = dma.done [#allocation9], 32768
    $region77: #{fused_forward.1} parent=1 // pred_fallthru
      _
    // Predicated region
    $region78: #{fused_forward.1} parent=1 // pred_check
      _
    $region79: #{fused_forward.1} parent=1 // pred_check_branch
      %173 = sbr.rel (0) target = $region81
    $region80: #{fused_forward.1} parent=1 // pred_region
      %175 = dma.done [#allocation12], 512
    $region81: #{fused_forward.1} parent=1 // pred_fallthru
      _
    // Predicated region
    $region82: #{fused_forward.1} parent=1 // pred_check
      _
    $region83: #{fused_forward.1} parent=1 // pred_check_branch
      %177 = sbr.rel (0) target = $region85
    $region84: #{fused_forward.1} parent=1 // pred_region
      %179 = dma.done [#allocation12], 32768
    $region85: #{fused_forward.1} parent=1 // pred_fallthru
      _
    // Predicated region
    $region86: #{fused_forward.1} parent=1 // pred_check
      _
    $region87: #{fused_forward.1} parent=1 // pred_check_branch
      %181 = sbr.rel (0) target = $region89
    $region88: #{fused_forward.1} parent=1 // pred_region
      %183 = dma.done [#allocation15], 1024
    $region89: #{fused_forward.1} parent=1 // pred_fallthru
      _
    // Predicated region
    $region90: #{fused_forward.1} parent=1 // pred_check
      _
    $region91: #{fused_forward.1} parent=1 // pred_check_branch
      %185 = sbr.rel (0) target = $region93
    $region92: #{fused_forward.1} parent=1 // pred_region
      %187 = dma.done [#allocation15], 304
    $region93: #{fused_forward.1} parent=1 // pred_fallthru
      _
    %v189 = vld [vmem:[%s0] sm:$0xff]
    %v190 = vld [vmem:[%s0 + $0x8] sm:$0xff]
    %v191 = vld [vmem:[%s1] sm:$0xff]
    %v192 = vld [vmem:[%s1 + $0x8] sm:$0xff]
    %v193 = vld [vmem:[%s1 + $0x10] sm:$0xf]
    %v194 = vpack.c.bf16 %v192, %v191
    %v195 = vpack.c.bf16 %v193, %v193
    %v196 = vld [vmem:[%s2] sm:$0xff]
    %v197 = vld [vmem:[%s2 + $0x8] sm:$0xff]
    %v198 = vld [vmem:[%s2 + $0x10] sm:$0xff]
    %v199 = vld [vmem:[%s2 + $0x18] sm:$0xff]
    %v200 = vld [vmem:[%s2 + $0x20] sm:$0xff]
    %v201 = vld [vmem:[%s2 + $0x28] sm:$0xff]
    %v202 = vld [vmem:[%s2 + $0x30] sm:$0xff]
    %v203 = vld [vmem:[%s2 + $0x38] sm:$0xff]
    %v204 = vld [vmem:[%s2 + $0x40] sm:$0xff]
    %v205 = vld [vmem:[%s2 + $0x48] sm:$0xff]
    %v206 = vld [vmem:[%s2 + $0x50] sm:$0xff]
    %v207 = vld [vmem:[%s2 + $0x58] sm:$0xff]
    %v208 = vld [vmem:[%s3] sm:$0xff]
    %v209 = vld [vmem:[%s3 + $0x8] sm:$0xff]
    %v210 = vld [vmem:[%s3 + $0x10] sm:$0xff]
    %v211 = vld [vmem:[%s3 + $0x18] sm:$0xff]
    %v212 = vld [vmem:[%s3 + $0x20] sm:$0xff]
    %v213 = vld [vmem:[%s3 + $0x28] sm:$0xff]
    %v214 = vld [vmem:[%s3 + $0x30] sm:$0xff]
    %v215 = vld [vmem:[%s3 + $0x38] sm:$0xff]
    %v216 = vld [vmem:[%s3 + $0x40] sm:$0xff]
    %v217 = vld [vmem:[%s3 + $0x48] sm:$0xff]
    %v218 = vld [vmem:[%s3 + $0x50] sm:$0xff]
    %v219 = vld [vmem:[%s3 + $0x58] sm:$0xff]
    %v220 = vlaneseq
    %v221 = vand.u32 %v220, 127
    %vm222 = vcmp.lt.s32.totalorder %v221, 102
    %v223 = vsel %vm222, 1, 0
    %v224 = vcvt.s32.f32 %v223
    %v225 = vpack.c.bf16 %v190, %v189
    %v226 = vld [vmem:[%s4] sm:$0xff]
    %v227 = vld [vmem:[%s4 + $0x8] sm:$0xff]
    %v228 = vld [vmem:[%s4 + $0x10] sm:$0xff]
    %v229 = vld [vmem:[%s4 + $0x18] sm:$0xff]
    %v230 = vld [vmem:[%s4 + $0x20] sm:$0xff]
    %v231 = vld [vmem:[%s4 + $0x28] sm:$0xff]
    %v232 = vld [vmem:[%s4 + $0x30] sm:$0xff]
    %v233 = vld [vmem:[%s4 + $0x38] sm:$0xff]
    %v234 = vld [vmem:[%s4 + $0x40] sm:$0xff]
    %v235 = vld [vmem:[%s4 + $0x48] sm:$0xff]
    %v236 = vld [vmem:[%s4 + $0x50] sm:$0xff]
    %v237 = vld [vmem:[%s4 + $0x58] sm:$0xff]
    %v238 = vld [vmem:[%s4 + $0x60] sm:$0xff]
    %v239 = vld [vmem:[%s4 + $0x68] sm:$0xff]
    %v240 = vld [vmem:[%s4 + $0x70] sm:$0xff]
    %v241 = vld [vmem:[%s4 + $0x78] sm:$0xff]
    %v242 = vld [vmem:[#allocation7] sm:$0x3]
    %v244 = vperm.slane %v242, 0
    %v245 = vperm.slane %v242, 1
    %v264 = vunpack.c.l.b16 %v226
    %v265 = vunpack.c.h.b16 %v226
    %v266 = vunpack.c.l.b16 %v227
    %v267 = vunpack.c.h.b16 %v227
    %v268 = vunpack.c.l.b16 %v228
    %v269 = vunpack.c.h.b16 %v228
    %v270 = vunpack.c.l.b16 %v229
    %v271 = vunpack.c.h.b16 %v229
    %v272 = vunpack.c.l.b16 %v230
    %v273 = vunpack.c.h.b16 %v230
    %v274 = vunpack.c.l.b16 %v231
    %v275 = vunpack.c.h.b16 %v231
    %v276 = vunpack.c.l.b16 %v232
    %v277 = vunpack.c.h.b16 %v232
    %v278 = vunpack.c.l.b16 %v233
    %v279 = vunpack.c.h.b16 %v233
    %v280 = vunpack.c.l.b16 %v234
    %v281 = vunpack.c.h.b16 %v234
    %v282 = vunpack.c.l.b16 %v235
    %v283 = vunpack.c.h.b16 %v235
    %v284 = vunpack.c.l.b16 %v236
    %v285 = vunpack.c.h.b16 %v236
    %v286 = vunpack.c.l.b16 %v237
    %v287 = vunpack.c.h.b16 %v237
    %v288 = vunpack.c.l.b16 %v238
    %v289 = vunpack.c.h.b16 %v238
    %v290 = vunpack.c.l.b16 %v239
    %v291 = vunpack.c.h.b16 %v239
    %v292 = vunpack.c.l.b16 %v240
    %v293 = vunpack.c.h.b16 %v240
    %v294 = vunpack.c.l.b16 %v241
    %v295 = vunpack.c.h.b16 %v241
    %v296 = vpack.c.b16 %v266, %v264
    %v297 = vpack.c.b16 %v267, %v265
    %v298 = vpack.c.b16 %v270, %v268
    %v299 = vpack.c.b16 %v271, %v269
    %v300 = vpack.c.b16 %v274, %v272
    %v301 = vpack.c.b16 %v275, %v273
    %v302 = vpack.c.b16 %v278, %v276
    %v303 = vpack.c.b16 %v279, %v277
    %v304 = vpack.c.b16 %v282, %v280
    %v305 = vpack.c.b16 %v283, %v281
    %v306 = vpack.c.b16 %v286, %v284
    %v307 = vpack.c.b16 %v287, %v285
    %v308 = vpack.c.b16 %v290, %v288
    %v309 = vpack.c.b16 %v291, %v289
    %v310 = vpack.c.b16 %v294, %v292
    %v311 = vpack.c.b16 %v295, %v293
    %328 = vmatpush.bf16.msra.mxu0 %v310
    %329 = vmatpush.bf16.msra.mxu0 %v308
    %330 = vmatpush.bf16.msra.mxu0 %v306
    %331 = vmatpush.bf16.msra.mxu0 %v304
    %332 = vmatpush.bf16.msra.mxu0 %v302
    %333 = vmatpush.bf16.msra.mxu0 %v300
    %334 = vmatpush.bf16.msra.mxu0 %v298
    %335 = vmatpush.bf16.msra.mxu0 %v296
    %336 = vmatmul.bf16.gmra.mxu0 %v225
    %v337 = vpop.f32.mrf.mxu0
    %v338 = vadd.f32 %v244, %v337
    %v339 = vpop.f32.mrf.mxu0
    %v340 = vadd.f32 %v244, %v339
    %341 = vdwg.mxu0
    %342 = vmatpush.bf16.msra.mxu0 %v311
    %343 = vmatpush.bf16.msra.mxu0 %v309
    %344 = vmatpush.bf16.msra.mxu0 %v307
    %345 = vmatpush.bf16.msra.mxu0 %v305
    %346 = vmatpush.bf16.msra.mxu0 %v303
    %347 = vmatpush.bf16.msra.mxu0 %v301
    %348 = vmatpush.bf16.msra.mxu0 %v299
    %349 = vmatpush.bf16.msra.mxu0 %v297
    %350 = vmatmul.bf16.gmra.mxu0 %v225
    %v351 = vpop.f32.mrf.mxu0
    %v352 = vadd.f32 %v245, %v351
    %v353 = vpop.f32.mrf.mxu0
    %v354 = vadd.f32 %v245, %v353
    %355 = vdwg.mxu0
    %v356 = vld [vmem:[#allocation2] sm:$0xff]
    %v357 = vld [vmem:[#allocation2 + $0x8] sm:$0xf]
    %v358 = vld [vmem:[#allocation2 + $0xc] sm:$0xff]
    %v359 = vld [vmem:[#allocation2 + $0x14] sm:$0xf]
    %v360 = vld [vmem:[#allocation2 + $0x18] sm:$0xff]
    %v361 = vld [vmem:[#allocation2 + $0x20] sm:$0xf]
    %v362 = vld [vmem:[#allocation2 + $0x24] sm:$0xff]
    %v363 = vld [vmem:[#allocation2 + $0x2c] sm:$0xf]
    %v364 = vld [vmem:[#allocation2 + $0x30] sm:$0xff]
    %v365 = vld [vmem:[#allocation2 + $0x38] sm:$0xf]
    %v366 = vld [vmem:[#allocation2 + $0x3c] sm:$0xff]
    %v367 = vld [vmem:[#allocation2 + $0x44] sm:$0xf]
    %v368 = vld [vmem:[#allocation2 + $0x48] sm:$0xff]
    %v369 = vld [vmem:[#allocation2 + $0x50] sm:$0xf]
    %v370 = vld [vmem:[#allocation2 + $0x54] sm:$0xff]
    %v371 = vld [vmem:[#allocation2 + $0x5c] sm:$0xf]
    %v372 = vld [vmem:[#allocation2 + $0x60] sm:$0xff]
    %v373 = vld [vmem:[#allocation2 + $0x68] sm:$0xf]
    %v374 = vld [vmem:[#allocation2 + $0x6c] sm:$0xff]
    %v375 = vld [vmem:[#allocation2 + $0x74] sm:$0xf]
    %v376 = vld [vmem:[#allocation2 + $0x78] sm:$0xff]
    %v377 = vld [vmem:[#allocation2 + $0x80] sm:$0xf]
    %v378 = vld [vmem:[#allocation2 + $0x84] sm:$0xff]
    %v379 = vld [vmem:[#allocation2 + $0x8c] sm:$0xf]
    %v380 = vld [vmem:[#allocation2 + $0x90] sm:$0xff]
    %v381 = vld [vmem:[#allocation2 + $0x98] sm:$0xf]
    %v382 = vld [vmem:[#allocation2 + $0x9c] sm:$0xff]
    %v383 = vld [vmem:[#allocation2 + $0xa4] sm:$0xf]
    %v384 = vld [vmem:[#allocation2 + $0xa8] sm:$0xff]
    %v385 = vld [vmem:[#allocation2 + $0xb0] sm:$0xf]
    %v386 = vld [vmem:[#allocation2 + $0xb4] sm:$0xff]
    %v387 = vld [vmem:[#allocation2 + $0xbc] sm:$0xf]
    %v388 = vld [vmem:[#allocation8] sm:$0x7]
    %v390 = vperm.slane %v388, 0
    %v391 = vperm.slane %v388, 1
    %v392 = vperm.slane %v388, 2
    %v428 = vunpack.c.l.b16 %v356
    %v429 = vunpack.c.h.b16 %v356
    %v430 = vunpack.c.l.b16 %v357
    %v431 = vunpack.c.l.b16 %v358
    %v432 = vunpack.c.h.b16 %v358
    %v433 = vunpack.c.l.b16 %v359
    %v434 = vunpack.c.l.b16 %v360
    %v435 = vunpack.c.h.b16 %v360
    %v436 = vunpack.c.l.b16 %v361
    %v437 = vunpack.c.l.b16 %v362
    %v438 = vunpack.c.h.b16 %v362
    %v439 = vunpack.c.l.b16 %v363
    %v440 = vunpack.c.l.b16 %v364
    %v441 = vunpack.c.h.b16 %v364
    %v442 = vunpack.c.l.b16 %v365
    %v443 = vunpack.c.l.b16 %v366
    %v444 = vunpack.c.h.b16 %v366
    %v445 = vunpack.c.l.b16 %v367
    %v446 = vunpack.c.l.b16 %v368
    %v447 = vunpack.c.h.b16 %v368
    %v448 = vunpack.c.l.b16 %v369
    %v449 = vunpack.c.l.b16 %v370
    %v450 = vunpack.c.h.b16 %v370
    %v451 = vunpack.c.l.b16 %v371
    %v452 = vunpack.c.l.b16 %v372
    %v453 = vunpack.c.h.b16 %v372
    %v454 = vunpack.c.l.b16 %v373
    %v455 = vunpack.c.l.b16 %v374
    %v456 = vunpack.c.h.b16 %v374
    %v457 = vunpack.c.l.b16 %v375
    %v458 = vunpack.c.l.b16 %v376
    %v459 = vunpack.c.h.b16 %v376
    %v460 = vunpack.c.l.b16 %v377
    %v461 = vunpack.c.l.b16 %v378
    %v462 = vunpack.c.h.b16 %v378
    %v463 = vunpack.c.l.b16 %v379
    %v464 = vunpack.c.l.b16 %v380
    %v465 = vunpack.c.h.b16 %v380
    %v466 = vunpack.c.l.b16 %v381
    %v467 = vunpack.c.l.b16 %v382
    %v468 = vunpack.c.h.b16 %v382
    %v469 = vunpack.c.l.b16 %v383
    %v470 = vunpack.c.l.b16 %v384
    %v471 = vunpack.c.h.b16 %v384
    %v472 = vunpack.c.l.b16 %v385
    %v473 = vunpack.c.l.b16 %v386
    %v474 = vunpack.c.h.b16 %v386
    %v475 = vunpack.c.l.b16 %v387
    %v476 = vpack.c.b16 %v431, %v428
    %v477 = vpack.c.b16 %v432, %v429
    %v478 = vpack.c.b16 %v433, %v430
    %v479 = vpack.c.b16 %v437, %v434
    %v480 = vpack.c.b16 %v438, %v435
    %v481 = vpack.c.b16 %v439, %v436
    %v482 = vpack.c.b16 %v443, %v440
    %v483 = vpack.c.b16 %v444, %v441
    %v484 = vpack.c.b16 %v445, %v442
    %v485 = vpack.c.b16 %v449, %v446
    %v486 = vpack.c.b16 %v450, %v447
    %v487 = vpack.c.b16 %v451, %v448
    %v488 = vpack.c.b16 %v455, %v452
    %v489 = vpack.c.b16 %v456, %v453
    %v490 = vpack.c.b16 %v457, %v454
    %v491 = vpack.c.b16 %v461, %v458
    %v492 = vpack.c.b16 %v462, %v459
    %v493 = vpack.c.b16 %v463, %v460
    %v494 = vpack.c.b16 %v467, %v464
    %v495 = vpack.c.b16 %v468, %v465
    %v496 = vpack.c.b16 %v469, %v466
    %v497 = vpack.c.b16 %v473, %v470
    %v498 = vpack.c.b16 %v474, %v471
    %v499 = vpack.c.b16 %v475, %v472
    %524 = vmatpush.bf16.msra.mxu0 %v497
    %525 = vmatpush.bf16.msra.mxu0 %v494
    %526 = vmatpush.bf16.msra.mxu0 %v491
    %527 = vmatpush.bf16.msra.mxu0 %v488
    %528 = vmatpush.bf16.msra.mxu0 %v485
    %529 = vmatpush.bf16.msra.mxu0 %v482
    %530 = vmatpush.bf16.msra.mxu0 %v479
    %531 = vmatpush.bf16.msra.mxu0 %v476
    %532 = vmatmul.bf16.gmra.mxu0 %v225
    %v533 = vpop.f32.mrf.mxu0
    %v534 = vadd.f32 %v390, %v533
    %v535 = vpop.f32.mrf.mxu0
    %v536 = vadd.f32 %v390, %v535
    %537 = vdwg.mxu0
    %538 = vmatpush.bf16.msra.mxu0 %v498
    %539 = vmatpush.bf16.msra.mxu0 %v495
    %540 = vmatpush.bf16.msra.mxu0 %v492
    %541 = vmatpush.bf16.msra.mxu0 %v489
    %542 = vmatpush.bf16.msra.mxu0 %v486
    %543 = vmatpush.bf16.msra.mxu0 %v483
    %544 = vmatpush.bf16.msra.mxu0 %v480
    %545 = vmatpush.bf16.msra.mxu0 %v477
    %546 = vmatmul.bf16.gmra.mxu0 %v225
    %v547 = vpop.f32.mrf.mxu0
    %v548 = vadd.f32 %v391, %v547
    %v549 = vpop.f32.mrf.mxu0
    %v550 = vadd.f32 %v391, %v549
    %551 = vdwg.mxu0
    %552 = vmatpush.bf16.msra.mxu0 %v499
    %553 = vmatpush.bf16.msra.mxu0 %v496
    %554 = vmatpush.bf16.msra.mxu0 %v493
    %555 = vmatpush.bf16.msra.mxu0 %v490
    %556 = vmatpush.bf16.msra.mxu0 %v487
    %557 = vmatpush.bf16.msra.mxu0 %v484
    %558 = vmatpush.bf16.msra.mxu0 %v481
    %559 = vmatpush.bf16.msra.mxu0 %v478
    %560 = vmatmul.bf16.gmra.mxu0 %v225
    %v561 = vpop.f32.mrf.mxu0
    %v562 = vadd.f32 %v392, %v561
    %v563 = vpop.f32.mrf.mxu0
    %v564 = vadd.f32 %v392, %v563
    %565 = vdwg.mxu0
    %vm566 = vcmask 261120
    %v568 = vsel %vm566, %v338, 0
    %v571 = vsel %vm566, %v340, 0
    %v574 = vsel %vm566, %v534, 0
    %v577 = vsel %vm566, %v536, 0
    %579 = vmatpush.xpose.msra.mxu0 0.0
    %580 = vmatpush.xpose.msra.mxu0 0.0
    %581 = vmatpush.xpose.msra.mxu0 0.0
    %582 = vmatpush.xpose.msra.mxu0 0.0
    %583 = vmatpush.xpose.msra.mxu0 0.0
    %584 = vmatpush.xpose.msra.mxu0 0.0
    %585 = vmatpush.xpose.msra.mxu0 0.0
    %586 = vmatpush.xpose.msra.mxu0 0.0
    %587 = vmatpush.xpose.msra.mxu0 0.0
    %588 = vmatpush.xpose.msra.mxu0 0.0
    %589 = vmatpush.xpose.msra.mxu0 0.0
    %590 = vmatpush.xpose.msra.mxu0 0.0
    %591 = vmatpush.xpose.msra.mxu0 0.0
    %592 = vmatpush.xpose.msra.mxu0 0.0
    %593 = vmatpush.xpose.msra.mxu0 %v577
    %594 = vmatpush.xpose.msra.mxu0 %v574
    %595 = vmatmul.f32.gmra.mxu0 %v568
    %v596 = vpop.f32.mrf.mxu0
    %v597 = vadd.f32 0.0, %v596
    %598 = vmatmul.f32.gmra.mxu0 %v571
    %v599 = vpop.f32.mrf.mxu0
    %v600 = vadd.f32 0.0, %v599
    %601 = vdwg.mxu0
    %602 = vrot.lane.b32.xlu0 %v338, 96
    %v603 = vpop.permute.xlu0 %602
    %604 = vrot.lane.b32.xlu0 %v340, 96
    %v605 = vpop.permute.xlu0 %604
    %606 = vrot.lane.b32.xlu0 %v534, 96
    %v607 = vpop.permute.xlu0 %606
    %608 = vrot.lane.b32.xlu0 %v536, 96
    %v609 = vpop.permute.xlu0 %608
    %v610 = vsel %vm566, %v603, 0
    %v612 = vsel %vm566, %v605, 0
    %v614 = vsel %vm566, %v607, 0
    %v616 = vsel %vm566, %v609, 0
    %618 = vmatpush.xpose.msra.mxu0 0.0
    %619 = vmatpush.xpose.msra.mxu0 0.0
    %620 = vmatpush.xpose.msra.mxu0 0.0
    %621 = vmatpush.xpose.msra.mxu0 0.0
    %622 = vmatpush.xpose.msra.mxu0 0.0
    %623 = vmatpush.xpose.msra.mxu0 0.0
    %624 = vmatpush.xpose.msra.mxu0 0.0
    %625 = vmatpush.xpose.msra.mxu0 0.0
    %626 = vmatpush.xpose.msra.mxu0 0.0
    %627 = vmatpush.xpose.msra.mxu0 0.0
    %628 = vmatpush.xpose.msra.mxu0 0.0
    %629 = vmatpush.xpose.msra.mxu0 0.0
    %630 = vmatpush.xpose.msra.mxu0 0.0
    %631 = vmatpush.xpose.msra.mxu0 0.0
    %632 = vmatpush.xpose.msra.mxu0 %v616
    %633 = vmatpush.xpose.msra.mxu0 %v614
    %634 = vmatmul.f32.gmra.mxu0 %v610
    %v635 = vpop.f32.mrf.mxu0
    %v636 = vadd.f32 0.0, %v635
    %637 = vmatmul.f32.gmra.mxu0 %v612
    %v638 = vpop.f32.mrf.mxu0
    %v639 = vadd.f32 0.0, %v638
    %640 = vdwg.mxu0
    %641 = vrot.lane.b32.xlu0 %v338, 64
    %v642 = vpop.permute.xlu0 %641
    %643 = vrot.lane.b32.xlu0 %v340, 64
    %v644 = vpop.permute.xlu0 %643
    %645 = vrot.lane.b32.xlu0 %v534, 64
    %v646 = vpop.permute.xlu0 %645
    %647 = vrot.lane.b32.xlu0 %v536, 64
    %v648 = vpop.permute.xlu0 %647
    %v649 = vsel %vm566, %v642, 0
    %v651 = vsel %vm566, %v644, 0
    %v653 = vsel %vm566, %v646, 0
    %v655 = vsel %vm566, %v648, 0
    %657 = vmatpush.xpose.msra.mxu0 0.0
    %658 = vmatpush.xpose.msra.mxu0 0.0
    %659 = vmatpush.xpose.msra.mxu0 0.0
    %660 = vmatpush.xpose.msra.mxu0 0.0
    %661 = vmatpush.xpose.msra.mxu0 0.0
    %662 = vmatpush.xpose.msra.mxu0 0.0
    %663 = vmatpush.xpose.msra.mxu0 0.0
    %664 = vmatpush.xpose.msra.mxu0 0.0
    %665 = vmatpush.xpose.msra.mxu0 0.0
    %666 = vmatpush.xpose.msra.mxu0 0.0
    %667 = vmatpush.xpose.msra.mxu0 0.0
    %668 = vmatpush.xpose.msra.mxu0 0.0
    %669 = vmatpush.xpose.msra.mxu0 0.0
    %670 = vmatpush.xpose.msra.mxu0 0.0
    %671 = vmatpush.xpose.msra.mxu0 %v655
    %672 = vmatpush.xpose.msra.mxu0 %v653
    %673 = vmatmul.f32.gmra.mxu0 %v649
    %v674 = vpop.f32.mrf.mxu0
    %v675 = vadd.f32 0.0, %v674
    %676 = vmatmul.f32.gmra.mxu0 %v651
    %v677 = vpop.f32.mrf.mxu0
    %v678 = vadd.f32 0.0, %v677
    %679 = vdwg.mxu0
    %680 = vrot.lane.b32.xlu0 %v338, 32
    %v681 = vpop.permute.xlu0 %680
    %682 = vrot.lane.b32.xlu0 %v340, 32
    %v683 = vpop.permute.xlu0 %682
    %684 = vrot.lane.b32.xlu0 %v534, 32
    %v685 = vpop.permute.xlu0 %684
    %686 = vrot.lane.b32.xlu0 %v536, 32
    %v687 = vpop.permute.xlu0 %686
    %v688 = vsel %vm566, %v681, 0
    %v690 = vsel %vm566, %v683, 0
    %v692 = vsel %vm566, %v685, 0
    %v694 = vsel %vm566, %v687, 0
    %696 = vmatpush.xpose.msra.mxu0 0.0
    %697 = vmatpush.xpose.msra.mxu0 0.0
    %698 = vmatpush.xpose.msra.mxu0 0.0
    %699 = vmatpush.xpose.msra.mxu0 0.0
    %700 = vmatpush.xpose.msra.mxu0 0.0
    %701 = vmatpush.xpose.msra.mxu0 0.0
    %702 = vmatpush.xpose.msra.mxu0 0.0
    %703 = vmatpush.xpose.msra.mxu0 0.0
    %704 = vmatpush.xpose.msra.mxu0 0.0
    %705 = vmatpush.xpose.msra.mxu0 0.0
    %706 = vmatpush.xpose.msra.mxu0 0.0
    %707 = vmatpush.xpose.msra.mxu0 0.0
    %708 = vmatpush.xpose.msra.mxu0 0.0
    %709 = vmatpush.xpose.msra.mxu0 0.0
    %710 = vmatpush.xpose.msra.mxu0 %v694
    %711 = vmatpush.xpose.msra.mxu0 %v692
    %712 = vmatmul.f32.gmra.mxu0 %v688
    %v713 = vpop.f32.mrf.mxu0
    %v714 = vadd.f32 0.0, %v713
    %715 = vmatmul.f32.gmra.mxu0 %v690
    %v716 = vpop.f32.mrf.mxu0
    %v717 = vadd.f32 0.0, %v716
    %718 = vdwg.mxu0
    %v720 = vsel %vm566, %v352, 0
    %v723 = vsel %vm566, %v354, 0
    %v726 = vsel %vm566, %v548, 0
    %v729 = vsel %vm566, %v550, 0
    %731 = vmatpush.xpose.msra.mxu0 0.0
    %732 = vmatpush.xpose.msra.mxu0 0.0
    %733 = vmatpush.xpose.msra.mxu0 0.0
    %734 = vmatpush.xpose.msra.mxu0 0.0
    %735 = vmatpush.xpose.msra.mxu0 0.0
    %736 = vmatpush.xpose.msra.mxu0 0.0
    %737 = vmatpush.xpose.msra.mxu0 0.0
    %738 = vmatpush.xpose.msra.mxu0 0.0
    %739 = vmatpush.xpose.msra.mxu0 0.0
    %740 = vmatpush.xpose.msra.mxu0 0.0
    %741 = vmatpush.xpose.msra.mxu0 0.0
    %742 = vmatpush.xpose.msra.mxu0 0.0
    %743 = vmatpush.xpose.msra.mxu0 0.0
    %744 = vmatpush.xpose.msra.mxu0 0.0
    %745 = vmatpush.xpose.msra.mxu0 %v729
    %746 = vmatpush.xpose.msra.mxu0 %v726
    %747 = vmatmul.f32.gmra.mxu0 %v720
    %v748 = vpop.f32.mrf.mxu0
    %v749 = vadd.f32 0.0, %v748
    %750 = vmatmul.f32.gmra.mxu0 %v723
    %v751 = vpop.f32.mrf.mxu0
    %v752 = vadd.f32 0.0, %v751
    %753 = vdwg.mxu0
    %754 = vrot.lane.b32.xlu0 %v352, 96
    %v755 = vpop.permute.xlu0 %754
    %756 = vrot.lane.b32.xlu0 %v354, 96
    %v757 = vpop.permute.xlu0 %756
    %758 = vrot.lane.b32.xlu0 %v548, 96
    %v759 = vpop.permute.xlu0 %758
    %760 = vrot.lane.b32.xlu0 %v550, 96
    %v761 = vpop.permute.xlu0 %760
    %v762 = vsel %vm566, %v755, 0
    %v764 = vsel %vm566, %v757, 0
    %v766 = vsel %vm566, %v759, 0
    %v768 = vsel %vm566, %v761, 0
    %770 = vmatpush.xpose.msra.mxu0 0.0
    %771 = vmatpush.xpose.msra.mxu0 0.0
    %772 = vmatpush.xpose.msra.mxu0 0.0
    %773 = vmatpush.xpose.msra.mxu0 0.0
    %774 = vmatpush.xpose.msra.mxu0 0.0
    %775 = vmatpush.xpose.msra.mxu0 0.0
    %776 = vmatpush.xpose.msra.mxu0 0.0
    %777 = vmatpush.xpose.msra.mxu0 0.0
    %778 = vmatpush.xpose.msra.mxu0 0.0
    %779 = vmatpush.xpose.msra.mxu0 0.0
    %780 = vmatpush.xpose.msra.mxu0 0.0
    %781 = vmatpush.xpose.msra.mxu0 0.0
    %782 = vmatpush.xpose.msra.mxu0 0.0
    %783 = vmatpush.xpose.msra.mxu0 0.0
    %784 = vmatpush.xpose.msra.mxu0 %v768
    %785 = vmatpush.xpose.msra.mxu0 %v766
    %786 = vmatmul.f32.gmra.mxu0 %v762
    %v787 = vpop.f32.mrf.mxu0
    %v788 = vadd.f32 0.0, %v787
    %789 = vmatmul.f32.gmra.mxu0 %v764
    %v790 = vpop.f32.mrf.mxu0
    %v791 = vadd.f32 0.0, %v790
    %792 = vdwg.mxu0
    %v793 = vmul.f32 %v597, 0.24253562
    %v794 = vmul.f32 %v600, 0.24253562
    %v795 = vmul.f32 %v636, 0.24253562
    %v796 = vmul.f32 %v639, 0.24253562
    %v797 = vmul.f32 %v675, 0.24253562
    %v798 = vmul.f32 %v678, 0.24253562
    %v799 = vmul.f32 %v714, 0.24253562
    %v800 = vmul.f32 %v717, 0.24253562
    %v801 = vmul.f32 %v749, 0.24253562
    %v802 = vmul.f32 %v752, 0.24253562
    %v803 = vmul.f32 %v788, 0.24253562
    %v804 = vmul.f32 %v791, 0.24253562
    %v805 = vadd.f32 %v793, %v196
    %v806 = vadd.f32 %v794, %v197
    %v807 = vadd.f32 %v795, %v198
    %v808 = vadd.f32 %v796, %v199
    %v809 = vadd.f32 %v797, %v200
    %v810 = vadd.f32 %v798, %v201
    %v811 = vadd.f32 %v799, %v202
    %v812 = vadd.f32 %v800, %v203
    %v813 = vadd.f32 %v801, %v204
    %v814 = vadd.f32 %v802, %v205
    %v815 = vadd.f32 %v803, %v206
    %v816 = vadd.f32 %v804, %v207
    %vm817 = vcmask 130048
    %v818 = vsel %vm817, %v805, -inf
    %819 = vmax.xlane.f32.xlu0 %v818
    %v820 = vpop.xlane.xlu0 %819
    %v821 = vsel %vm817, %v806, -inf
    %822 = vmax.xlane.f32.xlu0 %v821
    %v823 = vpop.xlane.xlu0 %822
    %v824 = vsel %vm817, %v807, -inf
    %825 = vmax.xlane.f32.xlu0 %v824
    %v826 = vpop.xlane.xlu0 %825
    %v827 = vsel %vm817, %v808, -inf
    %828 = vmax.xlane.f32.xlu0 %v827
    %v829 = vpop.xlane.xlu0 %828
    %v830 = vsel %vm817, %v809, -inf
    %831 = vmax.xlane.f32.xlu0 %v830
    %v832 = vpop.xlane.xlu0 %831
    %v833 = vsel %vm817, %v810, -inf
    %834 = vmax.xlane.f32.xlu0 %v833
    %v835 = vpop.xlane.xlu0 %834
    %v836 = vsel %vm817, %v811, -inf
    %837 = vmax.xlane.f32.xlu0 %v836
    %v838 = vpop.xlane.xlu0 %837
    %v839 = vsel %vm817, %v812, -inf
    %840 = vmax.xlane.f32.xlu0 %v839
    %v841 = vpop.xlane.xlu0 %840
    %v842 = vsel %vm817, %v813, -inf
    %843 = vmax.xlane.f32.xlu0 %v842
    %v844 = vpop.xlane.xlu0 %843
    %v845 = vsel %vm817, %v814, -inf
    %846 = vmax.xlane.f32.xlu0 %v845
    %v847 = vpop.xlane.xlu0 %846
    %v848 = vsel %vm817, %v815, -inf
    %849 = vmax.xlane.f32.xlu0 %v848
    %v850 = vpop.xlane.xlu0 %849
    %v851 = vsel %vm817, %v816, -inf
    %852 = vmax.xlane.f32.xlu0 %v851
    %v853 = vpop.xlane.xlu0 %852
    %v854 = vsub.f32 %v805, %v820
    %v855 = vsub.f32 %v806, %v823
    %v856 = vsub.f32 %v807, %v826
    %v857 = vsub.f32 %v808, %v829
    %v858 = vsub.f32 %v809, %v832
    %v859 = vsub.f32 %v810, %v835
    %v860 = vsub.f32 %v811, %v838
    %v861 = vsub.f32 %v812, %v841
    %v862 = vsub.f32 %v813, %v844
    %v863 = vsub.f32 %v814, %v847
    %v864 = vsub.f32 %v815, %v850
    %v865 = vsub.f32 %v816, %v853
    %v866 = vmul.f32 %v854, 1.442695
    %v867 = vpow.pop %v866
    %v868 = vmul.f32 %v855, 1.442695
    %v869 = vpow.pop %v868
    %v870 = vmul.f32 %v856, 1.442695
    %v871 = vpow.pop %v870
    %v872 = vmul.f32 %v857, 1.442695
    %v873 = vpow.pop %v872
    %v874 = vmul.f32 %v858, 1.442695
    %v875 = vpow.pop %v874
    %v876 = vmul.f32 %v859, 1.442695
    %v877 = vpow.pop %v876
    %v878 = vmul.f32 %v860, 1.442695
    %v879 = vpow.pop %v878
    %v880 = vmul.f32 %v861, 1.442695
    %v881 = vpow.pop %v880
    %v882 = vmul.f32 %v862, 1.442695
    %v883 = vpow.pop %v882
    %v884 = vmul.f32 %v863, 1.442695
    %v885 = vpow.pop %v884
    %v886 = vmul.f32 %v864, 1.442695
    %v887 = vpow.pop %v886
    %v888 = vmul.f32 %v865, 1.442695
    %v889 = vpow.pop %v888
    %v890 = vsel %vm817, %v867, 0.0
    %891 = vadd.xlane.f32.xlu0 %v890
    %v892 = vpop.xlane.xlu0 %891
    %v893 = vsel %vm817, %v869, 0.0
    %894 = vadd.xlane.f32.xlu0 %v893
    %v895 = vpop.xlane.xlu0 %894
    %v896 = vsel %vm817, %v871, 0.0
    %897 = vadd.xlane.f32.xlu0 %v896
    %v898 = vpop.xlane.xlu0 %897
    %v899 = vsel %vm817, %v873, 0.0
    %900 = vadd.xlane.f32.xlu0 %v899
    %v901 = vpop.xlane.xlu0 %900
    %v902 = vsel %vm817, %v875, 0.0
    %903 = vadd.xlane.f32.xlu0 %v902
    %v904 = vpop.xlane.xlu0 %903
    %v905 = vsel %vm817, %v877, 0.0
    %906 = vadd.xlane.f32.xlu0 %v905
    %v907 = vpop.xlane.xlu0 %906
    %v908 = vsel %vm817, %v879, 0.0
    %909 = vadd.xlane.f32.xlu0 %v908
    %v910 = vpop.xlane.xlu0 %909
    %v911 = vsel %vm817, %v881, 0.0
    %912 = vadd.xlane.f32.xlu0 %v911
    %v913 = vpop.xlane.xlu0 %912
    %v914 = vsel %vm817, %v883, 0.0
    %915 = vadd.xlane.f32.xlu0 %v914
    %v916 = vpop.xlane.xlu0 %915
    %v917 = vsel %vm817, %v885, 0.0
    %918 = vadd.xlane.f32.xlu0 %v917
    %v919 = vpop.xlane.xlu0 %918
    %v920 = vsel %vm817, %v887, 0.0
    %921 = vadd.xlane.f32.xlu0 %v920
    %v922 = vpop.xlane.xlu0 %921
    %v923 = vsel %vm817, %v889, 0.0
    %924 = vadd.xlane.f32.xlu0 %v923
    %v925 = vpop.xlane.xlu0 %924
    %v926 = vrcp.pop %v892
    %v927 = vrcp.pop %v895
    %v928 = vrcp.pop %v898
    %v929 = vrcp.pop %v901
    %v930 = vrcp.pop %v904
    %v931 = vrcp.pop %v907
    %v932 = vrcp.pop %v910
    %v933 = vrcp.pop %v913
    %v934 = vrcp.pop %v916
    %v935 = vrcp.pop %v919
    %v936 = vrcp.pop %v922
    %v937 = vrcp.pop %v925
    %v938 = vmul.f32 %v867, %v926
    %v939 = vmul.f32 %v869, %v927
    %v940 = vmul.f32 %v871, %v928
    %v941 = vmul.f32 %v873, %v929
    %v942 = vmul.f32 %v875, %v930
    %v943 = vmul.f32 %v877, %v931
    %v944 = vmul.f32 %v879, %v932
    %v945 = vmul.f32 %v881, %v933
    %v946 = vmul.f32 %v883, %v934
    %v947 = vmul.f32 %v885, %v935
    %v948 = vmul.f32 %v887, %v936
    %v949 = vmul.f32 %v889, %v937
    %950 = vrot.lane.b32.xlu0 %v548, 64
    %v951 = vpop.permute.xlu0 %950
    %952 = vrot.lane.b32.xlu0 %v550, 64
    %v953 = vpop.permute.xlu0 %952
    %v957 = vsel %vm817, %v938, 0
    %v960 = vsel %vm817, %v939, 0
    %962 = vmatpush.msra.mxu0 0.0
    %963 = vmatpush.msra.mxu0 0.0
    %964 = vmatpush.msra.mxu0 0.0
    %965 = vmatpush.msra.mxu0 0.0
    %966 = vmatpush.msra.mxu0 0.0
    %967 = vmatpush.msra.mxu0 0.0
    %968 = vmatpush.msra.mxu0 0.0
    %969 = vmatpush.msra.mxu0 0.0
    %970 = vmatpush.msra.mxu0 0.0
    %971 = vmatpush.msra.mxu0 0.0
    %972 = vmatpush.msra.mxu0 0.0
    %973 = vmatpush.msra.mxu0 0.0
    %974 = vmatpush.msra.mxu0 0.0
    %975 = vmatpush.msra.mxu0 0.0
    %976 = vmatpush.msra.mxu0 %v953
    %977 = vmatpush.msra.mxu0 %v951
    %978 = vmatmul.f32.gmra.mxu0 %v957
    %v979 = vpop.f32.mrf.mxu0
    %v980 = vadd.f32 0.0, %v979
    %981 = vmatmul.f32.gmra.mxu0 %v960
    %v982 = vpop.f32.mrf.mxu0
    %v983 = vadd.f32 0.0, %v982
    %984 = vdwg.mxu0
    %985 = vrot.lane.b32.xlu0 %v548, 32
    %v986 = vpop.permute.xlu0 %985
    %987 = vrot.lane.b32.xlu0 %v550, 32
    %v988 = vpop.permute.xlu0 %987
    %v992 = vsel %vm817, %v940, 0
    %v995 = vsel %vm817, %v941, 0
    %997 = vmatpush.msra.mxu0 0.0
    %998 = vmatpush.msra.mxu0 0.0
    %999 = vmatpush.msra.mxu0 0.0
    %1000 = vmatpush.msra.mxu0 0.0
    %1001 = vmatpush.msra.mxu0 0.0
    %1002 = vmatpush.msra.mxu0 0.0
    %1003 = vmatpush.msra.mxu0 0.0
    %1004 = vmatpush.msra.mxu0 0.0
    %1005 = vmatpush.msra.mxu0 0.0
    %1006 = vmatpush.msra.mxu0 0.0
    %1007 = vmatpush.msra.mxu0 0.0
    %1008 = vmatpush.msra.mxu0 0.0
    %1009 = vmatpush.msra.mxu0 0.0
    %1010 = vmatpush.msra.mxu0 0.0
    %1011 = vmatpush.msra.mxu0 %v988
    %1012 = vmatpush.msra.mxu0 %v986
    %1013 = vmatmul.f32.gmra.mxu0 %v992
    %v1014 = vpop.f32.mrf.mxu0
    %v1015 = vadd.f32 0.0, %v1014
    %1016 = vmatmul.f32.gmra.mxu0 %v995
    %v1017 = vpop.f32.mrf.mxu0
    %v1018 = vadd.f32 0.0, %v1017
    %1019 = vdwg.mxu0
    %v1021 = vsel %vm817, %v942, 0
    %v1024 = vsel %vm817, %v943, 0
    %1026 = vmatpush.msra.mxu0 0.0
    %1027 = vmatpush.msra.mxu0 0.0
    %1028 = vmatpush.msra.mxu0 0.0
    %1029 = vmatpush.msra.mxu0 0.0
    %1030 = vmatpush.msra.mxu0 0.0
    %1031 = vmatpush.msra.mxu0 0.0
    %1032 = vmatpush.msra.mxu0 0.0
    %1033 = vmatpush.msra.mxu0 0.0
    %1034 = vmatpush.msra.mxu0 0.0
    %1035 = vmatpush.msra.mxu0 0.0
    %1036 = vmatpush.msra.mxu0 0.0
    %1037 = vmatpush.msra.mxu0 0.0
    %1038 = vmatpush.msra.mxu0 0.0
    %1039 = vmatpush.msra.mxu0 0.0
    %1040 = vmatpush.msra.mxu0 %v564
    %1041 = vmatpush.msra.mxu0 %v562
    %1042 = vmatmul.f32.gmra.mxu0 %v1021
    %v1043 = vpop.f32.mrf.mxu0
    %v1044 = vadd.f32 0.0, %v1043
    %1045 = vmatmul.f32.gmra.mxu0 %v1024
    %v1046 = vpop.f32.mrf.mxu0
    %v1047 = vadd.f32 0.0, %v1046
    %1048 = vdwg.mxu0
    %1051 = vrot.lane.b32.xlu0 %v562, 96
    %v1052 = vpop.permute.xlu0 %1051
    %1053 = vrot.lane.b32.xlu0 %v564, 96
    %v1054 = vpop.permute.xlu0 %1053
    %v1058 = vsel %vm817, %v944, 0
    %v1061 = vsel %vm817, %v945, 0
    %1063 = vmatpush.msra.mxu0 0.0
    %1064 = vmatpush.msra.mxu0 0.0
    %1065 = vmatpush.msra.mxu0 0.0
    %1066 = vmatpush.msra.mxu0 0.0
    %1067 = vmatpush.msra.mxu0 0.0
    %1068 = vmatpush.msra.mxu0 0.0
    %1069 = vmatpush.msra.mxu0 0.0
    %1070 = vmatpush.msra.mxu0 0.0
    %1071 = vmatpush.msra.mxu0 0.0
    %1072 = vmatpush.msra.mxu0 0.0
    %1073 = vmatpush.msra.mxu0 0.0
    %1074 = vmatpush.msra.mxu0 0.0
    %1075 = vmatpush.msra.mxu0 0.0
    %1076 = vmatpush.msra.mxu0 0.0
    %1077 = vmatpush.msra.mxu0 %v1054
    %1078 = vmatpush.msra.mxu0 %v1052
    %1079 = vmatmul.f32.gmra.mxu0 %v1058
    %v1080 = vpop.f32.mrf.mxu0
    %v1081 = vadd.f32 0.0, %v1080
    %1082 = vmatmul.f32.gmra.mxu0 %v1061
    %v1083 = vpop.f32.mrf.mxu0
    %v1084 = vadd.f32 0.0, %v1083
    %1085 = vdwg.mxu0
    %1086 = vrot.lane.b32.xlu0 %v562, 64
    %v1087 = vpop.permute.xlu0 %1086
    %1088 = vrot.lane.b32.xlu0 %v564, 64
    %v1089 = vpop.permute.xlu0 %1088
    %v1093 = vsel %vm817, %v946, 0
    %v1096 = vsel %vm817, %v947, 0
    %1098 = vmatpush.msra.mxu0 0.0
    %1099 = vmatpush.msra.mxu0 0.0
    %1100 = vmatpush.msra.mxu0 0.0
    %1101 = vmatpush.msra.mxu0 0.0
    %1102 = vmatpush.msra.mxu0 0.0
    %1103 = vmatpush.msra.mxu0 0.0
    %1104 = vmatpush.msra.mxu0 0.0
    %1105 = vmatpush.msra.mxu0 0.0
    %1106 = vmatpush.msra.mxu0 0.0
    %1107 = vmatpush.msra.mxu0 0.0
    %1108 = vmatpush.msra.mxu0 0.0
    %1109 = vmatpush.msra.mxu0 0.0
    %1110 = vmatpush.msra.mxu0 0.0
    %1111 = vmatpush.msra.mxu0 0.0
    %1112 = vmatpush.msra.mxu0 %v1089
    %1113 = vmatpush.msra.mxu0 %v1087
    %1114 = vmatmul.f32.gmra.mxu0 %v1093
    %v1115 = vpop.f32.mrf.mxu0
    %v1116 = vadd.f32 0.0, %v1115
    %1117 = vmatmul.f32.gmra.mxu0 %v1096
    %v1118 = vpop.f32.mrf.mxu0
    %v1119 = vadd.f32 0.0, %v1118
    %1120 = vdwg.mxu0
    %1121 = vrot.lane.b32.xlu0 %v562, 32
    %v1122 = vpop.permute.xlu0 %1121
    %1123 = vrot.lane.b32.xlu0 %v564, 32
    %v1124 = vpop.permute.xlu0 %1123
    %v1128 = vsel %vm817, %v948, 0
    %v1131 = vsel %vm817, %v949, 0
    %1133 = vmatpush.msra.mxu0 0.0
    %1134 = vmatpush.msra.mxu0 0.0
    %1135 = vmatpush.msra.mxu0 0.0
    %1136 = vmatpush.msra.mxu0 0.0
    %1137 = vmatpush.msra.mxu0 0.0
    %1138 = vmatpush.msra.mxu0 0.0
    %1139 = vmatpush.msra.mxu0 0.0
    %1140 = vmatpush.msra.mxu0 0.0
    %1141 = vmatpush.msra.mxu0 0.0
    %1142 = vmatpush.msra.mxu0 0.0
    %1143 = vmatpush.msra.mxu0 0.0
    %1144 = vmatpush.msra.mxu0 0.0
    %1145 = vmatpush.msra.mxu0 0.0
    %1146 = vmatpush.msra.mxu0 0.0
    %1147 = vmatpush.msra.mxu0 %v1124
    %1148 = vmatpush.msra.mxu0 %v1122
    %1149 = vmatmul.f32.gmra.mxu0 %v1128
    %v1150 = vpop.f32.mrf.mxu0
    %v1151 = vadd.f32 0.0, %v1150
    %1152 = vmatmul.f32.gmra.mxu0 %v1131
    %v1153 = vpop.f32.mrf.mxu0
    %v1154 = vadd.f32 0.0, %v1153
    %1155 = vdwg.mxu0
    %1158 = vrot.lane.b32.xlu0 %v1015, 32
    %v1159 = vpop.permute.xlu0 %1158
    %1160 = vrot.lane.b32.xlu0 %v1018, 32
    %v1161 = vpop.permute.xlu0 %1160
    %1166 = vrot.lane.b32.xlu0 %v1044, 64
    %v1167 = vpop.permute.xlu0 %1166
    %1168 = vrot.lane.b32.xlu0 %v1047, 64
    %v1169 = vpop.permute.xlu0 %1168
    %1174 = vrot.lane.b32.xlu0 %v1081, 96
    %v1175 = vpop.permute.xlu0 %1174
    %1176 = vrot.lane.b32.xlu0 %v1084, 96
    %v1177 = vpop.permute.xlu0 %1176
    %1182 = vrot.lane.b32.xlu0 %v1151, 32
    %v1183 = vpop.permute.xlu0 %1182
    %1184 = vrot.lane.b32.xlu0 %v1154, 32
    %v1185 = vpop.permute.xlu0 %1184
    %v1188 = vsel %vm566, %v980, %v1159
    %v1189 = vsel %vm566, %v983, %v1161
    %vm1190 = vcmask 523264
    %v1191 = vsel %vm1190, %v1188, %v1167
    %v1192 = vsel %vm1190, %v1189, %v1169
    %vm1193 = vcmask 785408
    %v1194 = vsel %vm1193, %v1191, %v1175
    %v1195 = vsel %vm1193, %v1192, %v1177
    %v1196 = vsel %vm566, %v1116, %v1183
    %v1197 = vsel %vm566, %v1119, %v1185
    %v1198 = vpack.c.bf16 %v1195, %v1194
    %v1199 = vpack.c.bf16 %v1197, %v1196
    %v1200 = vld [vmem:[#allocation5] sm:$0xf]
    %v1201 = vld [vmem:[#allocation5 + $0x4] sm:$0xf]
    %v1202 = vld [vmem:[#allocation5 + $0x8] sm:$0xf]
    %v1203 = vld [vmem:[#allocation5 + $0xc] sm:$0xf]
    %v1204 = vld [vmem:[#allocation5 + $0x10] sm:$0xf]
    %v1205 = vld [vmem:[#allocation5 + $0x14] sm:$0xf]
    %v1206 = vld [vmem:[#allocation5 + $0x18] sm:$0xf]
    %v1207 = vld [vmem:[#allocation5 + $0x1c] sm:$0xf]
    %v1208 = vld [vmem:[#allocation5 + $0x20] sm:$0xf]
    %v1209 = vld [vmem:[#allocation5 + $0x24] sm:$0xf]
    %v1210 = vld [vmem:[#allocation5 + $0x28] sm:$0xf]
    %v1211 = vld [vmem:[#allocation5 + $0x2c] sm:$0xf]
    %v1212 = vld [vmem:[#allocation5 + $0x30] sm:$0xf]
    %v1213 = vld [vmem:[#allocation5 + $0x34] sm:$0xf]
    %v1214 = vld [vmem:[#allocation5 + $0x38] sm:$0xf]
    %v1215 = vld [vmem:[#allocation5 + $0x3c] sm:$0xf]
    %v1216 = vld [vmem:[#allocation5 + $0x40] sm:$0xf]
    %v1217 = vld [vmem:[#allocation5 + $0x44] sm:$0xf]
    %v1218 = vld [vmem:[#allocation5 + $0x48] sm:$0xf]
    %v1219 = vld [vmem:[#allocation5 + $0x4c] sm:$0xf]
    %v1220 = vld [vmem:[#allocation5 + $0x50] sm:$0xf]
    %v1221 = vld [vmem:[#allocation5 + $0x54] sm:$0xf]
    %v1222 = vld [vmem:[#allocation5 + $0x58] sm:$0xf]
    %v1223 = vld [vmem:[#allocation5 + $0x5c] sm:$0xf]
    %v1224 = vld [vmem:[#allocation16] sm:$0x1]
    %v1226 = vperm.slane %v1224, 0
    %v1252 = vunpack.c.l.b16 %v1200
    %v1253 = vunpack.c.l.b16 %v1201
    %v1254 = vunpack.c.l.b16 %v1202
    %v1255 = vunpack.c.l.b16 %v1203
    %v1256 = vunpack.c.l.b16 %v1204
    %v1257 = vunpack.c.l.b16 %v1205
    %v1258 = vunpack.c.l.b16 %v1206
    %v1259 = vunpack.c.l.b16 %v1207
    %v1260 = vunpack.c.l.b16 %v1208
    %v1261 = vunpack.c.l.b16 %v1209
    %v1262 = vunpack.c.l.b16 %v1210
    %v1263 = vunpack.c.l.b16 %v1211
    %v1264 = vunpack.c.l.b16 %v1212
    %v1265 = vunpack.c.l.b16 %v1213
    %v1266 = vunpack.c.l.b16 %v1214
    %v1267 = vunpack.c.l.b16 %v1215
    %v1268 = vunpack.c.l.b16 %v1216
    %v1269 = vunpack.c.l.b16 %v1217
    %v1270 = vunpack.c.l.b16 %v1218
    %v1271 = vunpack.c.l.b16 %v1219
    %v1272 = vunpack.c.l.b16 %v1220
    %v1273 = vunpack.c.l.b16 %v1221
    %v1274 = vunpack.c.l.b16 %v1222
    %v1275 = vunpack.c.l.b16 %v1223
    %v1276 = vpack.c.b16 %v1253, %v1252
    %v1277 = vpack.c.b16 %v1255, %v1254
    %v1278 = vpack.c.b16 %v1257, %v1256
    %v1279 = vpack.c.b16 %v1259, %v1258
    %v1280 = vpack.c.b16 %v1261, %v1260
    %v1281 = vpack.c.b16 %v1263, %v1262
    %v1282 = vpack.c.b16 %v1265, %v1264
    %v1283 = vpack.c.b16 %v1267, %v1266
    %v1284 = vpack.c.b16 %v1269, %v1268
    %v1285 = vpack.c.b16 %v1271, %v1270
    %v1286 = vpack.c.b16 %v1273, %v1272
    %v1287 = vpack.c.b16 %v1275, %v1274
    %v1301 = vsel %vm1190, %v1199, 0
    %1303 = vmatpush.bf16.msra.mxu0 %v1283
    %1304 = vmatpush.bf16.msra.mxu0 %v1282
    %1305 = vmatpush.bf16.msra.mxu0 %v1281
    %1306 = vmatpush.bf16.msra.mxu0 %v1280
    %1307 = vmatpush.bf16.msra.mxu0 %v1279
    %1308 = vmatpush.bf16.msra.mxu0 %v1278
    %1309 = vmatpush.bf16.msra.mxu0 %v1277
    %1310 = vmatpush.bf16.msra.mxu0 %v1276
    %1311 = vmatmul.bf16.gmra.mxu0 %v1198
    %v1312 = vpop.f32.mrf.mxu0
    %v1313 = vadd.f32 %v1226, %v1312
    %v1314 = vpop.f32.mrf.mxu0
    %v1315 = vadd.f32 %v1226, %v1314
    %1316 = vdwg.mxu0
    %1317 = vmatpush.bf16.msra.mxu0 0
    %1318 = vmatpush.bf16.msra.mxu0 0
    %1319 = vmatpush.bf16.msra.mxu0 0
    %1320 = vmatpush.bf16.msra.mxu0 0
    %1321 = vmatpush.bf16.msra.mxu0 %v1287
    %1322 = vmatpush.bf16.msra.mxu0 %v1286
    %1323 = vmatpush.bf16.msra.mxu0 %v1285
    %1324 = vmatpush.bf16.msra.mxu0 %v1284
    %1325 = vmatmul.bf16.gmra.mxu0 %v1301
    %v1326 = vpop.f32.mrf.mxu0
    %v1327 = vadd.f32 %v1313, %v1326
    %v1328 = vpop.f32.mrf.mxu0
    %v1329 = vadd.f32 %v1315, %v1328
    %1330 = vdwg.mxu0
    %v1331 = vadd.f32 %v189, %v1327
    %v1332 = vadd.f32 %v190, %v1329
    %1333 = vadd.xlane.f32.xlu0 %v1331
    %v1334 = vpop.xlane.xlu0 %1333
    %1335 = vadd.xlane.f32.xlu0 %v1332
    %v1336 = vpop.xlane.xlu0 %1335
    %v1337 = vmul.f32 %v1334, 0.009803922
    %v1338 = vmul.f32 %v1336, 0.009803922
    %v1339 = vsub.f32 %v1331, %v1337
    %v1340 = vsub.f32 %v1332, %v1338
    %v1341 = vmul.f32 %v1339, %v224
    %v1342 = vmul.f32 %v1340, %v224
    %v1343 = vmul.f32 %v1341, %v1341
    %v1344 = vmul.f32 %v1342, %v1342
    %1345 = vadd.xlane.f32.xlu0 %v1343
    %v1346 = vpop.xlane.xlu0 %1345
    %1347 = vadd.xlane.f32.xlu0 %v1344
    %v1348 = vpop.xlane.xlu0 %1347
    %v1349 = vmul.f32 %v1346, 0.009803922
    %v1350 = vmul.f32 %v1348, 0.009803922
    %v1351 = vadd.f32 %v1349, 1e-05
    %v1352 = vadd.f32 %v1350, 1e-05
    %v1353 = vrsqrt.pop %v1351
    %v1354 = vmul.f32 %v1353, %v1351
    %v1355 = vmul.f32 %v1354, %v1353
    %v1356 = vmul.f32 0.5, %v1355
    %v1357 = vsub.f32 1.5, %v1356
    %v1358 = vmul.f32 %v1353, %v1357
    %vm1359 = vweird.f32 %v1351
    %vm1360 = vweird.f32 %v1353
    %vm1361 = vmor %vm1359, %vm1360
    %v1362 = vsel %vm1361, %v1353, %v1358
    %v1363 = vrsqrt.pop %v1352
    %v1364 = vmul.f32 %v1363, %v1352
    %v1365 = vmul.f32 %v1364, %v1363
    %v1366 = vmul.f32 0.5, %v1365
    %v1367 = vsub.f32 1.5, %v1366
    %v1368 = vmul.f32 %v1363, %v1367
    %vm1369 = vweird.f32 %v1352
    %vm1370 = vweird.f32 %v1363
    %vm1371 = vmor %vm1369, %vm1370
    %v1372 = vsel %vm1371, %v1363, %v1368
    %v1373 = vmul.f32 %v1341, %v1362
    %v1374 = vmul.f32 %v1342, %v1372
    %s1375 = scalar_lea.vmem [#allocation16], 3
    %v1376 = vld [vmem:[%s1375] sm:$0x1]
    %v1378 = vperm.slane %v1376, 0
    %v1380 = vmul.f32 %v1373, %v1378
    %v1381 = vmul.f32 %v1374, %v1378
    %s1382 = scalar_lea.vmem [#allocation16], 4
    %v1383 = vld [vmem:[%s1382] sm:$0x1]
    %v1385 = vperm.slane %v1383, 0
    %v1387 = vadd.f32 %v1380, %v1385
    %v1388 = vadd.f32 %v1381, %v1385
    %v1389 = vpack.c.bf16 %v1388, %v1387
    %s1390 = scalar_lea.vmem %s4, 128
    %v1391 = vld [vmem:[%s1390] sm:$0xff]
    %v1392 = vld [vmem:[%s1390 + $0x8] sm:$0xff]
    %v1393 = vld [vmem:[%s1390 + $0x10] sm:$0xff]
    %v1394 = vld [vmem:[%s1390 + $0x18] sm:$0xff]
    %v1395 = vld [vmem:[%s1390 + $0x20] sm:$0xff]
    %v1396 = vld [vmem:[%s1390 + $0x28] sm:$0xff]
    %v1397 = vld [vmem:[%s1390 + $0x30] sm:$0xff]
    %v1398 = vld [vmem:[%s1390 + $0x38] sm:$0xff]
    %v1399 = vld [vmem:[%s1390 + $0x40] sm:$0xff]
    %v1400 = vld [vmem:[%s1390 + $0x48] sm:$0xff]
    %v1401 = vld [vmem:[%s1390 + $0x50] sm:$0xff]
    %v1402 = vld [vmem:[%s1390 + $0x58] sm:$0xff]
    %v1403 = vld [vmem:[%s1390 + $0x60] sm:$0xff]
    %v1404 = vld [vmem:[%s1390 + $0x68] sm:$0xff]
    %v1405 = vld [vmem:[%s1390 + $0x70] sm:$0xff]
    %v1406 = vld [vmem:[%s1390 + $0x78] sm:$0xff]
    %s1407 = scalar_lea.vmem [#allocation7], 2
    %v1408 = vld [vmem:[%s1407] sm:$0x3]
    %v1410 = vperm.slane %v1408, 0
    %v1411 = vperm.slane %v1408, 1
    %v1430 = vunpack.c.l.b16 %v1391
    %v1431 = vunpack.c.h.b16 %v1391
    %v1432 = vunpack.c.l.b16 %v1392
    %v1433 = vunpack.c.h.b16 %v1392
    %v1434 = vunpack.c.l.b16 %v1393
    %v1435 = vunpack.c.h.b16 %v1393
    %v1436 = vunpack.c.l.b16 %v1394
    %v1437 = vunpack.c.h.b16 %v1394
    %v1438 = vunpack.c.l.b16 %v1395
    %v1439 = vunpack.c.h.b16 %v1395
    %v1440 = vunpack.c.l.b16 %v1396
    %v1441 = vunpack.c.h.b16 %v1396
    %v1442 = vunpack.c.l.b16 %v1397
    %v1443 = vunpack.c.h.b16 %v1397
    %v1444 = vunpack.c.l.b16 %v1398
    %v1445 = vunpack.c.h.b16 %v1398
    %v1446 = vunpack.c.l.b16 %v1399
    %v1447 = vunpack.c.h.b16 %v1399
    %v1448 = vunpack.c.l.b16 %v1400
    %v1449 = vunpack.c.h.b16 %v1400
    %v1450 = vunpack.c.l.b16 %v1401
    %v1451 = vunpack.c.h.b16 %v1401
    %v1452 = vunpack.c.l.b16 %v1402
    %v1453 = vunpack.c.h.b16 %v1402
    %v1454 = vunpack.c.l.b16 %v1403
    %v1455 = vunpack.c.h.b16 %v1403
    %v1456 = vunpack.c.l.b16 %v1404
    %v1457 = vunpack.c.h.b16 %v1404
    %v1458 = vunpack.c.l.b16 %v1405
    %v1459 = vunpack.c.h.b16 %v1405
    %v1460 = vunpack.c.l.b16 %v1406
    %v1461 = vunpack.c.h.b16 %v1406
    %v1462 = vpack.c.b16 %v1432, %v1430
    %v1463 = vpack.c.b16 %v1433, %v1431
    %v1464 = vpack.c.b16 %v1436, %v1434
    %v1465 = vpack.c.b16 %v1437, %v1435
    %v1466 = vpack.c.b16 %v1440, %v1438
    %v1467 = vpack.c.b16 %v1441, %v1439
    %v1468 = vpack.c.b16 %v1444, %v1442
    %v1469 = vpack.c.b16 %v1445, %v1443
    %v1470 = vpack.c.b16 %v1448, %v1446
    %v1471 = vpack.c.b16 %v1449, %v1447
    %v1472 = vpack.c.b16 %v1452, %v1450
    %v1473 = vpack.c.b16 %v1453, %v1451
    %v1474 = vpack.c.b16 %v1456, %v1454
    %v1475 = vpack.c.b16 %v1457, %v1455
    %v1476 = vpack.c.b16 %v1460, %v1458
    %v1477 = vpack.c.b16 %v1461, %v1459
    %1494 = vmatpush.bf16.msra.mxu0 %v1476
    %1495 = vmatpush.bf16.msra.mxu0 %v1474
    %1496 = vmatpush.bf16.msra.mxu0 %v1472
    %1497 = vmatpush.bf16.msra.mxu0 %v1470
    %1498 = vmatpush.bf16.msra.mxu0 %v1468
    %1499 = vmatpush.bf16.msra.mxu0 %v1466
    %1500 = vmatpush.bf16.msra.mxu0 %v1464
    %1501 = vmatpush.bf16.msra.mxu0 %v1462
    %1502 = vmatmul.bf16.gmra.mxu0 %v1389
    %v1503 = vpop.f32.mrf.mxu0
    %v1504 = vadd.f32 %v1410, %v1503
    %v1505 = vpop.f32.mrf.mxu0
    %v1506 = vadd.f32 %v1410, %v1505
    %1507 = vdwg.mxu0
    %1508 = vmatpush.bf16.msra.mxu0 %v1477
    %1509 = vmatpush.bf16.msra.mxu0 %v1475
    %1510 = vmatpush.bf16.msra.mxu0 %v1473
    %1511 = vmatpush.bf16.msra.mxu0 %v1471
    %1512 = vmatpush.bf16.msra.mxu0 %v1469
    %1513 = vmatpush.bf16.msra.mxu0 %v1467
    %1514 = vmatpush.bf16.msra.mxu0 %v1465
    %1515 = vmatpush.bf16.msra.mxu0 %v1463
    %1516 = vmatmul.bf16.gmra.mxu0 %v1389
    %v1517 = vpop.f32.mrf.mxu0
    %v1518 = vadd.f32 %v1411, %v1517
    %v1519 = vpop.f32.mrf.mxu0
    %v1520 = vadd.f32 %v1411, %v1519
    %1521 = vdwg.mxu0
    %s1522 = scalar_lea.vmem [#allocation2], 192
    %v1523 = vld [vmem:[%s1522] sm:$0xff]
    %v1524 = vld [vmem:[%s1522 + $0x8] sm:$0xf]
    %v1525 = vld [vmem:[%s1522 + $0xc] sm:$0xff]
    %v1526 = vld [vmem:[%s1522 + $0x14] sm:$0xf]
    %v1527 = vld [vmem:[%s1522 + $0x18] sm:$0xff]
    %v1528 = vld [vmem:[%s1522 + $0x20] sm:$0xf]
    %v1529 = vld [vmem:[%s1522 + $0x24] sm:$0xff]
    %v1530 = vld [vmem:[%s1522 + $0x2c] sm:$0xf]
    %v1531 = vld [vmem:[%s1522 + $0x30] sm:$0xff]
    %v1532 = vld [vmem:[%s1522 + $0x38] sm:$0xf]
    %v1533 = vld [vmem:[%s1522 + $0x3c] sm:$0xff]
    %v1534 = vld [vmem:[%s1522 + $0x44] sm:$0xf]
    %v1535 = vld [vmem:[%s1522 + $0x48] sm:$0xff]
    %v1536 = vld [vmem:[%s1522 + $0x50] sm:$0xf]
    %v1537 = vld [vmem:[%s1522 + $0x54] sm:$0xff]
    %v1538 = vld [vmem:[%s1522 + $0x5c] sm:$0xf]
    %v1539 = vld [vmem:[%s1522 + $0x60] sm:$0xff]
    %v1540 = vld [vmem:[%s1522 + $0x68] sm:$0xf]
    %v1541 = vld [vmem:[%s1522 + $0x6c] sm:$0xff]
    %v1542 = vld [vmem:[%s1522 + $0x74] sm:$0xf]
    %v1543 = vld [vmem:[%s1522 + $0x78] sm:$0xff]
    %v1544 = vld [vmem:[%s1522 + $0x80] sm:$0xf]
    %v1545 = vld [vmem:[%s1522 + $0x84] sm:$0xff]
    %v1546 = vld [vmem:[%s1522 + $0x8c] sm:$0xf]
    %v1547 = vld [vmem:[%s1522 + $0x90] sm:$0xff]
    %v1548 = vld [vmem:[%s1522 + $0x98] sm:$0xf]
    %v1549 = vld [vmem:[%s1522 + $0x9c] sm:$0xff]
    %v1550 = vld [vmem:[%s1522 + $0xa4] sm:$0xf]
    %v1551 = vld [vmem:[%s1522 + $0xa8] sm:$0xff]
    %v1552 = vld [vmem:[%s1522 + $0xb0] sm:$0xf]
    %v1553 = vld [vmem:[%s1522 + $0xb4] sm:$0xff]
    %v1554 = vld [vmem:[%s1522 + $0xbc] sm:$0xf]
    %s1555 = scalar_lea.vmem [#allocation8], 3
    %v1556 = vld [vmem:[%s1555] sm:$0x7]
    %v1558 = vperm.slane %v1556, 0
    %v1559 = vperm.slane %v1556, 1
    %v1560 = vperm.slane %v1556, 2
    %v1596 = vunpack.c.l.b16 %v1523
    %v1597 = vunpack.c.h.b16 %v1523
    %v1598 = vunpack.c.l.b16 %v1524
    %v1599 = vunpack.c.l.b16 %v1525
    %v1600 = vunpack.c.h.b16 %v1525
    %v1601 = vunpack.c.l.b16 %v1526
    %v1602 = vunpack.c.l.b16 %v1527
    %v1603 = vunpack.c.h.b16 %v1527
    %v1604 = vunpack.c.l.b16 %v1528
    %v1605 = vunpack.c.l.b16 %v1529
    %v1606 = vunpack.c.h.b16 %v1529
    %v1607 = vunpack.c.l.b16 %v1530
    %v1608 = vunpack.c.l.b16 %v1531
    %v1609 = vunpack.c.h.b16 %v1531
    %v1610 = vunpack.c.l.b16 %v1532
    %v1611 = vunpack.c.l.b16 %v1533
    %v1612 = vunpack.c.h.b16 %v1533
    %v1613 = vunpack.c.l.b16 %v1534
    %v1614 = vunpack.c.l.b16 %v1535
    %v1615 = vunpack.c.h.b16 %v1535
    %v1616 = vunpack.c.l.b16 %v1536
    %v1617 = vunpack.c.l.b16 %v1537
    %v1618 = vunpack.c.h.b16 %v1537
    %v1619 = vunpack.c.l.b16 %v1538
    %v1620 = vunpack.c.l.b16 %v1539
    %v1621 = vunpack.c.h.b16 %v1539
    %v1622 = vunpack.c.l.b16 %v1540
    %v1623 = vunpack.c.l.b16 %v1541
    %v1624 = vunpack.c.h.b16 %v1541
    %v1625 = vunpack.c.l.b16 %v1542
    %v1626 = vunpack.c.l.b16 %v1543
    %v1627 = vunpack.c.h.b16 %v1543
    %v1628 = vunpack.c.l.b16 %v1544
    %v1629 = vunpack.c.l.b16 %v1545
    %v1630 = vunpack.c.h.b16 %v1545
    %v1631 = vunpack.c.l.b16 %v1546
    %v1632 = vunpack.c.l.b16 %v1547
    %v1633 = vunpack.c.h.b16 %v1547
    %v1634 = vunpack.c.l.b16 %v1548
    %v1635 = vunpack.c.l.b16 %v1549
    %v1636 = vunpack.c.h.b16 %v1549
    %v1637 = vunpack.c.l.b16 %v1550
    %v1638 = vunpack.c.l.b16 %v1551
    %v1639 = vunpack.c.h.b16 %v1551
    %v1640 = vunpack.c.l.b16 %v1552
    %v1641 = vunpack.c.l.b16 %v1553
    %v1642 = vunpack.c.h.b16 %v1553
    %v1643 = vunpack.c.l.b16 %v1554
    %v1644 = vpack.c.b16 %v1599, %v1596
    %v1645 = vpack.c.b16 %v1600, %v1597
    %v1646 = vpack.c.b16 %v1601, %v1598
    %v1647 = vpack.c.b16 %v1605, %v1602
    %v1648 = vpack.c.b16 %v1606, %v1603
    %v1649 = vpack.c.b16 %v1607, %v1604
    %v1650 = vpack.c.b16 %v1611, %v1608
    %v1651 = vpack.c.b16 %v1612, %v1609
    %v1652 = vpack.c.b16 %v1613, %v1610
    %v1653 = vpack.c.b16 %v1617, %v1614
    %v1654 = vpack.c.b16 %v1618, %v1615
    %v1655 = vpack.c.b16 %v1619, %v1616
    %v1656 = vpack.c.b16 %v1623, %v1620
    %v1657 = vpack.c.b16 %v1624, %v1621
    %v1658 = vpack.c.b16 %v1625, %v1622
    %v1659 = vpack.c.b16 %v1629, %v1626
    %v1660 = vpack.c.b16 %v1630, %v1627
    %v1661 = vpack.c.b16 %v1631, %v1628
    %v1662 = vpack.c.b16 %v1635, %v1632
    %v1663 = vpack.c.b16 %v1636, %v1633
    %v1664 = vpack.c.b16 %v1637, %v1634
    %v1665 = vpack.c.b16 %v1641, %v1638
    %v1666 = vpack.c.b16 %v1642, %v1639
    %v1667 = vpack.c.b16 %v1643, %v1640
    %1692 = vmatpush.bf16.msra.mxu0 %v1665
    %1693 = vmatpush.bf16.msra.mxu0 %v1662
    %1694 = vmatpush.bf16.msra.mxu0 %v1659
    %1695 = vmatpush.bf16.msra.mxu0 %v1656
    %1696 = vmatpush.bf16.msra.mxu0 %v1653
    %1697 = vmatpush.bf16.msra.mxu0 %v1650
    %1698 = vmatpush.bf16.msra.mxu0 %v1647
    %1699 = vmatpush.bf16.msra.mxu0 %v1644
    %1700 = vmatmul.bf16.gmra.mxu0 %v194
    %v1701 = vpop.f32.mrf.mxu0
    %v1702 = vadd.f32 %v1558, %v1701
    %v1703 = vpop.f32.mrf.mxu0
    %v1704 = vadd.f32 %v1558, %v1703
    %1705 = vmatmul.bf16.gmra.mxu0 %v195
    %v1706 = vpop.f32.mrf.mxu0
    %v1707 = vadd.f32 %v1558, %v1706
    %v1708 = vpop.f32.mrf.mxu0
    %1709 = vdwg.mxu0
    %1710 = vmatpush.bf16.msra.mxu0 %v1666
    %1711 = vmatpush.bf16.msra.mxu0 %v1663
    %1712 = vmatpush.bf16.msra.mxu0 %v1660
    %1713 = vmatpush.bf16.msra.mxu0 %v1657
    %1714 = vmatpush.bf16.msra.mxu0 %v1654
    %1715 = vmatpush.bf16.msra.mxu0 %v1651
    %1716 = vmatpush.bf16.msra.mxu0 %v1648
    %1717 = vmatpush.bf16.msra.mxu0 %v1645
    %1718 = vmatmul.bf16.gmra.mxu0 %v194
    %v1719 = vpop.f32.mrf.mxu0
    %v1720 = vadd.f32 %v1559, %v1719
    %v1721 = vpop.f32.mrf.mxu0
    %v1722 = vadd.f32 %v1559, %v1721
    %1723 = vmatmul.bf16.gmra.mxu0 %v195
    %v1724 = vpop.f32.mrf.mxu0
    %v1725 = vadd.f32 %v1559, %v1724
    %v1726 = vpop.f32.mrf.mxu0
    %1727 = vdwg.mxu0
    %1728 = vmatpush.bf16.msra.mxu0 %v1667
    %1729 = vmatpush.bf16.msra.mxu0 %v1664
    %1730 = vmatpush.bf16.msra.mxu0 %v1661
    %1731 = vmatpush.bf16.msra.mxu0 %v1658
    %1732 = vmatpush.bf16.msra.mxu0 %v1655
    %1733 = vmatpush.bf16.msra.mxu0 %v1652
    %1734 = vmatpush.bf16.msra.mxu0 %v1649
    %1735 = vmatpush.bf16.msra.mxu0 %v1646
    %1736 = vmatmul.bf16.gmra.mxu0 %v194
    %v1737 = vpop.f32.mrf.mxu0
    %v1738 = vadd.f32 %v1560, %v1737
    %v1739 = vpop.f32.mrf.mxu0
    %v1740 = vadd.f32 %v1560, %v1739
    %1741 = vmatmul.bf16.gmra.mxu0 %v195
    %v1742 = vpop.f32.mrf.mxu0
    %v1743 = vadd.f32 %v1560, %v1742
    %v1744 = vpop.f32.mrf.mxu0
    %1745 = vdwg.mxu0
    %v1747 = vsel %vm566, %v1504, 0
    %v1750 = vsel %vm566, %v1506, 0
    %v1753 = vsel %vm566, %v1702, 0
    %v1756 = vsel %vm566, %v1704, 0
    %v1759 = vsel %vm566, %v1707, 0
    %1761 = vmatpush.xpose.msra.mxu0 0.0
    %1762 = vmatpush.xpose.msra.mxu0 0.0
    %1763 = vmatpush.xpose.msra.mxu0 0.0
    %1764 = vmatpush.xpose.msra.mxu0 0.0
    %1765 = vmatpush.xpose.msra.mxu0 0.0
    %1766 = vmatpush.xpose.msra.mxu0 0.0
    %1767 = vmatpush.xpose.msra.mxu0 0.0
    %1768 = vmatpush.xpose.msra.mxu0 0.0
    %1769 = vmatpush.xpose.msra.mxu0 0.0
    %1770 = vmatpush.xpose.msra.mxu0 0.0
    %1771 = vmatpush.xpose.msra.mxu0 0.0
    %1772 = vmatpush.xpose.msra.mxu0 0.0
    %1773 = vmatpush.xpose.msra.mxu0 0.0
    %1774 = vmatpush.xpose.msra.mxu0 %v1759
    %1775 = vmatpush.xpose.msra.mxu0 %v1756
    %1776 = vmatpush.xpose.msra.mxu0 %v1753
    %1777 = vmatmul.f32.gmra.mxu0 %v1747
    %v1778 = vpop.f32.mrf.mxu0
    %v1779 = vadd.f32 0.0, %v1778
    %1780 = vmatmul.f32.gmra.mxu0 %v1750
    %v1781 = vpop.f32.mrf.mxu0
    %v1782 = vadd.f32 0.0, %v1781
    %1783 = vdwg.mxu0
    %1784 = vrot.lane.b32.xlu0 %v1504, 96
    %v1785 = vpop.permute.xlu0 %1784
    %1786 = vrot.lane.b32.xlu0 %v1506, 96
    %v1787 = vpop.permute.xlu0 %1786
    %1788 = vrot.lane.b32.xlu0 %v1702, 96
    %v1789 = vpop.permute.xlu0 %1788
    %1790 = vrot.lane.b32.xlu0 %v1704, 96
    %v1791 = vpop.permute.xlu0 %1790
    %1792 = vrot.lane.b32.xlu0 %v1707, 96
    %v1793 = vpop.permute.xlu0 %1792
    %v1794 = vsel %vm566, %v1785, 0
    %v1796 = vsel %vm566, %v1787, 0
    %v1798 = vsel %vm566, %v1789, 0
    %v1800 = vsel %vm566, %v1791, 0
    %v1802 = vsel %vm566, %v1793, 0
    %1804 = vmatpush.xpose.msra.mxu0 0.0
    %1805 = vmatpush.xpose.msra.mxu0 0.0
    %1806 = vmatpush.xpose.msra.mxu0 0.0
    %1807 = vmatpush.xpose.msra.mxu0 0.0
    %1808 = vmatpush.xpose.msra.mxu0 0.0
    %1809 = vmatpush.xpose.msra.mxu0 0.0
    %1810 = vmatpush.xpose.msra.mxu0 0.0
    %1811 = vmatpush.xpose.msra.mxu0 0.0
    %1812 = vmatpush.xpose.msra.mxu0 0.0
    %1813 = vmatpush.xpose.msra.mxu0 0.0
    %1814 = vmatpush.xpose.msra.mxu0 0.0
    %1815 = vmatpush.xpose.msra.mxu0 0.0
    %1816 = vmatpush.xpose.msra.mxu0 0.0
    %1817 = vmatpush.xpose.msra.mxu0 %v1802
    %1818 = vmatpush.xpose.msra.mxu0 %v1800
    %1819 = vmatpush.xpose.msra.mxu0 %v1798
    %1820 = vmatmul.f32.gmra.mxu0 %v1794
    %v1821 = vpop.f32.mrf.mxu0
    %v1822 = vadd.f32 0.0, %v1821
    %1823 = vmatmul.f32.gmra.mxu0 %v1796
    %v1824 = vpop.f32.mrf.mxu0
    %v1825 = vadd.f32 0.0, %v1824
    %1826 = vdwg.mxu0
    %1827 = vrot.lane.b32.xlu0 %v1504, 64
    %v1828 = vpop.permute.xlu0 %1827
    %1829 = vrot.lane.b32.xlu0 %v1506, 64
    %v1830 = vpop.permute.xlu0 %1829
    %1831 = vrot.lane.b32.xlu0 %v1702, 64
    %v1832 = vpop.permute.xlu0 %1831
    %1833 = vrot.lane.b32.xlu0 %v1704, 64
    %v1834 = vpop.permute.xlu0 %1833
    %1835 = vrot.lane.b32.xlu0 %v1707, 64
    %v1836 = vpop.permute.xlu0 %1835
    %v1837 = vsel %vm566, %v1828, 0
    %v1839 = vsel %vm566, %v1830, 0
    %v1841 = vsel %vm566, %v1832, 0
    %v1843 = vsel %vm566, %v1834, 0
    %v1845 = vsel %vm566, %v1836, 0
    %1847 = vmatpush.xpose.msra.mxu0 0.0
    %1848 = vmatpush.xpose.msra.mxu0 0.0
    %1849 = vmatpush.xpose.msra.mxu0 0.0
    %1850 = vmatpush.xpose.msra.mxu0 0.0
    %1851 = vmatpush.xpose.msra.mxu0 0.0
    %1852 = vmatpush.xpose.msra.mxu0 0.0
    %1853 = vmatpush.xpose.msra.mxu0 0.0
    %1854 = vmatpush.xpose.msra.mxu0 0.0
    %1855 = vmatpush.xpose.msra.mxu0 0.0
    %1856 = vmatpush.xpose.msra.mxu0 0.0
    %1857 = vmatpush.xpose.msra.mxu0 0.0
    %1858 = vmatpush.xpose.msra.mxu0 0.0
    %1859 = vmatpush.xpose.msra.mxu0 0.0
    %1860 = vmatpush.xpose.msra.mxu0 %v1845
    %1861 = vmatpush.xpose.msra.mxu0 %v1843
    %1862 = vmatpush.xpose.msra.mxu0 %v1841
    %1863 = vmatmul.f32.gmra.mxu0 %v1837
    %v1864 = vpop.f32.mrf.mxu0
    %v1865 = vadd.f32 0.0, %v1864
    %1866 = vmatmul.f32.gmra.mxu0 %v1839
    %v1867 = vpop.f32.mrf.mxu0
    %v1868 = vadd.f32 0.0, %v1867
    %1869 = vdwg.mxu0
    %1870 = vrot.lane.b32.xlu0 %v1504, 32
    %v1871 = vpop.permute.xlu0 %1870
    %1872 = vrot.lane.b32.xlu0 %v1506, 32
    %v1873 = vpop.permute.xlu0 %1872
    %1874 = vrot.lane.b32.xlu0 %v1702, 32
    %v1875 = vpop.permute.xlu0 %1874
    %1876 = vrot.lane.b32.xlu0 %v1704, 32
    %v1877 = vpop.permute.xlu0 %1876
    %1878 = vrot.lane.b32.xlu0 %v1707, 32
    %v1879 = vpop.permute.xlu0 %1878
    %v1880 = vsel %vm566, %v1871, 0
    %v1882 = vsel %vm566, %v1873, 0
    %v1884 = vsel %vm566, %v1875, 0
    %v1886 = vsel %vm566, %v1877, 0
    %v1888 = vsel %vm566, %v1879, 0
    %1890 = vmatpush.xpose.msra.mxu0 0.0
    %1891 = vmatpush.xpose.msra.mxu0 0.0
    %1892 = vmatpush.xpose.msra.mxu0 0.0
    %1893 = vmatpush.xpose.msra.mxu0 0.0
    %1894 = vmatpush.xpose.msra.mxu0 0.0
    %1895 = vmatpush.xpose.msra.mxu0 0.0
    %1896 = vmatpush.xpose.msra.mxu0 0.0
    %1897 = vmatpush.xpose.msra.mxu0 0.0
    %1898 = vmatpush.xpose.msra.mxu0 0.0
    %1899 = vmatpush.xpose.msra.mxu0 0.0
    %1900 = vmatpush.xpose.msra.mxu0 0.0
    %1901 = vmatpush.xpose.msra.mxu0 0.0
    %1902 = vmatpush.xpose.msra.mxu0 0.0
    %1903 = vmatpush.xpose.msra.mxu0 %v1888
    %1904 = vmatpush.xpose.msra.mxu0 %v1886
    %1905 = vmatpush.xpose.msra.mxu0 %v1884
    %1906 = vmatmul.f32.gmra.mxu0 %v1880
    %v1907 = vpop.f32.mrf.mxu0
    %v1908 = vadd.f32 0.0, %v1907
    %1909 = vmatmul.f32.gmra.mxu0 %v1882
    %v1910 = vpop.f32.mrf.mxu0
    %v1911 = vadd.f32 0.0, %v1910
    %1912 = vdwg.mxu0
    %v1914 = vsel %vm566, %v1518, 0
    %v1917 = vsel %vm566, %v1520, 0
    %v1920 = vsel %vm566, %v1720, 0
    %v1923 = vsel %vm566, %v1722, 0
    %v1926 = vsel %vm566, %v1725, 0
    %1928 = vmatpush.xpose.msra.mxu0 0.0
    %1929 = vmatpush.xpose.msra.mxu0 0.0
    %1930 = vmatpush.xpose.msra.mxu0 0.0
    %1931 = vmatpush.xpose.msra.mxu0 0.0
    %1932 = vmatpush.xpose.msra.mxu0 0.0
    %1933 = vmatpush.xpose.msra.mxu0 0.0
    %1934 = vmatpush.xpose.msra.mxu0 0.0
    %1935 = vmatpush.xpose.msra.mxu0 0.0
    %1936 = vmatpush.xpose.msra.mxu0 0.0
    %1937 = vmatpush.xpose.msra.mxu0 0.0
    %1938 = vmatpush.xpose.msra.mxu0 0.0
    %1939 = vmatpush.xpose.msra.mxu0 0.0
    %1940 = vmatpush.xpose.msra.mxu0 0.0
    %1941 = vmatpush.xpose.msra.mxu0 %v1926
    %1942 = vmatpush.xpose.msra.mxu0 %v1923
    %1943 = vmatpush.xpose.msra.mxu0 %v1920
    %1944 = vmatmul.f32.gmra.mxu0 %v1914
    %v1945 = vpop.f32.mrf.mxu0
    %v1946 = vadd.f32 0.0, %v1945
    %1947 = vmatmul.f32.gmra.mxu0 %v1917
    %v1948 = vpop.f32.mrf.mxu0
    %v1949 = vadd.f32 0.0, %v1948
    %1950 = vdwg.mxu0
    %1951 = vrot.lane.b32.xlu0 %v1518, 96
    %v1952 = vpop.permute.xlu0 %1951
    %1953 = vrot.lane.b32.xlu0 %v1520, 96
    %v1954 = vpop.permute.xlu0 %1953
    %1955 = vrot.lane.b32.xlu0 %v1720, 96
    %v1956 = vpop.permute.xlu0 %1955
    %1957 = vrot.lane.b32.xlu0 %v1722, 96
    %v1958 = vpop.permute.xlu0 %1957
    %1959 = vrot.lane.b32.xlu0 %v1725, 96
    %v1960 = vpop.permute.xlu0 %1959
    %v1961 = vsel %vm566, %v1952, 0
    %v1963 = vsel %vm566, %v1954, 0
    %v1965 = vsel %vm566, %v1956, 0
    %v1967 = vsel %vm566, %v1958, 0
    %v1969 = vsel %vm566, %v1960, 0
    %1971 = vmatpush.xpose.msra.mxu0 0.0
    %1972 = vmatpush.xpose.msra.mxu0 0.0
    %1973 = vmatpush.xpose.msra.mxu0 0.0
    %1974 = vmatpush.xpose.msra.mxu0 0.0
    %1975 = vmatpush.xpose.msra.mxu0 0.0
    %1976 = vmatpush.xpose.msra.mxu0 0.0
    %1977 = vmatpush.xpose.msra.mxu0 0.0
    %1978 = vmatpush.xpose.msra.mxu0 0.0
    %1979 = vmatpush.xpose.msra.mxu0 0.0
    %1980 = vmatpush.xpose.msra.mxu0 0.0
    %1981 = vmatpush.xpose.msra.mxu0 0.0
    %1982 = vmatpush.xpose.msra.mxu0 0.0
    %1983 = vmatpush.xpose.msra.mxu0 0.0
    %1984 = vmatpush.xpose.msra.mxu0 %v1969
    %1985 = vmatpush.xpose.msra.mxu0 %v1967
    %1986 = vmatpush.xpose.msra.mxu0 %v1965
    %1987 = vmatmul.f32.gmra.mxu0 %v1961
    %v1988 = vpop.f32.mrf.mxu0
    %v1989 = vadd.f32 0.0, %v1988
    %1990 = vmatmul.f32.gmra.mxu0 %v1963
    %v1991 = vpop.f32.mrf.mxu0
    %v1992 = vadd.f32 0.0, %v1991
    %1993 = vdwg.mxu0
    %v1994 = vmul.f32 %v1779, 0.24253562
    %v1995 = vmul.f32 %v1782, 0.24253562
    %v1996 = vmul.f32 %v1822, 0.24253562
    %v1997 = vmul.f32 %v1825, 0.24253562
    %v1998 = vmul.f32 %v1865, 0.24253562
    %v1999 = vmul.f32 %v1868, 0.24253562
    %v2000 = vmul.f32 %v1908, 0.24253562
    %v2001 = vmul.f32 %v1911, 0.24253562
    %v2002 = vmul.f32 %v1946, 0.24253562
    %v2003 = vmul.f32 %v1949, 0.24253562
    %v2004 = vmul.f32 %v1989, 0.24253562
    %v2005 = vmul.f32 %v1992, 0.24253562
    %v2006 = vadd.f32 %v1994, %v208
    %v2007 = vadd.f32 %v1995, %v209
    %v2008 = vadd.f32 %v1996, %v210
    %v2009 = vadd.f32 %v1997, %v211
    %v2010 = vadd.f32 %v1998, %v212
    %v2011 = vadd.f32 %v1999, %v213
    %v2012 = vadd.f32 %v2000, %v214
    %v2013 = vadd.f32 %v2001, %v215
    %v2014 = vadd.f32 %v2002, %v216
    %v2015 = vadd.f32 %v2003, %v217
    %v2016 = vadd.f32 %v2004, %v218
    %v2017 = vadd.f32 %v2005, %v219
    %vm2018 = vcmask 162816
    %v2019 = vsel %vm2018, %v2006, -inf
    %2020 = vmax.xlane.f32.xlu0 %v2019
    %v2021 = vpop.xlane.xlu0 %2020
    %v2022 = vsel %vm2018, %v2007, -inf
    %2023 = vmax.xlane.f32.xlu0 %v2022
    %v2024 = vpop.xlane.xlu0 %2023
    %v2025 = vsel %vm2018, %v2008, -inf
    %2026 = vmax.xlane.f32.xlu0 %v2025
    %v2027 = vpop.xlane.xlu0 %2026
    %v2028 = vsel %vm2018, %v2009, -inf
    %2029 = vmax.xlane.f32.xlu0 %v2028
    %v2030 = vpop.xlane.xlu0 %2029
    %v2031 = vsel %vm2018, %v2010, -inf
    %2032 = vmax.xlane.f32.xlu0 %v2031
    %v2033 = vpop.xlane.xlu0 %2032
    %v2034 = vsel %vm2018, %v2011, -inf
    %2035 = vmax.xlane.f32.xlu0 %v2034
    %v2036 = vpop.xlane.xlu0 %2035
    %v2037 = vsel %vm2018, %v2012, -inf
    %2038 = vmax.xlane.f32.xlu0 %v2037
    %v2039 = vpop.xlane.xlu0 %2038
    %v2040 = vsel %vm2018, %v2013, -inf
    %2041 = vmax.xlane.f32.xlu0 %v2040
    %v2042 = vpop.xlane.xlu0 %2041
    %v2043 = vsel %vm2018, %v2014, -inf
    %2044 = vmax.xlane.f32.xlu0 %v2043
    %v2045 = vpop.xlane.xlu0 %2044
    %v2046 = vsel %vm2018, %v2015, -inf
    %2047 = vmax.xlane.f32.xlu0 %v2046
    %v2048 = vpop.xlane.xlu0 %2047
    %v2049 = vsel %vm2018, %v2016, -inf
    %2050 = vmax.xlane.f32.xlu0 %v2049
    %v2051 = vpop.xlane.xlu0 %2050
    %v2052 = vsel %vm2018, %v2017, -inf
    %2053 = vmax.xlane.f32.xlu0 %v2052
    %v2054 = vpop.xlane.xlu0 %2053
    %v2055 = vsub.f32 %v2006, %v2021
    %v2056 = vsub.f32 %v2007, %v2024
    %v2057 = vsub.f32 %v2008, %v2027
    %v2058 = vsub.f32 %v2009, %v2030
    %v2059 = vsub.f32 %v2010, %v2033
    %v2060 = vsub.f32 %v2011, %v2036
    %v2061 = vsub.f32 %v2012, %v2039
    %v2062 = vsub.f32 %v2013, %v2042
    %v2063 = vsub.f32 %v2014, %v2045
    %v2064 = vsub.f32 %v2015, %v2048
    %v2065 = vsub.f32 %v2016, %v2051
    %v2066 = vsub.f32 %v2017, %v2054
    %v2067 = vmul.f32 %v2055, 1.442695
    %v2068 = vpow.pop %v2067
    %v2069 = vmul.f32 %v2056, 1.442695
    %v2070 = vpow.pop %v2069
    %v2071 = vmul.f32 %v2057, 1.442695
    %v2072 = vpow.pop %v2071
    %v2073 = vmul.f32 %v2058, 1.442695
    %v2074 = vpow.pop %v2073
    %v2075 = vmul.f32 %v2059, 1.442695
    %v2076 = vpow.pop %v2075
    %v2077 = vmul.f32 %v2060, 1.442695
    %v2078 = vpow.pop %v2077
    %v2079 = vmul.f32 %v2061, 1.442695
    %v2080 = vpow.pop %v2079
    %v2081 = vmul.f32 %v2062, 1.442695
    %v2082 = vpow.pop %v2081
    %v2083 = vmul.f32 %v2063, 1.442695
    %v2084 = vpow.pop %v2083
    %v2085 = vmul.f32 %v2064, 1.442695
    %v2086 = vpow.pop %v2085
    %v2087 = vmul.f32 %v2065, 1.442695
    %v2088 = vpow.pop %v2087
    %v2089 = vmul.f32 %v2066, 1.442695
    %v2090 = vpow.pop %v2089
    %v2091 = vsel %vm2018, %v2068, 0.0
    %2092 = vadd.xlane.f32.xlu0 %v2091
    %v2093 = vpop.xlane.xlu0 %2092
    %v2094 = vsel %vm2018, %v2070, 0.0
    %2095 = vadd.xlane.f32.xlu0 %v2094
    %v2096 = vpop.xlane.xlu0 %2095
    %v2097 = vsel %vm2018, %v2072, 0.0
    %2098 = vadd.xlane.f32.xlu0 %v2097
    %v2099 = vpop.xlane.xlu0 %2098
    %v2100 = vsel %vm2018, %v2074, 0.0
    %2101 = vadd.xlane.f32.xlu0 %v2100
    %v2102 = vpop.xlane.xlu0 %2101
    %v2103 = vsel %vm2018, %v2076, 0.0
    %2104 = vadd.xlane.f32.xlu0 %v2103
    %v2105 = vpop.xlane.xlu0 %2104
    %v2106 = vsel %vm2018, %v2078, 0.0
    %2107 = vadd.xlane.f32.xlu0 %v2106
    %v2108 = vpop.xlane.xlu0 %2107
    %v2109 = vsel %vm2018, %v2080, 0.0
    %2110 = vadd.xlane.f32.xlu0 %v2109
    %v2111 = vpop.xlane.xlu0 %2110
    %v2112 = vsel %vm2018, %v2082, 0.0
    %2113 = vadd.xlane.f32.xlu0 %v2112
    %v2114 = vpop.xlane.xlu0 %2113
    %v2115 = vsel %vm2018, %v2084, 0.0
    %2116 = vadd.xlane.f32.xlu0 %v2115
    %v2117 = vpop.xlane.xlu0 %2116
    %v2118 = vsel %vm2018, %v2086, 0.0
    %2119 = vadd.xlane.f32.xlu0 %v2118
    %v2120 = vpop.xlane.xlu0 %2119
    %v2121 = vsel %vm2018, %v2088, 0.0
    %2122 = vadd.xlane.f32.xlu0 %v2121
    %v2123 = vpop.xlane.xlu0 %2122
    %v2124 = vsel %vm2018, %v2090, 0.0
    %2125 = vadd.xlane.f32.xlu0 %v2124
    %v2126 = vpop.xlane.xlu0 %2125
    %v2127 = vrcp.pop %v2093
    %v2128 = vrcp.pop %v2096
    %v2129 = vrcp.pop %v2099
    %v2130 = vrcp.pop %v2102
    %v2131 = vrcp.pop %v2105
    %v2132 = vrcp.pop %v2108
    %v2133 = vrcp.pop %v2111
    %v2134 = vrcp.pop %v2114
    %v2135 = vrcp.pop %v2117
    %v2136 = vrcp.pop %v2120
    %v2137 = vrcp.pop %v2123
    %v2138 = vrcp.pop %v2126
    %v2139 = vmul.f32 %v2068, %v2127
    %v2140 = vmul.f32 %v2070, %v2128
    %v2141 = vmul.f32 %v2072, %v2129
    %v2142 = vmul.f32 %v2074, %v2130
    %v2143 = vmul.f32 %v2076, %v2131
    %v2144 = vmul.f32 %v2078, %v2132
    %v2145 = vmul.f32 %v2080, %v2133
    %v2146 = vmul.f32 %v2082, %v2134
    %v2147 = vmul.f32 %v2084, %v2135
    %v2148 = vmul.f32 %v2086, %v2136
    %v2149 = vmul.f32 %v2088, %v2137
    %v2150 = vmul.f32 %v2090, %v2138
    %2151 = vrot.lane.b32.xlu0 %v1720, 64
    %v2152 = vpop.permute.xlu0 %2151
    %2153 = vrot.lane.b32.xlu0 %v1722, 64
    %v2154 = vpop.permute.xlu0 %2153
    %2155 = vrot.lane.b32.xlu0 %v1725, 64
    %v2156 = vpop.permute.xlu0 %2155
    %v2160 = vsel %vm2018, %v2139, 0
    %v2163 = vsel %vm2018, %v2140, 0
    %vm2165 = vcmask 1043456
    %v2166 = vsel %vm2165, %v2156, 0
    %2168 = vmatpush.msra.mxu0 0.0
    %2169 = vmatpush.msra.mxu0 0.0
    %2170 = vmatpush.msra.mxu0 0.0
    %2171 = vmatpush.msra.mxu0 0.0
    %2172 = vmatpush.msra.mxu0 0.0
    %2173 = vmatpush.msra.mxu0 0.0
    %2174 = vmatpush.msra.mxu0 0.0
    %2175 = vmatpush.msra.mxu0 0.0
    %2176 = vmatpush.msra.mxu0 0.0
    %2177 = vmatpush.msra.mxu0 0.0
    %2178 = vmatpush.msra.mxu0 0.0
    %2179 = vmatpush.msra.mxu0 0.0
    %2180 = vmatpush.msra.mxu0 0.0
    %2181 = vmatpush.msra.mxu0 %v2166
    %2182 = vmatpush.msra.mxu0 %v2154
    %2183 = vmatpush.msra.mxu0 %v2152
    %2184 = vmatmul.f32.gmra.mxu0 %v2160
    %v2185 = vpop.f32.mrf.mxu0
    %v2186 = vadd.f32 0.0, %v2185
    %2187 = vmatmul.f32.gmra.mxu0 %v2163
    %v2188 = vpop.f32.mrf.mxu0
    %v2189 = vadd.f32 0.0, %v2188
    %2190 = vdwg.mxu0
    %2191 = vrot.lane.b32.xlu0 %v1720, 32
    %v2192 = vpop.permute.xlu0 %2191
    %2193 = vrot.lane.b32.xlu0 %v1722, 32
    %v2194 = vpop.permute.xlu0 %2193
    %2195 = vrot.lane.b32.xlu0 %v1725, 32
    %v2196 = vpop.permute.xlu0 %2195
    %v2200 = vsel %vm2018, %v2141, 0
    %v2203 = vsel %vm2018, %v2142, 0
    %v2205 = vsel %vm2165, %v2196, 0
    %2207 = vmatpush.msra.mxu0 0.0
    %2208 = vmatpush.msra.mxu0 0.0
    %2209 = vmatpush.msra.mxu0 0.0
    %2210 = vmatpush.msra.mxu0 0.0
    %2211 = vmatpush.msra.mxu0 0.0
    %2212 = vmatpush.msra.mxu0 0.0
    %2213 = vmatpush.msra.mxu0 0.0
    %2214 = vmatpush.msra.mxu0 0.0
    %2215 = vmatpush.msra.mxu0 0.0
    %2216 = vmatpush.msra.mxu0 0.0
    %2217 = vmatpush.msra.mxu0 0.0
    %2218 = vmatpush.msra.mxu0 0.0
    %2219 = vmatpush.msra.mxu0 0.0
    %2220 = vmatpush.msra.mxu0 %v2205
    %2221 = vmatpush.msra.mxu0 %v2194
    %2222 = vmatpush.msra.mxu0 %v2192
    %2223 = vmatmul.f32.gmra.mxu0 %v2200
    %v2224 = vpop.f32.mrf.mxu0
    %v2225 = vadd.f32 0.0, %v2224
    %2226 = vmatmul.f32.gmra.mxu0 %v2203
    %v2227 = vpop.f32.mrf.mxu0
    %v2228 = vadd.f32 0.0, %v2227
    %2229 = vdwg.mxu0
    %v2231 = vsel %vm2018, %v2143, 0
    %v2234 = vsel %vm2018, %v2144, 0
    %v2237 = vsel %vm2165, %v1743, 0
    %2239 = vmatpush.msra.mxu0 0.0
    %2240 = vmatpush.msra.mxu0 0.0
    %2241 = vmatpush.msra.mxu0 0.0
    %2242 = vmatpush.msra.mxu0 0.0
    %2243 = vmatpush.msra.mxu0 0.0
    %2244 = vmatpush.msra.mxu0 0.0
    %2245 = vmatpush.msra.mxu0 0.0
    %2246 = vmatpush.msra.mxu0 0.0
    %2247 = vmatpush.msra.mxu0 0.0
    %2248 = vmatpush.msra.mxu0 0.0
    %2249 = vmatpush.msra.mxu0 0.0
    %2250 = vmatpush.msra.mxu0 0.0
    %2251 = vmatpush.msra.mxu0 0.0
    %2252 = vmatpush.msra.mxu0 %v2237
    %2253 = vmatpush.msra.mxu0 %v1740
    %2254 = vmatpush.msra.mxu0 %v1738
    %2255 = vmatmul.f32.gmra.mxu0 %v2231
    %v2256 = vpop.f32.mrf.mxu0
    %v2257 = vadd.f32 0.0, %v2256
    %2258 = vmatmul.f32.gmra.mxu0 %v2234
    %v2259 = vpop.f32.mrf.mxu0
    %v2260 = vadd.f32 0.0, %v2259
    %2261 = vdwg.mxu0
    %2264 = vrot.lane.b32.xlu0 %v1738, 96
    %v2265 = vpop.permute.xlu0 %2264
    %2266 = vrot.lane.b32.xlu0 %v1740, 96
    %v2267 = vpop.permute.xlu0 %2266
    %2268 = vrot.lane.b32.xlu0 %v1743, 96
    %v2269 = vpop.permute.xlu0 %2268
    %v2273 = vsel %vm2018, %v2145, 0
    %v2276 = vsel %vm2018, %v2146, 0
    %v2278 = vsel %vm2165, %v2269, 0
    %2280 = vmatpush.msra.mxu0 0.0
    %2281 = vmatpush.msra.mxu0 0.0
    %2282 = vmatpush.msra.mxu0 0.0
    %2283 = vmatpush.msra.mxu0 0.0
    %2284 = vmatpush.msra.mxu0 0.0
    %2285 = vmatpush.msra.mxu0 0.0
    %2286 = vmatpush.msra.mxu0 0.0
    %2287 = vmatpush.msra.mxu0 0.0
    %2288 = vmatpush.msra.mxu0 0.0
    %2289 = vmatpush.msra.mxu0 0.0
    %2290 = vmatpush.msra.mxu0 0.0
    %2291 = vmatpush.msra.mxu0 0.0
    %2292 = vmatpush.msra.mxu0 0.0
    %2293 = vmatpush.msra.mxu0 %v2278
    %2294 = vmatpush.msra.mxu0 %v2267
    %2295 = vmatpush.msra.mxu0 %v2265
    %2296 = vmatmul.f32.gmra.mxu0 %v2273
    %v2297 = vpop.f32.mrf.mxu0
    %v2298 = vadd.f32 0.0, %v2297
    %2299 = vmatmul.f32.gmra.mxu0 %v2276
    %v2300 = vpop.f32.mrf.mxu0
    %v2301 = vadd.f32 0.0, %v2300
    %2302 = vdwg.mxu0
    %2303 = vrot.lane.b32.xlu0 %v1738, 64
    %v2304 = vpop.permute.xlu0 %2303
    %2305 = vrot.lane.b32.xlu0 %v1740, 64
    %v2306 = vpop.permute.xlu0 %2305
    %2307 = vrot.lane.b32.xlu0 %v1743, 64
    %v2308 = vpop.permute.xlu0 %2307
    %v2312 = vsel %vm2018, %v2147, 0
    %v2315 = vsel %vm2018, %v2148, 0
    %v2317 = vsel %vm2165, %v2308, 0
    %2319 = vmatpush.msra.mxu0 0.0
    %2320 = vmatpush.msra.mxu0 0.0
    %2321 = vmatpush.msra.mxu0 0.0
    %2322 = vmatpush.msra.mxu0 0.0
    %2323 = vmatpush.msra.mxu0 0.0
    %2324 = vmatpush.msra.mxu0 0.0
    %2325 = vmatpush.msra.mxu0 0.0
    %2326 = vmatpush.msra.mxu0 0.0
    %2327 = vmatpush.msra.mxu0 0.0
    %2328 = vmatpush.msra.mxu0 0.0
    %2329 = vmatpush.msra.mxu0 0.0
    %2330 = vmatpush.msra.mxu0 0.0
    %2331 = vmatpush.msra.mxu0 0.0
    %2332 = vmatpush.msra.mxu0 %v2317
    %2333 = vmatpush.msra.mxu0 %v2306
    %2334 = vmatpush.msra.mxu0 %v2304
    %2335 = vmatmul.f32.gmra.mxu0 %v2312
    %v2336 = vpop.f32.mrf.mxu0
    %v2337 = vadd.f32 0.0, %v2336
    %2338 = vmatmul.f32.gmra.mxu0 %v2315
    %v2339 = vpop.f32.mrf.mxu0
    %v2340 = vadd.f32 0.0, %v2339
    %2341 = vdwg.mxu0
    %2342 = vrot.lane.b32.xlu0 %v1738, 32
    %v2343 = vpop.permute.xlu0 %2342
    %2344 = vrot.lane.b32.xlu0 %v1740, 32
    %v2345 = vpop.permute.xlu0 %2344
    %2346 = vrot.lane.b32.xlu0 %v1743, 32
    %v2347 = vpop.permute.xlu0 %2346
    %v2351 = vsel %vm2018, %v2149, 0
    %v2354 = vsel %vm2018, %v2150, 0
    %v2356 = vsel %vm2165, %v2347, 0
    %2358 = vmatpush.msra.mxu0 0.0
    %2359 = vmatpush.msra.mxu0 0.0
    %2360 = vmatpush.msra.mxu0 0.0
    %2361 = vmatpush.msra.mxu0 0.0
    %2362 = vmatpush.msra.mxu0 0.0
    %2363 = vmatpush.msra.mxu0 0.0
    %2364 = vmatpush.msra.mxu0 0.0
    %2365 = vmatpush.msra.mxu0 0.0
    %2366 = vmatpush.msra.mxu0 0.0
    %2367 = vmatpush.msra.mxu0 0.0
    %2368 = vmatpush.msra.mxu0 0.0
    %2369 = vmatpush.msra.mxu0 0.0
    %2370 = vmatpush.msra.mxu0 0.0
    %2371 = vmatpush.msra.mxu0 %v2356
    %2372 = vmatpush.msra.mxu0 %v2345
    %2373 = vmatpush.msra.mxu0 %v2343
    %2374 = vmatmul.f32.gmra.mxu0 %v2351
    %v2375 = vpop.f32.mrf.mxu0
    %v2376 = vadd.f32 0.0, %v2375
    %2377 = vmatmul.f32.gmra.mxu0 %v2354
    %v2378 = vpop.f32.mrf.mxu0
    %v2379 = vadd.f32 0.0, %v2378
    %2380 = vdwg.mxu0
    %2383 = vrot.lane.b32.xlu0 %v2225, 32
    %v2384 = vpop.permute.xlu0 %2383
    %2385 = vrot.lane.b32.xlu0 %v2228, 32
    %v2386 = vpop.permute.xlu0 %2385
    %2391 = vrot.lane.b32.xlu0 %v2257, 64
    %v2392 = vpop.permute.xlu0 %2391
    %2393 = vrot.lane.b32.xlu0 %v2260, 64
    %v2394 = vpop.permute.xlu0 %2393
    %2399 = vrot.lane.b32.xlu0 %v2298, 96
    %v2400 = vpop.permute.xlu0 %2399
    %2401 = vrot.lane.b32.xlu0 %v2301, 96
    %v2402 = vpop.permute.xlu0 %2401
    %2407 = vrot.lane.b32.xlu0 %v2376, 32
    %v2408 = vpop.permute.xlu0 %2407
    %2409 = vrot.lane.b32.xlu0 %v2379, 32
    %v2410 = vpop.permute.xlu0 %2409
    %v2413 = vsel %vm566, %v2186, %v2384
    %v2414 = vsel %vm566, %v2189, %v2386
    %v2415 = vsel %vm1190, %v2413, %v2392
    %v2416 = vsel %vm1190, %v2414, %v2394
    %v2417 = vsel %vm1193, %v2415, %v2400
    %v2418 = vsel %vm1193, %v2416, %v2402
    %v2419 = vsel %vm566, %v2337, %v2408
    %v2420 = vsel %vm566, %v2340, %v2410
    %v2421 = vpack.c.bf16 %v2418, %v2417
    %v2422 = vpack.c.bf16 %v2420, %v2419
    %s2423 = scalar_lea.vmem [#allocation5], 96
    %v2424 = vld [vmem:[%s2423] sm:$0xf]
    %v2425 = vld [vmem:[%s2423 + $0x4] sm:$0xf]
    %v2426 = vld [vmem:[%s2423 + $0x8] sm:$0xf]
    %v2427 = vld [vmem:[%s2423 + $0xc] sm:$0xf]
    %v2428 = vld [vmem:[%s2423 + $0x10] sm:$0xf]
    %v2429 = vld [vmem:[%s2423 + $0x14] sm:$0xf]
    %v2430 = vld [vmem:[%s2423 + $0x18] sm:$0xf]
    %v2431 = vld [vmem:[%s2423 + $0x1c] sm:$0xf]
    %v2432 = vld [vmem:[%s2423 + $0x20] sm:$0xf]
    %v2433 = vld [vmem:[%s2423 + $0x24] sm:$0xf]
    %v2434 = vld [vmem:[%s2423 + $0x28] sm:$0xf]
    %v2435 = vld [vmem:[%s2423 + $0x2c] sm:$0xf]
    %v2436 = vld [vmem:[%s2423 + $0x30] sm:$0xf]
    %v2437 = vld [vmem:[%s2423 + $0x34] sm:$0xf]
    %v2438 = vld [vmem:[%s2423 + $0x38] sm:$0xf]
    %v2439 = vld [vmem:[%s2423 + $0x3c] sm:$0xf]
    %v2440 = vld [vmem:[%s2423 + $0x40] sm:$0xf]
    %v2441 = vld [vmem:[%s2423 + $0x44] sm:$0xf]
    %v2442 = vld [vmem:[%s2423 + $0x48] sm:$0xf]
    %v2443 = vld [vmem:[%s2423 + $0x4c] sm:$0xf]
    %v2444 = vld [vmem:[%s2423 + $0x50] sm:$0xf]
    %v2445 = vld [vmem:[%s2423 + $0x54] sm:$0xf]
    %v2446 = vld [vmem:[%s2423 + $0x58] sm:$0xf]
    %v2447 = vld [vmem:[%s2423 + $0x5c] sm:$0xf]
    %s2448 = scalar_lea.vmem [#allocation16], 1
    %v2449 = vld [vmem:[%s2448] sm:$0x1]
    %v2451 = vperm.slane %v2449, 0
    %v2477 = vunpack.c.l.b16 %v2424
    %v2478 = vunpack.c.l.b16 %v2425
    %v2479 = vunpack.c.l.b16 %v2426
    %v2480 = vunpack.c.l.b16 %v2427
    %v2481 = vunpack.c.l.b16 %v2428
    %v2482 = vunpack.c.l.b16 %v2429
    %v2483 = vunpack.c.l.b16 %v2430
    %v2484 = vunpack.c.l.b16 %v2431
    %v2485 = vunpack.c.l.b16 %v2432
    %v2486 = vunpack.c.l.b16 %v2433
    %v2487 = vunpack.c.l.b16 %v2434
    %v2488 = vunpack.c.l.b16 %v2435
    %v2489 = vunpack.c.l.b16 %v2436
    %v2490 = vunpack.c.l.b16 %v2437
    %v2491 = vunpack.c.l.b16 %v2438
    %v2492 = vunpack.c.l.b16 %v2439
    %v2493 = vunpack.c.l.b16 %v2440
    %v2494 = vunpack.c.l.b16 %v2441
    %v2495 = vunpack.c.l.b16 %v2442
    %v2496 = vunpack.c.l.b16 %v2443
    %v2497 = vunpack.c.l.b16 %v2444
    %v2498 = vunpack.c.l.b16 %v2445
    %v2499 = vunpack.c.l.b16 %v2446
    %v2500 = vunpack.c.l.b16 %v2447
    %v2501 = vpack.c.b16 %v2478, %v2477
    %v2502 = vpack.c.b16 %v2480, %v2479
    %v2503 = vpack.c.b16 %v2482, %v2481
    %v2504 = vpack.c.b16 %v2484, %v2483
    %v2505 = vpack.c.b16 %v2486, %v2485
    %v2506 = vpack.c.b16 %v2488, %v2487
    %v2507 = vpack.c.b16 %v2490, %v2489
    %v2508 = vpack.c.b16 %v2492, %v2491
    %v2509 = vpack.c.b16 %v2494, %v2493
    %v2510 = vpack.c.b16 %v2496, %v2495
    %v2511 = vpack.c.b16 %v2498, %v2497
    %v2512 = vpack.c.b16 %v2500, %v2499
    %v2526 = vsel %vm1190, %v2422, 0
    %2528 = vmatpush.bf16.msra.mxu0 %v2508
    %2529 = vmatpush.bf16.msra.mxu0 %v2507
    %2530 = vmatpush.bf16.msra.mxu0 %v2506
    %2531 = vmatpush.bf16.msra.mxu0 %v2505
    %2532 = vmatpush.bf16.msra.mxu0 %v2504
    %2533 = vmatpush.bf16.msra.mxu0 %v2503
    %2534 = vmatpush.bf16.msra.mxu0 %v2502
    %2535 = vmatpush.bf16.msra.mxu0 %v2501
    %2536 = vmatmul.bf16.gmra.mxu0 %v2421
    %v2537 = vpop.f32.mrf.mxu0
    %v2538 = vadd.f32 %v2451, %v2537
    %v2539 = vpop.f32.mrf.mxu0
    %v2540 = vadd.f32 %v2451, %v2539
    %2541 = vdwg.mxu0
    %2542 = vmatpush.bf16.msra.mxu0 0
    %2543 = vmatpush.bf16.msra.mxu0 0
    %2544 = vmatpush.bf16.msra.mxu0 0
    %2545 = vmatpush.bf16.msra.mxu0 0
    %2546 = vmatpush.bf16.msra.mxu0 %v2512
    %2547 = vmatpush.bf16.msra.mxu0 %v2511
    %2548 = vmatpush.bf16.msra.mxu0 %v2510
    %2549 = vmatpush.bf16.msra.mxu0 %v2509
    %2550 = vmatmul.bf16.gmra.mxu0 %v2526
    %v2551 = vpop.f32.mrf.mxu0
    %v2552 = vadd.f32 %v2538, %v2551
    %v2553 = vpop.f32.mrf.mxu0
    %v2554 = vadd.f32 %v2540, %v2553
    %2555 = vdwg.mxu0
    %v2556 = vadd.f32 %v1387, %v2552
    %v2557 = vadd.f32 %v1388, %v2554
    %2558 = vadd.xlane.f32.xlu0 %v2556
    %v2559 = vpop.xlane.xlu0 %2558
    %2560 = vadd.xlane.f32.xlu0 %v2557
    %v2561 = vpop.xlane.xlu0 %2560
    %v2562 = vmul.f32 %v2559, 0.009803922
    %v2563 = vmul.f32 %v2561, 0.009803922
    %v2564 = vsub.f32 %v2556, %v2562
    %v2565 = vsub.f32 %v2557, %v2563
    %v2566 = vmul.f32 %v2564, %v224
    %v2567 = vmul.f32 %v2565, %v224
    %v2568 = vmul.f32 %v2566, %v2566
    %v2569 = vmul.f32 %v2567, %v2567
    %2570 = vadd.xlane.f32.xlu0 %v2568
    %v2571 = vpop.xlane.xlu0 %2570
    %2572 = vadd.xlane.f32.xlu0 %v2569
    %v2573 = vpop.xlane.xlu0 %2572
    %v2574 = vmul.f32 %v2571, 0.009803922
    %v2575 = vmul.f32 %v2573, 0.009803922
    %v2576 = vadd.f32 %v2574, 1e-05
    %v2577 = vadd.f32 %v2575, 1e-05
    %v2578 = vrsqrt.pop %v2576
    %v2579 = vmul.f32 %v2578, %v2576
    %v2580 = vmul.f32 %v2579, %v2578
    %v2581 = vmul.f32 0.5, %v2580
    %v2582 = vsub.f32 1.5, %v2581
    %v2583 = vmul.f32 %v2578, %v2582
    %vm2584 = vweird.f32 %v2576
    %vm2585 = vweird.f32 %v2578
    %vm2586 = vmor %vm2584, %vm2585
    %v2587 = vsel %vm2586, %v2578, %v2583
    %v2588 = vrsqrt.pop %v2577
    %v2589 = vmul.f32 %v2588, %v2577
    %v2590 = vmul.f32 %v2589, %v2588
    %v2591 = vmul.f32 0.5, %v2590
    %v2592 = vsub.f32 1.5, %v2591
    %v2593 = vmul.f32 %v2588, %v2592
    %vm2594 = vweird.f32 %v2577
    %vm2595 = vweird.f32 %v2588
    %vm2596 = vmor %vm2594, %vm2595
    %v2597 = vsel %vm2596, %v2588, %v2593
    %v2598 = vmul.f32 %v2566, %v2587
    %v2599 = vmul.f32 %v2567, %v2597
    %s2600 = scalar_lea.vmem [#allocation16], 5
    %v2601 = vld [vmem:[%s2600] sm:$0x1]
    %v2603 = vperm.slane %v2601, 0
    %v2605 = vmul.f32 %v2598, %v2603
    %v2606 = vmul.f32 %v2599, %v2603
    %s2607 = scalar_lea.vmem [#allocation16], 6
    %v2608 = vld [vmem:[%s2607] sm:$0x1]
    %v2610 = vperm.slane %v2608, 0
    %v2612 = vadd.f32 %v2605, %v2610
    %v2613 = vadd.f32 %v2606, %v2610
    %v2614 = vpack.c.bf16 %v2613, %v2612
    %v2615 = vld [vmem:[#allocation10] sm:$0xff]
    %v2616 = vld [vmem:[#allocation10 + $0x8] sm:$0xff]
    %v2617 = vld [vmem:[#allocation10 + $0x10] sm:$0xff]
    %v2618 = vld [vmem:[#allocation10 + $0x18] sm:$0xff]
    %v2619 = vld [vmem:[#allocation10 + $0x20] sm:$0xff]
    %v2620 = vld [vmem:[#allocation10 + $0x28] sm:$0xff]
    %v2621 = vld [vmem:[#allocation10 + $0x30] sm:$0xff]
    %v2622 = vld [vmem:[#allocation10 + $0x38] sm:$0xff]
    %v2623 = vld [vmem:[#allocation10 + $0x40] sm:$0xff]
    %v2624 = vld [vmem:[#allocation10 + $0x48] sm:$0xff]
    %v2625 = vld [vmem:[#allocation10 + $0x50] sm:$0xff]
    %v2626 = vld [vmem:[#allocation10 + $0x58] sm:$0xff]
    %v2627 = vld [vmem:[#allocation10 + $0x60] sm:$0xff]
    %v2628 = vld [vmem:[#allocation10 + $0x68] sm:$0xff]
    %v2629 = vld [vmem:[#allocation10 + $0x70] sm:$0xff]
    %v2630 = vld [vmem:[#allocation10 + $0x78] sm:$0xff]
    %v2631 = vld [vmem:[#allocation10 + $0x80] sm:$0xff]
    %v2632 = vld [vmem:[#allocation10 + $0x88] sm:$0xff]
    %v2633 = vld [vmem:[#allocation10 + $0x90] sm:$0xff]
    %v2634 = vld [vmem:[#allocation10 + $0x98] sm:$0xff]
    %v2635 = vld [vmem:[#allocation10 + $0xa0] sm:$0xff]
    %v2636 = vld [vmem:[#allocation10 + $0xa8] sm:$0xff]
    %v2637 = vld [vmem:[#allocation10 + $0xb0] sm:$0xff]
    %v2638 = vld [vmem:[#allocation10 + $0xb8] sm:$0xff]
    %v2639 = vld [vmem:[#allocation10 + $0xc0] sm:$0xff]
    %v2640 = vld [vmem:[#allocation10 + $0xc8] sm:$0xff]
    %v2641 = vld [vmem:[#allocation10 + $0xd0] sm:$0xff]
    %v2642 = vld [vmem:[#allocation10 + $0xd8] sm:$0xff]
    %v2643 = vld [vmem:[#allocation10 + $0xe0] sm:$0xff]
    %v2644 = vld [vmem:[#allocation10 + $0xe8] sm:$0xff]
    %v2645 = vld [vmem:[#allocation10 + $0xf0] sm:$0xff]
    %v2646 = vld [vmem:[#allocation10 + $0xf8] sm:$0xff]
    %v2647 = vld [vmem:[#allocation10 + $0x100] sm:$0xff]
    %v2648 = vld [vmem:[#allocation10 + $0x108] sm:$0xff]
    %v2649 = vld [vmem:[#allocation10 + $0x110] sm:$0xff]
    %v2650 = vld [vmem:[#allocation10 + $0x118] sm:$0xff]
    %v2651 = vld [vmem:[#allocation10 + $0x120] sm:$0xff]
    %v2652 = vld [vmem:[#allocation10 + $0x128] sm:$0xff]
    %v2653 = vld [vmem:[#allocation10 + $0x130] sm:$0xff]
    %v2654 = vld [vmem:[#allocation10 + $0x138] sm:$0xff]
    %v2655 = vld [vmem:[#allocation10 + $0x140] sm:$0xff]
    %v2656 = vld [vmem:[#allocation10 + $0x148] sm:$0xff]
    %v2657 = vld [vmem:[#allocation10 + $0x150] sm:$0xff]
    %v2658 = vld [vmem:[#allocation10 + $0x158] sm:$0xff]
    %v2659 = vld [vmem:[#allocation10 + $0x160] sm:$0xff]
    %v2660 = vld [vmem:[#allocation10 + $0x168] sm:$0xff]
    %v2661 = vld [vmem:[#allocation10 + $0x170] sm:$0xff]
    %v2662 = vld [vmem:[#allocation10 + $0x178] sm:$0xff]
    %v2663 = vld [vmem:[#allocation10 + $0x180] sm:$0xff]
    %v2664 = vld [vmem:[#allocation10 + $0x188] sm:$0xff]
    %v2665 = vld [vmem:[#allocation10 + $0x190] sm:$0xff]
    %v2666 = vld [vmem:[#allocation10 + $0x198] sm:$0xff]
    %v2667 = vld [vmem:[#allocation10 + $0x1a0] sm:$0xff]
    %v2668 = vld [vmem:[#allocation10 + $0x1a8] sm:$0xff]
    %v2669 = vld [vmem:[#allocation10 + $0x1b0] sm:$0xff]
    %v2670 = vld [vmem:[#allocation10 + $0x1b8] sm:$0xff]
    %v2671 = vld [vmem:[#allocation10 + $0x1c0] sm:$0xff]
    %v2672 = vld [vmem:[#allocation10 + $0x1c8] sm:$0xff]
    %v2673 = vld [vmem:[#allocation10 + $0x1d0] sm:$0xff]
    %v2674 = vld [vmem:[#allocation10 + $0x1d8] sm:$0xff]
    %v2675 = vld [vmem:[#allocation10 + $0x1e0] sm:$0xff]
    %v2676 = vld [vmem:[#allocation10 + $0x1e8] sm:$0xff]
    %v2677 = vld [vmem:[#allocation10 + $0x1f0] sm:$0xff]
    %v2678 = vld [vmem:[#allocation10 + $0x1f8] sm:$0xff]
    %v2679 = vld [vmem:[#allocation10 + $0x200] sm:$0xff]
    %v2680 = vld [vmem:[#allocation10 + $0x208] sm:$0xff]
    %v2681 = vld [vmem:[#allocation10 + $0x210] sm:$0xff]
    %v2682 = vld [vmem:[#allocation10 + $0x218] sm:$0xff]
    %v2683 = vld [vmem:[#allocation10 + $0x220] sm:$0xff]
    %v2684 = vld [vmem:[#allocation10 + $0x228] sm:$0xff]
    %v2685 = vld [vmem:[#allocation10 + $0x230] sm:$0xff]
    %v2686 = vld [vmem:[#allocation10 + $0x238] sm:$0xff]
    %v2687 = vld [vmem:[#allocation10 + $0x240] sm:$0xff]
    %v2688 = vld [vmem:[#allocation10 + $0x248] sm:$0xff]
    %v2689 = vld [vmem:[#allocation10 + $0x250] sm:$0xff]
    %v2690 = vld [vmem:[#allocation10 + $0x258] sm:$0xff]
    %v2691 = vld [vmem:[#allocation10 + $0x260] sm:$0xff]
    %v2692 = vld [vmem:[#allocation10 + $0x268] sm:$0xff]
    %v2693 = vld [vmem:[#allocation10 + $0x270] sm:$0xff]
    %v2694 = vld [vmem:[#allocation10 + $0x278] sm:$0xff]
    %v2695 = vld [vmem:[#allocation10 + $0x280] sm:$0xff]
    %v2696 = vld [vmem:[#allocation10 + $0x288] sm:$0xff]
    %v2697 = vld [vmem:[#allocation10 + $0x290] sm:$0xff]
    %v2698 = vld [vmem:[#allocation10 + $0x298] sm:$0xff]
    %v2699 = vld [vmem:[#allocation10 + $0x2a0] sm:$0xff]
    %v2700 = vld [vmem:[#allocation10 + $0x2a8] sm:$0xff]
    %v2701 = vld [vmem:[#allocation10 + $0x2b0] sm:$0xff]
    %v2702 = vld [vmem:[#allocation10 + $0x2b8] sm:$0xff]
    %v2703 = vld [vmem:[#allocation10 + $0x2c0] sm:$0xff]
    %v2704 = vld [vmem:[#allocation10 + $0x2c8] sm:$0xff]
    %v2705 = vld [vmem:[#allocation10 + $0x2d0] sm:$0xff]
    %v2706 = vld [vmem:[#allocation10 + $0x2d8] sm:$0xff]
    %v2707 = vld [vmem:[#allocation10 + $0x2e0] sm:$0xff]
    %v2708 = vld [vmem:[#allocation10 + $0x2e8] sm:$0xff]
    %v2709 = vld [vmem:[#allocation10 + $0x2f0] sm:$0xff]
    %v2710 = vld [vmem:[#allocation10 + $0x2f8] sm:$0xff]
    %v2711 = vld [vmem:[#allocation10 + $0x300] sm:$0xff]
    %v2712 = vld [vmem:[#allocation10 + $0x308] sm:$0xff]
    %v2713 = vld [vmem:[#allocation10 + $0x310] sm:$0xff]
    %v2714 = vld [vmem:[#allocation10 + $0x318] sm:$0xff]
    %v2715 = vld [vmem:[#allocation10 + $0x320] sm:$0xff]
    %v2716 = vld [vmem:[#allocation10 + $0x328] sm:$0xff]
    %v2717 = vld [vmem:[#allocation10 + $0x330] sm:$0xff]
    %v2718 = vld [vmem:[#allocation10 + $0x338] sm:$0xff]
    %v2719 = vld [vmem:[#allocation10 + $0x340] sm:$0xff]
    %v2720 = vld [vmem:[#allocation10 + $0x348] sm:$0xff]
    %v2721 = vld [vmem:[#allocation10 + $0x350] sm:$0xff]
    %v2722 = vld [vmem:[#allocation10 + $0x358] sm:$0xff]
    %v2723 = vld [vmem:[#allocation10 + $0x360] sm:$0xff]
    %v2724 = vld [vmem:[#allocation10 + $0x368] sm:$0xff]
    %v2725 = vld [vmem:[#allocation10 + $0x370] sm:$0xff]
    %v2726 = vld [vmem:[#allocation10 + $0x378] sm:$0xff]
    %v2727 = vld [vmem:[#allocation10 + $0x380] sm:$0xff]
    %v2728 = vld [vmem:[#allocation10 + $0x388] sm:$0xff]
    %v2729 = vld [vmem:[#allocation10 + $0x390] sm:$0xff]
    %v2730 = vld [vmem:[#allocation10 + $0x398] sm:$0xff]
    %v2731 = vld [vmem:[#allocation10 + $0x3a0] sm:$0xff]
    %v2732 = vld [vmem:[#allocation10 + $0x3a8] sm:$0xff]
    %v2733 = vld [vmem:[#allocation10 + $0x3b0] sm:$0xff]
    %v2734 = vld [vmem:[#allocation10 + $0x3b8] sm:$0xff]
    %v2735 = vld [vmem:[#allocation10 + $0x3c0] sm:$0xff]
    %v2736 = vld [vmem:[#allocation10 + $0x3c8] sm:$0xff]
    %v2737 = vld [vmem:[#allocation10 + $0x3d0] sm:$0xff]
    %v2738 = vld [vmem:[#allocation10 + $0x3d8] sm:$0xff]
    %v2739 = vld [vmem:[#allocation10 + $0x3e0] sm:$0xff]
    %v2740 = vld [vmem:[#allocation10 + $0x3e8] sm:$0xff]
    %v2741 = vld [vmem:[#allocation10 + $0x3f0] sm:$0xff]
    %v2742 = vld [vmem:[#allocation10 + $0x3f8] sm:$0xff]
    %v2743 = vld [vmem:[#allocation11] sm:$0xff]
    %v2744 = vld [vmem:[#allocation11 + $0x8] sm:$0xff]
    %v2747 = vperm.slane %v2743, 0
    %v2748 = vperm.slane %v2743, 1
    %v2749 = vperm.slane %v2743, 2
    %v2750 = vperm.slane %v2743, 3
    %v2751 = vperm.slane %v2743, 4
    %v2752 = vperm.slane %v2743, 5
    %v2753 = vperm.slane %v2743, 6
    %v2754 = vperm.slane %v2743, 7
    %v2755 = vperm.slane %v2744, 0
    %v2756 = vperm.slane %v2744, 1
    %v2757 = vperm.slane %v2744, 2
    %v2758 = vperm.slane %v2744, 3
    %v2759 = vperm.slane %v2744, 4
    %v2760 = vperm.slane %v2744, 5
    %v2761 = vperm.slane %v2744, 6
    %v2762 = vperm.slane %v2744, 7
    %v2907 = vunpack.c.l.b16 %v2615
    %v2908 = vunpack.c.h.b16 %v2615
    %v2909 = vunpack.c.l.b16 %v2616
    %v2910 = vunpack.c.h.b16 %v2616
    %v2911 = vunpack.c.l.b16 %v2617
    %v2912 = vunpack.c.h.b16 %v2617
    %v2913 = vunpack.c.l.b16 %v2618
    %v2914 = vunpack.c.h.b16 %v2618
    %v2915 = vunpack.c.l.b16 %v2619
    %v2916 = vunpack.c.h.b16 %v2619
    %v2917 = vunpack.c.l.b16 %v2620
    %v2918 = vunpack.c.h.b16 %v2620
    %v2919 = vunpack.c.l.b16 %v2621
    %v2920 = vunpack.c.h.b16 %v2621
    %v2921 = vunpack.c.l.b16 %v2622
    %v2922 = vunpack.c.h.b16 %v2622
    %v2923 = vunpack.c.l.b16 %v2623
    %v2924 = vunpack.c.h.b16 %v2623
    %v2925 = vunpack.c.l.b16 %v2624
    %v2926 = vunpack.c.h.b16 %v2624
    %v2927 = vunpack.c.l.b16 %v2625
    %v2928 = vunpack.c.h.b16 %v2625
    %v2929 = vunpack.c.l.b16 %v2626
    %v2930 = vunpack.c.h.b16 %v2626
    %v2931 = vunpack.c.l.b16 %v2627
    %v2932 = vunpack.c.h.b16 %v2627
    %v2933 = vunpack.c.l.b16 %v2628
    %v2934 = vunpack.c.h.b16 %v2628
    %v2935 = vunpack.c.l.b16 %v2629
    %v2936 = vunpack.c.h.b16 %v2629
    %v2937 = vunpack.c.l.b16 %v2630
    %v2938 = vunpack.c.h.b16 %v2630
    %v2939 = vunpack.c.l.b16 %v2631
    %v2940 = vunpack.c.h.b16 %v2631
    %v2941 = vunpack.c.l.b16 %v2632
    %v2942 = vunpack.c.h.b16 %v2632
    %v2943 = vunpack.c.l.b16 %v2633
    %v2944 = vunpack.c.h.b16 %v2633
    %v2945 = vunpack.c.l.b16 %v2634
    %v2946 = vunpack.c.h.b16 %v2634
    %v2947 = vunpack.c.l.b16 %v2635
    %v2948 = vunpack.c.h.b16 %v2635
    %v2949 = vunpack.c.l.b16 %v2636
    %v2950 = vunpack.c.h.b16 %v2636
    %v2951 = vunpack.c.l.b16 %v2637
    %v2952 = vunpack.c.h.b16 %v2637
    %v2953 = vunpack.c.l.b16 %v2638
    %v2954 = vunpack.c.h.b16 %v2638
    %v2955 = vunpack.c.l.b16 %v2639
    %v2956 = vunpack.c.h.b16 %v2639
    %v2957 = vunpack.c.l.b16 %v2640
    %v2958 = vunpack.c.h.b16 %v2640
    %v2959 = vunpack.c.l.b16 %v2641
    %v2960 = vunpack.c.h.b16 %v2641
    %v2961 = vunpack.c.l.b16 %v2642
    %v2962 = vunpack.c.h.b16 %v2642
    %v2963 = vunpack.c.l.b16 %v2643
    %v2964 = vunpack.c.h.b16 %v2643
    %v2965 = vunpack.c.l.b16 %v2644
    %v2966 = vunpack.c.h.b16 %v2644
    %v2967 = vunpack.c.l.b16 %v2645
    %v2968 = vunpack.c.h.b16 %v2645
    %v2969 = vunpack.c.l.b16 %v2646
    %v2970 = vunpack.c.h.b16 %v2646
    %v2971 = vunpack.c.l.b16 %v2647
    %v2972 = vunpack.c.h.b16 %v2647
    %v2973 = vunpack.c.l.b16 %v2648
    %v2974 = vunpack.c.h.b16 %v2648
    %v2975 = vunpack.c.l.b16 %v2649
    %v2976 = vunpack.c.h.b16 %v2649
    %v2977 = vunpack.c.l.b16 %v2650
    %v2978 = vunpack.c.h.b16 %v2650
    %v2979 = vunpack.c.l.b16 %v2651
    %v2980 = vunpack.c.h.b16 %v2651
    %v2981 = vunpack.c.l.b16 %v2652
    %v2982 = vunpack.c.h.b16 %v2652
    %v2983 = vunpack.c.l.b16 %v2653
    %v2984 = vunpack.c.h.b16 %v2653
    %v2985 = vunpack.c.l.b16 %v2654
    %v2986 = vunpack.c.h.b16 %v2654
    %v2987 = vunpack.c.l.b16 %v2655
    %v2988 = vunpack.c.h.b16 %v2655
    %v2989 = vunpack.c.l.b16 %v2656
    %v2990 = vunpack.c.h.b16 %v2656
    %v2991 = vunpack.c.l.b16 %v2657
    %v2992 = vunpack.c.h.b16 %v2657
    %v2993 = vunpack.c.l.b16 %v2658
    %v2994 = vunpack.c.h.b16 %v2658
    %v2995 = vunpack.c.l.b16 %v2659
    %v2996 = vunpack.c.h.b16 %v2659
    %v2997 = vunpack.c.l.b16 %v2660
    %v2998 = vunpack.c.h.b16 %v2660
    %v2999 = vunpack.c.l.b16 %v2661
    %v3000 = vunpack.c.h.b16 %v2661
    %v3001 = vunpack.c.l.b16 %v2662
    %v3002 = vunpack.c.h.b16 %v2662
    %v3003 = vunpack.c.l.b16 %v2663
    %v3004 = vunpack.c.h.b16 %v2663
    %v3005 = vunpack.c.l.b16 %v2664
    %v3006 = vunpack.c.h.b16 %v2664
    %v3007 = vunpack.c.l.b16 %v2665
    %v3008 = vunpack.c.h.b16 %v2665
    %v3009 = vunpack.c.l.b16 %v2666
    %v3010 = vunpack.c.h.b16 %v2666
    %v3011 = vunpack.c.l.b16 %v2667
    %v3012 = vunpack.c.h.b16 %v2667
    %v3013 = vunpack.c.l.b16 %v2668
    %v3014 = vunpack.c.h.b16 %v2668
    %v3015 = vunpack.c.l.b16 %v2669
    %v3016 = vunpack.c.h.b16 %v2669
    %v3017 = vunpack.c.l.b16 %v2670
    %v3018 = vunpack.c.h.b16 %v2670
    %v3019 = vunpack.c.l.b16 %v2671
    %v3020 = vunpack.c.h.b16 %v2671
    %v3021 = vunpack.c.l.b16 %v2672
    %v3022 = vunpack.c.h.b16 %v2672
    %v3023 = vunpack.c.l.b16 %v2673
    %v3024 = vunpack.c.h.b16 %v2673
    %v3025 = vunpack.c.l.b16 %v2674
    %v3026 = vunpack.c.h.b16 %v2674
    %v3027 = vunpack.c.l.b16 %v2675
    %v3028 = vunpack.c.h.b16 %v2675
    %v3029 = vunpack.c.l.b16 %v2676
    %v3030 = vunpack.c.h.b16 %v2676
    %v3031 = vunpack.c.l.b16 %v2677
    %v3032 = vunpack.c.h.b16 %v2677
    %v3033 = vunpack.c.l.b16 %v2678
    %v3034 = vunpack.c.h.b16 %v2678
    %v3035 = vunpack.c.l.b16 %v2679
    %v3036 = vunpack.c.h.b16 %v2679
    %v3037 = vunpack.c.l.b16 %v2680
    %v3038 = vunpack.c.h.b16 %v2680
    %v3039 = vunpack.c.l.b16 %v2681
    %v3040 = vunpack.c.h.b16 %v2681
    %v3041 = vunpack.c.l.b16 %v2682
    %v3042 = vunpack.c.h.b16 %v2682
    %v3043 = vunpack.c.l.b16 %v2683
    %v3044 = vunpack.c.h.b16 %v2683
    %v3045 = vunpack.c.l.b16 %v2684
    %v3046 = vunpack.c.h.b16 %v2684
    %v3047 = vunpack.c.l.b16 %v2685
    %v3048 = vunpack.c.h.b16 %v2685
    %v3049 = vunpack.c.l.b16 %v2686
    %v3050 = vunpack.c.h.b16 %v2686
    %v3051 = vunpack.c.l.b16 %v2687
    %v3052 = vunpack.c.h.b16 %v2687
    %v3053 = vunpack.c.l.b16 %v2688
    %v3054 = vunpack.c.h.b16 %v2688
    %v3055 = vunpack.c.l.b16 %v2689
    %v3056 = vunpack.c.h.b16 %v2689
    %v3057 = vunpack.c.l.b16 %v2690
    %v3058 = vunpack.c.h.b16 %v2690
    %v3059 = vunpack.c.l.b16 %v2691
    %v3060 = vunpack.c.h.b16 %v2691
    %v3061 = vunpack.c.l.b16 %v2692
    %v3062 = vunpack.c.h.b16 %v2692
    %v3063 = vunpack.c.l.b16 %v2693
    %v3064 = vunpack.c.h.b16 %v2693
    %v3065 = vunpack.c.l.b16 %v2694
    %v3066 = vunpack.c.h.b16 %v2694
    %v3067 = vunpack.c.l.b16 %v2695
    %v3068 = vunpack.c.h.b16 %v2695
    %v3069 = vunpack.c.l.b16 %v2696
    %v3070 = vunpack.c.h.b16 %v2696
    %v3071 = vunpack.c.l.b16 %v2697
    %v3072 = vunpack.c.h.b16 %v2697
    %v3073 = vunpack.c.l.b16 %v2698
    %v3074 = vunpack.c.h.b16 %v2698
    %v3075 = vunpack.c.l.b16 %v2699
    %v3076 = vunpack.c.h.b16 %v2699
    %v3077 = vunpack.c.l.b16 %v2700
    %v3078 = vunpack.c.h.b16 %v2700
    %v3079 = vunpack.c.l.b16 %v2701
    %v3080 = vunpack.c.h.b16 %v2701
    %v3081 = vunpack.c.l.b16 %v2702
    %v3082 = vunpack.c.h.b16 %v2702
    %v3083 = vunpack.c.l.b16 %v2703
    %v3084 = vunpack.c.h.b16 %v2703
    %v3085 = vunpack.c.l.b16 %v2704
    %v3086 = vunpack.c.h.b16 %v2704
    %v3087 = vunpack.c.l.b16 %v2705
    %v3088 = vunpack.c.h.b16 %v2705
    %v3089 = vunpack.c.l.b16 %v2706
    %v3090 = vunpack.c.h.b16 %v2706
    %v3091 = vunpack.c.l.b16 %v2707
    %v3092 = vunpack.c.h.b16 %v2707
    %v3093 = vunpack.c.l.b16 %v2708
    %v3094 = vunpack.c.h.b16 %v2708
    %v3095 = vunpack.c.l.b16 %v2709
    %v3096 = vunpack.c.h.b16 %v2709
    %v3097 = vunpack.c.l.b16 %v2710
    %v3098 = vunpack.c.h.b16 %v2710
    %v3099 = vunpack.c.l.b16 %v2711
    %v3100 = vunpack.c.h.b16 %v2711
    %v3101 = vunpack.c.l.b16 %v2712
    %v3102 = vunpack.c.h.b16 %v2712
    %v3103 = vunpack.c.l.b16 %v2713
    %v3104 = vunpack.c.h.b16 %v2713
    %v3105 = vunpack.c.l.b16 %v2714
    %v3106 = vunpack.c.h.b16 %v2714
    %v3107 = vunpack.c.l.b16 %v2715
    %v3108 = vunpack.c.h.b16 %v2715
    %v3109 = vunpack.c.l.b16 %v2716
    %v3110 = vunpack.c.h.b16 %v2716
    %v3111 = vunpack.c.l.b16 %v2717
    %v3112 = vunpack.c.h.b16 %v2717
    %v3113 = vunpack.c.l.b16 %v2718
    %v3114 = vunpack.c.h.b16 %v2718
    %v3115 = vunpack.c.l.b16 %v2719
    %v3116 = vunpack.c.h.b16 %v2719
    %v3117 = vunpack.c.l.b16 %v2720
    %v3118 = vunpack.c.h.b16 %v2720
    %v3119 = vunpack.c.l.b16 %v2721
    %v3120 = vunpack.c.h.b16 %v2721
    %v3121 = vunpack.c.l.b16 %v2722
    %v3122 = vunpack.c.h.b16 %v2722
    %v3123 = vunpack.c.l.b16 %v2723
    %v3124 = vunpack.c.h.b16 %v2723
    %v3125 = vunpack.c.l.b16 %v2724
    %v3126 = vunpack.c.h.b16 %v2724
    %v3127 = vunpack.c.l.b16 %v2725
    %v3128 = vunpack.c.h.b16 %v2725
    %v3129 = vunpack.c.l.b16 %v2726
    %v3130 = vunpack.c.h.b16 %v2726
    %v3131 = vunpack.c.l.b16 %v2727
    %v3132 = vunpack.c.h.b16 %v2727
    %v3133 = vunpack.c.l.b16 %v2728
    %v3134 = vunpack.c.h.b16 %v2728
    %v3135 = vunpack.c.l.b16 %v2729
    %v3136 = vunpack.c.h.b16 %v2729
    %v3137 = vunpack.c.l.b16 %v2730
    %v3138 = vunpack.c.h.b16 %v2730
    %v3139 = vunpack.c.l.b16 %v2731
    %v3140 = vunpack.c.h.b16 %v2731
    %v3141 = vunpack.c.l.b16 %v2732
    %v3142 = vunpack.c.h.b16 %v2732
    %v3143 = vunpack.c.l.b16 %v2733
    %v3144 = vunpack.c.h.b16 %v2733
    %v3145 = vunpack.c.l.b16 %v2734
    %v3146 = vunpack.c.h.b16 %v2734
    %v3147 = vunpack.c.l.b16 %v2735
    %v3148 = vunpack.c.h.b16 %v2735
    %v3149 = vunpack.c.l.b16 %v2736
    %v3150 = vunpack.c.h.b16 %v2736
    %v3151 = vunpack.c.l.b16 %v2737
    %v3152 = vunpack.c.h.b16 %v2737
    %v3153 = vunpack.c.l.b16 %v2738
    %v3154 = vunpack.c.h.b16 %v2738
    %v3155 = vunpack.c.l.b16 %v2739
    %v3156 = vunpack.c.h.b16 %v2739
    %v3157 = vunpack.c.l.b16 %v2740
    %v3158 = vunpack.c.h.b16 %v2740
    %v3159 = vunpack.c.l.b16 %v2741
    %v3160 = vunpack.c.h.b16 %v2741
    %v3161 = vunpack.c.l.b16 %v2742
    %v3162 = vunpack.c.h.b16 %v2742
    %v3163 = vpack.c.b16 %v2923, %v2907
    %v3164 = vpack.c.b16 %v2924, %v2908
    %v3165 = vpack.c.b16 %v2925, %v2909
    %v3166 = vpack.c.b16 %v2926, %v2910
    %v3167 = vpack.c.b16 %v2927, %v2911
    %v3168 = vpack.c.b16 %v2928, %v2912
    %v3169 = vpack.c.b16 %v2929, %v2913
    %v3170 = vpack.c.b16 %v2930, %v2914
    %v3171 = vpack.c.b16 %v2931, %v2915
    %v3172 = vpack.c.b16 %v2932, %v2916
    %v3173 = vpack.c.b16 %v2933, %v2917
    %v3174 = vpack.c.b16 %v2934, %v2918
    %v3175 = vpack.c.b16 %v2935, %v2919
    %v3176 = vpack.c.b16 %v2936, %v2920
    %v3177 = vpack.c.b16 %v2937, %v2921
    %v3178 = vpack.c.b16 %v2938, %v2922
    %v3179 = vpack.c.b16 %v2955, %v2939
    %v3180 = vpack.c.b16 %v2956, %v2940
    %v3181 = vpack.c.b16 %v2957, %v2941
    %v3182 = vpack.c.b16 %v2958, %v2942
    %v3183 = vpack.c.b16 %v2959, %v2943
    %v3184 = vpack.c.b16 %v2960, %v2944
    %v3185 = vpack.c.b16 %v2961, %v2945
    %v3186 = vpack.c.b16 %v2962, %v2946
    %v3187 = vpack.c.b16 %v2963, %v2947
    %v3188 = vpack.c.b16 %v2964, %v2948
    %v3189 = vpack.c.b16 %v2965, %v2949
    %v3190 = vpack.c.b16 %v2966, %v2950
    %v3191 = vpack.c.b16 %v2967, %v2951
    %v3192 = vpack.c.b16 %v2968, %v2952
    %v3193 = vpack.c.b16 %v2969, %v2953
    %v3194 = vpack.c.b16 %v2970, %v2954
    %v3195 = vpack.c.b16 %v2987, %v2971
    %v3196 = vpack.c.b16 %v2988, %v2972
    %v3197 = vpack.c.b16 %v2989, %v2973
    %v3198 = vpack.c.b16 %v2990, %v2974
    %v3199 = vpack.c.b16 %v2991, %v2975
    %v3200 = vpack.c.b16 %v2992, %v2976
    %v3201 = vpack.c.b16 %v2993, %v2977
    %v3202 = vpack.c.b16 %v2994, %v2978
    %v3203 = vpack.c.b16 %v2995, %v2979
    %v3204 = vpack.c.b16 %v2996, %v2980
    %v3205 = vpack.c.b16 %v2997, %v2981
    %v3206 = vpack.c.b16 %v2998, %v2982
    %v3207 = vpack.c.b16 %v2999, %v2983
    %v3208 = vpack.c.b16 %v3000, %v2984
    %v3209 = vpack.c.b16 %v3001, %v2985
    %v3210 = vpack.c.b16 %v3002, %v2986
    %v3211 = vpack.c.b16 %v3019, %v3003
    %v3212 = vpack.c.b16 %v3020, %v3004
    %v3213 = vpack.c.b16 %v3021, %v3005
    %v3214 = vpack.c.b16 %v3022, %v3006
    %v3215 = vpack.c.b16 %v3023, %v3007
    %v3216 = vpack.c.b16 %v3024, %v3008
    %v3217 = vpack.c.b16 %v3025, %v3009
    %v3218 = vpack.c.b16 %v3026, %v3010
    %v3219 = vpack.c.b16 %v3027, %v3011
    %v3220 = vpack.c.b16 %v3028, %v3012
    %v3221 = vpack.c.b16 %v3029, %v3013
    %v3222 = vpack.c.b16 %v3030, %v3014
    %v3223 = vpack.c.b16 %v3031, %v3015
    %v3224 = vpack.c.b16 %v3032, %v3016
    %v3225 = vpack.c.b16 %v3033, %v3017
    %v3226 = vpack.c.b16 %v3034, %v3018
    %v3227 = vpack.c.b16 %v3051, %v3035
    %v3228 = vpack.c.b16 %v3052, %v3036
    %v3229 = vpack.c.b16 %v3053, %v3037
    %v3230 = vpack.c.b16 %v3054, %v3038
    %v3231 = vpack.c.b16 %v3055, %v3039
    %v3232 = vpack.c.b16 %v3056, %v3040
    %v3233 = vpack.c.b16 %v3057, %v3041
    %v3234 = vpack.c.b16 %v3058, %v3042
    %v3235 = vpack.c.b16 %v3059, %v3043
    %v3236 = vpack.c.b16 %v3060, %v3044
    %v3237 = vpack.c.b16 %v3061, %v3045
    %v3238 = vpack.c.b16 %v3062, %v3046
    %v3239 = vpack.c.b16 %v3063, %v3047
    %v3240 = vpack.c.b16 %v3064, %v3048
    %v3241 = vpack.c.b16 %v3065, %v3049
    %v3242 = vpack.c.b16 %v3066, %v3050
    %v3243 = vpack.c.b16 %v3083, %v3067
    %v3244 = vpack.c.b16 %v3084, %v3068
    %v3245 = vpack.c.b16 %v3085, %v3069
    %v3246 = vpack.c.b16 %v3086, %v3070
    %v3247 = vpack.c.b16 %v3087, %v3071
    %v3248 = vpack.c.b16 %v3088, %v3072
    %v3249 = vpack.c.b16 %v3089, %v3073
    %v3250 = vpack.c.b16 %v3090, %v3074
    %v3251 = vpack.c.b16 %v3091, %v3075
    %v3252 = vpack.c.b16 %v3092, %v3076
    %v3253 = vpack.c.b16 %v3093, %v3077
    %v3254 = vpack.c.b16 %v3094, %v3078
    %v3255 = vpack.c.b16 %v3095, %v3079
    %v3256 = vpack.c.b16 %v3096, %v3080
    %v3257 = vpack.c.b16 %v3097, %v3081
    %v3258 = vpack.c.b16 %v3098, %v3082
    %v3259 = vpack.c.b16 %v3115, %v3099
    %v3260 = vpack.c.b16 %v3116, %v3100
    %v3261 = vpack.c.b16 %v3117, %v3101
    %v3262 = vpack.c.b16 %v3118, %v3102
    %v3263 = vpack.c.b16 %v3119, %v3103
    %v3264 = vpack.c.b16 %v3120, %v3104
    %v3265 = vpack.c.b16 %v3121, %v3105
    %v3266 = vpack.c.b16 %v3122, %v3106
    %v3267 = vpack.c.b16 %v3123, %v3107
    %v3268 = vpack.c.b16 %v3124, %v3108
    %v3269 = vpack.c.b16 %v3125, %v3109
    %v3270 = vpack.c.b16 %v3126, %v3110
    %v3271 = vpack.c.b16 %v3127, %v3111
    %v3272 = vpack.c.b16 %v3128, %v3112
    %v3273 = vpack.c.b16 %v3129, %v3113
    %v3274 = vpack.c.b16 %v3130, %v3114
    %v3275 = vpack.c.b16 %v3147, %v3131
    %v3276 = vpack.c.b16 %v3148, %v3132
    %v3277 = vpack.c.b16 %v3149, %v3133
    %v3278 = vpack.c.b16 %v3150, %v3134
    %v3279 = vpack.c.b16 %v3151, %v3135
    %v3280 = vpack.c.b16 %v3152, %v3136
    %v3281 = vpack.c.b16 %v3153, %v3137
    %v3282 = vpack.c.b16 %v3154, %v3138
    %v3283 = vpack.c.b16 %v3155, %v3139
    %v3284 = vpack.c.b16 %v3156, %v3140
    %v3285 = vpack.c.b16 %v3157, %v3141
    %v3286 = vpack.c.b16 %v3158, %v3142
    %v3287 = vpack.c.b16 %v3159, %v3143
    %v3288 = vpack.c.b16 %v3160, %v3144
    %v3289 = vpack.c.b16 %v3161, %v3145
    %v3290 = vpack.c.b16 %v3162, %v3146
    %3419 = vmatpush.bf16.msra.mxu0 %v3275
    %3420 = vmatpush.bf16.msra.mxu0 %v3259
    %3421 = vmatpush.bf16.msra.mxu0 %v3243
    %3422 = vmatpush.bf16.msra.mxu0 %v3227
    %3423 = vmatpush.bf16.msra.mxu0 %v3211
    %3424 = vmatpush.bf16.msra.mxu0 %v3195
    %3425 = vmatpush.bf16.msra.mxu0 %v3179
    %3426 = vmatpush.bf16.msra.mxu0 %v3163
    %3427 = vmatmul.bf16.gmra.mxu0 %v2614
    %v3428 = vpop.f32.mrf.mxu0
    %v3429 = vadd.f32 %v2747, %v3428
    %v3430 = vpop.f32.mrf.mxu0
    %v3431 = vadd.f32 %v2747, %v3430
    %3432 = vdwg.mxu0
    %3433 = vmatpush.bf16.msra.mxu0 %v3276
    %3434 = vmatpush.bf16.msra.mxu0 %v3260
    %3435 = vmatpush.bf16.msra.mxu0 %v3244
    %3436 = vmatpush.bf16.msra.mxu0 %v3228
    %3437 = vmatpush.bf16.msra.mxu0 %v3212
    %3438 = vmatpush.bf16.msra.mxu0 %v3196
    %3439 = vmatpush.bf16.msra.mxu0 %v3180
    %3440 = vmatpush.bf16.msra.mxu0 %v3164
    %3441 = vmatmul.bf16.gmra.mxu0 %v2614
    %v3442 = vpop.f32.mrf.mxu0
    %v3443 = vadd.f32 %v2748, %v3442
    %v3444 = vpop.f32.mrf.mxu0
    %v3445 = vadd.f32 %v2748, %v3444
    %3446 = vdwg.mxu0
    %3447 = vmatpush.bf16.msra.mxu0 %v3277
    %3448 = vmatpush.bf16.msra.mxu0 %v3261
    %3449 = vmatpush.bf16.msra.mxu0 %v3245
    %3450 = vmatpush.bf16.msra.mxu0 %v3229
    %3451 = vmatpush.bf16.msra.mxu0 %v3213
    %3452 = vmatpush.bf16.msra.mxu0 %v3197
    %3453 = vmatpush.bf16.msra.mxu0 %v3181
    %3454 = vmatpush.bf16.msra.mxu0 %v3165
    %3455 = vmatmul.bf16.gmra.mxu0 %v2614
    %v3456 = vpop.f32.mrf.mxu0
    %v3457 = vadd.f32 %v2749, %v3456
    %v3458 = vpop.f32.mrf.mxu0
    %v3459 = vadd.f32 %v2749, %v3458
    %3460 = vdwg.mxu0
    %3461 = vmatpush.bf16.msra.mxu0 %v3278
    %3462 = vmatpush.bf16.msra.mxu0 %v3262
    %3463 = vmatpush.bf16.msra.mxu0 %v3246
    %3464 = vmatpush.bf16.msra.mxu0 %v3230
    %3465 = vmatpush.bf16.msra.mxu0 %v3214
    %3466 = vmatpush.bf16.msra.mxu0 %v3198
    %3467 = vmatpush.bf16.msra.mxu0 %v3182
    %3468 = vmatpush.bf16.msra.mxu0 %v3166
    %3469 = vmatmul.bf16.gmra.mxu0 %v2614
    %v3470 = vpop.f32.mrf.mxu0
    %v3471 = vadd.f32 %v2750, %v3470
    %v3472 = vpop.f32.mrf.mxu0
    %v3473 = vadd.f32 %v2750, %v3472
    %3474 = vdwg.mxu0
    %3475 = vmatpush.bf16.msra.mxu0 %v3279
    %3476 = vmatpush.bf16.msra.mxu0 %v3263
    %3477 = vmatpush.bf16.msra.mxu0 %v3247
    %3478 = vmatpush.bf16.msra.mxu0 %v3231
    %3479 = vmatpush.bf16.msra.mxu0 %v3215
    %3480 = vmatpush.bf16.msra.mxu0 %v3199
    %3481 = vmatpush.bf16.msra.mxu0 %v3183
    %3482 = vmatpush.bf16.msra.mxu0 %v3167
    %3483 = vmatmul.bf16.gmra.mxu0 %v2614
    %v3484 = vpop.f32.mrf.mxu0
    %v3485 = vadd.f32 %v2751, %v3484
    %v3486 = vpop.f32.mrf.mxu0
    %v3487 = vadd.f32 %v2751, %v3486
    %3488 = vdwg.mxu0
    %3489 = vmatpush.bf16.msra.mxu0 %v3280
    %3490 = vmatpush.bf16.msra.mxu0 %v3264
    %3491 = vmatpush.bf16.msra.mxu0 %v3248
    %3492 = vmatpush.bf16.msra.mxu0 %v3232
    %3493 = vmatpush.bf16.msra.mxu0 %v3216
    %3494 = vmatpush.bf16.msra.mxu0 %v3200
    %3495 = vmatpush.bf16.msra.mxu0 %v3184
    %3496 = vmatpush.bf16.msra.mxu0 %v3168
    %3497 = vmatmul.bf16.gmra.mxu0 %v2614
    %v3498 = vpop.f32.mrf.mxu0
    %v3499 = vadd.f32 %v2752, %v3498
    %v3500 = vpop.f32.mrf.mxu0
    %v3501 = vadd.f32 %v2752, %v3500
    %3502 = vdwg.mxu0
    %3503 = vmatpush.bf16.msra.mxu0 %v3281
    %3504 = vmatpush.bf16.msra.mxu0 %v3265
    %3505 = vmatpush.bf16.msra.mxu0 %v3249
    %3506 = vmatpush.bf16.msra.mxu0 %v3233
    %3507 = vmatpush.bf16.msra.mxu0 %v3217
    %3508 = vmatpush.bf16.msra.mxu0 %v3201
    %3509 = vmatpush.bf16.msra.mxu0 %v3185
    %3510 = vmatpush.bf16.msra.mxu0 %v3169
    %3511 = vmatmul.bf16.gmra.mxu0 %v2614
    %v3512 = vpop.f32.mrf.mxu0
    %v3513 = vadd.f32 %v2753, %v3512
    %v3514 = vpop.f32.mrf.mxu0
    %v3515 = vadd.f32 %v2753, %v3514
    %3516 = vdwg.mxu0
    %3517 = vmatpush.bf16.msra.mxu0 %v3282
    %3518 = vmatpush.bf16.msra.mxu0 %v3266
    %3519 = vmatpush.bf16.msra.mxu0 %v3250
    %3520 = vmatpush.bf16.msra.mxu0 %v3234
    %3521 = vmatpush.bf16.msra.mxu0 %v3218
    %3522 = vmatpush.bf16.msra.mxu0 %v3202
    %3523 = vmatpush.bf16.msra.mxu0 %v3186
    %3524 = vmatpush.bf16.msra.mxu0 %v3170
    %3525 = vmatmul.bf16.gmra.mxu0 %v2614
    %v3526 = vpop.f32.mrf.mxu0
    %v3527 = vadd.f32 %v2754, %v3526
    %v3528 = vpop.f32.mrf.mxu0
    %v3529 = vadd.f32 %v2754, %v3528
    %3530 = vdwg.mxu0
    %3531 = vmatpush.bf16.msra.mxu0 %v3283
    %3532 = vmatpush.bf16.msra.mxu0 %v3267
    %3533 = vmatpush.bf16.msra.mxu0 %v3251
    %3534 = vmatpush.bf16.msra.mxu0 %v3235
    %3535 = vmatpush.bf16.msra.mxu0 %v3219
    %3536 = vmatpush.bf16.msra.mxu0 %v3203
    %3537 = vmatpush.bf16.msra.mxu0 %v3187
    %3538 = vmatpush.bf16.msra.mxu0 %v3171
    %3539 = vmatmul.bf16.gmra.mxu0 %v2614
    %v3540 = vpop.f32.mrf.mxu0
    %v3541 = vadd.f32 %v2755, %v3540
    %v3542 = vpop.f32.mrf.mxu0
    %v3543 = vadd.f32 %v2755, %v3542
    %3544 = vdwg.mxu0
    %3545 = vmatpush.bf16.msra.mxu0 %v3284
    %3546 = vmatpush.bf16.msra.mxu0 %v3268
    %3547 = vmatpush.bf16.msra.mxu0 %v3252
    %3548 = vmatpush.bf16.msra.mxu0 %v3236
    %3549 = vmatpush.bf16.msra.mxu0 %v3220
    %3550 = vmatpush.bf16.msra.mxu0 %v3204
    %3551 = vmatpush.bf16.msra.mxu0 %v3188
    %3552 = vmatpush.bf16.msra.mxu0 %v3172
    %3553 = vmatmul.bf16.gmra.mxu0 %v2614
    %v3554 = vpop.f32.mrf.mxu0
    %v3555 = vadd.f32 %v2756, %v3554
    %v3556 = vpop.f32.mrf.mxu0
    %v3557 = vadd.f32 %v2756, %v3556
    %3558 = vdwg.mxu0
    %3559 = vmatpush.bf16.msra.mxu0 %v3285
    %3560 = vmatpush.bf16.msra.mxu0 %v3269
    %3561 = vmatpush.bf16.msra.mxu0 %v3253
    %3562 = vmatpush.bf16.msra.mxu0 %v3237
    %3563 = vmatpush.bf16.msra.mxu0 %v3221
    %3564 = vmatpush.bf16.msra.mxu0 %v3205
    %3565 = vmatpush.bf16.msra.mxu0 %v3189
    %3566 = vmatpush.bf16.msra.mxu0 %v3173
    %3567 = vmatmul.bf16.gmra.mxu0 %v2614
    %v3568 = vpop.f32.mrf.mxu0
    %v3569 = vadd.f32 %v2757, %v3568
    %v3570 = vpop.f32.mrf.mxu0
    %v3571 = vadd.f32 %v2757, %v3570
    %3572 = vdwg.mxu0
    %3573 = vmatpush.bf16.msra.mxu0 %v3286
    %3574 = vmatpush.bf16.msra.mxu0 %v3270
    %3575 = vmatpush.bf16.msra.mxu0 %v3254
    %3576 = vmatpush.bf16.msra.mxu0 %v3238
    %3577 = vmatpush.bf16.msra.mxu0 %v3222
    %3578 = vmatpush.bf16.msra.mxu0 %v3206
    %3579 = vmatpush.bf16.msra.mxu0 %v3190
    %3580 = vmatpush.bf16.msra.mxu0 %v3174
    %3581 = vmatmul.bf16.gmra.mxu0 %v2614
    %v3582 = vpop.f32.mrf.mxu0
    %v3583 = vadd.f32 %v2758, %v3582
    %v3584 = vpop.f32.mrf.mxu0
    %v3585 = vadd.f32 %v2758, %v3584
    %3586 = vdwg.mxu0
    %3587 = vmatpush.bf16.msra.mxu0 %v3287
    %3588 = vmatpush.bf16.msra.mxu0 %v3271
    %3589 = vmatpush.bf16.msra.mxu0 %v3255
    %3590 = vmatpush.bf16.msra.mxu0 %v3239
    %3591 = vmatpush.bf16.msra.mxu0 %v3223
    %3592 = vmatpush.bf16.msra.mxu0 %v3207
    %3593 = vmatpush.bf16.msra.mxu0 %v3191
    %3594 = vmatpush.bf16.msra.mxu0 %v3175
    %3595 = vmatmul.bf16.gmra.mxu0 %v2614
    %v3596 = vpop.f32.mrf.mxu0
    %v3597 = vadd.f32 %v2759, %v3596
    %v3598 = vpop.f32.mrf.mxu0
    %v3599 = vadd.f32 %v2759, %v3598
    %3600 = vdwg.mxu0
    %3601 = vmatpush.bf16.msra.mxu0 %v3288
    %3602 = vmatpush.bf16.msra.mxu0 %v3272
    %3603 = vmatpush.bf16.msra.mxu0 %v3256
    %3604 = vmatpush.bf16.msra.mxu0 %v3240
    %3605 = vmatpush.bf16.msra.mxu0 %v3224
    %3606 = vmatpush.bf16.msra.mxu0 %v3208
    %3607 = vmatpush.bf16.msra.mxu0 %v3192
    %3608 = vmatpush.bf16.msra.mxu0 %v3176
    %3609 = vmatmul.bf16.gmra.mxu0 %v2614
    %v3610 = vpop.f32.mrf.mxu0
    %v3611 = vadd.f32 %v2760, %v3610
    %v3612 = vpop.f32.mrf.mxu0
    %v3613 = vadd.f32 %v2760, %v3612
    %3614 = vdwg.mxu0
    %3615 = vmatpush.bf16.msra.mxu0 %v3289
    %3616 = vmatpush.bf16.msra.mxu0 %v3273
    %3617 = vmatpush.bf16.msra.mxu0 %v3257
    %3618 = vmatpush.bf16.msra.mxu0 %v3241
    %3619 = vmatpush.bf16.msra.mxu0 %v3225
    %3620 = vmatpush.bf16.msra.mxu0 %v3209
    %3621 = vmatpush.bf16.msra.mxu0 %v3193
    %3622 = vmatpush.bf16.msra.mxu0 %v3177
    %3623 = vmatmul.bf16.gmra.mxu0 %v2614
    %v3624 = vpop.f32.mrf.mxu0
    %v3625 = vadd.f32 %v2761, %v3624
    %v3626 = vpop.f32.mrf.mxu0
    %v3627 = vadd.f32 %v2761, %v3626
    %3628 = vdwg.mxu0
    %3629 = vmatpush.bf16.msra.mxu0 %v3290
    %3630 = vmatpush.bf16.msra.mxu0 %v3274
    %3631 = vmatpush.bf16.msra.mxu0 %v3258
    %3632 = vmatpush.bf16.msra.mxu0 %v3242
    %3633 = vmatpush.bf16.msra.mxu0 %v3226
    %3634 = vmatpush.bf16.msra.mxu0 %v3210
    %3635 = vmatpush.bf16.msra.mxu0 %v3194
    %3636 = vmatpush.bf16.msra.mxu0 %v3178
    %3637 = vmatmul.bf16.gmra.mxu0 %v2614
    %v3638 = vpop.f32.mrf.mxu0
    %v3639 = vadd.f32 %v2762, %v3638
    %v3640 = vpop.f32.mrf.mxu0
    %v3641 = vadd.f32 %v2762, %v3640
    %3642 = vdwg.mxu0
    %v3643 = vmax.f32 %v3429, 0.0
    %v3644 = vmax.f32 %v3443, 0.0
    %v3645 = vmax.f32 %v3457, 0.0
    %v3646 = vmax.f32 %v3471, 0.0
    %v3647 = vmax.f32 %v3485, 0.0
    %v3648 = vmax.f32 %v3499, 0.0
    %v3649 = vmax.f32 %v3513, 0.0
    %v3650 = vmax.f32 %v3527, 0.0
    %v3651 = vmax.f32 %v3541, 0.0
    %v3652 = vmax.f32 %v3555, 0.0
    %v3653 = vmax.f32 %v3569, 0.0
    %v3654 = vmax.f32 %v3583, 0.0
    %v3655 = vmax.f32 %v3597, 0.0
    %v3656 = vmax.f32 %v3611, 0.0
    %v3657 = vmax.f32 %v3625, 0.0
    %v3658 = vmax.f32 %v3639, 0.0
    %v3659 = vmax.f32 %v3431, 0.0
    %v3660 = vmax.f32 %v3445, 0.0
    %v3661 = vmax.f32 %v3459, 0.0
    %v3662 = vmax.f32 %v3473, 0.0
    %v3663 = vmax.f32 %v3487, 0.0
    %v3664 = vmax.f32 %v3501, 0.0
    %v3665 = vmax.f32 %v3515, 0.0
    %v3666 = vmax.f32 %v3529, 0.0
    %v3667 = vmax.f32 %v3543, 0.0
    %v3668 = vmax.f32 %v3557, 0.0
    %v3669 = vmax.f32 %v3571, 0.0
    %v3670 = vmax.f32 %v3585, 0.0
    %v3671 = vmax.f32 %v3599, 0.0
    %v3672 = vmax.f32 %v3613, 0.0
    %v3673 = vmax.f32 %v3627, 0.0
    %v3674 = vmax.f32 %v3641, 0.0
    %v3675 = vpack.c.bf16 %v3659, %v3643
    %v3676 = vpack.c.bf16 %v3660, %v3644
    %v3677 = vpack.c.bf16 %v3661, %v3645
    %v3678 = vpack.c.bf16 %v3662, %v3646
    %v3679 = vpack.c.bf16 %v3663, %v3647
    %v3680 = vpack.c.bf16 %v3664, %v3648
    %v3681 = vpack.c.bf16 %v3665, %v3649
    %v3682 = vpack.c.bf16 %v3666, %v3650
    %v3683 = vpack.c.bf16 %v3667, %v3651
    %v3684 = vpack.c.bf16 %v3668, %v3652
    %v3685 = vpack.c.bf16 %v3669, %v3653
    %v3686 = vpack.c.bf16 %v3670, %v3654
    %v3687 = vpack.c.bf16 %v3671, %v3655
    %v3688 = vpack.c.bf16 %v3672, %v3656
    %v3689 = vpack.c.bf16 %v3673, %v3657
    %v3690 = vpack.c.bf16 %v3674, %v3658
    %v3691 = vld [vmem:[#allocation13] sm:$0xf]
    %v3692 = vld [vmem:[#allocation13 + $0x4] sm:$0xf]
    %v3693 = vld [vmem:[#allocation13 + $0x8] sm:$0xf]
    %v3694 = vld [vmem:[#allocation13 + $0xc] sm:$0xf]
    %v3695 = vld [vmem:[#allocation13 + $0x10] sm:$0xf]
    %v3696 = vld [vmem:[#allocation13 + $0x14] sm:$0xf]
    %v3697 = vld [vmem:[#allocation13 + $0x18] sm:$0xf]
    %v3698 = vld [vmem:[#allocation13 + $0x1c] sm:$0xf]
    %v3699 = vld [vmem:[#allocation13 + $0x20] sm:$0xf]
    %v3700 = vld [vmem:[#allocation13 + $0x24] sm:$0xf]
    %v3701 = vld [vmem:[#allocation13 + $0x28] sm:$0xf]
    %v3702 = vld [vmem:[#allocation13 + $0x2c] sm:$0xf]
    %v3703 = vld [vmem:[#allocation13 + $0x30] sm:$0xf]
    %v3704 = vld [vmem:[#allocation13 + $0x34] sm:$0xf]
    %v3705 = vld [vmem:[#allocation13 + $0x38] sm:$0xf]
    %v3706 = vld [vmem:[#allocation13 + $0x3c] sm:$0xf]
    %v3707 = vld [vmem:[#allocation13 + $0x40] sm:$0xf]
    %v3708 = vld [vmem:[#allocation13 + $0x44] sm:$0xf]
    %v3709 = vld [vmem:[#allocation13 + $0x48] sm:$0xf]
    %v3710 = vld [vmem:[#allocation13 + $0x4c] sm:$0xf]
    %v3711 = vld [vmem:[#allocation13 + $0x50] sm:$0xf]
    %v3712 = vld [vmem:[#allocation13 + $0x54] sm:$0xf]
    %v3713 = vld [vmem:[#allocation13 + $0x58] sm:$0xf]
    %v3714 = vld [vmem:[#allocation13 + $0x5c] sm:$0xf]
    %v3715 = vld [vmem:[#allocation13 + $0x60] sm:$0xf]
    %v3716 = vld [vmem:[#allocation13 + $0x64] sm:$0xf]
    %v3717 = vld [vmem:[#allocation13 + $0x68] sm:$0xf]
    %v3718 = vld [vmem:[#allocation13 + $0x6c] sm:$0xf]
    %v3719 = vld [vmem:[#allocation13 + $0x70] sm:$0xf]
    %v3720 = vld [vmem:[#allocation13 + $0x74] sm:$0xf]
    %v3721 = vld [vmem:[#allocation13 + $0x78] sm:$0xf]
    %v3722 = vld [vmem:[#allocation13 + $0x7c] sm:$0xf]
    %v3723 = vld [vmem:[#allocation13 + $0x80] sm:$0xf]
    %v3724 = vld [vmem:[#allocation13 + $0x84] sm:$0xf]
    %v3725 = vld [vmem:[#allocation13 + $0x88] sm:$0xf]
    %v3726 = vld [vmem:[#allocation13 + $0x8c] sm:$0xf]
    %v3727 = vld [vmem:[#allocation13 + $0x90] sm:$0xf]
    %v3728 = vld [vmem:[#allocation13 + $0x94] sm:$0xf]
    %v3729 = vld [vmem:[#allocation13 + $0x98] sm:$0xf]
    %v3730 = vld [vmem:[#allocation13 + $0x9c] sm:$0xf]
    %v3731 = vld [vmem:[#allocation13 + $0xa0] sm:$0xf]
    %v3732 = vld [vmem:[#allocation13 + $0xa4] sm:$0xf]
    %v3733 = vld [vmem:[#allocation13 + $0xa8] sm:$0xf]
    %v3734 = vld [vmem:[#allocation13 + $0xac] sm:$0xf]
    %v3735 = vld [vmem:[#allocation13 + $0xb0] sm:$0xf]
    %v3736 = vld [vmem:[#allocation13 + $0xb4] sm:$0xf]
    %v3737 = vld [vmem:[#allocation13 + $0xb8] sm:$0xf]
    %v3738 = vld [vmem:[#allocation13 + $0xbc] sm:$0xf]
    %v3739 = vld [vmem:[#allocation13 + $0xc0] sm:$0xf]
    %v3740 = vld [vmem:[#allocation13 + $0xc4] sm:$0xf]
    %v3741 = vld [vmem:[#allocation13 + $0xc8] sm:$0xf]
    %v3742 = vld [vmem:[#allocation13 + $0xcc] sm:$0xf]
    %v3743 = vld [vmem:[#allocation13 + $0xd0] sm:$0xf]
    %v3744 = vld [vmem:[#allocation13 + $0xd4] sm:$0xf]
    %v3745 = vld [vmem:[#allocation13 + $0xd8] sm:$0xf]
    %v3746 = vld [vmem:[#allocation13 + $0xdc] sm:$0xf]
    %v3747 = vld [vmem:[#allocation13 + $0xe0] sm:$0xf]
    %v3748 = vld [vmem:[#allocation13 + $0xe4] sm:$0xf]
    %v3749 = vld [vmem:[#allocation13 + $0xe8] sm:$0xf]
    %v3750 = vld [vmem:[#allocation13 + $0xec] sm:$0xf]
    %v3751 = vld [vmem:[#allocation13 + $0xf0] sm:$0xf]
    %v3752 = vld [vmem:[#allocation13 + $0xf4] sm:$0xf]
    %v3753 = vld [vmem:[#allocation13 + $0xf8] sm:$0xf]
    %v3754 = vld [vmem:[#allocation13 + $0xfc] sm:$0xf]
    %v3755 = vld [vmem:[#allocation13 + $0x100] sm:$0xf]
    %v3756 = vld [vmem:[#allocation13 + $0x104] sm:$0xf]
    %v3757 = vld [vmem:[#allocation13 + $0x108] sm:$0xf]
    %v3758 = vld [vmem:[#allocation13 + $0x10c] sm:$0xf]
    %v3759 = vld [vmem:[#allocation13 + $0x110] sm:$0xf]
    %v3760 = vld [vmem:[#allocation13 + $0x114] sm:$0xf]
    %v3761 = vld [vmem:[#allocation13 + $0x118] sm:$0xf]
    %v3762 = vld [vmem:[#allocation13 + $0x11c] sm:$0xf]
    %v3763 = vld [vmem:[#allocation13 + $0x120] sm:$0xf]
    %v3764 = vld [vmem:[#allocation13 + $0x124] sm:$0xf]
    %v3765 = vld [vmem:[#allocation13 + $0x128] sm:$0xf]
    %v3766 = vld [vmem:[#allocation13 + $0x12c] sm:$0xf]
    %v3767 = vld [vmem:[#allocation13 + $0x130] sm:$0xf]
    %v3768 = vld [vmem:[#allocation13 + $0x134] sm:$0xf]
    %v3769 = vld [vmem:[#allocation13 + $0x138] sm:$0xf]
    %v3770 = vld [vmem:[#allocation13 + $0x13c] sm:$0xf]
    %v3771 = vld [vmem:[#allocation13 + $0x140] sm:$0xf]
    %v3772 = vld [vmem:[#allocation13 + $0x144] sm:$0xf]
    %v3773 = vld [vmem:[#allocation13 + $0x148] sm:$0xf]
    %v3774 = vld [vmem:[#allocation13 + $0x14c] sm:$0xf]
    %v3775 = vld [vmem:[#allocation13 + $0x150] sm:$0xf]
    %v3776 = vld [vmem:[#allocation13 + $0x154] sm:$0xf]
    %v3777 = vld [vmem:[#allocation13 + $0x158] sm:$0xf]
    %v3778 = vld [vmem:[#allocation13 + $0x15c] sm:$0xf]
    %v3779 = vld [vmem:[#allocation13 + $0x160] sm:$0xf]
    %v3780 = vld [vmem:[#allocation13 + $0x164] sm:$0xf]
    %v3781 = vld [vmem:[#allocation13 + $0x168] sm:$0xf]
    %v3782 = vld [vmem:[#allocation13 + $0x16c] sm:$0xf]
    %v3783 = vld [vmem:[#allocation13 + $0x170] sm:$0xf]
    %v3784 = vld [vmem:[#allocation13 + $0x174] sm:$0xf]
    %v3785 = vld [vmem:[#allocation13 + $0x178] sm:$0xf]
    %v3786 = vld [vmem:[#allocation13 + $0x17c] sm:$0xf]
    %v3787 = vld [vmem:[#allocation13 + $0x180] sm:$0xf]
    %v3788 = vld [vmem:[#allocation13 + $0x184] sm:$0xf]
    %v3789 = vld [vmem:[#allocation13 + $0x188] sm:$0xf]
    %v3790 = vld [vmem:[#allocation13 + $0x18c] sm:$0xf]
    %v3791 = vld [vmem:[#allocation13 + $0x190] sm:$0xf]
    %v3792 = vld [vmem:[#allocation13 + $0x194] sm:$0xf]
    %v3793 = vld [vmem:[#allocation13 + $0x198] sm:$0xf]
    %v3794 = vld [vmem:[#allocation13 + $0x19c] sm:$0xf]
    %v3795 = vld [vmem:[#allocation13 + $0x1a0] sm:$0xf]
    %v3796 = vld [vmem:[#allocation13 + $0x1a4] sm:$0xf]
    %v3797 = vld [vmem:[#allocation13 + $0x1a8] sm:$0xf]
    %v3798 = vld [vmem:[#allocation13 + $0x1ac] sm:$0xf]
    %v3799 = vld [vmem:[#allocation13 + $0x1b0] sm:$0xf]
    %v3800 = vld [vmem:[#allocation13 + $0x1b4] sm:$0xf]
    %v3801 = vld [vmem:[#allocation13 + $0x1b8] sm:$0xf]
    %v3802 = vld [vmem:[#allocation13 + $0x1bc] sm:$0xf]
    %v3803 = vld [vmem:[#allocation13 + $0x1c0] sm:$0xf]
    %v3804 = vld [vmem:[#allocation13 + $0x1c4] sm:$0xf]
    %v3805 = vld [vmem:[#allocation13 + $0x1c8] sm:$0xf]
    %v3806 = vld [vmem:[#allocation13 + $0x1cc] sm:$0xf]
    %v3807 = vld [vmem:[#allocation13 + $0x1d0] sm:$0xf]
    %v3808 = vld [vmem:[#allocation13 + $0x1d4] sm:$0xf]
    %v3809 = vld [vmem:[#allocation13 + $0x1d8] sm:$0xf]
    %v3810 = vld [vmem:[#allocation13 + $0x1dc] sm:$0xf]
    %v3811 = vld [vmem:[#allocation13 + $0x1e0] sm:$0xf]
    %v3812 = vld [vmem:[#allocation13 + $0x1e4] sm:$0xf]
    %v3813 = vld [vmem:[#allocation13 + $0x1e8] sm:$0xf]
    %v3814 = vld [vmem:[#allocation13 + $0x1ec] sm:$0xf]
    %v3815 = vld [vmem:[#allocation13 + $0x1f0] sm:$0xf]
    %v3816 = vld [vmem:[#allocation13 + $0x1f4] sm:$0xf]
    %v3817 = vld [vmem:[#allocation13 + $0x1f8] sm:$0xf]
    %v3818 = vld [vmem:[#allocation13 + $0x1fc] sm:$0xf]
    %v3819 = vld [vmem:[#allocation13 + $0x200] sm:$0xf]
    %v3820 = vld [vmem:[#allocation13 + $0x204] sm:$0xf]
    %v3821 = vld [vmem:[#allocation13 + $0x208] sm:$0xf]
    %v3822 = vld [vmem:[#allocation13 + $0x20c] sm:$0xf]
    %v3823 = vld [vmem:[#allocation13 + $0x210] sm:$0xf]
    %v3824 = vld [vmem:[#allocation13 + $0x214] sm:$0xf]
    %v3825 = vld [vmem:[#allocation13 + $0x218] sm:$0xf]
    %v3826 = vld [vmem:[#allocation13 + $0x21c] sm:$0xf]
    %v3827 = vld [vmem:[#allocation13 + $0x220] sm:$0xf]
    %v3828 = vld [vmem:[#allocation13 + $0x224] sm:$0xf]
    %v3829 = vld [vmem:[#allocation13 + $0x228] sm:$0xf]
    %v3830 = vld [vmem:[#allocation13 + $0x22c] sm:$0xf]
    %v3831 = vld [vmem:[#allocation13 + $0x230] sm:$0xf]
    %v3832 = vld [vmem:[#allocation13 + $0x234] sm:$0xf]
    %v3833 = vld [vmem:[#allocation13 + $0x238] sm:$0xf]
    %v3834 = vld [vmem:[#allocation13 + $0x23c] sm:$0xf]
    %v3835 = vld [vmem:[#allocation13 + $0x240] sm:$0xf]
    %v3836 = vld [vmem:[#allocation13 + $0x244] sm:$0xf]
    %v3837 = vld [vmem:[#allocation13 + $0x248] sm:$0xf]
    %v3838 = vld [vmem:[#allocation13 + $0x24c] sm:$0xf]
    %v3839 = vld [vmem:[#allocation13 + $0x250] sm:$0xf]
    %v3840 = vld [vmem:[#allocation13 + $0x254] sm:$0xf]
    %v3841 = vld [vmem:[#allocation13 + $0x258] sm:$0xf]
    %v3842 = vld [vmem:[#allocation13 + $0x25c] sm:$0xf]
    %v3843 = vld [vmem:[#allocation13 + $0x260] sm:$0xf]
    %v3844 = vld [vmem:[#allocation13 + $0x264] sm:$0xf]
    %v3845 = vld [vmem:[#allocation13 + $0x268] sm:$0xf]
    %v3846 = vld [vmem:[#allocation13 + $0x26c] sm:$0xf]
    %v3847 = vld [vmem:[#allocation13 + $0x270] sm:$0xf]
    %v3848 = vld [vmem:[#allocation13 + $0x274] sm:$0xf]
    %v3849 = vld [vmem:[#allocation13 + $0x278] sm:$0xf]
    %v3850 = vld [vmem:[#allocation13 + $0x27c] sm:$0xf]
    %v3851 = vld [vmem:[#allocation13 + $0x280] sm:$0xf]
    %v3852 = vld [vmem:[#allocation13 + $0x284] sm:$0xf]
    %v3853 = vld [vmem:[#allocation13 + $0x288] sm:$0xf]
    %v3854 = vld [vmem:[#allocation13 + $0x28c] sm:$0xf]
    %v3855 = vld [vmem:[#allocation13 + $0x290] sm:$0xf]
    %v3856 = vld [vmem:[#allocation13 + $0x294] sm:$0xf]
    %v3857 = vld [vmem:[#allocation13 + $0x298] sm:$0xf]
    %v3858 = vld [vmem:[#allocation13 + $0x29c] sm:$0xf]
    %v3859 = vld [vmem:[#allocation13 + $0x2a0] sm:$0xf]
    %v3860 = vld [vmem:[#allocation13 + $0x2a4] sm:$0xf]
    %v3861 = vld [vmem:[#allocation13 + $0x2a8] sm:$0xf]
    %v3862 = vld [vmem:[#allocation13 + $0x2ac] sm:$0xf]
    %v3863 = vld [vmem:[#allocation13 + $0x2b0] sm:$0xf]
    %v3864 = vld [vmem:[#allocation13 + $0x2b4] sm:$0xf]
    %v3865 = vld [vmem:[#allocation13 + $0x2b8] sm:$0xf]
    %v3866 = vld [vmem:[#allocation13 + $0x2bc] sm:$0xf]
    %v3867 = vld [vmem:[#allocation13 + $0x2c0] sm:$0xf]
    %v3868 = vld [vmem:[#allocation13 + $0x2c4] sm:$0xf]
    %v3869 = vld [vmem:[#allocation13 + $0x2c8] sm:$0xf]
    %v3870 = vld [vmem:[#allocation13 + $0x2cc] sm:$0xf]
    %v3871 = vld [vmem:[#allocation13 + $0x2d0] sm:$0xf]
    %v3872 = vld [vmem:[#allocation13 + $0x2d4] sm:$0xf]
    %v3873 = vld [vmem:[#allocation13 + $0x2d8] sm:$0xf]
    %v3874 = vld [vmem:[#allocation13 + $0x2dc] sm:$0xf]
    %v3875 = vld [vmem:[#allocation13 + $0x2e0] sm:$0xf]
    %v3876 = vld [vmem:[#allocation13 + $0x2e4] sm:$0xf]
    %v3877 = vld [vmem:[#allocation13 + $0x2e8] sm:$0xf]
    %v3878 = vld [vmem:[#allocation13 + $0x2ec] sm:$0xf]
    %v3879 = vld [vmem:[#allocation13 + $0x2f0] sm:$0xf]
    %v3880 = vld [vmem:[#allocation13 + $0x2f4] sm:$0xf]
    %v3881 = vld [vmem:[#allocation13 + $0x2f8] sm:$0xf]
    %v3882 = vld [vmem:[#allocation13 + $0x2fc] sm:$0xf]
    %v3883 = vld [vmem:[#allocation13 + $0x300] sm:$0xf]
    %v3884 = vld [vmem:[#allocation13 + $0x304] sm:$0xf]
    %v3885 = vld [vmem:[#allocation13 + $0x308] sm:$0xf]
    %v3886 = vld [vmem:[#allocation13 + $0x30c] sm:$0xf]
    %v3887 = vld [vmem:[#allocation13 + $0x310] sm:$0xf]
    %v3888 = vld [vmem:[#allocation13 + $0x314] sm:$0xf]
    %v3889 = vld [vmem:[#allocation13 + $0x318] sm:$0xf]
    %v3890 = vld [vmem:[#allocation13 + $0x31c] sm:$0xf]
    %v3891 = vld [vmem:[#allocation13 + $0x320] sm:$0xf]
    %v3892 = vld [vmem:[#allocation13 + $0x324] sm:$0xf]
    %v3893 = vld [vmem:[#allocation13 + $0x328] sm:$0xf]
    %v3894 = vld [vmem:[#allocation13 + $0x32c] sm:$0xf]
    %v3895 = vld [vmem:[#allocation13 + $0x330] sm:$0xf]
    %v3896 = vld [vmem:[#allocation13 + $0x334] sm:$0xf]
    %v3897 = vld [vmem:[#allocation13 + $0x338] sm:$0xf]
    %v3898 = vld [vmem:[#allocation13 + $0x33c] sm:$0xf]
    %v3899 = vld [vmem:[#allocation13 + $0x340] sm:$0xf]
    %v3900 = vld [vmem:[#allocation13 + $0x344] sm:$0xf]
    %v3901 = vld [vmem:[#allocation13 + $0x348] sm:$0xf]
    %v3902 = vld [vmem:[#allocation13 + $0x34c] sm:$0xf]
    %v3903 = vld [vmem:[#allocation13 + $0x350] sm:$0xf]
    %v3904 = vld [vmem:[#allocation13 + $0x354] sm:$0xf]
    %v3905 = vld [vmem:[#allocation13 + $0x358] sm:$0xf]
    %v3906 = vld [vmem:[#allocation13 + $0x35c] sm:$0xf]
    %v3907 = vld [vmem:[#allocation13 + $0x360] sm:$0xf]
    %v3908 = vld [vmem:[#allocation13 + $0x364] sm:$0xf]
    %v3909 = vld [vmem:[#allocation13 + $0x368] sm:$0xf]
    %v3910 = vld [vmem:[#allocation13 + $0x36c] sm:$0xf]
    %v3911 = vld [vmem:[#allocation13 + $0x370] sm:$0xf]
    %v3912 = vld [vmem:[#allocation13 + $0x374] sm:$0xf]
    %v3913 = vld [vmem:[#allocation13 + $0x378] sm:$0xf]
    %v3914 = vld [vmem:[#allocation13 + $0x37c] sm:$0xf]
    %v3915 = vld [vmem:[#allocation13 + $0x380] sm:$0xf]
    %v3916 = vld [vmem:[#allocation13 + $0x384] sm:$0xf]
    %v3917 = vld [vmem:[#allocation13 + $0x388] sm:$0xf]
    %v3918 = vld [vmem:[#allocation13 + $0x38c] sm:$0xf]
    %v3919 = vld [vmem:[#allocation13 + $0x390] sm:$0xf]
    %v3920 = vld [vmem:[#allocation13 + $0x394] sm:$0xf]
    %v3921 = vld [vmem:[#allocation13 + $0x398] sm:$0xf]
    %v3922 = vld [vmem:[#allocation13 + $0x39c] sm:$0xf]
    %v3923 = vld [vmem:[#allocation13 + $0x3a0] sm:$0xf]
    %v3924 = vld [vmem:[#allocation13 + $0x3a4] sm:$0xf]
    %v3925 = vld [vmem:[#allocation13 + $0x3a8] sm:$0xf]
    %v3926 = vld [vmem:[#allocation13 + $0x3ac] sm:$0xf]
    %v3927 = vld [vmem:[#allocation13 + $0x3b0] sm:$0xf]
    %v3928 = vld [vmem:[#allocation13 + $0x3b4] sm:$0xf]
    %v3929 = vld [vmem:[#allocation13 + $0x3b8] sm:$0xf]
    %v3930 = vld [vmem:[#allocation13 + $0x3bc] sm:$0xf]
    %v3931 = vld [vmem:[#allocation13 + $0x3c0] sm:$0xf]
    %v3932 = vld [vmem:[#allocation13 + $0x3c4] sm:$0xf]
    %v3933 = vld [vmem:[#allocation13 + $0x3c8] sm:$0xf]
    %v3934 = vld [vmem:[#allocation13 + $0x3cc] sm:$0xf]
    %v3935 = vld [vmem:[#allocation13 + $0x3d0] sm:$0xf]
    %v3936 = vld [vmem:[#allocation13 + $0x3d4] sm:$0xf]
    %v3937 = vld [vmem:[#allocation13 + $0x3d8] sm:$0xf]
    %v3938 = vld [vmem:[#allocation13 + $0x3dc] sm:$0xf]
    %v3939 = vld [vmem:[#allocation13 + $0x3e0] sm:$0xf]
    %v3940 = vld [vmem:[#allocation13 + $0x3e4] sm:$0xf]
    %v3941 = vld [vmem:[#allocation13 + $0x3e8] sm:$0xf]
    %v3942 = vld [vmem:[#allocation13 + $0x3ec] sm:$0xf]
    %v3943 = vld [vmem:[#allocation13 + $0x3f0] sm:$0xf]
    %v3944 = vld [vmem:[#allocation13 + $0x3f4] sm:$0xf]
    %v3945 = vld [vmem:[#allocation13 + $0x3f8] sm:$0xf]
    %v3946 = vld [vmem:[#allocation13 + $0x3fc] sm:$0xf]
    %s3947 = scalar_lea.vmem [#allocation16], 2
    %v3948 = vld [vmem:[%s3947] sm:$0x1]
    %v3950 = vperm.slane %v3948, 0
    %v4208 = vunpack.c.l.b16 %v3691
    %v4209 = vunpack.c.l.b16 %v3692
    %v4210 = vunpack.c.l.b16 %v3693
    %v4211 = vunpack.c.l.b16 %v3694
    %v4212 = vunpack.c.l.b16 %v3695
    %v4213 = vunpack.c.l.b16 %v3696
    %v4214 = vunpack.c.l.b16 %v3697
    %v4215 = vunpack.c.l.b16 %v3698
    %v4216 = vunpack.c.l.b16 %v3699
    %v4217 = vunpack.c.l.b16 %v3700
    %v4218 = vunpack.c.l.b16 %v3701
    %v4219 = vunpack.c.l.b16 %v3702
    %v4220 = vunpack.c.l.b16 %v3703
    %v4221 = vunpack.c.l.b16 %v3704
    %v4222 = vunpack.c.l.b16 %v3705
    %v4223 = vunpack.c.l.b16 %v3706
    %v4224 = vunpack.c.l.b16 %v3707
    %v4225 = vunpack.c.l.b16 %v3708
    %v4226 = vunpack.c.l.b16 %v3709
    %v4227 = vunpack.c.l.b16 %v3710
    %v4228 = vunpack.c.l.b16 %v3711
    %v4229 = vunpack.c.l.b16 %v3712
    %v4230 = vunpack.c.l.b16 %v3713
    %v4231 = vunpack.c.l.b16 %v3714
    %v4232 = vunpack.c.l.b16 %v3715
    %v4233 = vunpack.c.l.b16 %v3716
    %v4234 = vunpack.c.l.b16 %v3717
    %v4235 = vunpack.c.l.b16 %v3718
    %v4236 = vunpack.c.l.b16 %v3719
    %v4237 = vunpack.c.l.b16 %v3720
    %v4238 = vunpack.c.l.b16 %v3721
    %v4239 = vunpack.c.l.b16 %v3722
    %v4240 = vunpack.c.l.b16 %v3723
    %v4241 = vunpack.c.l.b16 %v3724
    %v4242 = vunpack.c.l.b16 %v3725
    %v4243 = vunpack.c.l.b16 %v3726
    %v4244 = vunpack.c.l.b16 %v3727
    %v4245 = vunpack.c.l.b16 %v3728
    %v4246 = vunpack.c.l.b16 %v3729
    %v4247 = vunpack.c.l.b16 %v3730
    %v4248 = vunpack.c.l.b16 %v3731
    %v4249 = vunpack.c.l.b16 %v3732
    %v4250 = vunpack.c.l.b16 %v3733
    %v4251 = vunpack.c.l.b16 %v3734
    %v4252 = vunpack.c.l.b16 %v3735
    %v4253 = vunpack.c.l.b16 %v3736
    %v4254 = vunpack.c.l.b16 %v3737
    %v4255 = vunpack.c.l.b16 %v3738
    %v4256 = vunpack.c.l.b16 %v3739
    %v4257 = vunpack.c.l.b16 %v3740
    %v4258 = vunpack.c.l.b16 %v3741
    %v4259 = vunpack.c.l.b16 %v3742
    %v4260 = vunpack.c.l.b16 %v3743
    %v4261 = vunpack.c.l.b16 %v3744
    %v4262 = vunpack.c.l.b16 %v3745
    %v4263 = vunpack.c.l.b16 %v3746
    %v4264 = vunpack.c.l.b16 %v3747
    %v4265 = vunpack.c.l.b16 %v3748
    %v4266 = vunpack.c.l.b16 %v3749
    %v4267 = vunpack.c.l.b16 %v3750
    %v4268 = vunpack.c.l.b16 %v3751
    %v4269 = vunpack.c.l.b16 %v3752
    %v4270 = vunpack.c.l.b16 %v3753
    %v4271 = vunpack.c.l.b16 %v3754
    %v4272 = vunpack.c.l.b16 %v3755
    %v4273 = vunpack.c.l.b16 %v3756
    %v4274 = vunpack.c.l.b16 %v3757
    %v4275 = vunpack.c.l.b16 %v3758
    %v4276 = vunpack.c.l.b16 %v3759
    %v4277 = vunpack.c.l.b16 %v3760
    %v4278 = vunpack.c.l.b16 %v3761
    %v4279 = vunpack.c.l.b16 %v3762
    %v4280 = vunpack.c.l.b16 %v3763
    %v4281 = vunpack.c.l.b16 %v3764
    %v4282 = vunpack.c.l.b16 %v3765
    %v4283 = vunpack.c.l.b16 %v3766
    %v4284 = vunpack.c.l.b16 %v3767
    %v4285 = vunpack.c.l.b16 %v3768
    %v4286 = vunpack.c.l.b16 %v3769
    %v4287 = vunpack.c.l.b16 %v3770
    %v4288 = vunpack.c.l.b16 %v3771
    %v4289 = vunpack.c.l.b16 %v3772
    %v4290 = vunpack.c.l.b16 %v3773
    %v4291 = vunpack.c.l.b16 %v3774
    %v4292 = vunpack.c.l.b16 %v3775
    %v4293 = vunpack.c.l.b16 %v3776
    %v4294 = vunpack.c.l.b16 %v3777
    %v4295 = vunpack.c.l.b16 %v3778
    %v4296 = vunpack.c.l.b16 %v3779
    %v4297 = vunpack.c.l.b16 %v3780
    %v4298 = vunpack.c.l.b16 %v3781
    %v4299 = vunpack.c.l.b16 %v3782
    %v4300 = vunpack.c.l.b16 %v3783
    %v4301 = vunpack.c.l.b16 %v3784
    %v4302 = vunpack.c.l.b16 %v3785
    %v4303 = vunpack.c.l.b16 %v3786
    %v4304 = vunpack.c.l.b16 %v3787
    %v4305 = vunpack.c.l.b16 %v3788
    %v4306 = vunpack.c.l.b16 %v3789
    %v4307 = vunpack.c.l.b16 %v3790
    %v4308 = vunpack.c.l.b16 %v3791
    %v4309 = vunpack.c.l.b16 %v3792
    %v4310 = vunpack.c.l.b16 %v3793
    %v4311 = vunpack.c.l.b16 %v3794
    %v4312 = vunpack.c.l.b16 %v3795
    %v4313 = vunpack.c.l.b16 %v3796
    %v4314 = vunpack.c.l.b16 %v3797
    %v4315 = vunpack.c.l.b16 %v3798
    %v4316 = vunpack.c.l.b16 %v3799
    %v4317 = vunpack.c.l.b16 %v3800
    %v4318 = vunpack.c.l.b16 %v3801
    %v4319 = vunpack.c.l.b16 %v3802
    %v4320 = vunpack.c.l.b16 %v3803
    %v4321 = vunpack.c.l.b16 %v3804
    %v4322 = vunpack.c.l.b16 %v3805
    %v4323 = vunpack.c.l.b16 %v3806
    %v4324 = vunpack.c.l.b16 %v3807
    %v4325 = vunpack.c.l.b16 %v3808
    %v4326 = vunpack.c.l.b16 %v3809
    %v4327 = vunpack.c.l.b16 %v3810
    %v4328 = vunpack.c.l.b16 %v3811
    %v4329 = vunpack.c.l.b16 %v3812
    %v4330 = vunpack.c.l.b16 %v3813
    %v4331 = vunpack.c.l.b16 %v3814
    %v4332 = vunpack.c.l.b16 %v3815
    %v4333 = vunpack.c.l.b16 %v3816
    %v4334 = vunpack.c.l.b16 %v3817
    %v4335 = vunpack.c.l.b16 %v3818
    %v4336 = vunpack.c.l.b16 %v3819
    %v4337 = vunpack.c.l.b16 %v3820
    %v4338 = vunpack.c.l.b16 %v3821
    %v4339 = vunpack.c.l.b16 %v3822
    %v4340 = vunpack.c.l.b16 %v3823
    %v4341 = vunpack.c.l.b16 %v3824
    %v4342 = vunpack.c.l.b16 %v3825
    %v4343 = vunpack.c.l.b16 %v3826
    %v4344 = vunpack.c.l.b16 %v3827
    %v4345 = vunpack.c.l.b16 %v3828
    %v4346 = vunpack.c.l.b16 %v3829
    %v4347 = vunpack.c.l.b16 %v3830
    %v4348 = vunpack.c.l.b16 %v3831
    %v4349 = vunpack.c.l.b16 %v3832
    %v4350 = vunpack.c.l.b16 %v3833
    %v4351 = vunpack.c.l.b16 %v3834
    %v4352 = vunpack.c.l.b16 %v3835
    %v4353 = vunpack.c.l.b16 %v3836
    %v4354 = vunpack.c.l.b16 %v3837
    %v4355 = vunpack.c.l.b16 %v3838
    %v4356 = vunpack.c.l.b16 %v3839
    %v4357 = vunpack.c.l.b16 %v3840
    %v4358 = vunpack.c.l.b16 %v3841
    %v4359 = vunpack.c.l.b16 %v3842
    %v4360 = vunpack.c.l.b16 %v3843
    %v4361 = vunpack.c.l.b16 %v3844
    %v4362 = vunpack.c.l.b16 %v3845
    %v4363 = vunpack.c.l.b16 %v3846
    %v4364 = vunpack.c.l.b16 %v3847
    %v4365 = vunpack.c.l.b16 %v3848
    %v4366 = vunpack.c.l.b16 %v3849
    %v4367 = vunpack.c.l.b16 %v3850
    %v4368 = vunpack.c.l.b16 %v3851
    %v4369 = vunpack.c.l.b16 %v3852
    %v4370 = vunpack.c.l.b16 %v3853
    %v4371 = vunpack.c.l.b16 %v3854
    %v4372 = vunpack.c.l.b16 %v3855
    %v4373 = vunpack.c.l.b16 %v3856
    %v4374 = vunpack.c.l.b16 %v3857
    %v4375 = vunpack.c.l.b16 %v3858
    %v4376 = vunpack.c.l.b16 %v3859
    %v4377 = vunpack.c.l.b16 %v3860
    %v4378 = vunpack.c.l.b16 %v3861
    %v4379 = vunpack.c.l.b16 %v3862
    %v4380 = vunpack.c.l.b16 %v3863
    %v4381 = vunpack.c.l.b16 %v3864
    %v4382 = vunpack.c.l.b16 %v3865
    %v4383 = vunpack.c.l.b16 %v3866
    %v4384 = vunpack.c.l.b16 %v3867
    %v4385 = vunpack.c.l.b16 %v3868
    %v4386 = vunpack.c.l.b16 %v3869
    %v4387 = vunpack.c.l.b16 %v3870
    %v4388 = vunpack.c.l.b16 %v3871
    %v4389 = vunpack.c.l.b16 %v3872
    %v4390 = vunpack.c.l.b16 %v3873
    %v4391 = vunpack.c.l.b16 %v3874
    %v4392 = vunpack.c.l.b16 %v3875
    %v4393 = vunpack.c.l.b16 %v3876
    %v4394 = vunpack.c.l.b16 %v3877
    %v4395 = vunpack.c.l.b16 %v3878
    %v4396 = vunpack.c.l.b16 %v3879
    %v4397 = vunpack.c.l.b16 %v3880
    %v4398 = vunpack.c.l.b16 %v3881
    %v4399 = vunpack.c.l.b16 %v3882
    %v4400 = vunpack.c.l.b16 %v3883
    %v4401 = vunpack.c.l.b16 %v3884
    %v4402 = vunpack.c.l.b16 %v3885
    %v4403 = vunpack.c.l.b16 %v3886
    %v4404 = vunpack.c.l.b16 %v3887
    %v4405 = vunpack.c.l.b16 %v3888
    %v4406 = vunpack.c.l.b16 %v3889
    %v4407 = vunpack.c.l.b16 %v3890
    %v4408 = vunpack.c.l.b16 %v3891
    %v4409 = vunpack.c.l.b16 %v3892
    %v4410 = vunpack.c.l.b16 %v3893
    %v4411 = vunpack.c.l.b16 %v3894
    %v4412 = vunpack.c.l.b16 %v3895
    %v4413 = vunpack.c.l.b16 %v3896
    %v4414 = vunpack.c.l.b16 %v3897
    %v4415 = vunpack.c.l.b16 %v3898
    %v4416 = vunpack.c.l.b16 %v3899
    %v4417 = vunpack.c.l.b16 %v3900
    %v4418 = vunpack.c.l.b16 %v3901
    %v4419 = vunpack.c.l.b16 %v3902
    %v4420 = vunpack.c.l.b16 %v3903
    %v4421 = vunpack.c.l.b16 %v3904
    %v4422 = vunpack.c.l.b16 %v3905
    %v4423 = vunpack.c.l.b16 %v3906
    %v4424 = vunpack.c.l.b16 %v3907
    %v4425 = vunpack.c.l.b16 %v3908
    %v4426 = vunpack.c.l.b16 %v3909
    %v4427 = vunpack.c.l.b16 %v3910
    %v4428 = vunpack.c.l.b16 %v3911
    %v4429 = vunpack.c.l.b16 %v3912
    %v4430 = vunpack.c.l.b16 %v3913
    %v4431 = vunpack.c.l.b16 %v3914
    %v4432 = vunpack.c.l.b16 %v3915
    %v4433 = vunpack.c.l.b16 %v3916
    %v4434 = vunpack.c.l.b16 %v3917
    %v4435 = vunpack.c.l.b16 %v3918
    %v4436 = vunpack.c.l.b16 %v3919
    %v4437 = vunpack.c.l.b16 %v3920
    %v4438 = vunpack.c.l.b16 %v3921
    %v4439 = vunpack.c.l.b16 %v3922
    %v4440 = vunpack.c.l.b16 %v3923
    %v4441 = vunpack.c.l.b16 %v3924
    %v4442 = vunpack.c.l.b16 %v3925
    %v4443 = vunpack.c.l.b16 %v3926
    %v4444 = vunpack.c.l.b16 %v3927
    %v4445 = vunpack.c.l.b16 %v3928
    %v4446 = vunpack.c.l.b16 %v3929
    %v4447 = vunpack.c.l.b16 %v3930
    %v4448 = vunpack.c.l.b16 %v3931
    %v4449 = vunpack.c.l.b16 %v3932
    %v4450 = vunpack.c.l.b16 %v3933
    %v4451 = vunpack.c.l.b16 %v3934
    %v4452 = vunpack.c.l.b16 %v3935
    %v4453 = vunpack.c.l.b16 %v3936
    %v4454 = vunpack.c.l.b16 %v3937
    %v4455 = vunpack.c.l.b16 %v3938
    %v4456 = vunpack.c.l.b16 %v3939
    %v4457 = vunpack.c.l.b16 %v3940
    %v4458 = vunpack.c.l.b16 %v3941
    %v4459 = vunpack.c.l.b16 %v3942
    %v4460 = vunpack.c.l.b16 %v3943
    %v4461 = vunpack.c.l.b16 %v3944
    %v4462 = vunpack.c.l.b16 %v3945
    %v4463 = vunpack.c.l.b16 %v3946
    %v4464 = vpack.c.b16 %v4209, %v4208
    %v4465 = vpack.c.b16 %v4211, %v4210
    %v4466 = vpack.c.b16 %v4213, %v4212
    %v4467 = vpack.c.b16 %v4215, %v4214
    %v4468 = vpack.c.b16 %v4217, %v4216
    %v4469 = vpack.c.b16 %v4219, %v4218
    %v4470 = vpack.c.b16 %v4221, %v4220
    %v4471 = vpack.c.b16 %v4223, %v4222
    %v4472 = vpack.c.b16 %v4225, %v4224
    %v4473 = vpack.c.b16 %v4227, %v4226
    %v4474 = vpack.c.b16 %v4229, %v4228
    %v4475 = vpack.c.b16 %v4231, %v4230
    %v4476 = vpack.c.b16 %v4233, %v4232
    %v4477 = vpack.c.b16 %v4235, %v4234
    %v4478 = vpack.c.b16 %v4237, %v4236
    %v4479 = vpack.c.b16 %v4239, %v4238
    %v4480 = vpack.c.b16 %v4241, %v4240
    %v4481 = vpack.c.b16 %v4243, %v4242
    %v4482 = vpack.c.b16 %v4245, %v4244
    %v4483 = vpack.c.b16 %v4247, %v4246
    %v4484 = vpack.c.b16 %v4249, %v4248
    %v4485 = vpack.c.b16 %v4251, %v4250
    %v4486 = vpack.c.b16 %v4253, %v4252
    %v4487 = vpack.c.b16 %v4255, %v4254
    %v4488 = vpack.c.b16 %v4257, %v4256
    %v4489 = vpack.c.b16 %v4259, %v4258
    %v4490 = vpack.c.b16 %v4261, %v4260
    %v4491 = vpack.c.b16 %v4263, %v4262
    %v4492 = vpack.c.b16 %v4265, %v4264
    %v4493 = vpack.c.b16 %v4267, %v4266
    %v4494 = vpack.c.b16 %v4269, %v4268
    %v4495 = vpack.c.b16 %v4271, %v4270
    %v4496 = vpack.c.b16 %v4273, %v4272
    %v4497 = vpack.c.b16 %v4275, %v4274
    %v4498 = vpack.c.b16 %v4277, %v4276
    %v4499 = vpack.c.b16 %v4279, %v4278
    %v4500 = vpack.c.b16 %v4281, %v4280
    %v4501 = vpack.c.b16 %v4283, %v4282
    %v4502 = vpack.c.b16 %v4285, %v4284
    %v4503 = vpack.c.b16 %v4287, %v4286
    %v4504 = vpack.c.b16 %v4289, %v4288
    %v4505 = vpack.c.b16 %v4291, %v4290
    %v4506 = vpack.c.b16 %v4293, %v4292
    %v4507 = vpack.c.b16 %v4295, %v4294
    %v4508 = vpack.c.b16 %v4297, %v4296
    %v4509 = vpack.c.b16 %v4299, %v4298
    %v4510 = vpack.c.b16 %v4301, %v4300
    %v4511 = vpack.c.b16 %v4303, %v4302
    %v4512 = vpack.c.b16 %v4305, %v4304
    %v4513 = vpack.c.b16 %v4307, %v4306
    %v4514 = vpack.c.b16 %v4309, %v4308
    %v4515 = vpack.c.b16 %v4311, %v4310
    %v4516 = vpack.c.b16 %v4313, %v4312
    %v4517 = vpack.c.b16 %v4315, %v4314
    %v4518 = vpack.c.b16 %v4317, %v4316
    %v4519 = vpack.c.b16 %v4319, %v4318
    %v4520 = vpack.c.b16 %v4321, %v4320
    %v4521 = vpack.c.b16 %v4323, %v4322
    %v4522 = vpack.c.b16 %v4325, %v4324
    %v4523 = vpack.c.b16 %v4327, %v4326
    %v4524 = vpack.c.b16 %v4329, %v4328
    %v4525 = vpack.c.b16 %v4331, %v4330
    %v4526 = vpack.c.b16 %v4333, %v4332
    %v4527 = vpack.c.b16 %v4335, %v4334
    %v4528 = vpack.c.b16 %v4337, %v4336
    %v4529 = vpack.c.b16 %v4339, %v4338
    %v4530 = vpack.c.b16 %v4341, %v4340
    %v4531 = vpack.c.b16 %v4343, %v4342
    %v4532 = vpack.c.b16 %v4345, %v4344
    %v4533 = vpack.c.b16 %v4347, %v4346
    %v4534 = vpack.c.b16 %v4349, %v4348
    %v4535 = vpack.c.b16 %v4351, %v4350
    %v4536 = vpack.c.b16 %v4353, %v4352
    %v4537 = vpack.c.b16 %v4355, %v4354
    %v4538 = vpack.c.b16 %v4357, %v4356
    %v4539 = vpack.c.b16 %v4359, %v4358
    %v4540 = vpack.c.b16 %v4361, %v4360
    %v4541 = vpack.c.b16 %v4363, %v4362
    %v4542 = vpack.c.b16 %v4365, %v4364
    %v4543 = vpack.c.b16 %v4367, %v4366
    %v4544 = vpack.c.b16 %v4369, %v4368
    %v4545 = vpack.c.b16 %v4371, %v4370
    %v4546 = vpack.c.b16 %v4373, %v4372
    %v4547 = vpack.c.b16 %v4375, %v4374
    %v4548 = vpack.c.b16 %v4377, %v4376
    %v4549 = vpack.c.b16 %v4379, %v4378
    %v4550 = vpack.c.b16 %v4381, %v4380
    %v4551 = vpack.c.b16 %v4383, %v4382
    %v4552 = vpack.c.b16 %v4385, %v4384
    %v4553 = vpack.c.b16 %v4387, %v4386
    %v4554 = vpack.c.b16 %v4389, %v4388
    %v4555 = vpack.c.b16 %v4391, %v4390
    %v4556 = vpack.c.b16 %v4393, %v4392
    %v4557 = vpack.c.b16 %v4395, %v4394
    %v4558 = vpack.c.b16 %v4397, %v4396
    %v4559 = vpack.c.b16 %v4399, %v4398
    %v4560 = vpack.c.b16 %v4401, %v4400
    %v4561 = vpack.c.b16 %v4403, %v4402
    %v4562 = vpack.c.b16 %v4405, %v4404
    %v4563 = vpack.c.b16 %v4407, %v4406
    %v4564 = vpack.c.b16 %v4409, %v4408
    %v4565 = vpack.c.b16 %v4411, %v4410
    %v4566 = vpack.c.b16 %v4413, %v4412
    %v4567 = vpack.c.b16 %v4415, %v4414
    %v4568 = vpack.c.b16 %v4417, %v4416
    %v4569 = vpack.c.b16 %v4419, %v4418
    %v4570 = vpack.c.b16 %v4421, %v4420
    %v4571 = vpack.c.b16 %v4423, %v4422
    %v4572 = vpack.c.b16 %v4425, %v4424
    %v4573 = vpack.c.b16 %v4427, %v4426
    %v4574 = vpack.c.b16 %v4429, %v4428
    %v4575 = vpack.c.b16 %v4431, %v4430
    %v4576 = vpack.c.b16 %v4433, %v4432
    %v4577 = vpack.c.b16 %v4435, %v4434
    %v4578 = vpack.c.b16 %v4437, %v4436
    %v4579 = vpack.c.b16 %v4439, %v4438
    %v4580 = vpack.c.b16 %v4441, %v4440
    %v4581 = vpack.c.b16 %v4443, %v4442
    %v4582 = vpack.c.b16 %v4445, %v4444
    %v4583 = vpack.c.b16 %v4447, %v4446
    %v4584 = vpack.c.b16 %v4449, %v4448
    %v4585 = vpack.c.b16 %v4451, %v4450
    %v4586 = vpack.c.b16 %v4453, %v4452
    %v4587 = vpack.c.b16 %v4455, %v4454
    %v4588 = vpack.c.b16 %v4457, %v4456
    %v4589 = vpack.c.b16 %v4459, %v4458
    %v4590 = vpack.c.b16 %v4461, %v4460
    %v4591 = vpack.c.b16 %v4463, %v4462
    %4720 = vmatpush.bf16.msra.mxu0 %v4471
    %4721 = vmatpush.bf16.msra.mxu0 %v4470
    %4722 = vmatpush.bf16.msra.mxu0 %v4469
    %4723 = vmatpush.bf16.msra.mxu0 %v4468
    %4724 = vmatpush.bf16.msra.mxu0 %v4467
    %4725 = vmatpush.bf16.msra.mxu0 %v4466
    %4726 = vmatpush.bf16.msra.mxu0 %v4465
    %4727 = vmatpush.bf16.msra.mxu0 %v4464
    %4728 = vmatmul.bf16.gmra.mxu0 %v3675
    %v4729 = vpop.f32.mrf.mxu0
    %v4730 = vadd.f32 %v3950, %v4729
    %v4731 = vpop.f32.mrf.mxu0
    %v4732 = vadd.f32 %v3950, %v4731
    %4733 = vdwg.mxu0
    %4734 = vmatpush.bf16.msra.mxu0 %v4479
    %4735 = vmatpush.bf16.msra.mxu0 %v4478
    %4736 = vmatpush.bf16.msra.mxu0 %v4477
    %4737 = vmatpush.bf16.msra.mxu0 %v4476
    %4738 = vmatpush.bf16.msra.mxu0 %v4475
    %4739 = vmatpush.bf16.msra.mxu0 %v4474
    %4740 = vmatpush.bf16.msra.mxu0 %v4473
    %4741 = vmatpush.bf16.msra.mxu0 %v4472
    %4742 = vmatmul.bf16.gmra.mxu0 %v3676
    %v4743 = vpop.f32.mrf.mxu0
    %v4744 = vadd.f32 %v4730, %v4743
    %v4745 = vpop.f32.mrf.mxu0
    %v4746 = vadd.f32 %v4732, %v4745
    %4747 = vdwg.mxu0
    %4748 = vmatpush.bf16.msra.mxu0 %v4487
    %4749 = vmatpush.bf16.msra.mxu0 %v4486
    %4750 = vmatpush.bf16.msra.mxu0 %v4485
    %4751 = vmatpush.bf16.msra.mxu0 %v4484
    %4752 = vmatpush.bf16.msra.mxu0 %v4483
    %4753 = vmatpush.bf16.msra.mxu0 %v4482
    %4754 = vmatpush.bf16.msra.mxu0 %v4481
    %4755 = vmatpush.bf16.msra.mxu0 %v4480
    %4756 = vmatmul.bf16.gmra.mxu0 %v3677
    %v4757 = vpop.f32.mrf.mxu0
    %v4758 = vadd.f32 %v4744, %v4757
    %v4759 = vpop.f32.mrf.mxu0
    %v4760 = vadd.f32 %v4746, %v4759
    %4761 = vdwg.mxu0
    %4762 = vmatpush.bf16.msra.mxu0 %v4495
    %4763 = vmatpush.bf16.msra.mxu0 %v4494
    %4764 = vmatpush.bf16.msra.mxu0 %v4493
    %4765 = vmatpush.bf16.msra.mxu0 %v4492
    %4766 = vmatpush.bf16.msra.mxu0 %v4491
    %4767 = vmatpush.bf16.msra.mxu0 %v4490
    %4768 = vmatpush.bf16.msra.mxu0 %v4489
    %4769 = vmatpush.bf16.msra.mxu0 %v4488
    %4770 = vmatmul.bf16.gmra.mxu0 %v3678
    %v4771 = vpop.f32.mrf.mxu0
    %v4772 = vadd.f32 %v4758, %v4771
    %v4773 = vpop.f32.mrf.mxu0
    %v4774 = vadd.f32 %v4760, %v4773
    %4775 = vdwg.mxu0
    %4776 = vmatpush.bf16.msra.mxu0 %v4503
    %4777 = vmatpush.bf16.msra.mxu0 %v4502
    %4778 = vmatpush.bf16.msra.mxu0 %v4501
    %4779 = vmatpush.bf16.msra.mxu0 %v4500
    %4780 = vmatpush.bf16.msra.mxu0 %v4499
    %4781 = vmatpush.bf16.msra.mxu0 %v4498
    %4782 = vmatpush.bf16.msra.mxu0 %v4497
    %4783 = vmatpush.bf16.msra.mxu0 %v4496
    %4784 = vmatmul.bf16.gmra.mxu0 %v3679
    %v4785 = vpop.f32.mrf.mxu0
    %v4786 = vadd.f32 %v4772, %v4785
    %v4787 = vpop.f32.mrf.mxu0
    %v4788 = vadd.f32 %v4774, %v4787
    %4789 = vdwg.mxu0
    %4790 = vmatpush.bf16.msra.mxu0 %v4511
    %4791 = vmatpush.bf16.msra.mxu0 %v4510
    %4792 = vmatpush.bf16.msra.mxu0 %v4509
    %4793 = vmatpush.bf16.msra.mxu0 %v4508
    %4794 = vmatpush.bf16.msra.mxu0 %v4507
    %4795 = vmatpush.bf16.msra.mxu0 %v4506
    %4796 = vmatpush.bf16.msra.mxu0 %v4505
    %4797 = vmatpush.bf16.msra.mxu0 %v4504
    %4798 = vmatmul.bf16.gmra.mxu0 %v3680
    %v4799 = vpop.f32.mrf.mxu0
    %v4800 = vadd.f32 %v4786, %v4799
    %v4801 = vpop.f32.mrf.mxu0
    %v4802 = vadd.f32 %v4788, %v4801
    %4803 = vdwg.mxu0
    %4804 = vmatpush.bf16.msra.mxu0 %v4519
    %4805 = vmatpush.bf16.msra.mxu0 %v4518
    %4806 = vmatpush.bf16.msra.mxu0 %v4517
    %4807 = vmatpush.bf16.msra.mxu0 %v4516
    %4808 = vmatpush.bf16.msra.mxu0 %v4515
    %4809 = vmatpush.bf16.msra.mxu0 %v4514
    %4810 = vmatpush.bf16.msra.mxu0 %v4513
    %4811 = vmatpush.bf16.msra.mxu0 %v4512
    %4812 = vmatmul.bf16.gmra.mxu0 %v3681
    %v4813 = vpop.f32.mrf.mxu0
    %v4814 = vadd.f32 %v4800, %v4813
    %v4815 = vpop.f32.mrf.mxu0
    %v4816 = vadd.f32 %v4802, %v4815
    %4817 = vdwg.mxu0
    %4818 = vmatpush.bf16.msra.mxu0 %v4527
    %4819 = vmatpush.bf16.msra.mxu0 %v4526
    %4820 = vmatpush.bf16.msra.mxu0 %v4525
    %4821 = vmatpush.bf16.msra.mxu0 %v4524
    %4822 = vmatpush.bf16.msra.mxu0 %v4523
    %4823 = vmatpush.bf16.msra.mxu0 %v4522
    %4824 = vmatpush.bf16.msra.mxu0 %v4521
    %4825 = vmatpush.bf16.msra.mxu0 %v4520
    %4826 = vmatmul.bf16.gmra.mxu0 %v3682
    %v4827 = vpop.f32.mrf.mxu0
    %v4828 = vadd.f32 %v4814, %v4827
    %v4829 = vpop.f32.mrf.mxu0
    %v4830 = vadd.f32 %v4816, %v4829
    %4831 = vdwg.mxu0
    %4832 = vmatpush.bf16.msra.mxu0 %v4535
    %4833 = vmatpush.bf16.msra.mxu0 %v4534
    %4834 = vmatpush.bf16.msra.mxu0 %v4533
    %4835 = vmatpush.bf16.msra.mxu0 %v4532
    %4836 = vmatpush.bf16.msra.mxu0 %v4531
    %4837 = vmatpush.bf16.msra.mxu0 %v4530
    %4838 = vmatpush.bf16.msra.mxu0 %v4529
    %4839 = vmatpush.bf16.msra.mxu0 %v4528
    %4840 = vmatmul.bf16.gmra.mxu0 %v3683
    %v4841 = vpop.f32.mrf.mxu0
    %v4842 = vadd.f32 %v4828, %v4841
    %v4843 = vpop.f32.mrf.mxu0
    %v4844 = vadd.f32 %v4830, %v4843
    %4845 = vdwg.mxu0
    %4846 = vmatpush.bf16.msra.mxu0 %v4543
    %4847 = vmatpush.bf16.msra.mxu0 %v4542
    %4848 = vmatpush.bf16.msra.mxu0 %v4541
    %4849 = vmatpush.bf16.msra.mxu0 %v4540
    %4850 = vmatpush.bf16.msra.mxu0 %v4539
    %4851 = vmatpush.bf16.msra.mxu0 %v4538
    %4852 = vmatpush.bf16.msra.mxu0 %v4537
    %4853 = vmatpush.bf16.msra.mxu0 %v4536
    %4854 = vmatmul.bf16.gmra.mxu0 %v3684
    %v4855 = vpop.f32.mrf.mxu0
    %v4856 = vadd.f32 %v4842, %v4855
    %v4857 = vpop.f32.mrf.mxu0
    %v4858 = vadd.f32 %v4844, %v4857
    %4859 = vdwg.mxu0
    %4860 = vmatpush.bf16.msra.mxu0 %v4551
    %4861 = vmatpush.bf16.msra.mxu0 %v4550
    %4862 = vmatpush.bf16.msra.mxu0 %v4549
    %4863 = vmatpush.bf16.msra.mxu0 %v4548
    %4864 = vmatpush.bf16.msra.mxu0 %v4547
    %4865 = vmatpush.bf16.msra.mxu0 %v4546
    %4866 = vmatpush.bf16.msra.mxu0 %v4545
    %4867 = vmatpush.bf16.msra.mxu0 %v4544
    %4868 = vmatmul.bf16.gmra.mxu0 %v3685
    %v4869 = vpop.f32.mrf.mxu0
    %v4870 = vadd.f32 %v4856, %v4869
    %v4871 = vpop.f32.mrf.mxu0
    %v4872 = vadd.f32 %v4858, %v4871
    %4873 = vdwg.mxu0
    %4874 = vmatpush.bf16.msra.mxu0 %v4559
    %4875 = vmatpush.bf16.msra.mxu0 %v4558
    %4876 = vmatpush.bf16.msra.mxu0 %v4557
    %4877 = vmatpush.bf16.msra.mxu0 %v4556
    %4878 = vmatpush.bf16.msra.mxu0 %v4555
    %4879 = vmatpush.bf16.msra.mxu0 %v4554
    %4880 = vmatpush.bf16.msra.mxu0 %v4553
    %4881 = vmatpush.bf16.msra.mxu0 %v4552
    %4882 = vmatmul.bf16.gmra.mxu0 %v3686
    %v4883 = vpop.f32.mrf.mxu0
    %v4884 = vadd.f32 %v4870, %v4883
    %v4885 = vpop.f32.mrf.mxu0
    %v4886 = vadd.f32 %v4872, %v4885
    %4887 = vdwg.mxu0
    %4888 = vmatpush.bf16.msra.mxu0 %v4567
    %4889 = vmatpush.bf16.msra.mxu0 %v4566
    %4890 = vmatpush.bf16.msra.mxu0 %v4565
    %4891 = vmatpush.bf16.msra.mxu0 %v4564
    %4892 = vmatpush.bf16.msra.mxu0 %v4563
    %4893 = vmatpush.bf16.msra.mxu0 %v4562
    %4894 = vmatpush.bf16.msra.mxu0 %v4561
    %4895 = vmatpush.bf16.msra.mxu0 %v4560
    %4896 = vmatmul.bf16.gmra.mxu0 %v3687
    %v4897 = vpop.f32.mrf.mxu0
    %v4898 = vadd.f32 %v4884, %v4897
    %v4899 = vpop.f32.mrf.mxu0
    %v4900 = vadd.f32 %v4886, %v4899
    %4901 = vdwg.mxu0
    %4902 = vmatpush.bf16.msra.mxu0 %v4575
    %4903 = vmatpush.bf16.msra.mxu0 %v4574
    %4904 = vmatpush.bf16.msra.mxu0 %v4573
    %4905 = vmatpush.bf16.msra.mxu0 %v4572
    %4906 = vmatpush.bf16.msra.mxu0 %v4571
    %4907 = vmatpush.bf16.msra.mxu0 %v4570
    %4908 = vmatpush.bf16.msra.mxu0 %v4569
    %4909 = vmatpush.bf16.msra.mxu0 %v4568
    %4910 = vmatmul.bf16.gmra.mxu0 %v3688
    %v4911 = vpop.f32.mrf.mxu0
    %v4912 = vadd.f32 %v4898, %v4911
    %v4913 = vpop.f32.mrf.mxu0
    %v4914 = vadd.f32 %v4900, %v4913
    %4915 = vdwg.mxu0
    %4916 = vmatpush.bf16.msra.mxu0 %v4583
    %4917 = vmatpush.bf16.msra.mxu0 %v4582
    %4918 = vmatpush.bf16.msra.mxu0 %v4581
    %4919 = vmatpush.bf16.msra.mxu0 %v4580
    %4920 = vmatpush.bf16.msra.mxu0 %v4579
    %4921 = vmatpush.bf16.msra.mxu0 %v4578
    %4922 = vmatpush.bf16.msra.mxu0 %v4577
    %4923 = vmatpush.bf16.msra.mxu0 %v4576
    %4924 = vmatmul.bf16.gmra.mxu0 %v3689
    %v4925 = vpop.f32.mrf.mxu0
    %v4926 = vadd.f32 %v4912, %v4925
    %v4927 = vpop.f32.mrf.mxu0
    %v4928 = vadd.f32 %v4914, %v4927
    %4929 = vdwg.mxu0
    %4930 = vmatpush.bf16.msra.mxu0 %v4591
    %4931 = vmatpush.bf16.msra.mxu0 %v4590
    %4932 = vmatpush.bf16.msra.mxu0 %v4589
    %4933 = vmatpush.bf16.msra.mxu0 %v4588
    %4934 = vmatpush.bf16.msra.mxu0 %v4587
    %4935 = vmatpush.bf16.msra.mxu0 %v4586
    %4936 = vmatpush.bf16.msra.mxu0 %v4585
    %4937 = vmatpush.bf16.msra.mxu0 %v4584
    %4938 = vmatmul.bf16.gmra.mxu0 %v3690
    %v4939 = vpop.f32.mrf.mxu0
    %v4940 = vadd.f32 %v4926, %v4939
    %v4941 = vpop.f32.mrf.mxu0
    %v4942 = vadd.f32 %v4928, %v4941
    %4943 = vdwg.mxu0
    %v4944 = vadd.f32 %v2612, %v4940
    %v4945 = vadd.f32 %v2613, %v4942
    %4946 = vadd.xlane.f32.xlu0 %v4944
    %v4947 = vpop.xlane.xlu0 %4946
    %4948 = vadd.xlane.f32.xlu0 %v4945
    %v4949 = vpop.xlane.xlu0 %4948
    %v4950 = vmul.f32 %v4947, 0.009803922
    %v4951 = vmul.f32 %v4949, 0.009803922
    %v4952 = vsub.f32 %v4944, %v4950
    %v4953 = vsub.f32 %v4945, %v4951
    %v4954 = vmul.f32 %v4952, %v224
    %v4955 = vmul.f32 %v4953, %v224
    %v4956 = vmul.f32 %v4954, %v4954
    %v4957 = vmul.f32 %v4955, %v4955
    %4958 = vadd.xlane.f32.xlu0 %v4956
    %v4959 = vpop.xlane.xlu0 %4958
    %4960 = vadd.xlane.f32.xlu0 %v4957
    %v4961 = vpop.xlane.xlu0 %4960
    %v4962 = vmul.f32 %v4959, 0.009803922
    %v4963 = vmul.f32 %v4961, 0.009803922
    %v4964 = vadd.f32 %v4962, 1e-05
    %v4965 = vadd.f32 %v4963, 1e-05
    %v4966 = vrsqrt.pop %v4964
    %v4967 = vmul.f32 %v4966, %v4964
    %v4968 = vmul.f32 %v4967, %v4966
    %v4969 = vmul.f32 0.5, %v4968
    %v4970 = vsub.f32 1.5, %v4969
    %v4971 = vmul.f32 %v4966, %v4970
    %vm4972 = vweird.f32 %v4964
    %vm4973 = vweird.f32 %v4966
    %vm4974 = vmor %vm4972, %vm4973
    %v4975 = vsel %vm4974, %v4966, %v4971
    %v4976 = vrsqrt.pop %v4965
    %v4977 = vmul.f32 %v4976, %v4965
    %v4978 = vmul.f32 %v4977, %v4976
    %v4979 = vmul.f32 0.5, %v4978
    %v4980 = vsub.f32 1.5, %v4979
    %v4981 = vmul.f32 %v4976, %v4980
    %vm4982 = vweird.f32 %v4965
    %vm4983 = vweird.f32 %v4976
    %vm4984 = vmor %vm4982, %vm4983
    %v4985 = vsel %vm4984, %v4976, %v4981
    %v4986 = vmul.f32 %v4954, %v4975
    %v4987 = vmul.f32 %v4955, %v4985
    %s4988 = scalar_lea.vmem [#allocation16], 7
    %v4989 = vld [vmem:[%s4988] sm:$0x1]
    %v4991 = vperm.slane %v4989, 0
    %v4993 = vmul.f32 %v4986, %v4991
    %v4994 = vmul.f32 %v4987, %v4991
    %s4995 = scalar_lea.vmem [#allocation16], 8
    %v4996 = vld [vmem:[%s4995] sm:$0x1]
    %v4998 = vperm.slane %v4996, 0
    %v5000 = vadd.f32 %v4993, %v4998
    %v5001 = vadd.f32 %v4994, %v4998
    %v5002 = vpack.c.bf16 %v5001, %v5000
    %s5003 = scalar_lea.vmem %s4, 256
    %v5004 = vld [vmem:[%s5003] sm:$0xff]
    %v5005 = vld [vmem:[%s5003 + $0x8] sm:$0xff]
    %v5006 = vld [vmem:[%s5003 + $0x10] sm:$0xff]
    %v5007 = vld [vmem:[%s5003 + $0x18] sm:$0xff]
    %v5008 = vld [vmem:[%s5003 + $0x20] sm:$0xff]
    %v5009 = vld [vmem:[%s5003 + $0x28] sm:$0xff]
    %v5010 = vld [vmem:[%s5003 + $0x30] sm:$0xff]
    %v5011 = vld [vmem:[%s5003 + $0x38] sm:$0xff]
    %v5012 = vld [vmem:[%s5003 + $0x40] sm:$0xff]
    %v5013 = vld [vmem:[%s5003 + $0x48] sm:$0xff]
    %v5014 = vld [vmem:[%s5003 + $0x50] sm:$0xff]
    %v5015 = vld [vmem:[%s5003 + $0x58] sm:$0xff]
    %v5016 = vld [vmem:[%s5003 + $0x60] sm:$0xff]
    %v5017 = vld [vmem:[%s5003 + $0x68] sm:$0xff]
    %v5018 = vld [vmem:[%s5003 + $0x70] sm:$0xff]
    %v5019 = vld [vmem:[%s5003 + $0x78] sm:$0xff]
    %s5020 = scalar_lea.vmem [#allocation7], 4
    %v5021 = vld [vmem:[%s5020] sm:$0x3]
    %v5023 = vperm.slane %v5021, 0
    %v5024 = vperm.slane %v5021, 1
    %v5043 = vunpack.c.l.b16 %v5004
    %v5044 = vunpack.c.h.b16 %v5004
    %v5045 = vunpack.c.l.b16 %v5005
    %v5046 = vunpack.c.h.b16 %v5005
    %v5047 = vunpack.c.l.b16 %v5006
    %v5048 = vunpack.c.h.b16 %v5006
    %v5049 = vunpack.c.l.b16 %v5007
    %v5050 = vunpack.c.h.b16 %v5007
    %v5051 = vunpack.c.l.b16 %v5008
    %v5052 = vunpack.c.h.b16 %v5008
    %v5053 = vunpack.c.l.b16 %v5009
    %v5054 = vunpack.c.h.b16 %v5009
    %v5055 = vunpack.c.l.b16 %v5010
    %v5056 = vunpack.c.h.b16 %v5010
    %v5057 = vunpack.c.l.b16 %v5011
    %v5058 = vunpack.c.h.b16 %v5011
    %v5059 = vunpack.c.l.b16 %v5012
    %v5060 = vunpack.c.h.b16 %v5012
    %v5061 = vunpack.c.l.b16 %v5013
    %v5062 = vunpack.c.h.b16 %v5013
    %v5063 = vunpack.c.l.b16 %v5014
    %v5064 = vunpack.c.h.b16 %v5014
    %v5065 = vunpack.c.l.b16 %v5015
    %v5066 = vunpack.c.h.b16 %v5015
    %v5067 = vunpack.c.l.b16 %v5016
    %v5068 = vunpack.c.h.b16 %v5016
    %v5069 = vunpack.c.l.b16 %v5017
    %v5070 = vunpack.c.h.b16 %v5017
    %v5071 = vunpack.c.l.b16 %v5018
    %v5072 = vunpack.c.h.b16 %v5018
    %v5073 = vunpack.c.l.b16 %v5019
    %v5074 = vunpack.c.h.b16 %v5019
    %v5075 = vpack.c.b16 %v5045, %v5043
    %v5076 = vpack.c.b16 %v5046, %v5044
    %v5077 = vpack.c.b16 %v5049, %v5047
    %v5078 = vpack.c.b16 %v5050, %v5048
    %v5079 = vpack.c.b16 %v5053, %v5051
    %v5080 = vpack.c.b16 %v5054, %v5052
    %v5081 = vpack.c.b16 %v5057, %v5055
    %v5082 = vpack.c.b16 %v5058, %v5056
    %v5083 = vpack.c.b16 %v5061, %v5059
    %v5084 = vpack.c.b16 %v5062, %v5060
    %v5085 = vpack.c.b16 %v5065, %v5063
    %v5086 = vpack.c.b16 %v5066, %v5064
    %v5087 = vpack.c.b16 %v5069, %v5067
    %v5088 = vpack.c.b16 %v5070, %v5068
    %v5089 = vpack.c.b16 %v5073, %v5071
    %v5090 = vpack.c.b16 %v5074, %v5072
    %5107 = vmatpush.bf16.msra.mxu0 %v5089
    %5108 = vmatpush.bf16.msra.mxu0 %v5087
    %5109 = vmatpush.bf16.msra.mxu0 %v5085
    %5110 = vmatpush.bf16.msra.mxu0 %v5083
    %5111 = vmatpush.bf16.msra.mxu0 %v5081
    %5112 = vmatpush.bf16.msra.mxu0 %v5079
    %5113 = vmatpush.bf16.msra.mxu0 %v5077
    %5114 = vmatpush.bf16.msra.mxu0 %v5075
    %5115 = vmatmul.bf16.gmra.mxu0 %v5002
    %v5116 = vpop.f32.mrf.mxu0
    %v5117 = vadd.f32 %v5023, %v5116
    %v5118 = vpop.f32.mrf.mxu0
    %v5119 = vadd.f32 %v5023, %v5118
    %5120 = vdwg.mxu0
    %5121 = vmatpush.bf16.msra.mxu0 %v5090
    %5122 = vmatpush.bf16.msra.mxu0 %v5088
    %5123 = vmatpush.bf16.msra.mxu0 %v5086
    %5124 = vmatpush.bf16.msra.mxu0 %v5084
    %5125 = vmatpush.bf16.msra.mxu0 %v5082
    %5126 = vmatpush.bf16.msra.mxu0 %v5080
    %5127 = vmatpush.bf16.msra.mxu0 %v5078
    %5128 = vmatpush.bf16.msra.mxu0 %v5076
    %5129 = vmatmul.bf16.gmra.mxu0 %v5002
    %v5130 = vpop.f32.mrf.mxu0
    %v5131 = vadd.f32 %v5024, %v5130
    %v5132 = vpop.f32.mrf.mxu0
    %v5133 = vadd.f32 %v5024, %v5132
    %5134 = vdwg.mxu0
    %s5135 = scalar_lea.vmem [#allocation2], 384
    %v5136 = vld [vmem:[%s5135] sm:$0xff]
    %v5137 = vld [vmem:[%s5135 + $0x8] sm:$0xf]
    %v5138 = vld [vmem:[%s5135 + $0xc] sm:$0xff]
    %v5139 = vld [vmem:[%s5135 + $0x14] sm:$0xf]
    %v5140 = vld [vmem:[%s5135 + $0x18] sm:$0xff]
    %v5141 = vld [vmem:[%s5135 + $0x20] sm:$0xf]
    %v5142 = vld [vmem:[%s5135 + $0x24] sm:$0xff]
    %v5143 = vld [vmem:[%s5135 + $0x2c] sm:$0xf]
    %v5144 = vld [vmem:[%s5135 + $0x30] sm:$0xff]
    %v5145 = vld [vmem:[%s5135 + $0x38] sm:$0xf]
    %v5146 = vld [vmem:[%s5135 + $0x3c] sm:$0xff]
    %v5147 = vld [vmem:[%s5135 + $0x44] sm:$0xf]
    %v5148 = vld [vmem:[%s5135 + $0x48] sm:$0xff]
    %v5149 = vld [vmem:[%s5135 + $0x50] sm:$0xf]
    %v5150 = vld [vmem:[%s5135 + $0x54] sm:$0xff]
    %v5151 = vld [vmem:[%s5135 + $0x5c] sm:$0xf]
    %v5152 = vld [vmem:[%s5135 + $0x60] sm:$0xff]
    %v5153 = vld [vmem:[%s5135 + $0x68] sm:$0xf]
    %v5154 = vld [vmem:[%s5135 + $0x6c] sm:$0xff]
    %v5155 = vld [vmem:[%s5135 + $0x74] sm:$0xf]
    %v5156 = vld [vmem:[%s5135 + $0x78] sm:$0xff]
    %v5157 = vld [vmem:[%s5135 + $0x80] sm:$0xf]
    %v5158 = vld [vmem:[%s5135 + $0x84] sm:$0xff]
    %v5159 = vld [vmem:[%s5135 + $0x8c] sm:$0xf]
    %v5160 = vld [vmem:[%s5135 + $0x90] sm:$0xff]
    %v5161 = vld [vmem:[%s5135 + $0x98] sm:$0xf]
    %v5162 = vld [vmem:[%s5135 + $0x9c] sm:$0xff]
    %v5163 = vld [vmem:[%s5135 + $0xa4] sm:$0xf]
    %v5164 = vld [vmem:[%s5135 + $0xa8] sm:$0xff]
    %v5165 = vld [vmem:[%s5135 + $0xb0] sm:$0xf]
    %v5166 = vld [vmem:[%s5135 + $0xb4] sm:$0xff]
    %v5167 = vld [vmem:[%s5135 + $0xbc] sm:$0xf]
    %s5168 = scalar_lea.vmem [#allocation8], 6
    %v5169 = vld [vmem:[%s5168] sm:$0x7]
    %v5171 = vperm.slane %v5169, 0
    %v5172 = vperm.slane %v5169, 1
    %v5173 = vperm.slane %v5169, 2
    %v5209 = vunpack.c.l.b16 %v5136
    %v5210 = vunpack.c.h.b16 %v5136
    %v5211 = vunpack.c.l.b16 %v5137
    %v5212 = vunpack.c.l.b16 %v5138
    %v5213 = vunpack.c.h.b16 %v5138
    %v5214 = vunpack.c.l.b16 %v5139
    %v5215 = vunpack.c.l.b16 %v5140
    %v5216 = vunpack.c.h.b16 %v5140
    %v5217 = vunpack.c.l.b16 %v5141
    %v5218 = vunpack.c.l.b16 %v5142
    %v5219 = vunpack.c.h.b16 %v5142
    %v5220 = vunpack.c.l.b16 %v5143
    %v5221 = vunpack.c.l.b16 %v5144
    %v5222 = vunpack.c.h.b16 %v5144
    %v5223 = vunpack.c.l.b16 %v5145
    %v5224 = vunpack.c.l.b16 %v5146
    %v5225 = vunpack.c.h.b16 %v5146
    %v5226 = vunpack.c.l.b16 %v5147
    %v5227 = vunpack.c.l.b16 %v5148
    %v5228 = vunpack.c.h.b16 %v5148
    %v5229 = vunpack.c.l.b16 %v5149
    %v5230 = vunpack.c.l.b16 %v5150
    %v5231 = vunpack.c.h.b16 %v5150
    %v5232 = vunpack.c.l.b16 %v5151
    %v5233 = vunpack.c.l.b16 %v5152
    %v5234 = vunpack.c.h.b16 %v5152
    %v5235 = vunpack.c.l.b16 %v5153
    %v5236 = vunpack.c.l.b16 %v5154
    %v5237 = vunpack.c.h.b16 %v5154
    %v5238 = vunpack.c.l.b16 %v5155
    %v5239 = vunpack.c.l.b16 %v5156
    %v5240 = vunpack.c.h.b16 %v5156
    %v5241 = vunpack.c.l.b16 %v5157
    %v5242 = vunpack.c.l.b16 %v5158
    %v5243 = vunpack.c.h.b16 %v5158
    %v5244 = vunpack.c.l.b16 %v5159
    %v5245 = vunpack.c.l.b16 %v5160
    %v5246 = vunpack.c.h.b16 %v5160
    %v5247 = vunpack.c.l.b16 %v5161
    %v5248 = vunpack.c.l.b16 %v5162
    %v5249 = vunpack.c.h.b16 %v5162
    %v5250 = vunpack.c.l.b16 %v5163
    %v5251 = vunpack.c.l.b16 %v5164
    %v5252 = vunpack.c.h.b16 %v5164
    %v5253 = vunpack.c.l.b16 %v5165
    %v5254 = vunpack.c.l.b16 %v5166
    %v5255 = vunpack.c.h.b16 %v5166
    %v5256 = vunpack.c.l.b16 %v5167
    %v5257 = vpack.c.b16 %v5212, %v5209
    %v5258 = vpack.c.b16 %v5213, %v5210
    %v5259 = vpack.c.b16 %v5214, %v5211
    %v5260 = vpack.c.b16 %v5218, %v5215
    %v5261 = vpack.c.b16 %v5219, %v5216
    %v5262 = vpack.c.b16 %v5220, %v5217
    %v5263 = vpack.c.b16 %v5224, %v5221
    %v5264 = vpack.c.b16 %v5225, %v5222
    %v5265 = vpack.c.b16 %v5226, %v5223
    %v5266 = vpack.c.b16 %v5230, %v5227
    %v5267 = vpack.c.b16 %v5231, %v5228
    %v5268 = vpack.c.b16 %v5232, %v5229
    %v5269 = vpack.c.b16 %v5236, %v5233
    %v5270 = vpack.c.b16 %v5237, %v5234
    %v5271 = vpack.c.b16 %v5238, %v5235
    %v5272 = vpack.c.b16 %v5242, %v5239
    %v5273 = vpack.c.b16 %v5243, %v5240
    %v5274 = vpack.c.b16 %v5244, %v5241
    %v5275 = vpack.c.b16 %v5248, %v5245
    %v5276 = vpack.c.b16 %v5249, %v5246
    %v5277 = vpack.c.b16 %v5250, %v5247
    %v5278 = vpack.c.b16 %v5254, %v5251
    %v5279 = vpack.c.b16 %v5255, %v5252
    %v5280 = vpack.c.b16 %v5256, %v5253
    %5305 = vmatpush.bf16.msra.mxu0 %v5278
    %5306 = vmatpush.bf16.msra.mxu0 %v5275
    %5307 = vmatpush.bf16.msra.mxu0 %v5272
    %5308 = vmatpush.bf16.msra.mxu0 %v5269
    %5309 = vmatpush.bf16.msra.mxu0 %v5266
    %5310 = vmatpush.bf16.msra.mxu0 %v5263
    %5311 = vmatpush.bf16.msra.mxu0 %v5260
    %5312 = vmatpush.bf16.msra.mxu0 %v5257
    %5313 = vmatmul.bf16.gmra.mxu0 %v5002
    %v5314 = vpop.f32.mrf.mxu0
    %v5315 = vadd.f32 %v5171, %v5314
    %v5316 = vpop.f32.mrf.mxu0
    %v5317 = vadd.f32 %v5171, %v5316
    %5318 = vdwg.mxu0
    %5319 = vmatpush.bf16.msra.mxu0 %v5279
    %5320 = vmatpush.bf16.msra.mxu0 %v5276
    %5321 = vmatpush.bf16.msra.mxu0 %v5273
    %5322 = vmatpush.bf16.msra.mxu0 %v5270
    %5323 = vmatpush.bf16.msra.mxu0 %v5267
    %5324 = vmatpush.bf16.msra.mxu0 %v5264
    %5325 = vmatpush.bf16.msra.mxu0 %v5261
    %5326 = vmatpush.bf16.msra.mxu0 %v5258
    %5327 = vmatmul.bf16.gmra.mxu0 %v5002
    %v5328 = vpop.f32.mrf.mxu0
    %v5329 = vadd.f32 %v5172, %v5328
    %v5330 = vpop.f32.mrf.mxu0
    %v5331 = vadd.f32 %v5172, %v5330
    %5332 = vdwg.mxu0
    %5333 = vmatpush.bf16.msra.mxu0 %v5280
    %5334 = vmatpush.bf16.msra.mxu0 %v5277
    %5335 = vmatpush.bf16.msra.mxu0 %v5274
    %5336 = vmatpush.bf16.msra.mxu0 %v5271
    %5337 = vmatpush.bf16.msra.mxu0 %v5268
    %5338 = vmatpush.bf16.msra.mxu0 %v5265
    %5339 = vmatpush.bf16.msra.mxu0 %v5262
    %5340 = vmatpush.bf16.msra.mxu0 %v5259
    %5341 = vmatmul.bf16.gmra.mxu0 %v5002
    %v5342 = vpop.f32.mrf.mxu0
    %v5343 = vadd.f32 %v5173, %v5342
    %v5344 = vpop.f32.mrf.mxu0
    %v5345 = vadd.f32 %v5173, %v5344
    %5346 = vdwg.mxu0
    %v5348 = vsel %vm566, %v5117, 0
    %v5351 = vsel %vm566, %v5119, 0
    %v5354 = vsel %vm566, %v5315, 0
    %v5357 = vsel %vm566, %v5317, 0
    %5359 = vmatpush.xpose.msra.mxu0 0.0
    %5360 = vmatpush.xpose.msra.mxu0 0.0
    %5361 = vmatpush.xpose.msra.mxu0 0.0
    %5362 = vmatpush.xpose.msra.mxu0 0.0
    %5363 = vmatpush.xpose.msra.mxu0 0.0
    %5364 = vmatpush.xpose.msra.mxu0 0.0
    %5365 = vmatpush.xpose.msra.mxu0 0.0
    %5366 = vmatpush.xpose.msra.mxu0 0.0
    %5367 = vmatpush.xpose.msra.mxu0 0.0
    %5368 = vmatpush.xpose.msra.mxu0 0.0
    %5369 = vmatpush.xpose.msra.mxu0 0.0
    %5370 = vmatpush.xpose.msra.mxu0 0.0
    %5371 = vmatpush.xpose.msra.mxu0 0.0
    %5372 = vmatpush.xpose.msra.mxu0 0.0
    %5373 = vmatpush.xpose.msra.mxu0 %v5357
    %5374 = vmatpush.xpose.msra.mxu0 %v5354
    %5375 = vmatmul.f32.gmra.mxu0 %v5348
    %v5376 = vpop.f32.mrf.mxu0
    %v5377 = vadd.f32 0.0, %v5376
    %5378 = vmatmul.f32.gmra.mxu0 %v5351
    %v5379 = vpop.f32.mrf.mxu0
    %v5380 = vadd.f32 0.0, %v5379
    %5381 = vdwg.mxu0
    %5382 = vrot.lane.b32.xlu0 %v5117, 96
    %v5383 = vpop.permute.xlu0 %5382
    %5384 = vrot.lane.b32.xlu0 %v5119, 96
    %v5385 = vpop.permute.xlu0 %5384
    %5386 = vrot.lane.b32.xlu0 %v5315, 96
    %v5387 = vpop.permute.xlu0 %5386
    %5388 = vrot.lane.b32.xlu0 %v5317, 96
    %v5389 = vpop.permute.xlu0 %5388
    %v5390 = vsel %vm566, %v5383, 0
    %v5392 = vsel %vm566, %v5385, 0
    %v5394 = vsel %vm566, %v5387, 0
    %v5396 = vsel %vm566, %v5389, 0
    %5398 = vmatpush.xpose.msra.mxu0 0.0
    %5399 = vmatpush.xpose.msra.mxu0 0.0
    %5400 = vmatpush.xpose.msra.mxu0 0.0
    %5401 = vmatpush.xpose.msra.mxu0 0.0
    %5402 = vmatpush.xpose.msra.mxu0 0.0
    %5403 = vmatpush.xpose.msra.mxu0 0.0
    %5404 = vmatpush.xpose.msra.mxu0 0.0
    %5405 = vmatpush.xpose.msra.mxu0 0.0
    %5406 = vmatpush.xpose.msra.mxu0 0.0
    %5407 = vmatpush.xpose.msra.mxu0 0.0
    %5408 = vmatpush.xpose.msra.mxu0 0.0
    %5409 = vmatpush.xpose.msra.mxu0 0.0
    %5410 = vmatpush.xpose.msra.mxu0 0.0
    %5411 = vmatpush.xpose.msra.mxu0 0.0
    %5412 = vmatpush.xpose.msra.mxu0 %v5396
    %5413 = vmatpush.xpose.msra.mxu0 %v5394
    %5414 = vmatmul.f32.gmra.mxu0 %v5390
    %v5415 = vpop.f32.mrf.mxu0
    %v5416 = vadd.f32 0.0, %v5415
    %5417 = vmatmul.f32.gmra.mxu0 %v5392
    %v5418 = vpop.f32.mrf.mxu0
    %v5419 = vadd.f32 0.0, %v5418
    %5420 = vdwg.mxu0
    %5421 = vrot.lane.b32.xlu0 %v5117, 64
    %v5422 = vpop.permute.xlu0 %5421
    %5423 = vrot.lane.b32.xlu0 %v5119, 64
    %v5424 = vpop.permute.xlu0 %5423
    %5425 = vrot.lane.b32.xlu0 %v5315, 64
    %v5426 = vpop.permute.xlu0 %5425
    %5427 = vrot.lane.b32.xlu0 %v5317, 64
    %v5428 = vpop.permute.xlu0 %5427
    %v5429 = vsel %vm566, %v5422, 0
    %v5431 = vsel %vm566, %v5424, 0
    %v5433 = vsel %vm566, %v5426, 0
    %v5435 = vsel %vm566, %v5428, 0
    %5437 = vmatpush.xpose.msra.mxu0 0.0
    %5438 = vmatpush.xpose.msra.mxu0 0.0
    %5439 = vmatpush.xpose.msra.mxu0 0.0
    %5440 = vmatpush.xpose.msra.mxu0 0.0
    %5441 = vmatpush.xpose.msra.mxu0 0.0
    %5442 = vmatpush.xpose.msra.mxu0 0.0
    %5443 = vmatpush.xpose.msra.mxu0 0.0
    %5444 = vmatpush.xpose.msra.mxu0 0.0
    %5445 = vmatpush.xpose.msra.mxu0 0.0
    %5446 = vmatpush.xpose.msra.mxu0 0.0
    %5447 = vmatpush.xpose.msra.mxu0 0.0
    %5448 = vmatpush.xpose.msra.mxu0 0.0
    %5449 = vmatpush.xpose.msra.mxu0 0.0
    %5450 = vmatpush.xpose.msra.mxu0 0.0
    %5451 = vmatpush.xpose.msra.mxu0 %v5435
    %5452 = vmatpush.xpose.msra.mxu0 %v5433
    %5453 = vmatmul.f32.gmra.mxu0 %v5429
    %v5454 = vpop.f32.mrf.mxu0
    %v5455 = vadd.f32 0.0, %v5454
    %5456 = vmatmul.f32.gmra.mxu0 %v5431
    %v5457 = vpop.f32.mrf.mxu0
    %v5458 = vadd.f32 0.0, %v5457
    %5459 = vdwg.mxu0
    %5460 = vrot.lane.b32.xlu0 %v5117, 32
    %v5461 = vpop.permute.xlu0 %5460
    %5462 = vrot.lane.b32.xlu0 %v5119, 32
    %v5463 = vpop.permute.xlu0 %5462
    %5464 = vrot.lane.b32.xlu0 %v5315, 32
    %v5465 = vpop.permute.xlu0 %5464
    %5466 = vrot.lane.b32.xlu0 %v5317, 32
    %v5467 = vpop.permute.xlu0 %5466
    %v5468 = vsel %vm566, %v5461, 0
    %v5470 = vsel %vm566, %v5463, 0
    %v5472 = vsel %vm566, %v5465, 0
    %v5474 = vsel %vm566, %v5467, 0
    %5476 = vmatpush.xpose.msra.mxu0 0.0
    %5477 = vmatpush.xpose.msra.mxu0 0.0
    %5478 = vmatpush.xpose.msra.mxu0 0.0
    %5479 = vmatpush.xpose.msra.mxu0 0.0
    %5480 = vmatpush.xpose.msra.mxu0 0.0
    %5481 = vmatpush.xpose.msra.mxu0 0.0
    %5482 = vmatpush.xpose.msra.mxu0 0.0
    %5483 = vmatpush.xpose.msra.mxu0 0.0
    %5484 = vmatpush.xpose.msra.mxu0 0.0
    %5485 = vmatpush.xpose.msra.mxu0 0.0
    %5486 = vmatpush.xpose.msra.mxu0 0.0
    %5487 = vmatpush.xpose.msra.mxu0 0.0
    %5488 = vmatpush.xpose.msra.mxu0 0.0
    %5489 = vmatpush.xpose.msra.mxu0 0.0
    %5490 = vmatpush.xpose.msra.mxu0 %v5474
    %5491 = vmatpush.xpose.msra.mxu0 %v5472
    %5492 = vmatmul.f32.gmra.mxu0 %v5468
    %v5493 = vpop.f32.mrf.mxu0
    %v5494 = vadd.f32 0.0, %v5493
    %5495 = vmatmul.f32.gmra.mxu0 %v5470
    %v5496 = vpop.f32.mrf.mxu0
    %v5497 = vadd.f32 0.0, %v5496
    %5498 = vdwg.mxu0
    %v5500 = vsel %vm566, %v5131, 0
    %v5503 = vsel %vm566, %v5133, 0
    %v5506 = vsel %vm566, %v5329, 0
    %v5509 = vsel %vm566, %v5331, 0
    %5511 = vmatpush.xpose.msra.mxu0 0.0
    %5512 = vmatpush.xpose.msra.mxu0 0.0
    %5513 = vmatpush.xpose.msra.mxu0 0.0
    %5514 = vmatpush.xpose.msra.mxu0 0.0
    %5515 = vmatpush.xpose.msra.mxu0 0.0
    %5516 = vmatpush.xpose.msra.mxu0 0.0
    %5517 = vmatpush.xpose.msra.mxu0 0.0
    %5518 = vmatpush.xpose.msra.mxu0 0.0
    %5519 = vmatpush.xpose.msra.mxu0 0.0
    %5520 = vmatpush.xpose.msra.mxu0 0.0
    %5521 = vmatpush.xpose.msra.mxu0 0.0
    %5522 = vmatpush.xpose.msra.mxu0 0.0
    %5523 = vmatpush.xpose.msra.mxu0 0.0
    %5524 = vmatpush.xpose.msra.mxu0 0.0
    %5525 = vmatpush.xpose.msra.mxu0 %v5509
    %5526 = vmatpush.xpose.msra.mxu0 %v5506
    %5527 = vmatmul.f32.gmra.mxu0 %v5500
    %v5528 = vpop.f32.mrf.mxu0
    %v5529 = vadd.f32 0.0, %v5528
    %5530 = vmatmul.f32.gmra.mxu0 %v5503
    %v5531 = vpop.f32.mrf.mxu0
    %v5532 = vadd.f32 0.0, %v5531
    %5533 = vdwg.mxu0
    %5534 = vrot.lane.b32.xlu0 %v5131, 96
    %v5535 = vpop.permute.xlu0 %5534
    %5536 = vrot.lane.b32.xlu0 %v5133, 96
    %v5537 = vpop.permute.xlu0 %5536
    %5538 = vrot.lane.b32.xlu0 %v5329, 96
    %v5539 = vpop.permute.xlu0 %5538
    %5540 = vrot.lane.b32.xlu0 %v5331, 96
    %v5541 = vpop.permute.xlu0 %5540
    %v5542 = vsel %vm566, %v5535, 0
    %v5544 = vsel %vm566, %v5537, 0
    %v5546 = vsel %vm566, %v5539, 0
    %v5548 = vsel %vm566, %v5541, 0
    %5550 = vmatpush.xpose.msra.mxu0 0.0
    %5551 = vmatpush.xpose.msra.mxu0 0.0
    %5552 = vmatpush.xpose.msra.mxu0 0.0
    %5553 = vmatpush.xpose.msra.mxu0 0.0
    %5554 = vmatpush.xpose.msra.mxu0 0.0
    %5555 = vmatpush.xpose.msra.mxu0 0.0
    %5556 = vmatpush.xpose.msra.mxu0 0.0
    %5557 = vmatpush.xpose.msra.mxu0 0.0
    %5558 = vmatpush.xpose.msra.mxu0 0.0
    %5559 = vmatpush.xpose.msra.mxu0 0.0
    %5560 = vmatpush.xpose.msra.mxu0 0.0
    %5561 = vmatpush.xpose.msra.mxu0 0.0
    %5562 = vmatpush.xpose.msra.mxu0 0.0
    %5563 = vmatpush.xpose.msra.mxu0 0.0
    %5564 = vmatpush.xpose.msra.mxu0 %v5548
    %5565 = vmatpush.xpose.msra.mxu0 %v5546
    %5566 = vmatmul.f32.gmra.mxu0 %v5542
    %v5567 = vpop.f32.mrf.mxu0
    %v5568 = vadd.f32 0.0, %v5567
    %5569 = vmatmul.f32.gmra.mxu0 %v5544
    %v5570 = vpop.f32.mrf.mxu0
    %v5571 = vadd.f32 0.0, %v5570
    %5572 = vdwg.mxu0
    %v5573 = vmul.f32 %v5377, 0.24253562
    %v5574 = vmul.f32 %v5380, 0.24253562
    %v5575 = vmul.f32 %v5416, 0.24253562
    %v5576 = vmul.f32 %v5419, 0.24253562
    %v5577 = vmul.f32 %v5455, 0.24253562
    %v5578 = vmul.f32 %v5458, 0.24253562
    %v5579 = vmul.f32 %v5494, 0.24253562
    %v5580 = vmul.f32 %v5497, 0.24253562
    %v5581 = vmul.f32 %v5529, 0.24253562
    %v5582 = vmul.f32 %v5532, 0.24253562
    %v5583 = vmul.f32 %v5568, 0.24253562
    %v5584 = vmul.f32 %v5571, 0.24253562
    %v5585 = vadd.f32 %v5573, %v196
    %v5586 = vadd.f32 %v5574, %v197
    %v5587 = vadd.f32 %v5575, %v198
    %v5588 = vadd.f32 %v5576, %v199
    %v5589 = vadd.f32 %v5577, %v200
    %v5590 = vadd.f32 %v5578, %v201
    %v5591 = vadd.f32 %v5579, %v202
    %v5592 = vadd.f32 %v5580, %v203
    %v5593 = vadd.f32 %v5581, %v204
    %v5594 = vadd.f32 %v5582, %v205
    %v5595 = vadd.f32 %v5583, %v206
    %v5596 = vadd.f32 %v5584, %v207
    %v5597 = vsel %vm817, %v5585, -inf
    %5598 = vmax.xlane.f32.xlu0 %v5597
    %v5599 = vpop.xlane.xlu0 %5598
    %v5600 = vsel %vm817, %v5586, -inf
    %5601 = vmax.xlane.f32.xlu0 %v5600
    %v5602 = vpop.xlane.xlu0 %5601
    %v5603 = vsel %vm817, %v5587, -inf
    %5604 = vmax.xlane.f32.xlu0 %v5603
    %v5605 = vpop.xlane.xlu0 %5604
    %v5606 = vsel %vm817, %v5588, -inf
    %5607 = vmax.xlane.f32.xlu0 %v5606
    %v5608 = vpop.xlane.xlu0 %5607
    %v5609 = vsel %vm817, %v5589, -inf
    %5610 = vmax.xlane.f32.xlu0 %v5609
    %v5611 = vpop.xlane.xlu0 %5610
    %v5612 = vsel %vm817, %v5590, -inf
    %5613 = vmax.xlane.f32.xlu0 %v5612
    %v5614 = vpop.xlane.xlu0 %5613
    %v5615 = vsel %vm817, %v5591, -inf
    %5616 = vmax.xlane.f32.xlu0 %v5615
    %v5617 = vpop.xlane.xlu0 %5616
    %v5618 = vsel %vm817, %v5592, -inf
    %5619 = vmax.xlane.f32.xlu0 %v5618
    %v5620 = vpop.xlane.xlu0 %5619
    %v5621 = vsel %vm817, %v5593, -inf
    %5622 = vmax.xlane.f32.xlu0 %v5621
    %v5623 = vpop.xlane.xlu0 %5622
    %v5624 = vsel %vm817, %v5594, -inf
    %5625 = vmax.xlane.f32.xlu0 %v5624
    %v5626 = vpop.xlane.xlu0 %5625
    %v5627 = vsel %vm817, %v5595, -inf
    %5628 = vmax.xlane.f32.xlu0 %v5627
    %v5629 = vpop.xlane.xlu0 %5628
    %v5630 = vsel %vm817, %v5596, -inf
    %5631 = vmax.xlane.f32.xlu0 %v5630
    %v5632 = vpop.xlane.xlu0 %5631
    %v5633 = vsub.f32 %v5585, %v5599
    %v5634 = vsub.f32 %v5586, %v5602
    %v5635 = vsub.f32 %v5587, %v5605
    %v5636 = vsub.f32 %v5588, %v5608
    %v5637 = vsub.f32 %v5589, %v5611
    %v5638 = vsub.f32 %v5590, %v5614
    %v5639 = vsub.f32 %v5591, %v5617
    %v5640 = vsub.f32 %v5592, %v5620
    %v5641 = vsub.f32 %v5593, %v5623
    %v5642 = vsub.f32 %v5594, %v5626
    %v5643 = vsub.f32 %v5595, %v5629
    %v5644 = vsub.f32 %v5596, %v5632
    %v5645 = vmul.f32 %v5633, 1.442695
    %v5646 = vpow.pop %v5645
    %v5647 = vmul.f32 %v5634, 1.442695
    %v5648 = vpow.pop %v5647
    %v5649 = vmul.f32 %v5635, 1.442695
    %v5650 = vpow.pop %v5649
    %v5651 = vmul.f32 %v5636, 1.442695
    %v5652 = vpow.pop %v5651
    %v5653 = vmul.f32 %v5637, 1.442695
    %v5654 = vpow.pop %v5653
    %v5655 = vmul.f32 %v5638, 1.442695
    %v5656 = vpow.pop %v5655
    %v5657 = vmul.f32 %v5639, 1.442695
    %v5658 = vpow.pop %v5657
    %v5659 = vmul.f32 %v5640, 1.442695
    %v5660 = vpow.pop %v5659
    %v5661 = vmul.f32 %v5641, 1.442695
    %v5662 = vpow.pop %v5661
    %v5663 = vmul.f32 %v5642, 1.442695
    %v5664 = vpow.pop %v5663
    %v5665 = vmul.f32 %v5643, 1.442695
    %v5666 = vpow.pop %v5665
    %v5667 = vmul.f32 %v5644, 1.442695
    %v5668 = vpow.pop %v5667
    %v5669 = vsel %vm817, %v5646, 0.0
    %5670 = vadd.xlane.f32.xlu0 %v5669
    %v5671 = vpop.xlane.xlu0 %5670
    %v5672 = vsel %vm817, %v5648, 0.0
    %5673 = vadd.xlane.f32.xlu0 %v5672
    %v5674 = vpop.xlane.xlu0 %5673
    %v5675 = vsel %vm817, %v5650, 0.0
    %5676 = vadd.xlane.f32.xlu0 %v5675
    %v5677 = vpop.xlane.xlu0 %5676
    %v5678 = vsel %vm817, %v5652, 0.0
    %5679 = vadd.xlane.f32.xlu0 %v5678
    %v5680 = vpop.xlane.xlu0 %5679
    %v5681 = vsel %vm817, %v5654, 0.0
    %5682 = vadd.xlane.f32.xlu0 %v5681
    %v5683 = vpop.xlane.xlu0 %5682
    %v5684 = vsel %vm817, %v5656, 0.0
    %5685 = vadd.xlane.f32.xlu0 %v5684
    %v5686 = vpop.xlane.xlu0 %5685
    %v5687 = vsel %vm817, %v5658, 0.0
    %5688 = vadd.xlane.f32.xlu0 %v5687
    %v5689 = vpop.xlane.xlu0 %5688
    %v5690 = vsel %vm817, %v5660, 0.0
    %5691 = vadd.xlane.f32.xlu0 %v5690
    %v5692 = vpop.xlane.xlu0 %5691
    %v5693 = vsel %vm817, %v5662, 0.0
    %5694 = vadd.xlane.f32.xlu0 %v5693
    %v5695 = vpop.xlane.xlu0 %5694
    %v5696 = vsel %vm817, %v5664, 0.0
    %5697 = vadd.xlane.f32.xlu0 %v5696
    %v5698 = vpop.xlane.xlu0 %5697
    %v5699 = vsel %vm817, %v5666, 0.0
    %5700 = vadd.xlane.f32.xlu0 %v5699
    %v5701 = vpop.xlane.xlu0 %5700
    %v5702 = vsel %vm817, %v5668, 0.0
    %5703 = vadd.xlane.f32.xlu0 %v5702
    %v5704 = vpop.xlane.xlu0 %5703
    %v5705 = vrcp.pop %v5671
    %v5706 = vrcp.pop %v5674
    %v5707 = vrcp.pop %v5677
    %v5708 = vrcp.pop %v5680
    %v5709 = vrcp.pop %v5683
    %v5710 = vrcp.pop %v5686
    %v5711 = vrcp.pop %v5689
    %v5712 = vrcp.pop %v5692
    %v5713 = vrcp.pop %v5695
    %v5714 = vrcp.pop %v5698
    %v5715 = vrcp.pop %v5701
    %v5716 = vrcp.pop %v5704
    %v5717 = vmul.f32 %v5646, %v5705
    %v5718 = vmul.f32 %v5648, %v5706
    %v5719 = vmul.f32 %v5650, %v5707
    %v5720 = vmul.f32 %v5652, %v5708
    %v5721 = vmul.f32 %v5654, %v5709
    %v5722 = vmul.f32 %v5656, %v5710
    %v5723 = vmul.f32 %v5658, %v5711
    %v5724 = vmul.f32 %v5660, %v5712
    %v5725 = vmul.f32 %v5662, %v5713
    %v5726 = vmul.f32 %v5664, %v5714
    %v5727 = vmul.f32 %v5666, %v5715
    %v5728 = vmul.f32 %v5668, %v5716
    %5729 = vrot.lane.b32.xlu0 %v5329, 64
    %v5730 = vpop.permute.xlu0 %5729
    %5731 = vrot.lane.b32.xlu0 %v5331, 64
    %v5732 = vpop.permute.xlu0 %5731
    %v5736 = vsel %vm817, %v5717, 0
    %v5739 = vsel %vm817, %v5718, 0
    %5741 = vmatpush.msra.mxu0 0.0
    %5742 = vmatpush.msra.mxu0 0.0
    %5743 = vmatpush.msra.mxu0 0.0
    %5744 = vmatpush.msra.mxu0 0.0
    %5745 = vmatpush.msra.mxu0 0.0
    %5746 = vmatpush.msra.mxu0 0.0
    %5747 = vmatpush.msra.mxu0 0.0
    %5748 = vmatpush.msra.mxu0 0.0
    %5749 = vmatpush.msra.mxu0 0.0
    %5750 = vmatpush.msra.mxu0 0.0
    %5751 = vmatpush.msra.mxu0 0.0
    %5752 = vmatpush.msra.mxu0 0.0
    %5753 = vmatpush.msra.mxu0 0.0
    %5754 = vmatpush.msra.mxu0 0.0
    %5755 = vmatpush.msra.mxu0 %v5732
    %5756 = vmatpush.msra.mxu0 %v5730
    %5757 = vmatmul.f32.gmra.mxu0 %v5736
    %v5758 = vpop.f32.mrf.mxu0
    %v5759 = vadd.f32 0.0, %v5758
    %5760 = vmatmul.f32.gmra.mxu0 %v5739
    %v5761 = vpop.f32.mrf.mxu0
    %v5762 = vadd.f32 0.0, %v5761
    %5763 = vdwg.mxu0
    %5764 = vrot.lane.b32.xlu0 %v5329, 32
    %v5765 = vpop.permute.xlu0 %5764
    %5766 = vrot.lane.b32.xlu0 %v5331, 32
    %v5767 = vpop.permute.xlu0 %5766
    %v5771 = vsel %vm817, %v5719, 0
    %v5774 = vsel %vm817, %v5720, 0
    %5776 = vmatpush.msra.mxu0 0.0
    %5777 = vmatpush.msra.mxu0 0.0
    %5778 = vmatpush.msra.mxu0 0.0
    %5779 = vmatpush.msra.mxu0 0.0
    %5780 = vmatpush.msra.mxu0 0.0
    %5781 = vmatpush.msra.mxu0 0.0
    %5782 = vmatpush.msra.mxu0 0.0
    %5783 = vmatpush.msra.mxu0 0.0
    %5784 = vmatpush.msra.mxu0 0.0
    %5785 = vmatpush.msra.mxu0 0.0
    %5786 = vmatpush.msra.mxu0 0.0
    %5787 = vmatpush.msra.mxu0 0.0
    %5788 = vmatpush.msra.mxu0 0.0
    %5789 = vmatpush.msra.mxu0 0.0
    %5790 = vmatpush.msra.mxu0 %v5767
    %5791 = vmatpush.msra.mxu0 %v5765
    %5792 = vmatmul.f32.gmra.mxu0 %v5771
    %v5793 = vpop.f32.mrf.mxu0
    %v5794 = vadd.f32 0.0, %v5793
    %5795 = vmatmul.f32.gmra.mxu0 %v5774
    %v5796 = vpop.f32.mrf.mxu0
    %v5797 = vadd.f32 0.0, %v5796
    %5798 = vdwg.mxu0
    %v5800 = vsel %vm817, %v5721, 0
    %v5803 = vsel %vm817, %v5722, 0
    %5805 = vmatpush.msra.mxu0 0.0
    %5806 = vmatpush.msra.mxu0 0.0
    %5807 = vmatpush.msra.mxu0 0.0
    %5808 = vmatpush.msra.mxu0 0.0
    %5809 = vmatpush.msra.mxu0 0.0
    %5810 = vmatpush.msra.mxu0 0.0
    %5811 = vmatpush.msra.mxu0 0.0
    %5812 = vmatpush.msra.mxu0 0.0
    %5813 = vmatpush.msra.mxu0 0.0
    %5814 = vmatpush.msra.mxu0 0.0
    %5815 = vmatpush.msra.mxu0 0.0
    %5816 = vmatpush.msra.mxu0 0.0
    %5817 = vmatpush.msra.mxu0 0.0
    %5818 = vmatpush.msra.mxu0 0.0
    %5819 = vmatpush.msra.mxu0 %v5345
    %5820 = vmatpush.msra.mxu0 %v5343
    %5821 = vmatmul.f32.gmra.mxu0 %v5800
    %v5822 = vpop.f32.mrf.mxu0
    %v5823 = vadd.f32 0.0, %v5822
    %5824 = vmatmul.f32.gmra.mxu0 %v5803
    %v5825 = vpop.f32.mrf.mxu0
    %v5826 = vadd.f32 0.0, %v5825
    %5827 = vdwg.mxu0
    %5830 = vrot.lane.b32.xlu0 %v5343, 96
    %v5831 = vpop.permute.xlu0 %5830
    %5832 = vrot.lane.b32.xlu0 %v5345, 96
    %v5833 = vpop.permute.xlu0 %5832
    %v5837 = vsel %vm817, %v5723, 0
    %v5840 = vsel %vm817, %v5724, 0
    %5842 = vmatpush.msra.mxu0 0.0
    %5843 = vmatpush.msra.mxu0 0.0
    %5844 = vmatpush.msra.mxu0 0.0
    %5845 = vmatpush.msra.mxu0 0.0
    %5846 = vmatpush.msra.mxu0 0.0
    %5847 = vmatpush.msra.mxu0 0.0
    %5848 = vmatpush.msra.mxu0 0.0
    %5849 = vmatpush.msra.mxu0 0.0
    %5850 = vmatpush.msra.mxu0 0.0
    %5851 = vmatpush.msra.mxu0 0.0
    %5852 = vmatpush.msra.mxu0 0.0
    %5853 = vmatpush.msra.mxu0 0.0
    %5854 = vmatpush.msra.mxu0 0.0
    %5855 = vmatpush.msra.mxu0 0.0
    %5856 = vmatpush.msra.mxu0 %v5833
    %5857 = vmatpush.msra.mxu0 %v5831
    %5858 = vmatmul.f32.gmra.mxu0 %v5837
    %v5859 = vpop.f32.mrf.mxu0
    %v5860 = vadd.f32 0.0, %v5859
    %5861 = vmatmul.f32.gmra.mxu0 %v5840
    %v5862 = vpop.f32.mrf.mxu0
    %v5863 = vadd.f32 0.0, %v5862
    %5864 = vdwg.mxu0
    %5865 = vrot.lane.b32.xlu0 %v5343, 64
    %v5866 = vpop.permute.xlu0 %5865
    %5867 = vrot.lane.b32.xlu0 %v5345, 64
    %v5868 = vpop.permute.xlu0 %5867
    %v5872 = vsel %vm817, %v5725, 0
    %v5875 = vsel %vm817, %v5726, 0
    %5877 = vmatpush.msra.mxu0 0.0
    %5878 = vmatpush.msra.mxu0 0.0
    %5879 = vmatpush.msra.mxu0 0.0
    %5880 = vmatpush.msra.mxu0 0.0
    %5881 = vmatpush.msra.mxu0 0.0
    %5882 = vmatpush.msra.mxu0 0.0
    %5883 = vmatpush.msra.mxu0 0.0
    %5884 = vmatpush.msra.mxu0 0.0
    %5885 = vmatpush.msra.mxu0 0.0
    %5886 = vmatpush.msra.mxu0 0.0
    %5887 = vmatpush.msra.mxu0 0.0
    %5888 = vmatpush.msra.mxu0 0.0
    %5889 = vmatpush.msra.mxu0 0.0
    %5890 = vmatpush.msra.mxu0 0.0
    %5891 = vmatpush.msra.mxu0 %v5868
    %5892 = vmatpush.msra.mxu0 %v5866
    %5893 = vmatmul.f32.gmra.mxu0 %v5872
    %v5894 = vpop.f32.mrf.mxu0
    %v5895 = vadd.f32 0.0, %v5894
    %5896 = vmatmul.f32.gmra.mxu0 %v5875
    %v5897 = vpop.f32.mrf.mxu0
    %v5898 = vadd.f32 0.0, %v5897
    %5899 = vdwg.mxu0
    %5900 = vrot.lane.b32.xlu0 %v5343, 32
    %v5901 = vpop.permute.xlu0 %5900
    %5902 = vrot.lane.b32.xlu0 %v5345, 32
    %v5903 = vpop.permute.xlu0 %5902
    %v5907 = vsel %vm817, %v5727, 0
    %v5910 = vsel %vm817, %v5728, 0
    %5912 = vmatpush.msra.mxu0 0.0
    %5913 = vmatpush.msra.mxu0 0.0
    %5914 = vmatpush.msra.mxu0 0.0
    %5915 = vmatpush.msra.mxu0 0.0
    %5916 = vmatpush.msra.mxu0 0.0
    %5917 = vmatpush.msra.mxu0 0.0
    %5918 = vmatpush.msra.mxu0 0.0
    %5919 = vmatpush.msra.mxu0 0.0
    %5920 = vmatpush.msra.mxu0 0.0
    %5921 = vmatpush.msra.mxu0 0.0
    %5922 = vmatpush.msra.mxu0 0.0
    %5923 = vmatpush.msra.mxu0 0.0
    %5924 = vmatpush.msra.mxu0 0.0
    %5925 = vmatpush.msra.mxu0 0.0
    %5926 = vmatpush.msra.mxu0 %v5903
    %5927 = vmatpush.msra.mxu0 %v5901
    %5928 = vmatmul.f32.gmra.mxu0 %v5907
    %v5929 = vpop.f32.mrf.mxu0
    %v5930 = vadd.f32 0.0, %v5929
    %5931 = vmatmul.f32.gmra.mxu0 %v5910
    %v5932 = vpop.f32.mrf.mxu0
    %v5933 = vadd.f32 0.0, %v5932
    %5934 = vdwg.mxu0
    %5937 = vrot.lane.b32.xlu0 %v5794, 32
    %v5938 = vpop.permute.xlu0 %5937
    %5939 = vrot.lane.b32.xlu0 %v5797, 32
    %v5940 = vpop.permute.xlu0 %5939
    %5945 = vrot.lane.b32.xlu0 %v5823, 64
    %v5946 = vpop.permute.xlu0 %5945
    %5947 = vrot.lane.b32.xlu0 %v5826, 64
    %v5948 = vpop.permute.xlu0 %5947
    %5953 = vrot.lane.b32.xlu0 %v5860, 96
    %v5954 = vpop.permute.xlu0 %5953
    %5955 = vrot.lane.b32.xlu0 %v5863, 96
    %v5956 = vpop.permute.xlu0 %5955
    %5961 = vrot.lane.b32.xlu0 %v5930, 32
    %v5962 = vpop.permute.xlu0 %5961
    %5963 = vrot.lane.b32.xlu0 %v5933, 32
    %v5964 = vpop.permute.xlu0 %5963
    %v5967 = vsel %vm566, %v5759, %v5938
    %v5968 = vsel %vm566, %v5762, %v5940
    %v5969 = vsel %vm1190, %v5967, %v5946
    %v5970 = vsel %vm1190, %v5968, %v5948
    %v5971 = vsel %vm1193, %v5969, %v5954
    %v5972 = vsel %vm1193, %v5970, %v5956
    %v5973 = vsel %vm566, %v5895, %v5962
    %v5974 = vsel %vm566, %v5898, %v5964
    %v5975 = vpack.c.bf16 %v5972, %v5971
    %v5976 = vpack.c.bf16 %v5974, %v5973
    %s5977 = scalar_lea.vmem [#allocation5], 192
    %v5978 = vld [vmem:[%s5977] sm:$0xf]
    %v5979 = vld [vmem:[%s5977 + $0x4] sm:$0xf]
    %v5980 = vld [vmem:[%s5977 + $0x8] sm:$0xf]
    %v5981 = vld [vmem:[%s5977 + $0xc] sm:$0xf]
    %v5982 = vld [vmem:[%s5977 + $0x10] sm:$0xf]
    %v5983 = vld [vmem:[%s5977 + $0x14] sm:$0xf]
    %v5984 = vld [vmem:[%s5977 + $0x18] sm:$0xf]
    %v5985 = vld [vmem:[%s5977 + $0x1c] sm:$0xf]
    %v5986 = vld [vmem:[%s5977 + $0x20] sm:$0xf]
    %v5987 = vld [vmem:[%s5977 + $0x24] sm:$0xf]
    %v5988 = vld [vmem:[%s5977 + $0x28] sm:$0xf]
    %v5989 = vld [vmem:[%s5977 + $0x2c] sm:$0xf]
    %v5990 = vld [vmem:[%s5977 + $0x30] sm:$0xf]
    %v5991 = vld [vmem:[%s5977 + $0x34] sm:$0xf]
    %v5992 = vld [vmem:[%s5977 + $0x38] sm:$0xf]
    %v5993 = vld [vmem:[%s5977 + $0x3c] sm:$0xf]
    %v5994 = vld [vmem:[%s5977 + $0x40] sm:$0xf]
    %v5995 = vld [vmem:[%s5977 + $0x44] sm:$0xf]
    %v5996 = vld [vmem:[%s5977 + $0x48] sm:$0xf]
    %v5997 = vld [vmem:[%s5977 + $0x4c] sm:$0xf]
    %v5998 = vld [vmem:[%s5977 + $0x50] sm:$0xf]
    %v5999 = vld [vmem:[%s5977 + $0x54] sm:$0xf]
    %v6000 = vld [vmem:[%s5977 + $0x58] sm:$0xf]
    %v6001 = vld [vmem:[%s5977 + $0x5c] sm:$0xf]
    %s6002 = scalar_lea.vmem [#allocation16], 9
    %v6003 = vld [vmem:[%s6002] sm:$0x1]
    %v6005 = vperm.slane %v6003, 0
    %v6031 = vunpack.c.l.b16 %v5978
    %v6032 = vunpack.c.l.b16 %v5979
    %v6033 = vunpack.c.l.b16 %v5980
    %v6034 = vunpack.c.l.b16 %v5981
    %v6035 = vunpack.c.l.b16 %v5982
    %v6036 = vunpack.c.l.b16 %v5983
    %v6037 = vunpack.c.l.b16 %v5984
    %v6038 = vunpack.c.l.b16 %v5985
    %v6039 = vunpack.c.l.b16 %v5986
    %v6040 = vunpack.c.l.b16 %v5987
    %v6041 = vunpack.c.l.b16 %v5988
    %v6042 = vunpack.c.l.b16 %v5989
    %v6043 = vunpack.c.l.b16 %v5990
    %v6044 = vunpack.c.l.b16 %v5991
    %v6045 = vunpack.c.l.b16 %v5992
    %v6046 = vunpack.c.l.b16 %v5993
    %v6047 = vunpack.c.l.b16 %v5994
    %v6048 = vunpack.c.l.b16 %v5995
    %v6049 = vunpack.c.l.b16 %v5996
    %v6050 = vunpack.c.l.b16 %v5997
    %v6051 = vunpack.c.l.b16 %v5998
    %v6052 = vunpack.c.l.b16 %v5999
    %v6053 = vunpack.c.l.b16 %v6000
    %v6054 = vunpack.c.l.b16 %v6001
    %v6055 = vpack.c.b16 %v6032, %v6031
    %v6056 = vpack.c.b16 %v6034, %v6033
    %v6057 = vpack.c.b16 %v6036, %v6035
    %v6058 = vpack.c.b16 %v6038, %v6037
    %v6059 = vpack.c.b16 %v6040, %v6039
    %v6060 = vpack.c.b16 %v6042, %v6041
    %v6061 = vpack.c.b16 %v6044, %v6043
    %v6062 = vpack.c.b16 %v6046, %v6045
    %v6063 = vpack.c.b16 %v6048, %v6047
    %v6064 = vpack.c.b16 %v6050, %v6049
    %v6065 = vpack.c.b16 %v6052, %v6051
    %v6066 = vpack.c.b16 %v6054, %v6053
    %v6080 = vsel %vm1190, %v5976, 0
    %6082 = vmatpush.bf16.msra.mxu0 %v6062
    %6083 = vmatpush.bf16.msra.mxu0 %v6061
    %6084 = vmatpush.bf16.msra.mxu0 %v6060
    %6085 = vmatpush.bf16.msra.mxu0 %v6059
    %6086 = vmatpush.bf16.msra.mxu0 %v6058
    %6087 = vmatpush.bf16.msra.mxu0 %v6057
    %6088 = vmatpush.bf16.msra.mxu0 %v6056
    %6089 = vmatpush.bf16.msra.mxu0 %v6055
    %6090 = vmatmul.bf16.gmra.mxu0 %v5975
    %v6091 = vpop.f32.mrf.mxu0
    %v6092 = vadd.f32 %v6005, %v6091
    %v6093 = vpop.f32.mrf.mxu0
    %v6094 = vadd.f32 %v6005, %v6093
    %6095 = vdwg.mxu0
    %6096 = vmatpush.bf16.msra.mxu0 0
    %6097 = vmatpush.bf16.msra.mxu0 0
    %6098 = vmatpush.bf16.msra.mxu0 0
    %6099 = vmatpush.bf16.msra.mxu0 0
    %6100 = vmatpush.bf16.msra.mxu0 %v6066
    %6101 = vmatpush.bf16.msra.mxu0 %v6065
    %6102 = vmatpush.bf16.msra.mxu0 %v6064
    %6103 = vmatpush.bf16.msra.mxu0 %v6063
    %6104 = vmatmul.bf16.gmra.mxu0 %v6080
    %v6105 = vpop.f32.mrf.mxu0
    %v6106 = vadd.f32 %v6092, %v6105
    %v6107 = vpop.f32.mrf.mxu0
    %v6108 = vadd.f32 %v6094, %v6107
    %6109 = vdwg.mxu0
    %v6110 = vadd.f32 %v5000, %v6106
    %v6111 = vadd.f32 %v5001, %v6108
    %6112 = vadd.xlane.f32.xlu0 %v6110
    %v6113 = vpop.xlane.xlu0 %6112
    %6114 = vadd.xlane.f32.xlu0 %v6111
    %v6115 = vpop.xlane.xlu0 %6114
    %v6116 = vmul.f32 %v6113, 0.009803922
    %v6117 = vmul.f32 %v6115, 0.009803922
    %v6118 = vsub.f32 %v6110, %v6116
    %v6119 = vsub.f32 %v6111, %v6117
    %v6120 = vmul.f32 %v6118, %v224
    %v6121 = vmul.f32 %v6119, %v224
    %v6122 = vmul.f32 %v6120, %v6120
    %v6123 = vmul.f32 %v6121, %v6121
    %6124 = vadd.xlane.f32.xlu0 %v6122
    %v6125 = vpop.xlane.xlu0 %6124
    %6126 = vadd.xlane.f32.xlu0 %v6123
    %v6127 = vpop.xlane.xlu0 %6126
    %v6128 = vmul.f32 %v6125, 0.009803922
    %v6129 = vmul.f32 %v6127, 0.009803922
    %v6130 = vadd.f32 %v6128, 1e-05
    %v6131 = vadd.f32 %v6129, 1e-05
    %v6132 = vrsqrt.pop %v6130
    %v6133 = vmul.f32 %v6132, %v6130
    %v6134 = vmul.f32 %v6133, %v6132
    %v6135 = vmul.f32 0.5, %v6134
    %v6136 = vsub.f32 1.5, %v6135
    %v6137 = vmul.f32 %v6132, %v6136
    %vm6138 = vweird.f32 %v6130
    %vm6139 = vweird.f32 %v6132
    %vm6140 = vmor %vm6138, %vm6139
    %v6141 = vsel %vm6140, %v6132, %v6137
    %v6142 = vrsqrt.pop %v6131
    %v6143 = vmul.f32 %v6142, %v6131
    %v6144 = vmul.f32 %v6143, %v6142
    %v6145 = vmul.f32 0.5, %v6144
    %v6146 = vsub.f32 1.5, %v6145
    %v6147 = vmul.f32 %v6142, %v6146
    %vm6148 = vweird.f32 %v6131
    %vm6149 = vweird.f32 %v6142
    %vm6150 = vmor %vm6148, %vm6149
    %v6151 = vsel %vm6150, %v6142, %v6147
    %v6152 = vmul.f32 %v6120, %v6141
    %v6153 = vmul.f32 %v6121, %v6151
    %s6154 = scalar_lea.vmem [#allocation16], 12
    %v6155 = vld [vmem:[%s6154] sm:$0x1]
    %v6157 = vperm.slane %v6155, 0
    %v6159 = vmul.f32 %v6152, %v6157
    %v6160 = vmul.f32 %v6153, %v6157
    %s6161 = scalar_lea.vmem [#allocation16], 13
    %v6162 = vld [vmem:[%s6161] sm:$0x1]
    %v6164 = vperm.slane %v6162, 0
    %v6166 = vadd.f32 %v6159, %v6164
    %v6167 = vadd.f32 %v6160, %v6164
    %v6168 = vpack.c.bf16 %v6167, %v6166
    %s6169 = scalar_lea.vmem %s4, 384
    %v6170 = vld [vmem:[%s6169] sm:$0xff]
    %v6171 = vld [vmem:[%s6169 + $0x8] sm:$0xff]
    %v6172 = vld [vmem:[%s6169 + $0x10] sm:$0xff]
    %v6173 = vld [vmem:[%s6169 + $0x18] sm:$0xff]
    %v6174 = vld [vmem:[%s6169 + $0x20] sm:$0xff]
    %v6175 = vld [vmem:[%s6169 + $0x28] sm:$0xff]
    %v6176 = vld [vmem:[%s6169 + $0x30] sm:$0xff]
    %v6177 = vld [vmem:[%s6169 + $0x38] sm:$0xff]
    %v6178 = vld [vmem:[%s6169 + $0x40] sm:$0xff]
    %v6179 = vld [vmem:[%s6169 + $0x48] sm:$0xff]
    %v6180 = vld [vmem:[%s6169 + $0x50] sm:$0xff]
    %v6181 = vld [vmem:[%s6169 + $0x58] sm:$0xff]
    %v6182 = vld [vmem:[%s6169 + $0x60] sm:$0xff]
    %v6183 = vld [vmem:[%s6169 + $0x68] sm:$0xff]
    %v6184 = vld [vmem:[%s6169 + $0x70] sm:$0xff]
    %v6185 = vld [vmem:[%s6169 + $0x78] sm:$0xff]
    %s6186 = scalar_lea.vmem [#allocation7], 6
    %v6187 = vld [vmem:[%s6186] sm:$0x3]
    %v6189 = vperm.slane %v6187, 0
    %v6190 = vperm.slane %v6187, 1
    %v6209 = vunpack.c.l.b16 %v6170
    %v6210 = vunpack.c.h.b16 %v6170
    %v6211 = vunpack.c.l.b16 %v6171
    %v6212 = vunpack.c.h.b16 %v6171
    %v6213 = vunpack.c.l.b16 %v6172
    %v6214 = vunpack.c.h.b16 %v6172
    %v6215 = vunpack.c.l.b16 %v6173
    %v6216 = vunpack.c.h.b16 %v6173
    %v6217 = vunpack.c.l.b16 %v6174
    %v6218 = vunpack.c.h.b16 %v6174
    %v6219 = vunpack.c.l.b16 %v6175
    %v6220 = vunpack.c.h.b16 %v6175
    %v6221 = vunpack.c.l.b16 %v6176
    %v6222 = vunpack.c.h.b16 %v6176
    %v6223 = vunpack.c.l.b16 %v6177
    %v6224 = vunpack.c.h.b16 %v6177
    %v6225 = vunpack.c.l.b16 %v6178
    %v6226 = vunpack.c.h.b16 %v6178
    %v6227 = vunpack.c.l.b16 %v6179
    %v6228 = vunpack.c.h.b16 %v6179
    %v6229 = vunpack.c.l.b16 %v6180
    %v6230 = vunpack.c.h.b16 %v6180
    %v6231 = vunpack.c.l.b16 %v6181
    %v6232 = vunpack.c.h.b16 %v6181
    %v6233 = vunpack.c.l.b16 %v6182
    %v6234 = vunpack.c.h.b16 %v6182
    %v6235 = vunpack.c.l.b16 %v6183
    %v6236 = vunpack.c.h.b16 %v6183
    %v6237 = vunpack.c.l.b16 %v6184
    %v6238 = vunpack.c.h.b16 %v6184
    %v6239 = vunpack.c.l.b16 %v6185
    %v6240 = vunpack.c.h.b16 %v6185
    %v6241 = vpack.c.b16 %v6211, %v6209
    %v6242 = vpack.c.b16 %v6212, %v6210
    %v6243 = vpack.c.b16 %v6215, %v6213
    %v6244 = vpack.c.b16 %v6216, %v6214
    %v6245 = vpack.c.b16 %v6219, %v6217
    %v6246 = vpack.c.b16 %v6220, %v6218
    %v6247 = vpack.c.b16 %v6223, %v6221
    %v6248 = vpack.c.b16 %v6224, %v6222
    %v6249 = vpack.c.b16 %v6227, %v6225
    %v6250 = vpack.c.b16 %v6228, %v6226
    %v6251 = vpack.c.b16 %v6231, %v6229
    %v6252 = vpack.c.b16 %v6232, %v6230
    %v6253 = vpack.c.b16 %v6235, %v6233
    %v6254 = vpack.c.b16 %v6236, %v6234
    %v6255 = vpack.c.b16 %v6239, %v6237
    %v6256 = vpack.c.b16 %v6240, %v6238
    %6273 = vmatpush.bf16.msra.mxu0 %v6255
    %6274 = vmatpush.bf16.msra.mxu0 %v6253
    %6275 = vmatpush.bf16.msra.mxu0 %v6251
    %6276 = vmatpush.bf16.msra.mxu0 %v6249
    %6277 = vmatpush.bf16.msra.mxu0 %v6247
    %6278 = vmatpush.bf16.msra.mxu0 %v6245
    %6279 = vmatpush.bf16.msra.mxu0 %v6243
    %6280 = vmatpush.bf16.msra.mxu0 %v6241
    %6281 = vmatmul.bf16.gmra.mxu0 %v6168
    %v6282 = vpop.f32.mrf.mxu0
    %v6283 = vadd.f32 %v6189, %v6282
    %v6284 = vpop.f32.mrf.mxu0
    %v6285 = vadd.f32 %v6189, %v6284
    %6286 = vdwg.mxu0
    %6287 = vmatpush.bf16.msra.mxu0 %v6256
    %6288 = vmatpush.bf16.msra.mxu0 %v6254
    %6289 = vmatpush.bf16.msra.mxu0 %v6252
    %6290 = vmatpush.bf16.msra.mxu0 %v6250
    %6291 = vmatpush.bf16.msra.mxu0 %v6248
    %6292 = vmatpush.bf16.msra.mxu0 %v6246
    %6293 = vmatpush.bf16.msra.mxu0 %v6244
    %6294 = vmatpush.bf16.msra.mxu0 %v6242
    %6295 = vmatmul.bf16.gmra.mxu0 %v6168
    %v6296 = vpop.f32.mrf.mxu0
    %v6297 = vadd.f32 %v6190, %v6296
    %v6298 = vpop.f32.mrf.mxu0
    %v6299 = vadd.f32 %v6190, %v6298
    %6300 = vdwg.mxu0
    %s6301 = scalar_lea.vmem [#allocation2], 576
    %v6302 = vld [vmem:[%s6301] sm:$0xff]
    %v6303 = vld [vmem:[%s6301 + $0x8] sm:$0xf]
    %v6304 = vld [vmem:[%s6301 + $0xc] sm:$0xff]
    %v6305 = vld [vmem:[%s6301 + $0x14] sm:$0xf]
    %v6306 = vld [vmem:[%s6301 + $0x18] sm:$0xff]
    %v6307 = vld [vmem:[%s6301 + $0x20] sm:$0xf]
    %v6308 = vld [vmem:[%s6301 + $0x24] sm:$0xff]
    %v6309 = vld [vmem:[%s6301 + $0x2c] sm:$0xf]
    %v6310 = vld [vmem:[%s6301 + $0x30] sm:$0xff]
    %v6311 = vld [vmem:[%s6301 + $0x38] sm:$0xf]
    %v6312 = vld [vmem:[%s6301 + $0x3c] sm:$0xff]
    %v6313 = vld [vmem:[%s6301 + $0x44] sm:$0xf]
    %v6314 = vld [vmem:[%s6301 + $0x48] sm:$0xff]
    %v6315 = vld [vmem:[%s6301 + $0x50] sm:$0xf]
    %v6316 = vld [vmem:[%s6301 + $0x54] sm:$0xff]
    %v6317 = vld [vmem:[%s6301 + $0x5c] sm:$0xf]
    %v6318 = vld [vmem:[%s6301 + $0x60] sm:$0xff]
    %v6319 = vld [vmem:[%s6301 + $0x68] sm:$0xf]
    %v6320 = vld [vmem:[%s6301 + $0x6c] sm:$0xff]
    %v6321 = vld [vmem:[%s6301 + $0x74] sm:$0xf]
    %v6322 = vld [vmem:[%s6301 + $0x78] sm:$0xff]
    %v6323 = vld [vmem:[%s6301 + $0x80] sm:$0xf]
    %v6324 = vld [vmem:[%s6301 + $0x84] sm:$0xff]
    %v6325 = vld [vmem:[%s6301 + $0x8c] sm:$0xf]
    %v6326 = vld [vmem:[%s6301 + $0x90] sm:$0xff]
    %v6327 = vld [vmem:[%s6301 + $0x98] sm:$0xf]
    %v6328 = vld [vmem:[%s6301 + $0x9c] sm:$0xff]
    %v6329 = vld [vmem:[%s6301 + $0xa4] sm:$0xf]
    %v6330 = vld [vmem:[%s6301 + $0xa8] sm:$0xff]
    %v6331 = vld [vmem:[%s6301 + $0xb0] sm:$0xf]
    %v6332 = vld [vmem:[%s6301 + $0xb4] sm:$0xff]
    %v6333 = vld [vmem:[%s6301 + $0xbc] sm:$0xf]
    %s6334 = scalar_lea.vmem [#allocation8], 9
    %v6335 = vld [vmem:[%s6334] sm:$0x7]
    %v6337 = vperm.slane %v6335, 0
    %v6338 = vperm.slane %v6335, 1
    %v6339 = vperm.slane %v6335, 2
    %v6375 = vunpack.c.l.b16 %v6302
    %v6376 = vunpack.c.h.b16 %v6302
    %v6377 = vunpack.c.l.b16 %v6303
    %v6378 = vunpack.c.l.b16 %v6304
    %v6379 = vunpack.c.h.b16 %v6304
    %v6380 = vunpack.c.l.b16 %v6305
    %v6381 = vunpack.c.l.b16 %v6306
    %v6382 = vunpack.c.h.b16 %v6306
    %v6383 = vunpack.c.l.b16 %v6307
    %v6384 = vunpack.c.l.b16 %v6308
    %v6385 = vunpack.c.h.b16 %v6308
    %v6386 = vunpack.c.l.b16 %v6309
    %v6387 = vunpack.c.l.b16 %v6310
    %v6388 = vunpack.c.h.b16 %v6310
    %v6389 = vunpack.c.l.b16 %v6311
    %v6390 = vunpack.c.l.b16 %v6312
    %v6391 = vunpack.c.h.b16 %v6312
    %v6392 = vunpack.c.l.b16 %v6313
    %v6393 = vunpack.c.l.b16 %v6314
    %v6394 = vunpack.c.h.b16 %v6314
    %v6395 = vunpack.c.l.b16 %v6315
    %v6396 = vunpack.c.l.b16 %v6316
    %v6397 = vunpack.c.h.b16 %v6316
    %v6398 = vunpack.c.l.b16 %v6317
    %v6399 = vunpack.c.l.b16 %v6318
    %v6400 = vunpack.c.h.b16 %v6318
    %v6401 = vunpack.c.l.b16 %v6319
    %v6402 = vunpack.c.l.b16 %v6320
    %v6403 = vunpack.c.h.b16 %v6320
    %v6404 = vunpack.c.l.b16 %v6321
    %v6405 = vunpack.c.l.b16 %v6322
    %v6406 = vunpack.c.h.b16 %v6322
    %v6407 = vunpack.c.l.b16 %v6323
    %v6408 = vunpack.c.l.b16 %v6324
    %v6409 = vunpack.c.h.b16 %v6324
    %v6410 = vunpack.c.l.b16 %v6325
    %v6411 = vunpack.c.l.b16 %v6326
    %v6412 = vunpack.c.h.b16 %v6326
    %v6413 = vunpack.c.l.b16 %v6327
    %v6414 = vunpack.c.l.b16 %v6328
    %v6415 = vunpack.c.h.b16 %v6328
    %v6416 = vunpack.c.l.b16 %v6329
    %v6417 = vunpack.c.l.b16 %v6330
    %v6418 = vunpack.c.h.b16 %v6330
    %v6419 = vunpack.c.l.b16 %v6331
    %v6420 = vunpack.c.l.b16 %v6332
    %v6421 = vunpack.c.h.b16 %v6332
    %v6422 = vunpack.c.l.b16 %v6333
    %v6423 = vpack.c.b16 %v6378, %v6375
    %v6424 = vpack.c.b16 %v6379, %v6376
    %v6425 = vpack.c.b16 %v6380, %v6377
    %v6426 = vpack.c.b16 %v6384, %v6381
    %v6427 = vpack.c.b16 %v6385, %v6382
    %v6428 = vpack.c.b16 %v6386, %v6383
    %v6429 = vpack.c.b16 %v6390, %v6387
    %v6430 = vpack.c.b16 %v6391, %v6388
    %v6431 = vpack.c.b16 %v6392, %v6389
    %v6432 = vpack.c.b16 %v6396, %v6393
    %v6433 = vpack.c.b16 %v6397, %v6394
    %v6434 = vpack.c.b16 %v6398, %v6395
    %v6435 = vpack.c.b16 %v6402, %v6399
    %v6436 = vpack.c.b16 %v6403, %v6400
    %v6437 = vpack.c.b16 %v6404, %v6401
    %v6438 = vpack.c.b16 %v6408, %v6405
    %v6439 = vpack.c.b16 %v6409, %v6406
    %v6440 = vpack.c.b16 %v6410, %v6407
    %v6441 = vpack.c.b16 %v6414, %v6411
    %v6442 = vpack.c.b16 %v6415, %v6412
    %v6443 = vpack.c.b16 %v6416, %v6413
    %v6444 = vpack.c.b16 %v6420, %v6417
    %v6445 = vpack.c.b16 %v6421, %v6418
    %v6446 = vpack.c.b16 %v6422, %v6419
    %6471 = vmatpush.bf16.msra.mxu0 %v6444
    %6472 = vmatpush.bf16.msra.mxu0 %v6441
    %6473 = vmatpush.bf16.msra.mxu0 %v6438
    %6474 = vmatpush.bf16.msra.mxu0 %v6435
    %6475 = vmatpush.bf16.msra.mxu0 %v6432
    %6476 = vmatpush.bf16.msra.mxu0 %v6429
    %6477 = vmatpush.bf16.msra.mxu0 %v6426
    %6478 = vmatpush.bf16.msra.mxu0 %v6423
    %6479 = vmatmul.bf16.gmra.mxu0 %v194
    %v6480 = vpop.f32.mrf.mxu0
    %v6481 = vadd.f32 %v6337, %v6480
    %v6482 = vpop.f32.mrf.mxu0
    %v6483 = vadd.f32 %v6337, %v6482
    %6484 = vmatmul.bf16.gmra.mxu0 %v195
    %v6485 = vpop.f32.mrf.mxu0
    %v6486 = vadd.f32 %v6337, %v6485
    %v6487 = vpop.f32.mrf.mxu0
    %6488 = vdwg.mxu0
    %6489 = vmatpush.bf16.msra.mxu0 %v6445
    %6490 = vmatpush.bf16.msra.mxu0 %v6442
    %6491 = vmatpush.bf16.msra.mxu0 %v6439
    %6492 = vmatpush.bf16.msra.mxu0 %v6436
    %6493 = vmatpush.bf16.msra.mxu0 %v6433
    %6494 = vmatpush.bf16.msra.mxu0 %v6430
    %6495 = vmatpush.bf16.msra.mxu0 %v6427
    %6496 = vmatpush.bf16.msra.mxu0 %v6424
    %6497 = vmatmul.bf16.gmra.mxu0 %v194
    %v6498 = vpop.f32.mrf.mxu0
    %v6499 = vadd.f32 %v6338, %v6498
    %v6500 = vpop.f32.mrf.mxu0
    %v6501 = vadd.f32 %v6338, %v6500
    %6502 = vmatmul.bf16.gmra.mxu0 %v195
    %v6503 = vpop.f32.mrf.mxu0
    %v6504 = vadd.f32 %v6338, %v6503
    %v6505 = vpop.f32.mrf.mxu0
    %6506 = vdwg.mxu0
    %6507 = vmatpush.bf16.msra.mxu0 %v6446
    %6508 = vmatpush.bf16.msra.mxu0 %v6443
    %6509 = vmatpush.bf16.msra.mxu0 %v6440
    %6510 = vmatpush.bf16.msra.mxu0 %v6437
    %6511 = vmatpush.bf16.msra.mxu0 %v6434
    %6512 = vmatpush.bf16.msra.mxu0 %v6431
    %6513 = vmatpush.bf16.msra.mxu0 %v6428
    %6514 = vmatpush.bf16.msra.mxu0 %v6425
    %6515 = vmatmul.bf16.gmra.mxu0 %v194
    %v6516 = vpop.f32.mrf.mxu0
    %v6517 = vadd.f32 %v6339, %v6516
    %v6518 = vpop.f32.mrf.mxu0
    %v6519 = vadd.f32 %v6339, %v6518
    %6520 = vmatmul.bf16.gmra.mxu0 %v195
    %v6521 = vpop.f32.mrf.mxu0
    %v6522 = vadd.f32 %v6339, %v6521
    %v6523 = vpop.f32.mrf.mxu0
    %6524 = vdwg.mxu0
    %v6526 = vsel %vm566, %v6283, 0
    %v6529 = vsel %vm566, %v6285, 0
    %v6532 = vsel %vm566, %v6481, 0
    %v6535 = vsel %vm566, %v6483, 0
    %v6538 = vsel %vm566, %v6486, 0
    %6540 = vmatpush.xpose.msra.mxu0 0.0
    %6541 = vmatpush.xpose.msra.mxu0 0.0
    %6542 = vmatpush.xpose.msra.mxu0 0.0
    %6543 = vmatpush.xpose.msra.mxu0 0.0
    %6544 = vmatpush.xpose.msra.mxu0 0.0
    %6545 = vmatpush.xpose.msra.mxu0 0.0
    %6546 = vmatpush.xpose.msra.mxu0 0.0
    %6547 = vmatpush.xpose.msra.mxu0 0.0
    %6548 = vmatpush.xpose.msra.mxu0 0.0
    %6549 = vmatpush.xpose.msra.mxu0 0.0
    %6550 = vmatpush.xpose.msra.mxu0 0.0
    %6551 = vmatpush.xpose.msra.mxu0 0.0
    %6552 = vmatpush.xpose.msra.mxu0 0.0
    %6553 = vmatpush.xpose.msra.mxu0 %v6538
    %6554 = vmatpush.xpose.msra.mxu0 %v6535
    %6555 = vmatpush.xpose.msra.mxu0 %v6532
    %6556 = vmatmul.f32.gmra.mxu0 %v6526
    %v6557 = vpop.f32.mrf.mxu0
    %v6558 = vadd.f32 0.0, %v6557
    %6559 = vmatmul.f32.gmra.mxu0 %v6529
    %v6560 = vpop.f32.mrf.mxu0
    %v6561 = vadd.f32 0.0, %v6560
    %6562 = vdwg.mxu0
    %6563 = vrot.lane.b32.xlu0 %v6283, 96
    %v6564 = vpop.permute.xlu0 %6563
    %6565 = vrot.lane.b32.xlu0 %v6285, 96
    %v6566 = vpop.permute.xlu0 %6565
    %6567 = vrot.lane.b32.xlu0 %v6481, 96
    %v6568 = vpop.permute.xlu0 %6567
    %6569 = vrot.lane.b32.xlu0 %v6483, 96
    %v6570 = vpop.permute.xlu0 %6569
    %6571 = vrot.lane.b32.xlu0 %v6486, 96
    %v6572 = vpop.permute.xlu0 %6571
    %v6573 = vsel %vm566, %v6564, 0
    %v6575 = vsel %vm566, %v6566, 0
    %v6577 = vsel %vm566, %v6568, 0
    %v6579 = vsel %vm566, %v6570, 0
    %v6581 = vsel %vm566, %v6572, 0
    %6583 = vmatpush.xpose.msra.mxu0 0.0
    %6584 = vmatpush.xpose.msra.mxu0 0.0
    %6585 = vmatpush.xpose.msra.mxu0 0.0
    %6586 = vmatpush.xpose.msra.mxu0 0.0
    %6587 = vmatpush.xpose.msra.mxu0 0.0
    %6588 = vmatpush.xpose.msra.mxu0 0.0
    %6589 = vmatpush.xpose.msra.mxu0 0.0
    %6590 = vmatpush.xpose.msra.mxu0 0.0
    %6591 = vmatpush.xpose.msra.mxu0 0.0
    %6592 = vmatpush.xpose.msra.mxu0 0.0
    %6593 = vmatpush.xpose.msra.mxu0 0.0
    %6594 = vmatpush.xpose.msra.mxu0 0.0
    %6595 = vmatpush.xpose.msra.mxu0 0.0
    %6596 = vmatpush.xpose.msra.mxu0 %v6581
    %6597 = vmatpush.xpose.msra.mxu0 %v6579
    %6598 = vmatpush.xpose.msra.mxu0 %v6577
    %6599 = vmatmul.f32.gmra.mxu0 %v6573
    %v6600 = vpop.f32.mrf.mxu0
    %v6601 = vadd.f32 0.0, %v6600
    %6602 = vmatmul.f32.gmra.mxu0 %v6575
    %v6603 = vpop.f32.mrf.mxu0
    %v6604 = vadd.f32 0.0, %v6603
    %6605 = vdwg.mxu0
    %6606 = vrot.lane.b32.xlu0 %v6283, 64
    %v6607 = vpop.permute.xlu0 %6606
    %6608 = vrot.lane.b32.xlu0 %v6285, 64
    %v6609 = vpop.permute.xlu0 %6608
    %6610 = vrot.lane.b32.xlu0 %v6481, 64
    %v6611 = vpop.permute.xlu0 %6610
    %6612 = vrot.lane.b32.xlu0 %v6483, 64
    %v6613 = vpop.permute.xlu0 %6612
    %6614 = vrot.lane.b32.xlu0 %v6486, 64
    %v6615 = vpop.permute.xlu0 %6614
    %v6616 = vsel %vm566, %v6607, 0
    %v6618 = vsel %vm566, %v6609, 0
    %v6620 = vsel %vm566, %v6611, 0
    %v6622 = vsel %vm566, %v6613, 0
    %v6624 = vsel %vm566, %v6615, 0
    %6626 = vmatpush.xpose.msra.mxu0 0.0
    %6627 = vmatpush.xpose.msra.mxu0 0.0
    %6628 = vmatpush.xpose.msra.mxu0 0.0
    %6629 = vmatpush.xpose.msra.mxu0 0.0
    %6630 = vmatpush.xpose.msra.mxu0 0.0
    %6631 = vmatpush.xpose.msra.mxu0 0.0
    %6632 = vmatpush.xpose.msra.mxu0 0.0
    %6633 = vmatpush.xpose.msra.mxu0 0.0
    %6634 = vmatpush.xpose.msra.mxu0 0.0
    %6635 = vmatpush.xpose.msra.mxu0 0.0
    %6636 = vmatpush.xpose.msra.mxu0 0.0
    %6637 = vmatpush.xpose.msra.mxu0 0.0
    %6638 = vmatpush.xpose.msra.mxu0 0.0
    %6639 = vmatpush.xpose.msra.mxu0 %v6624
    %6640 = vmatpush.xpose.msra.mxu0 %v6622
    %6641 = vmatpush.xpose.msra.mxu0 %v6620
    %6642 = vmatmul.f32.gmra.mxu0 %v6616
    %v6643 = vpop.f32.mrf.mxu0
    %v6644 = vadd.f32 0.0, %v6643
    %6645 = vmatmul.f32.gmra.mxu0 %v6618
    %v6646 = vpop.f32.mrf.mxu0
    %v6647 = vadd.f32 0.0, %v6646
    %6648 = vdwg.mxu0
    %6649 = vrot.lane.b32.xlu0 %v6283, 32
    %v6650 = vpop.permute.xlu0 %6649
    %6651 = vrot.lane.b32.xlu0 %v6285, 32
    %v6652 = vpop.permute.xlu0 %6651
    %6653 = vrot.lane.b32.xlu0 %v6481, 32
    %v6654 = vpop.permute.xlu0 %6653
    %6655 = vrot.lane.b32.xlu0 %v6483, 32
    %v6656 = vpop.permute.xlu0 %6655
    %6657 = vrot.lane.b32.xlu0 %v6486, 32
    %v6658 = vpop.permute.xlu0 %6657
    %v6659 = vsel %vm566, %v6650, 0
    %v6661 = vsel %vm566, %v6652, 0
    %v6663 = vsel %vm566, %v6654, 0
    %v6665 = vsel %vm566, %v6656, 0
    %v6667 = vsel %vm566, %v6658, 0
    %6669 = vmatpush.xpose.msra.mxu0 0.0
    %6670 = vmatpush.xpose.msra.mxu0 0.0
    %6671 = vmatpush.xpose.msra.mxu0 0.0
    %6672 = vmatpush.xpose.msra.mxu0 0.0
    %6673 = vmatpush.xpose.msra.mxu0 0.0
    %6674 = vmatpush.xpose.msra.mxu0 0.0
    %6675 = vmatpush.xpose.msra.mxu0 0.0
    %6676 = vmatpush.xpose.msra.mxu0 0.0
    %6677 = vmatpush.xpose.msra.mxu0 0.0
    %6678 = vmatpush.xpose.msra.mxu0 0.0
    %6679 = vmatpush.xpose.msra.mxu0 0.0
    %6680 = vmatpush.xpose.msra.mxu0 0.0
    %6681 = vmatpush.xpose.msra.mxu0 0.0
    %6682 = vmatpush.xpose.msra.mxu0 %v6667
    %6683 = vmatpush.xpose.msra.mxu0 %v6665
    %6684 = vmatpush.xpose.msra.mxu0 %v6663
    %6685 = vmatmul.f32.gmra.mxu0 %v6659
    %v6686 = vpop.f32.mrf.mxu0
    %v6687 = vadd.f32 0.0, %v6686
    %6688 = vmatmul.f32.gmra.mxu0 %v6661
    %v6689 = vpop.f32.mrf.mxu0
    %v6690 = vadd.f32 0.0, %v6689
    %6691 = vdwg.mxu0
    %v6693 = vsel %vm566, %v6297, 0
    %v6696 = vsel %vm566, %v6299, 0
    %v6699 = vsel %vm566, %v6499, 0
    %v6702 = vsel %vm566, %v6501, 0
    %v6705 = vsel %vm566, %v6504, 0
    %6707 = vmatpush.xpose.msra.mxu0 0.0
    %6708 = vmatpush.xpose.msra.mxu0 0.0
    %6709 = vmatpush.xpose.msra.mxu0 0.0
    %6710 = vmatpush.xpose.msra.mxu0 0.0
    %6711 = vmatpush.xpose.msra.mxu0 0.0
    %6712 = vmatpush.xpose.msra.mxu0 0.0
    %6713 = vmatpush.xpose.msra.mxu0 0.0
    %6714 = vmatpush.xpose.msra.mxu0 0.0
    %6715 = vmatpush.xpose.msra.mxu0 0.0
    %6716 = vmatpush.xpose.msra.mxu0 0.0
    %6717 = vmatpush.xpose.msra.mxu0 0.0
    %6718 = vmatpush.xpose.msra.mxu0 0.0
    %6719 = vmatpush.xpose.msra.mxu0 0.0
    %6720 = vmatpush.xpose.msra.mxu0 %v6705
    %6721 = vmatpush.xpose.msra.mxu0 %v6702
    %6722 = vmatpush.xpose.msra.mxu0 %v6699
    %6723 = vmatmul.f32.gmra.mxu0 %v6693
    %v6724 = vpop.f32.mrf.mxu0
    %v6725 = vadd.f32 0.0, %v6724
    %6726 = vmatmul.f32.gmra.mxu0 %v6696
    %v6727 = vpop.f32.mrf.mxu0
    %v6728 = vadd.f32 0.0, %v6727
    %6729 = vdwg.mxu0
    %6730 = vrot.lane.b32.xlu0 %v6297, 96
    %v6731 = vpop.permute.xlu0 %6730
    %6732 = vrot.lane.b32.xlu0 %v6299, 96
    %v6733 = vpop.permute.xlu0 %6732
    %6734 = vrot.lane.b32.xlu0 %v6499, 96
    %v6735 = vpop.permute.xlu0 %6734
    %6736 = vrot.lane.b32.xlu0 %v6501, 96
    %v6737 = vpop.permute.xlu0 %6736
    %6738 = vrot.lane.b32.xlu0 %v6504, 96
    %v6739 = vpop.permute.xlu0 %6738
    %v6740 = vsel %vm566, %v6731, 0
    %v6742 = vsel %vm566, %v6733, 0
    %v6744 = vsel %vm566, %v6735, 0
    %v6746 = vsel %vm566, %v6737, 0
    %v6748 = vsel %vm566, %v6739, 0
    %6750 = vmatpush.xpose.msra.mxu0 0.0
    %6751 = vmatpush.xpose.msra.mxu0 0.0
    %6752 = vmatpush.xpose.msra.mxu0 0.0
    %6753 = vmatpush.xpose.msra.mxu0 0.0
    %6754 = vmatpush.xpose.msra.mxu0 0.0
    %6755 = vmatpush.xpose.msra.mxu0 0.0
    %6756 = vmatpush.xpose.msra.mxu0 0.0
    %6757 = vmatpush.xpose.msra.mxu0 0.0
    %6758 = vmatpush.xpose.msra.mxu0 0.0
    %6759 = vmatpush.xpose.msra.mxu0 0.0
    %6760 = vmatpush.xpose.msra.mxu0 0.0
    %6761 = vmatpush.xpose.msra.mxu0 0.0
    %6762 = vmatpush.xpose.msra.mxu0 0.0
    %6763 = vmatpush.xpose.msra.mxu0 %v6748
    %6764 = vmatpush.xpose.msra.mxu0 %v6746
    %6765 = vmatpush.xpose.msra.mxu0 %v6744
    %6766 = vmatmul.f32.gmra.mxu0 %v6740
    %v6767 = vpop.f32.mrf.mxu0
    %v6768 = vadd.f32 0.0, %v6767
    %6769 = vmatmul.f32.gmra.mxu0 %v6742
    %v6770 = vpop.f32.mrf.mxu0
    %v6771 = vadd.f32 0.0, %v6770
    %6772 = vdwg.mxu0
    %v6773 = vmul.f32 %v6558, 0.24253562
    %v6774 = vmul.f32 %v6561, 0.24253562
    %v6775 = vmul.f32 %v6601, 0.24253562
    %v6776 = vmul.f32 %v6604, 0.24253562
    %v6777 = vmul.f32 %v6644, 0.24253562
    %v6778 = vmul.f32 %v6647, 0.24253562
    %v6779 = vmul.f32 %v6687, 0.24253562
    %v6780 = vmul.f32 %v6690, 0.24253562
    %v6781 = vmul.f32 %v6725, 0.24253562
    %v6782 = vmul.f32 %v6728, 0.24253562
    %v6783 = vmul.f32 %v6768, 0.24253562
    %v6784 = vmul.f32 %v6771, 0.24253562
    %v6785 = vadd.f32 %v6773, %v208
    %v6786 = vadd.f32 %v6774, %v209
    %v6787 = vadd.f32 %v6775, %v210
    %v6788 = vadd.f32 %v6776, %v211
    %v6789 = vadd.f32 %v6777, %v212
    %v6790 = vadd.f32 %v6778, %v213
    %v6791 = vadd.f32 %v6779, %v214
    %v6792 = vadd.f32 %v6780, %v215
    %v6793 = vadd.f32 %v6781, %v216
    %v6794 = vadd.f32 %v6782, %v217
    %v6795 = vadd.f32 %v6783, %v218
    %v6796 = vadd.f32 %v6784, %v219
    %v6797 = vsel %vm2018, %v6785, -inf
    %6798 = vmax.xlane.f32.xlu0 %v6797
    %v6799 = vpop.xlane.xlu0 %6798
    %v6800 = vsel %vm2018, %v6786, -inf
    %6801 = vmax.xlane.f32.xlu0 %v6800
    %v6802 = vpop.xlane.xlu0 %6801
    %v6803 = vsel %vm2018, %v6787, -inf
    %6804 = vmax.xlane.f32.xlu0 %v6803
    %v6805 = vpop.xlane.xlu0 %6804
    %v6806 = vsel %vm2018, %v6788, -inf
    %6807 = vmax.xlane.f32.xlu0 %v6806
    %v6808 = vpop.xlane.xlu0 %6807
    %v6809 = vsel %vm2018, %v6789, -inf
    %6810 = vmax.xlane.f32.xlu0 %v6809
    %v6811 = vpop.xlane.xlu0 %6810
    %v6812 = vsel %vm2018, %v6790, -inf
    %6813 = vmax.xlane.f32.xlu0 %v6812
    %v6814 = vpop.xlane.xlu0 %6813
    %v6815 = vsel %vm2018, %v6791, -inf
    %6816 = vmax.xlane.f32.xlu0 %v6815
    %v6817 = vpop.xlane.xlu0 %6816
    %v6818 = vsel %vm2018, %v6792, -inf
    %6819 = vmax.xlane.f32.xlu0 %v6818
    %v6820 = vpop.xlane.xlu0 %6819
    %v6821 = vsel %vm2018, %v6793, -inf
    %6822 = vmax.xlane.f32.xlu0 %v6821
    %v6823 = vpop.xlane.xlu0 %6822
    %v6824 = vsel %vm2018, %v6794, -inf
    %6825 = vmax.xlane.f32.xlu0 %v6824
    %v6826 = vpop.xlane.xlu0 %6825
    %v6827 = vsel %vm2018, %v6795, -inf
    %6828 = vmax.xlane.f32.xlu0 %v6827
    %v6829 = vpop.xlane.xlu0 %6828
    %v6830 = vsel %vm2018, %v6796, -inf
    %6831 = vmax.xlane.f32.xlu0 %v6830
    %v6832 = vpop.xlane.xlu0 %6831
    %v6833 = vsub.f32 %v6785, %v6799
    %v6834 = vsub.f32 %v6786, %v6802
    %v6835 = vsub.f32 %v6787, %v6805
    %v6836 = vsub.f32 %v6788, %v6808
    %v6837 = vsub.f32 %v6789, %v6811
    %v6838 = vsub.f32 %v6790, %v6814
    %v6839 = vsub.f32 %v6791, %v6817
    %v6840 = vsub.f32 %v6792, %v6820
    %v6841 = vsub.f32 %v6793, %v6823
    %v6842 = vsub.f32 %v6794, %v6826
    %v6843 = vsub.f32 %v6795, %v6829
    %v6844 = vsub.f32 %v6796, %v6832
    %v6845 = vmul.f32 %v6833, 1.442695
    %v6846 = vpow.pop %v6845
    %v6847 = vmul.f32 %v6834, 1.442695
    %v6848 = vpow.pop %v6847
    %v6849 = vmul.f32 %v6835, 1.442695
    %v6850 = vpow.pop %v6849
    %v6851 = vmul.f32 %v6836, 1.442695
    %v6852 = vpow.pop %v6851
    %v6853 = vmul.f32 %v6837, 1.442695
    %v6854 = vpow.pop %v6853
    %v6855 = vmul.f32 %v6838, 1.442695
    %v6856 = vpow.pop %v6855
    %v6857 = vmul.f32 %v6839, 1.442695
    %v6858 = vpow.pop %v6857
    %v6859 = vmul.f32 %v6840, 1.442695
    %v6860 = vpow.pop %v6859
    %v6861 = vmul.f32 %v6841, 1.442695
    %v6862 = vpow.pop %v6861
    %v6863 = vmul.f32 %v6842, 1.442695
    %v6864 = vpow.pop %v6863
    %v6865 = vmul.f32 %v6843, 1.442695
    %v6866 = vpow.pop %v6865
    %v6867 = vmul.f32 %v6844, 1.442695
    %v6868 = vpow.pop %v6867
    %v6869 = vsel %vm2018, %v6846, 0.0
    %6870 = vadd.xlane.f32.xlu0 %v6869
    %v6871 = vpop.xlane.xlu0 %6870
    %v6872 = vsel %vm2018, %v6848, 0.0
    %6873 = vadd.xlane.f32.xlu0 %v6872
    %v6874 = vpop.xlane.xlu0 %6873
    %v6875 = vsel %vm2018, %v6850, 0.0
    %6876 = vadd.xlane.f32.xlu0 %v6875
    %v6877 = vpop.xlane.xlu0 %6876
    %v6878 = vsel %vm2018, %v6852, 0.0
    %6879 = vadd.xlane.f32.xlu0 %v6878
    %v6880 = vpop.xlane.xlu0 %6879
    %v6881 = vsel %vm2018, %v6854, 0.0
    %6882 = vadd.xlane.f32.xlu0 %v6881
    %v6883 = vpop.xlane.xlu0 %6882
    %v6884 = vsel %vm2018, %v6856, 0.0
    %6885 = vadd.xlane.f32.xlu0 %v6884
    %v6886 = vpop.xlane.xlu0 %6885
    %v6887 = vsel %vm2018, %v6858, 0.0
    %6888 = vadd.xlane.f32.xlu0 %v6887
    %v6889 = vpop.xlane.xlu0 %6888
    %v6890 = vsel %vm2018, %v6860, 0.0
    %6891 = vadd.xlane.f32.xlu0 %v6890
    %v6892 = vpop.xlane.xlu0 %6891
    %v6893 = vsel %vm2018, %v6862, 0.0
    %6894 = vadd.xlane.f32.xlu0 %v6893
    %v6895 = vpop.xlane.xlu0 %6894
    %v6896 = vsel %vm2018, %v6864, 0.0
    %6897 = vadd.xlane.f32.xlu0 %v6896
    %v6898 = vpop.xlane.xlu0 %6897
    %v6899 = vsel %vm2018, %v6866, 0.0
    %6900 = vadd.xlane.f32.xlu0 %v6899
    %v6901 = vpop.xlane.xlu0 %6900
    %v6902 = vsel %vm2018, %v6868, 0.0
    %6903 = vadd.xlane.f32.xlu0 %v6902
    %v6904 = vpop.xlane.xlu0 %6903
    %v6905 = vrcp.pop %v6871
    %v6906 = vrcp.pop %v6874
    %v6907 = vrcp.pop %v6877
    %v6908 = vrcp.pop %v6880
    %v6909 = vrcp.pop %v6883
    %v6910 = vrcp.pop %v6886
    %v6911 = vrcp.pop %v6889
    %v6912 = vrcp.pop %v6892
    %v6913 = vrcp.pop %v6895
    %v6914 = vrcp.pop %v6898
    %v6915 = vrcp.pop %v6901
    %v6916 = vrcp.pop %v6904
    %v6917 = vmul.f32 %v6846, %v6905
    %v6918 = vmul.f32 %v6848, %v6906
    %v6919 = vmul.f32 %v6850, %v6907
    %v6920 = vmul.f32 %v6852, %v6908
    %v6921 = vmul.f32 %v6854, %v6909
    %v6922 = vmul.f32 %v6856, %v6910
    %v6923 = vmul.f32 %v6858, %v6911
    %v6924 = vmul.f32 %v6860, %v6912
    %v6925 = vmul.f32 %v6862, %v6913
    %v6926 = vmul.f32 %v6864, %v6914
    %v6927 = vmul.f32 %v6866, %v6915
    %v6928 = vmul.f32 %v6868, %v6916
    %6929 = vrot.lane.b32.xlu0 %v6499, 64
    %v6930 = vpop.permute.xlu0 %6929
    %6931 = vrot.lane.b32.xlu0 %v6501, 64
    %v6932 = vpop.permute.xlu0 %6931
    %6933 = vrot.lane.b32.xlu0 %v6504, 64
    %v6934 = vpop.permute.xlu0 %6933
    %v6938 = vsel %vm2018, %v6917, 0
    %v6941 = vsel %vm2018, %v6918, 0
    %v6943 = vsel %vm2165, %v6934, 0
    %6945 = vmatpush.msra.mxu0 0.0
    %6946 = vmatpush.msra.mxu0 0.0
    %6947 = vmatpush.msra.mxu0 0.0
    %6948 = vmatpush.msra.mxu0 0.0
    %6949 = vmatpush.msra.mxu0 0.0
    %6950 = vmatpush.msra.mxu0 0.0
    %6951 = vmatpush.msra.mxu0 0.0
    %6952 = vmatpush.msra.mxu0 0.0
    %6953 = vmatpush.msra.mxu0 0.0
    %6954 = vmatpush.msra.mxu0 0.0
    %6955 = vmatpush.msra.mxu0 0.0
    %6956 = vmatpush.msra.mxu0 0.0
    %6957 = vmatpush.msra.mxu0 0.0
    %6958 = vmatpush.msra.mxu0 %v6943
    %6959 = vmatpush.msra.mxu0 %v6932
    %6960 = vmatpush.msra.mxu0 %v6930
    %6961 = vmatmul.f32.gmra.mxu0 %v6938
    %v6962 = vpop.f32.mrf.mxu0
    %v6963 = vadd.f32 0.0, %v6962
    %6964 = vmatmul.f32.gmra.mxu0 %v6941
    %v6965 = vpop.f32.mrf.mxu0
    %v6966 = vadd.f32 0.0, %v6965
    %6967 = vdwg.mxu0
    %6968 = vrot.lane.b32.xlu0 %v6499, 32
    %v6969 = vpop.permute.xlu0 %6968
    %6970 = vrot.lane.b32.xlu0 %v6501, 32
    %v6971 = vpop.permute.xlu0 %6970
    %6972 = vrot.lane.b32.xlu0 %v6504, 32
    %v6973 = vpop.permute.xlu0 %6972
    %v6977 = vsel %vm2018, %v6919, 0
    %v6980 = vsel %vm2018, %v6920, 0
    %v6982 = vsel %vm2165, %v6973, 0
    %6984 = vmatpush.msra.mxu0 0.0
    %6985 = vmatpush.msra.mxu0 0.0
    %6986 = vmatpush.msra.mxu0 0.0
    %6987 = vmatpush.msra.mxu0 0.0
    %6988 = vmatpush.msra.mxu0 0.0
    %6989 = vmatpush.msra.mxu0 0.0
    %6990 = vmatpush.msra.mxu0 0.0
    %6991 = vmatpush.msra.mxu0 0.0
    %6992 = vmatpush.msra.mxu0 0.0
    %6993 = vmatpush.msra.mxu0 0.0
    %6994 = vmatpush.msra.mxu0 0.0
    %6995 = vmatpush.msra.mxu0 0.0
    %6996 = vmatpush.msra.mxu0 0.0
    %6997 = vmatpush.msra.mxu0 %v6982
    %6998 = vmatpush.msra.mxu0 %v6971
    %6999 = vmatpush.msra.mxu0 %v6969
    %7000 = vmatmul.f32.gmra.mxu0 %v6977
    %v7001 = vpop.f32.mrf.mxu0
    %v7002 = vadd.f32 0.0, %v7001
    %7003 = vmatmul.f32.gmra.mxu0 %v6980
    %v7004 = vpop.f32.mrf.mxu0
    %v7005 = vadd.f32 0.0, %v7004
    %7006 = vdwg.mxu0
    %v7008 = vsel %vm2018, %v6921, 0
    %v7011 = vsel %vm2018, %v6922, 0
    %v7014 = vsel %vm2165, %v6522, 0
    %7016 = vmatpush.msra.mxu0 0.0
    %7017 = vmatpush.msra.mxu0 0.0
    %7018 = vmatpush.msra.mxu0 0.0
    %7019 = vmatpush.msra.mxu0 0.0
    %7020 = vmatpush.msra.mxu0 0.0
    %7021 = vmatpush.msra.mxu0 0.0
    %7022 = vmatpush.msra.mxu0 0.0
    %7023 = vmatpush.msra.mxu0 0.0
    %7024 = vmatpush.msra.mxu0 0.0
    %7025 = vmatpush.msra.mxu0 0.0
    %7026 = vmatpush.msra.mxu0 0.0
    %7027 = vmatpush.msra.mxu0 0.0
    %7028 = vmatpush.msra.mxu0 0.0
    %7029 = vmatpush.msra.mxu0 %v7014
    %7030 = vmatpush.msra.mxu0 %v6519
    %7031 = vmatpush.msra.mxu0 %v6517
    %7032 = vmatmul.f32.gmra.mxu0 %v7008
    %v7033 = vpop.f32.mrf.mxu0
    %v7034 = vadd.f32 0.0, %v7033
    %7035 = vmatmul.f32.gmra.mxu0 %v7011
    %v7036 = vpop.f32.mrf.mxu0
    %v7037 = vadd.f32 0.0, %v7036
    %7038 = vdwg.mxu0
    %7041 = vrot.lane.b32.xlu0 %v6517, 96
    %v7042 = vpop.permute.xlu0 %7041
    %7043 = vrot.lane.b32.xlu0 %v6519, 96
    %v7044 = vpop.permute.xlu0 %7043
    %7045 = vrot.lane.b32.xlu0 %v6522, 96
    %v7046 = vpop.permute.xlu0 %7045
    %v7050 = vsel %vm2018, %v6923, 0
    %v7053 = vsel %vm2018, %v6924, 0
    %v7055 = vsel %vm2165, %v7046, 0
    %7057 = vmatpush.msra.mxu0 0.0
    %7058 = vmatpush.msra.mxu0 0.0
    %7059 = vmatpush.msra.mxu0 0.0
    %7060 = vmatpush.msra.mxu0 0.0
    %7061 = vmatpush.msra.mxu0 0.0
    %7062 = vmatpush.msra.mxu0 0.0
    %7063 = vmatpush.msra.mxu0 0.0
    %7064 = vmatpush.msra.mxu0 0.0
    %7065 = vmatpush.msra.mxu0 0.0
    %7066 = vmatpush.msra.mxu0 0.0
    %7067 = vmatpush.msra.mxu0 0.0
    %7068 = vmatpush.msra.mxu0 0.0
    %7069 = vmatpush.msra.mxu0 0.0
    %7070 = vmatpush.msra.mxu0 %v7055
    %7071 = vmatpush.msra.mxu0 %v7044
    %7072 = vmatpush.msra.mxu0 %v7042
    %7073 = vmatmul.f32.gmra.mxu0 %v7050
    %v7074 = vpop.f32.mrf.mxu0
    %v7075 = vadd.f32 0.0, %v7074
    %7076 = vmatmul.f32.gmra.mxu0 %v7053
    %v7077 = vpop.f32.mrf.mxu0
    %v7078 = vadd.f32 0.0, %v7077
    %7079 = vdwg.mxu0
    %7080 = vrot.lane.b32.xlu0 %v6517, 64
    %v7081 = vpop.permute.xlu0 %7080
    %7082 = vrot.lane.b32.xlu0 %v6519, 64
    %v7083 = vpop.permute.xlu0 %7082
    %7084 = vrot.lane.b32.xlu0 %v6522, 64
    %v7085 = vpop.permute.xlu0 %7084
    %v7089 = vsel %vm2018, %v6925, 0
    %v7092 = vsel %vm2018, %v6926, 0
    %v7094 = vsel %vm2165, %v7085, 0
    %7096 = vmatpush.msra.mxu0 0.0
    %7097 = vmatpush.msra.mxu0 0.0
    %7098 = vmatpush.msra.mxu0 0.0
    %7099 = vmatpush.msra.mxu0 0.0
    %7100 = vmatpush.msra.mxu0 0.0
    %7101 = vmatpush.msra.mxu0 0.0
    %7102 = vmatpush.msra.mxu0 0.0
    %7103 = vmatpush.msra.mxu0 0.0
    %7104 = vmatpush.msra.mxu0 0.0
    %7105 = vmatpush.msra.mxu0 0.0
    %7106 = vmatpush.msra.mxu0 0.0
    %7107 = vmatpush.msra.mxu0 0.0
    %7108 = vmatpush.msra.mxu0 0.0
    %7109 = vmatpush.msra.mxu0 %v7094
    %7110 = vmatpush.msra.mxu0 %v7083
    %7111 = vmatpush.msra.mxu0 %v7081
    %7112 = vmatmul.f32.gmra.mxu0 %v7089
    %v7113 = vpop.f32.mrf.mxu0
    %v7114 = vadd.f32 0.0, %v7113
    %7115 = vmatmul.f32.gmra.mxu0 %v7092
    %v7116 = vpop.f32.mrf.mxu0
    %v7117 = vadd.f32 0.0, %v7116
    %7118 = vdwg.mxu0
    %7119 = vrot.lane.b32.xlu0 %v6517, 32
    %v7120 = vpop.permute.xlu0 %7119
    %7121 = vrot.lane.b32.xlu0 %v6519, 32
    %v7122 = vpop.permute.xlu0 %7121
    %7123 = vrot.lane.b32.xlu0 %v6522, 32
    %v7124 = vpop.permute.xlu0 %7123
    %v7128 = vsel %vm2018, %v6927, 0
    %v7131 = vsel %vm2018, %v6928, 0
    %v7133 = vsel %vm2165, %v7124, 0
    %7135 = vmatpush.msra.mxu0 0.0
    %7136 = vmatpush.msra.mxu0 0.0
    %7137 = vmatpush.msra.mxu0 0.0
    %7138 = vmatpush.msra.mxu0 0.0
    %7139 = vmatpush.msra.mxu0 0.0
    %7140 = vmatpush.msra.mxu0 0.0
    %7141 = vmatpush.msra.mxu0 0.0
    %7142 = vmatpush.msra.mxu0 0.0
    %7143 = vmatpush.msra.mxu0 0.0
    %7144 = vmatpush.msra.mxu0 0.0
    %7145 = vmatpush.msra.mxu0 0.0
    %7146 = vmatpush.msra.mxu0 0.0
    %7147 = vmatpush.msra.mxu0 0.0
    %7148 = vmatpush.msra.mxu0 %v7133
    %7149 = vmatpush.msra.mxu0 %v7122
    %7150 = vmatpush.msra.mxu0 %v7120
    %7151 = vmatmul.f32.gmra.mxu0 %v7128
    %v7152 = vpop.f32.mrf.mxu0
    %v7153 = vadd.f32 0.0, %v7152
    %7154 = vmatmul.f32.gmra.mxu0 %v7131
    %v7155 = vpop.f32.mrf.mxu0
    %v7156 = vadd.f32 0.0, %v7155
    %7157 = vdwg.mxu0
    %7160 = vrot.lane.b32.xlu0 %v7002, 32
    %v7161 = vpop.permute.xlu0 %7160
    %7162 = vrot.lane.b32.xlu0 %v7005, 32
    %v7163 = vpop.permute.xlu0 %7162
    %7168 = vrot.lane.b32.xlu0 %v7034, 64
    %v7169 = vpop.permute.xlu0 %7168
    %7170 = vrot.lane.b32.xlu0 %v7037, 64
    %v7171 = vpop.permute.xlu0 %7170
    %7176 = vrot.lane.b32.xlu0 %v7075, 96
    %v7177 = vpop.permute.xlu0 %7176
    %7178 = vrot.lane.b32.xlu0 %v7078, 96
    %v7179 = vpop.permute.xlu0 %7178
    %7184 = vrot.lane.b32.xlu0 %v7153, 32
    %v7185 = vpop.permute.xlu0 %7184
    %7186 = vrot.lane.b32.xlu0 %v7156, 32
    %v7187 = vpop.permute.xlu0 %7186
    %v7190 = vsel %vm566, %v6963, %v7161
    %v7191 = vsel %vm566, %v6966, %v7163
    %v7192 = vsel %vm1190, %v7190, %v7169
    %v7193 = vsel %vm1190, %v7191, %v7171
    %v7194 = vsel %vm1193, %v7192, %v7177
    %v7195 = vsel %vm1193, %v7193, %v7179
    %v7196 = vsel %vm566, %v7114, %v7185
    %v7197 = vsel %vm566, %v7117, %v7187
    %v7198 = vpack.c.bf16 %v7195, %v7194
    %v7199 = vpack.c.bf16 %v7197, %v7196
    %s7200 = scalar_lea.vmem [#allocation5], 288
    %v7201 = vld [vmem:[%s7200] sm:$0xf]
    %v7202 = vld [vmem:[%s7200 + $0x4] sm:$0xf]
    %v7203 = vld [vmem:[%s7200 + $0x8] sm:$0xf]
    %v7204 = vld [vmem:[%s7200 + $0xc] sm:$0xf]
    %v7205 = vld [vmem:[%s7200 + $0x10] sm:$0xf]
    %v7206 = vld [vmem:[%s7200 + $0x14] sm:$0xf]
    %v7207 = vld [vmem:[%s7200 + $0x18] sm:$0xf]
    %v7208 = vld [vmem:[%s7200 + $0x1c] sm:$0xf]
    %v7209 = vld [vmem:[%s7200 + $0x20] sm:$0xf]
    %v7210 = vld [vmem:[%s7200 + $0x24] sm:$0xf]
    %v7211 = vld [vmem:[%s7200 + $0x28] sm:$0xf]
    %v7212 = vld [vmem:[%s7200 + $0x2c] sm:$0xf]
    %v7213 = vld [vmem:[%s7200 + $0x30] sm:$0xf]
    %v7214 = vld [vmem:[%s7200 + $0x34] sm:$0xf]
    %v7215 = vld [vmem:[%s7200 + $0x38] sm:$0xf]
    %v7216 = vld [vmem:[%s7200 + $0x3c] sm:$0xf]
    %v7217 = vld [vmem:[%s7200 + $0x40] sm:$0xf]
    %v7218 = vld [vmem:[%s7200 + $0x44] sm:$0xf]
    %v7219 = vld [vmem:[%s7200 + $0x48] sm:$0xf]
    %v7220 = vld [vmem:[%s7200 + $0x4c] sm:$0xf]
    %v7221 = vld [vmem:[%s7200 + $0x50] sm:$0xf]
    %v7222 = vld [vmem:[%s7200 + $0x54] sm:$0xf]
    %v7223 = vld [vmem:[%s7200 + $0x58] sm:$0xf]
    %v7224 = vld [vmem:[%s7200 + $0x5c] sm:$0xf]
    %s7225 = scalar_lea.vmem [#allocation16], 10
    %v7226 = vld [vmem:[%s7225] sm:$0x1]
    %v7228 = vperm.slane %v7226, 0
    %v7254 = vunpack.c.l.b16 %v7201
    %v7255 = vunpack.c.l.b16 %v7202
    %v7256 = vunpack.c.l.b16 %v7203
    %v7257 = vunpack.c.l.b16 %v7204
    %v7258 = vunpack.c.l.b16 %v7205
    %v7259 = vunpack.c.l.b16 %v7206
    %v7260 = vunpack.c.l.b16 %v7207
    %v7261 = vunpack.c.l.b16 %v7208
    %v7262 = vunpack.c.l.b16 %v7209
    %v7263 = vunpack.c.l.b16 %v7210
    %v7264 = vunpack.c.l.b16 %v7211
    %v7265 = vunpack.c.l.b16 %v7212
    %v7266 = vunpack.c.l.b16 %v7213
    %v7267 = vunpack.c.l.b16 %v7214
    %v7268 = vunpack.c.l.b16 %v7215
    %v7269 = vunpack.c.l.b16 %v7216
    %v7270 = vunpack.c.l.b16 %v7217
    %v7271 = vunpack.c.l.b16 %v7218
    %v7272 = vunpack.c.l.b16 %v7219
    %v7273 = vunpack.c.l.b16 %v7220
    %v7274 = vunpack.c.l.b16 %v7221
    %v7275 = vunpack.c.l.b16 %v7222
    %v7276 = vunpack.c.l.b16 %v7223
    %v7277 = vunpack.c.l.b16 %v7224
    %v7278 = vpack.c.b16 %v7255, %v7254
    %v7279 = vpack.c.b16 %v7257, %v7256
    %v7280 = vpack.c.b16 %v7259, %v7258
    %v7281 = vpack.c.b16 %v7261, %v7260
    %v7282 = vpack.c.b16 %v7263, %v7262
    %v7283 = vpack.c.b16 %v7265, %v7264
    %v7284 = vpack.c.b16 %v7267, %v7266
    %v7285 = vpack.c.b16 %v7269, %v7268
    %v7286 = vpack.c.b16 %v7271, %v7270
    %v7287 = vpack.c.b16 %v7273, %v7272
    %v7288 = vpack.c.b16 %v7275, %v7274
    %v7289 = vpack.c.b16 %v7277, %v7276
    %v7303 = vsel %vm1190, %v7199, 0
    %7305 = vmatpush.bf16.msra.mxu0 %v7285
    %7306 = vmatpush.bf16.msra.mxu0 %v7284
    %7307 = vmatpush.bf16.msra.mxu0 %v7283
    %7308 = vmatpush.bf16.msra.mxu0 %v7282
    %7309 = vmatpush.bf16.msra.mxu0 %v7281
    %7310 = vmatpush.bf16.msra.mxu0 %v7280
    %7311 = vmatpush.bf16.msra.mxu0 %v7279
    %7312 = vmatpush.bf16.msra.mxu0 %v7278
    %7313 = vmatmul.bf16.gmra.mxu0 %v7198
    %v7314 = vpop.f32.mrf.mxu0
    %v7315 = vadd.f32 %v7228, %v7314
    %v7316 = vpop.f32.mrf.mxu0
    %v7317 = vadd.f32 %v7228, %v7316
    %7318 = vdwg.mxu0
    %7319 = vmatpush.bf16.msra.mxu0 0
    %7320 = vmatpush.bf16.msra.mxu0 0
    %7321 = vmatpush.bf16.msra.mxu0 0
    %7322 = vmatpush.bf16.msra.mxu0 0
    %7323 = vmatpush.bf16.msra.mxu0 %v7289
    %7324 = vmatpush.bf16.msra.mxu0 %v7288
    %7325 = vmatpush.bf16.msra.mxu0 %v7287
    %7326 = vmatpush.bf16.msra.mxu0 %v7286
    %7327 = vmatmul.bf16.gmra.mxu0 %v7303
    %v7328 = vpop.f32.mrf.mxu0
    %v7329 = vadd.f32 %v7315, %v7328
    %v7330 = vpop.f32.mrf.mxu0
    %v7331 = vadd.f32 %v7317, %v7330
    %7332 = vdwg.mxu0
    %v7333 = vadd.f32 %v6166, %v7329
    %v7334 = vadd.f32 %v6167, %v7331
    %7335 = vadd.xlane.f32.xlu0 %v7333
    %v7336 = vpop.xlane.xlu0 %7335
    %7337 = vadd.xlane.f32.xlu0 %v7334
    %v7338 = vpop.xlane.xlu0 %7337
    %v7339 = vmul.f32 %v7336, 0.009803922
    %v7340 = vmul.f32 %v7338, 0.009803922
    %v7341 = vsub.f32 %v7333, %v7339
    %v7342 = vsub.f32 %v7334, %v7340
    %v7343 = vmul.f32 %v7341, %v224
    %v7344 = vmul.f32 %v7342, %v224
    %v7345 = vmul.f32 %v7343, %v7343
    %v7346 = vmul.f32 %v7344, %v7344
    %7347 = vadd.xlane.f32.xlu0 %v7345
    %v7348 = vpop.xlane.xlu0 %7347
    %7349 = vadd.xlane.f32.xlu0 %v7346
    %v7350 = vpop.xlane.xlu0 %7349
    %v7351 = vmul.f32 %v7348, 0.009803922
    %v7352 = vmul.f32 %v7350, 0.009803922
    %v7353 = vadd.f32 %v7351, 1e-05
    %v7354 = vadd.f32 %v7352, 1e-05
    %v7355 = vrsqrt.pop %v7353
    %v7356 = vmul.f32 %v7355, %v7353
    %v7357 = vmul.f32 %v7356, %v7355
    %v7358 = vmul.f32 0.5, %v7357
    %v7359 = vsub.f32 1.5, %v7358
    %v7360 = vmul.f32 %v7355, %v7359
    %vm7361 = vweird.f32 %v7353
    %vm7362 = vweird.f32 %v7355
    %vm7363 = vmor %vm7361, %vm7362
    %v7364 = vsel %vm7363, %v7355, %v7360
    %v7365 = vrsqrt.pop %v7354
    %v7366 = vmul.f32 %v7365, %v7354
    %v7367 = vmul.f32 %v7366, %v7365
    %v7368 = vmul.f32 0.5, %v7367
    %v7369 = vsub.f32 1.5, %v7368
    %v7370 = vmul.f32 %v7365, %v7369
    %vm7371 = vweird.f32 %v7354
    %vm7372 = vweird.f32 %v7365
    %vm7373 = vmor %vm7371, %vm7372
    %v7374 = vsel %vm7373, %v7365, %v7370
    %v7375 = vmul.f32 %v7343, %v7364
    %v7376 = vmul.f32 %v7344, %v7374
    %s7377 = scalar_lea.vmem [#allocation16], 14
    %v7378 = vld [vmem:[%s7377] sm:$0x1]
    %v7380 = vperm.slane %v7378, 0
    %v7382 = vmul.f32 %v7375, %v7380
    %v7383 = vmul.f32 %v7376, %v7380
    %s7384 = scalar_lea.vmem [#allocation16], 15
    %v7385 = vld [vmem:[%s7384] sm:$0x1]
    %v7387 = vperm.slane %v7385, 0
    %v7389 = vadd.f32 %v7382, %v7387
    %v7390 = vadd.f32 %v7383, %v7387
    %v7391 = vpack.c.bf16 %v7390, %v7389
    %s7392 = scalar_lea.vmem [#allocation10], 1024
    %v7393 = vld [vmem:[%s7392] sm:$0xff]
    %v7394 = vld [vmem:[%s7392 + $0x8] sm:$0xff]
    %v7395 = vld [vmem:[%s7392 + $0x10] sm:$0xff]
    %v7396 = vld [vmem:[%s7392 + $0x18] sm:$0xff]
    %v7397 = vld [vmem:[%s7392 + $0x20] sm:$0xff]
    %v7398 = vld [vmem:[%s7392 + $0x28] sm:$0xff]
    %v7399 = vld [vmem:[%s7392 + $0x30] sm:$0xff]
    %v7400 = vld [vmem:[%s7392 + $0x38] sm:$0xff]
    %v7401 = vld [vmem:[%s7392 + $0x40] sm:$0xff]
    %v7402 = vld [vmem:[%s7392 + $0x48] sm:$0xff]
    %v7403 = vld [vmem:[%s7392 + $0x50] sm:$0xff]
    %v7404 = vld [vmem:[%s7392 + $0x58] sm:$0xff]
    %v7405 = vld [vmem:[%s7392 + $0x60] sm:$0xff]
    %v7406 = vld [vmem:[%s7392 + $0x68] sm:$0xff]
    %v7407 = vld [vmem:[%s7392 + $0x70] sm:$0xff]
    %v7408 = vld [vmem:[%s7392 + $0x78] sm:$0xff]
    %v7409 = vld [vmem:[%s7392 + $0x80] sm:$0xff]
    %v7410 = vld [vmem:[%s7392 + $0x88] sm:$0xff]
    %v7411 = vld [vmem:[%s7392 + $0x90] sm:$0xff]
    %v7412 = vld [vmem:[%s7392 + $0x98] sm:$0xff]
    %v7413 = vld [vmem:[%s7392 + $0xa0] sm:$0xff]
    %v7414 = vld [vmem:[%s7392 + $0xa8] sm:$0xff]
    %v7415 = vld [vmem:[%s7392 + $0xb0] sm:$0xff]
    %v7416 = vld [vmem:[%s7392 + $0xb8] sm:$0xff]
    %v7417 = vld [vmem:[%s7392 + $0xc0] sm:$0xff]
    %v7418 = vld [vmem:[%s7392 + $0xc8] sm:$0xff]
    %v7419 = vld [vmem:[%s7392 + $0xd0] sm:$0xff]
    %v7420 = vld [vmem:[%s7392 + $0xd8] sm:$0xff]
    %v7421 = vld [vmem:[%s7392 + $0xe0] sm:$0xff]
    %v7422 = vld [vmem:[%s7392 + $0xe8] sm:$0xff]
    %v7423 = vld [vmem:[%s7392 + $0xf0] sm:$0xff]
    %v7424 = vld [vmem:[%s7392 + $0xf8] sm:$0xff]
    %v7425 = vld [vmem:[%s7392 + $0x100] sm:$0xff]
    %v7426 = vld [vmem:[%s7392 + $0x108] sm:$0xff]
    %v7427 = vld [vmem:[%s7392 + $0x110] sm:$0xff]
    %v7428 = vld [vmem:[%s7392 + $0x118] sm:$0xff]
    %v7429 = vld [vmem:[%s7392 + $0x120] sm:$0xff]
    %v7430 = vld [vmem:[%s7392 + $0x128] sm:$0xff]
    %v7431 = vld [vmem:[%s7392 + $0x130] sm:$0xff]
    %v7432 = vld [vmem:[%s7392 + $0x138] sm:$0xff]
    %v7433 = vld [vmem:[%s7392 + $0x140] sm:$0xff]
    %v7434 = vld [vmem:[%s7392 + $0x148] sm:$0xff]
    %v7435 = vld [vmem:[%s7392 + $0x150] sm:$0xff]
    %v7436 = vld [vmem:[%s7392 + $0x158] sm:$0xff]
    %v7437 = vld [vmem:[%s7392 + $0x160] sm:$0xff]
    %v7438 = vld [vmem:[%s7392 + $0x168] sm:$0xff]
    %v7439 = vld [vmem:[%s7392 + $0x170] sm:$0xff]
    %v7440 = vld [vmem:[%s7392 + $0x178] sm:$0xff]
    %v7441 = vld [vmem:[%s7392 + $0x180] sm:$0xff]
    %v7442 = vld [vmem:[%s7392 + $0x188] sm:$0xff]
    %v7443 = vld [vmem:[%s7392 + $0x190] sm:$0xff]
    %v7444 = vld [vmem:[%s7392 + $0x198] sm:$0xff]
    %v7445 = vld [vmem:[%s7392 + $0x1a0] sm:$0xff]
    %v7446 = vld [vmem:[%s7392 + $0x1a8] sm:$0xff]
    %v7447 = vld [vmem:[%s7392 + $0x1b0] sm:$0xff]
    %v7448 = vld [vmem:[%s7392 + $0x1b8] sm:$0xff]
    %v7449 = vld [vmem:[%s7392 + $0x1c0] sm:$0xff]
    %v7450 = vld [vmem:[%s7392 + $0x1c8] sm:$0xff]
    %v7451 = vld [vmem:[%s7392 + $0x1d0] sm:$0xff]
    %v7452 = vld [vmem:[%s7392 + $0x1d8] sm:$0xff]
    %v7453 = vld [vmem:[%s7392 + $0x1e0] sm:$0xff]
    %v7454 = vld [vmem:[%s7392 + $0x1e8] sm:$0xff]
    %v7455 = vld [vmem:[%s7392 + $0x1f0] sm:$0xff]
    %v7456 = vld [vmem:[%s7392 + $0x1f8] sm:$0xff]
    %v7457 = vld [vmem:[%s7392 + $0x200] sm:$0xff]
    %v7458 = vld [vmem:[%s7392 + $0x208] sm:$0xff]
    %v7459 = vld [vmem:[%s7392 + $0x210] sm:$0xff]
    %v7460 = vld [vmem:[%s7392 + $0x218] sm:$0xff]
    %v7461 = vld [vmem:[%s7392 + $0x220] sm:$0xff]
    %v7462 = vld [vmem:[%s7392 + $0x228] sm:$0xff]
    %v7463 = vld [vmem:[%s7392 + $0x230] sm:$0xff]
    %v7464 = vld [vmem:[%s7392 + $0x238] sm:$0xff]
    %v7465 = vld [vmem:[%s7392 + $0x240] sm:$0xff]
    %v7466 = vld [vmem:[%s7392 + $0x248] sm:$0xff]
    %v7467 = vld [vmem:[%s7392 + $0x250] sm:$0xff]
    %v7468 = vld [vmem:[%s7392 + $0x258] sm:$0xff]
    %v7469 = vld [vmem:[%s7392 + $0x260] sm:$0xff]
    %v7470 = vld [vmem:[%s7392 + $0x268] sm:$0xff]
    %v7471 = vld [vmem:[%s7392 + $0x270] sm:$0xff]
    %v7472 = vld [vmem:[%s7392 + $0x278] sm:$0xff]
    %v7473 = vld [vmem:[%s7392 + $0x280] sm:$0xff]
    %v7474 = vld [vmem:[%s7392 + $0x288] sm:$0xff]
    %v7475 = vld [vmem:[%s7392 + $0x290] sm:$0xff]
    %v7476 = vld [vmem:[%s7392 + $0x298] sm:$0xff]
    %v7477 = vld [vmem:[%s7392 + $0x2a0] sm:$0xff]
    %v7478 = vld [vmem:[%s7392 + $0x2a8] sm:$0xff]
    %v7479 = vld [vmem:[%s7392 + $0x2b0] sm:$0xff]
    %v7480 = vld [vmem:[%s7392 + $0x2b8] sm:$0xff]
    %v7481 = vld [vmem:[%s7392 + $0x2c0] sm:$0xff]
    %v7482 = vld [vmem:[%s7392 + $0x2c8] sm:$0xff]
    %v7483 = vld [vmem:[%s7392 + $0x2d0] sm:$0xff]
    %v7484 = vld [vmem:[%s7392 + $0x2d8] sm:$0xff]
    %v7485 = vld [vmem:[%s7392 + $0x2e0] sm:$0xff]
    %v7486 = vld [vmem:[%s7392 + $0x2e8] sm:$0xff]
    %v7487 = vld [vmem:[%s7392 + $0x2f0] sm:$0xff]
    %v7488 = vld [vmem:[%s7392 + $0x2f8] sm:$0xff]
    %v7489 = vld [vmem:[%s7392 + $0x300] sm:$0xff]
    %v7490 = vld [vmem:[%s7392 + $0x308] sm:$0xff]
    %v7491 = vld [vmem:[%s7392 + $0x310] sm:$0xff]
    %v7492 = vld [vmem:[%s7392 + $0x318] sm:$0xff]
    %v7493 = vld [vmem:[%s7392 + $0x320] sm:$0xff]
    %v7494 = vld [vmem:[%s7392 + $0x328] sm:$0xff]
    %v7495 = vld [vmem:[%s7392 + $0x330] sm:$0xff]
    %v7496 = vld [vmem:[%s7392 + $0x338] sm:$0xff]
    %v7497 = vld [vmem:[%s7392 + $0x340] sm:$0xff]
    %v7498 = vld [vmem:[%s7392 + $0x348] sm:$0xff]
    %v7499 = vld [vmem:[%s7392 + $0x350] sm:$0xff]
    %v7500 = vld [vmem:[%s7392 + $0x358] sm:$0xff]
    %v7501 = vld [vmem:[%s7392 + $0x360] sm:$0xff]
    %v7502 = vld [vmem:[%s7392 + $0x368] sm:$0xff]
    %v7503 = vld [vmem:[%s7392 + $0x370] sm:$0xff]
    %v7504 = vld [vmem:[%s7392 + $0x378] sm:$0xff]
    %v7505 = vld [vmem:[%s7392 + $0x380] sm:$0xff]
    %v7506 = vld [vmem:[%s7392 + $0x388] sm:$0xff]
    %v7507 = vld [vmem:[%s7392 + $0x390] sm:$0xff]
    %v7508 = vld [vmem:[%s7392 + $0x398] sm:$0xff]
    %v7509 = vld [vmem:[%s7392 + $0x3a0] sm:$0xff]
    %v7510 = vld [vmem:[%s7392 + $0x3a8] sm:$0xff]
    %v7511 = vld [vmem:[%s7392 + $0x3b0] sm:$0xff]
    %v7512 = vld [vmem:[%s7392 + $0x3b8] sm:$0xff]
    %v7513 = vld [vmem:[%s7392 + $0x3c0] sm:$0xff]
    %v7514 = vld [vmem:[%s7392 + $0x3c8] sm:$0xff]
    %v7515 = vld [vmem:[%s7392 + $0x3d0] sm:$0xff]
    %v7516 = vld [vmem:[%s7392 + $0x3d8] sm:$0xff]
    %v7517 = vld [vmem:[%s7392 + $0x3e0] sm:$0xff]
    %v7518 = vld [vmem:[%s7392 + $0x3e8] sm:$0xff]
    %v7519 = vld [vmem:[%s7392 + $0x3f0] sm:$0xff]
    %v7520 = vld [vmem:[%s7392 + $0x3f8] sm:$0xff]
    %s7521 = scalar_lea.vmem [#allocation11], 16
    %v7522 = vld [vmem:[%s7521] sm:$0xff]
    %v7523 = vld [vmem:[%s7521 + $0x8] sm:$0xff]
    %v7526 = vperm.slane %v7522, 0
    %v7527 = vperm.slane %v7522, 1
    %v7528 = vperm.slane %v7522, 2
    %v7529 = vperm.slane %v7522, 3
    %v7530 = vperm.slane %v7522, 4
    %v7531 = vperm.slane %v7522, 5
    %v7532 = vperm.slane %v7522, 6
    %v7533 = vperm.slane %v7522, 7
    %v7534 = vperm.slane %v7523, 0
    %v7535 = vperm.slane %v7523, 1
    %v7536 = vperm.slane %v7523, 2
    %v7537 = vperm.slane %v7523, 3
    %v7538 = vperm.slane %v7523, 4
    %v7539 = vperm.slane %v7523, 5
    %v7540 = vperm.slane %v7523, 6
    %v7541 = vperm.slane %v7523, 7
    %v7686 = vunpack.c.l.b16 %v7393
    %v7687 = vunpack.c.h.b16 %v7393
    %v7688 = vunpack.c.l.b16 %v7394
    %v7689 = vunpack.c.h.b16 %v7394
    %v7690 = vunpack.c.l.b16 %v7395
    %v7691 = vunpack.c.h.b16 %v7395
    %v7692 = vunpack.c.l.b16 %v7396
    %v7693 = vunpack.c.h.b16 %v7396
    %v7694 = vunpack.c.l.b16 %v7397
    %v7695 = vunpack.c.h.b16 %v7397
    %v7696 = vunpack.c.l.b16 %v7398
    %v7697 = vunpack.c.h.b16 %v7398
    %v7698 = vunpack.c.l.b16 %v7399
    %v7699 = vunpack.c.h.b16 %v7399
    %v7700 = vunpack.c.l.b16 %v7400
    %v7701 = vunpack.c.h.b16 %v7400
    %v7702 = vunpack.c.l.b16 %v7401
    %v7703 = vunpack.c.h.b16 %v7401
    %v7704 = vunpack.c.l.b16 %v7402
    %v7705 = vunpack.c.h.b16 %v7402
    %v7706 = vunpack.c.l.b16 %v7403
    %v7707 = vunpack.c.h.b16 %v7403
    %v7708 = vunpack.c.l.b16 %v7404
    %v7709 = vunpack.c.h.b16 %v7404
    %v7710 = vunpack.c.l.b16 %v7405
    %v7711 = vunpack.c.h.b16 %v7405
    %v7712 = vunpack.c.l.b16 %v7406
    %v7713 = vunpack.c.h.b16 %v7406
    %v7714 = vunpack.c.l.b16 %v7407
    %v7715 = vunpack.c.h.b16 %v7407
    %v7716 = vunpack.c.l.b16 %v7408
    %v7717 = vunpack.c.h.b16 %v7408
    %v7718 = vunpack.c.l.b16 %v7409
    %v7719 = vunpack.c.h.b16 %v7409
    %v7720 = vunpack.c.l.b16 %v7410
    %v7721 = vunpack.c.h.b16 %v7410
    %v7722 = vunpack.c.l.b16 %v7411
    %v7723 = vunpack.c.h.b16 %v7411
    %v7724 = vunpack.c.l.b16 %v7412
    %v7725 = vunpack.c.h.b16 %v7412
    %v7726 = vunpack.c.l.b16 %v7413
    %v7727 = vunpack.c.h.b16 %v7413
    %v7728 = vunpack.c.l.b16 %v7414
    %v7729 = vunpack.c.h.b16 %v7414
    %v7730 = vunpack.c.l.b16 %v7415
    %v7731 = vunpack.c.h.b16 %v7415
    %v7732 = vunpack.c.l.b16 %v7416
    %v7733 = vunpack.c.h.b16 %v7416
    %v7734 = vunpack.c.l.b16 %v7417
    %v7735 = vunpack.c.h.b16 %v7417
    %v7736 = vunpack.c.l.b16 %v7418
    %v7737 = vunpack.c.h.b16 %v7418
    %v7738 = vunpack.c.l.b16 %v7419
    %v7739 = vunpack.c.h.b16 %v7419
    %v7740 = vunpack.c.l.b16 %v7420
    %v7741 = vunpack.c.h.b16 %v7420
    %v7742 = vunpack.c.l.b16 %v7421
    %v7743 = vunpack.c.h.b16 %v7421
    %v7744 = vunpack.c.l.b16 %v7422
    %v7745 = vunpack.c.h.b16 %v7422
    %v7746 = vunpack.c.l.b16 %v7423
    %v7747 = vunpack.c.h.b16 %v7423
    %v7748 = vunpack.c.l.b16 %v7424
    %v7749 = vunpack.c.h.b16 %v7424
    %v7750 = vunpack.c.l.b16 %v7425
    %v7751 = vunpack.c.h.b16 %v7425
    %v7752 = vunpack.c.l.b16 %v7426
    %v7753 = vunpack.c.h.b16 %v7426
    %v7754 = vunpack.c.l.b16 %v7427
    %v7755 = vunpack.c.h.b16 %v7427
    %v7756 = vunpack.c.l.b16 %v7428
    %v7757 = vunpack.c.h.b16 %v7428
    %v7758 = vunpack.c.l.b16 %v7429
    %v7759 = vunpack.c.h.b16 %v7429
    %v7760 = vunpack.c.l.b16 %v7430
    %v7761 = vunpack.c.h.b16 %v7430
    %v7762 = vunpack.c.l.b16 %v7431
    %v7763 = vunpack.c.h.b16 %v7431
    %v7764 = vunpack.c.l.b16 %v7432
    %v7765 = vunpack.c.h.b16 %v7432
    %v7766 = vunpack.c.l.b16 %v7433
    %v7767 = vunpack.c.h.b16 %v7433
    %v7768 = vunpack.c.l.b16 %v7434
    %v7769 = vunpack.c.h.b16 %v7434
    %v7770 = vunpack.c.l.b16 %v7435
    %v7771 = vunpack.c.h.b16 %v7435
    %v7772 = vunpack.c.l.b16 %v7436
    %v7773 = vunpack.c.h.b16 %v7436
    %v7774 = vunpack.c.l.b16 %v7437
    %v7775 = vunpack.c.h.b16 %v7437
    %v7776 = vunpack.c.l.b16 %v7438
    %v7777 = vunpack.c.h.b16 %v7438
    %v7778 = vunpack.c.l.b16 %v7439
    %v7779 = vunpack.c.h.b16 %v7439
    %v7780 = vunpack.c.l.b16 %v7440
    %v7781 = vunpack.c.h.b16 %v7440
    %v7782 = vunpack.c.l.b16 %v7441
    %v7783 = vunpack.c.h.b16 %v7441
    %v7784 = vunpack.c.l.b16 %v7442
    %v7785 = vunpack.c.h.b16 %v7442
    %v7786 = vunpack.c.l.b16 %v7443
    %v7787 = vunpack.c.h.b16 %v7443
    %v7788 = vunpack.c.l.b16 %v7444
    %v7789 = vunpack.c.h.b16 %v7444
    %v7790 = vunpack.c.l.b16 %v7445
    %v7791 = vunpack.c.h.b16 %v7445
    %v7792 = vunpack.c.l.b16 %v7446
    %v7793 = vunpack.c.h.b16 %v7446
    %v7794 = vunpack.c.l.b16 %v7447
    %v7795 = vunpack.c.h.b16 %v7447
    %v7796 = vunpack.c.l.b16 %v7448
    %v7797 = vunpack.c.h.b16 %v7448
    %v7798 = vunpack.c.l.b16 %v7449
    %v7799 = vunpack.c.h.b16 %v7449
    %v7800 = vunpack.c.l.b16 %v7450
    %v7801 = vunpack.c.h.b16 %v7450
    %v7802 = vunpack.c.l.b16 %v7451
    %v7803 = vunpack.c.h.b16 %v7451
    %v7804 = vunpack.c.l.b16 %v7452
    %v7805 = vunpack.c.h.b16 %v7452
    %v7806 = vunpack.c.l.b16 %v7453
    %v7807 = vunpack.c.h.b16 %v7453
    %v7808 = vunpack.c.l.b16 %v7454
    %v7809 = vunpack.c.h.b16 %v7454
    %v7810 = vunpack.c.l.b16 %v7455
    %v7811 = vunpack.c.h.b16 %v7455
    %v7812 = vunpack.c.l.b16 %v7456
    %v7813 = vunpack.c.h.b16 %v7456
    %v7814 = vunpack.c.l.b16 %v7457
    %v7815 = vunpack.c.h.b16 %v7457
    %v7816 = vunpack.c.l.b16 %v7458
    %v7817 = vunpack.c.h.b16 %v7458
    %v7818 = vunpack.c.l.b16 %v7459
    %v7819 = vunpack.c.h.b16 %v7459
    %v7820 = vunpack.c.l.b16 %v7460
    %v7821 = vunpack.c.h.b16 %v7460
    %v7822 = vunpack.c.l.b16 %v7461
    %v7823 = vunpack.c.h.b16 %v7461
    %v7824 = vunpack.c.l.b16 %v7462
    %v7825 = vunpack.c.h.b16 %v7462
    %v7826 = vunpack.c.l.b16 %v7463
    %v7827 = vunpack.c.h.b16 %v7463
    %v7828 = vunpack.c.l.b16 %v7464
    %v7829 = vunpack.c.h.b16 %v7464
    %v7830 = vunpack.c.l.b16 %v7465
    %v7831 = vunpack.c.h.b16 %v7465
    %v7832 = vunpack.c.l.b16 %v7466
    %v7833 = vunpack.c.h.b16 %v7466
    %v7834 = vunpack.c.l.b16 %v7467
    %v7835 = vunpack.c.h.b16 %v7467
    %v7836 = vunpack.c.l.b16 %v7468
    %v7837 = vunpack.c.h.b16 %v7468
    %v7838 = vunpack.c.l.b16 %v7469
    %v7839 = vunpack.c.h.b16 %v7469
    %v7840 = vunpack.c.l.b16 %v7470
    %v7841 = vunpack.c.h.b16 %v7470
    %v7842 = vunpack.c.l.b16 %v7471
    %v7843 = vunpack.c.h.b16 %v7471
    %v7844 = vunpack.c.l.b16 %v7472
    %v7845 = vunpack.c.h.b16 %v7472
    %v7846 = vunpack.c.l.b16 %v7473
    %v7847 = vunpack.c.h.b16 %v7473
    %v7848 = vunpack.c.l.b16 %v7474
    %v7849 = vunpack.c.h.b16 %v7474
    %v7850 = vunpack.c.l.b16 %v7475
    %v7851 = vunpack.c.h.b16 %v7475
    %v7852 = vunpack.c.l.b16 %v7476
    %v7853 = vunpack.c.h.b16 %v7476
    %v7854 = vunpack.c.l.b16 %v7477
    %v7855 = vunpack.c.h.b16 %v7477
    %v7856 = vunpack.c.l.b16 %v7478
    %v7857 = vunpack.c.h.b16 %v7478
    %v7858 = vunpack.c.l.b16 %v7479
    %v7859 = vunpack.c.h.b16 %v7479
    %v7860 = vunpack.c.l.b16 %v7480
    %v7861 = vunpack.c.h.b16 %v7480
    %v7862 = vunpack.c.l.b16 %v7481
    %v7863 = vunpack.c.h.b16 %v7481
    %v7864 = vunpack.c.l.b16 %v7482
    %v7865 = vunpack.c.h.b16 %v7482
    %v7866 = vunpack.c.l.b16 %v7483
    %v7867 = vunpack.c.h.b16 %v7483
    %v7868 = vunpack.c.l.b16 %v7484
    %v7869 = vunpack.c.h.b16 %v7484
    %v7870 = vunpack.c.l.b16 %v7485
    %v7871 = vunpack.c.h.b16 %v7485
    %v7872 = vunpack.c.l.b16 %v7486
    %v7873 = vunpack.c.h.b16 %v7486
    %v7874 = vunpack.c.l.b16 %v7487
    %v7875 = vunpack.c.h.b16 %v7487
    %v7876 = vunpack.c.l.b16 %v7488
    %v7877 = vunpack.c.h.b16 %v7488
    %v7878 = vunpack.c.l.b16 %v7489
    %v7879 = vunpack.c.h.b16 %v7489
    %v7880 = vunpack.c.l.b16 %v7490
    %v7881 = vunpack.c.h.b16 %v7490
    %v7882 = vunpack.c.l.b16 %v7491
    %v7883 = vunpack.c.h.b16 %v7491
    %v7884 = vunpack.c.l.b16 %v7492
    %v7885 = vunpack.c.h.b16 %v7492
    %v7886 = vunpack.c.l.b16 %v7493
    %v7887 = vunpack.c.h.b16 %v7493
    %v7888 = vunpack.c.l.b16 %v7494
    %v7889 = vunpack.c.h.b16 %v7494
    %v7890 = vunpack.c.l.b16 %v7495
    %v7891 = vunpack.c.h.b16 %v7495
    %v7892 = vunpack.c.l.b16 %v7496
    %v7893 = vunpack.c.h.b16 %v7496
    %v7894 = vunpack.c.l.b16 %v7497
    %v7895 = vunpack.c.h.b16 %v7497
    %v7896 = vunpack.c.l.b16 %v7498
    %v7897 = vunpack.c.h.b16 %v7498
    %v7898 = vunpack.c.l.b16 %v7499
    %v7899 = vunpack.c.h.b16 %v7499
    %v7900 = vunpack.c.l.b16 %v7500
    %v7901 = vunpack.c.h.b16 %v7500
    %v7902 = vunpack.c.l.b16 %v7501
    %v7903 = vunpack.c.h.b16 %v7501
    %v7904 = vunpack.c.l.b16 %v7502
    %v7905 = vunpack.c.h.b16 %v7502
    %v7906 = vunpack.c.l.b16 %v7503
    %v7907 = vunpack.c.h.b16 %v7503
    %v7908 = vunpack.c.l.b16 %v7504
    %v7909 = vunpack.c.h.b16 %v7504
    %v7910 = vunpack.c.l.b16 %v7505
    %v7911 = vunpack.c.h.b16 %v7505
    %v7912 = vunpack.c.l.b16 %v7506
    %v7913 = vunpack.c.h.b16 %v7506
    %v7914 = vunpack.c.l.b16 %v7507
    %v7915 = vunpack.c.h.b16 %v7507
    %v7916 = vunpack.c.l.b16 %v7508
    %v7917 = vunpack.c.h.b16 %v7508
    %v7918 = vunpack.c.l.b16 %v7509
    %v7919 = vunpack.c.h.b16 %v7509
    %v7920 = vunpack.c.l.b16 %v7510
    %v7921 = vunpack.c.h.b16 %v7510
    %v7922 = vunpack.c.l.b16 %v7511
    %v7923 = vunpack.c.h.b16 %v7511
    %v7924 = vunpack.c.l.b16 %v7512
    %v7925 = vunpack.c.h.b16 %v7512
    %v7926 = vunpack.c.l.b16 %v7513
    %v7927 = vunpack.c.h.b16 %v7513
    %v7928 = vunpack.c.l.b16 %v7514
    %v7929 = vunpack.c.h.b16 %v7514
    %v7930 = vunpack.c.l.b16 %v7515
    %v7931 = vunpack.c.h.b16 %v7515
    %v7932 = vunpack.c.l.b16 %v7516
    %v7933 = vunpack.c.h.b16 %v7516
    %v7934 = vunpack.c.l.b16 %v7517
    %v7935 = vunpack.c.h.b16 %v7517
    %v7936 = vunpack.c.l.b16 %v7518
    %v7937 = vunpack.c.h.b16 %v7518
    %v7938 = vunpack.c.l.b16 %v7519
    %v7939 = vunpack.c.h.b16 %v7519
    %v7940 = vunpack.c.l.b16 %v7520
    %v7941 = vunpack.c.h.b16 %v7520
    %v7942 = vpack.c.b16 %v7702, %v7686
    %v7943 = vpack.c.b16 %v7703, %v7687
    %v7944 = vpack.c.b16 %v7704, %v7688
    %v7945 = vpack.c.b16 %v7705, %v7689
    %v7946 = vpack.c.b16 %v7706, %v7690
    %v7947 = vpack.c.b16 %v7707, %v7691
    %v7948 = vpack.c.b16 %v7708, %v7692
    %v7949 = vpack.c.b16 %v7709, %v7693
    %v7950 = vpack.c.b16 %v7710, %v7694
    %v7951 = vpack.c.b16 %v7711, %v7695
    %v7952 = vpack.c.b16 %v7712, %v7696
    %v7953 = vpack.c.b16 %v7713, %v7697
    %v7954 = vpack.c.b16 %v7714, %v7698
    %v7955 = vpack.c.b16 %v7715, %v7699
    %v7956 = vpack.c.b16 %v7716, %v7700
    %v7957 = vpack.c.b16 %v7717, %v7701
    %v7958 = vpack.c.b16 %v7734, %v7718
    %v7959 = vpack.c.b16 %v7735, %v7719
    %v7960 = vpack.c.b16 %v7736, %v7720
    %v7961 = vpack.c.b16 %v7737, %v7721
    %v7962 = vpack.c.b16 %v7738, %v7722
    %v7963 = vpack.c.b16 %v7739, %v7723
    %v7964 = vpack.c.b16 %v7740, %v7724
    %v7965 = vpack.c.b16 %v7741, %v7725
    %v7966 = vpack.c.b16 %v7742, %v7726
    %v7967 = vpack.c.b16 %v7743, %v7727
    %v7968 = vpack.c.b16 %v7744, %v7728
    %v7969 = vpack.c.b16 %v7745, %v7729
    %v7970 = vpack.c.b16 %v7746, %v7730
    %v7971 = vpack.c.b16 %v7747, %v7731
    %v7972 = vpack.c.b16 %v7748, %v7732
    %v7973 = vpack.c.b16 %v7749, %v7733
    %v7974 = vpack.c.b16 %v7766, %v7750
    %v7975 = vpack.c.b16 %v7767, %v7751
    %v7976 = vpack.c.b16 %v7768, %v7752
    %v7977 = vpack.c.b16 %v7769, %v7753
    %v7978 = vpack.c.b16 %v7770, %v7754
    %v7979 = vpack.c.b16 %v7771, %v7755
    %v7980 = vpack.c.b16 %v7772, %v7756
    %v7981 = vpack.c.b16 %v7773, %v7757
    %v7982 = vpack.c.b16 %v7774, %v7758
    %v7983 = vpack.c.b16 %v7775, %v7759
    %v7984 = vpack.c.b16 %v7776, %v7760
    %v7985 = vpack.c.b16 %v7777, %v7761
    %v7986 = vpack.c.b16 %v7778, %v7762
    %v7987 = vpack.c.b16 %v7779, %v7763
    %v7988 = vpack.c.b16 %v7780, %v7764
    %v7989 = vpack.c.b16 %v7781, %v7765
    %v7990 = vpack.c.b16 %v7798, %v7782
    %v7991 = vpack.c.b16 %v7799, %v7783
    %v7992 = vpack.c.b16 %v7800, %v7784
    %v7993 = vpack.c.b16 %v7801, %v7785
    %v7994 = vpack.c.b16 %v7802, %v7786
    %v7995 = vpack.c.b16 %v7803, %v7787
    %v7996 = vpack.c.b16 %v7804, %v7788
    %v7997 = vpack.c.b16 %v7805, %v7789
    %v7998 = vpack.c.b16 %v7806, %v7790
    %v7999 = vpack.c.b16 %v7807, %v7791
    %v8000 = vpack.c.b16 %v7808, %v7792
    %v8001 = vpack.c.b16 %v7809, %v7793
    %v8002 = vpack.c.b16 %v7810, %v7794
    %v8003 = vpack.c.b16 %v7811, %v7795
    %v8004 = vpack.c.b16 %v7812, %v7796
    %v8005 = vpack.c.b16 %v7813, %v7797
    %v8006 = vpack.c.b16 %v7830, %v7814
    %v8007 = vpack.c.b16 %v7831, %v7815
    %v8008 = vpack.c.b16 %v7832, %v7816
    %v8009 = vpack.c.b16 %v7833, %v7817
    %v8010 = vpack.c.b16 %v7834, %v7818
    %v8011 = vpack.c.b16 %v7835, %v7819
    %v8012 = vpack.c.b16 %v7836, %v7820
    %v8013 = vpack.c.b16 %v7837, %v7821
    %v8014 = vpack.c.b16 %v7838, %v7822
    %v8015 = vpack.c.b16 %v7839, %v7823
    %v8016 = vpack.c.b16 %v7840, %v7824
    %v8017 = vpack.c.b16 %v7841, %v7825
    %v8018 = vpack.c.b16 %v7842, %v7826
    %v8019 = vpack.c.b16 %v7843, %v7827
    %v8020 = vpack.c.b16 %v7844, %v7828
    %v8021 = vpack.c.b16 %v7845, %v7829
    %v8022 = vpack.c.b16 %v7862, %v7846
    %v8023 = vpack.c.b16 %v7863, %v7847
    %v8024 = vpack.c.b16 %v7864, %v7848
    %v8025 = vpack.c.b16 %v7865, %v7849
    %v8026 = vpack.c.b16 %v7866, %v7850
    %v8027 = vpack.c.b16 %v7867, %v7851
    %v8028 = vpack.c.b16 %v7868, %v7852
    %v8029 = vpack.c.b16 %v7869, %v7853
    %v8030 = vpack.c.b16 %v7870, %v7854
    %v8031 = vpack.c.b16 %v7871, %v7855
    %v8032 = vpack.c.b16 %v7872, %v7856
    %v8033 = vpack.c.b16 %v7873, %v7857
    %v8034 = vpack.c.b16 %v7874, %v7858
    %v8035 = vpack.c.b16 %v7875, %v7859
    %v8036 = vpack.c.b16 %v7876, %v7860
    %v8037 = vpack.c.b16 %v7877, %v7861
    %v8038 = vpack.c.b16 %v7894, %v7878
    %v8039 = vpack.c.b16 %v7895, %v7879
    %v8040 = vpack.c.b16 %v7896, %v7880
    %v8041 = vpack.c.b16 %v7897, %v7881
    %v8042 = vpack.c.b16 %v7898, %v7882
    %v8043 = vpack.c.b16 %v7899, %v7883
    %v8044 = vpack.c.b16 %v7900, %v7884
    %v8045 = vpack.c.b16 %v7901, %v7885
    %v8046 = vpack.c.b16 %v7902, %v7886
    %v8047 = vpack.c.b16 %v7903, %v7887
    %v8048 = vpack.c.b16 %v7904, %v7888
    %v8049 = vpack.c.b16 %v7905, %v7889
    %v8050 = vpack.c.b16 %v7906, %v7890
    %v8051 = vpack.c.b16 %v7907, %v7891
    %v8052 = vpack.c.b16 %v7908, %v7892
    %v8053 = vpack.c.b16 %v7909, %v7893
    %v8054 = vpack.c.b16 %v7926, %v7910
    %v8055 = vpack.c.b16 %v7927, %v7911
    %v8056 = vpack.c.b16 %v7928, %v7912
    %v8057 = vpack.c.b16 %v7929, %v7913
    %v8058 = vpack.c.b16 %v7930, %v7914
    %v8059 = vpack.c.b16 %v7931, %v7915
    %v8060 = vpack.c.b16 %v7932, %v7916
    %v8061 = vpack.c.b16 %v7933, %v7917
    %v8062 = vpack.c.b16 %v7934, %v7918
    %v8063 = vpack.c.b16 %v7935, %v7919
    %v8064 = vpack.c.b16 %v7936, %v7920
    %v8065 = vpack.c.b16 %v7937, %v7921
    %v8066 = vpack.c.b16 %v7938, %v7922
    %v8067 = vpack.c.b16 %v7939, %v7923
    %v8068 = vpack.c.b16 %v7940, %v7924
    %v8069 = vpack.c.b16 %v7941, %v7925
    %8198 = vmatpush.bf16.msra.mxu0 %v8054
    %8199 = vmatpush.bf16.msra.mxu0 %v8038
    %8200 = vmatpush.bf16.msra.mxu0 %v8022
    %8201 = vmatpush.bf16.msra.mxu0 %v8006
    %8202 = vmatpush.bf16.msra.mxu0 %v7990
    %8203 = vmatpush.bf16.msra.mxu0 %v7974
    %8204 = vmatpush.bf16.msra.mxu0 %v7958
    %8205 = vmatpush.bf16.msra.mxu0 %v7942
    %8206 = vmatmul.bf16.gmra.mxu0 %v7391
    %v8207 = vpop.f32.mrf.mxu0
    %v8208 = vadd.f32 %v7526, %v8207
    %v8209 = vpop.f32.mrf.mxu0
    %v8210 = vadd.f32 %v7526, %v8209
    %8211 = vdwg.mxu0
    %8212 = vmatpush.bf16.msra.mxu0 %v8055
    %8213 = vmatpush.bf16.msra.mxu0 %v8039
    %8214 = vmatpush.bf16.msra.mxu0 %v8023
    %8215 = vmatpush.bf16.msra.mxu0 %v8007
    %8216 = vmatpush.bf16.msra.mxu0 %v7991
    %8217 = vmatpush.bf16.msra.mxu0 %v7975
    %8218 = vmatpush.bf16.msra.mxu0 %v7959
    %8219 = vmatpush.bf16.msra.mxu0 %v7943
    %8220 = vmatmul.bf16.gmra.mxu0 %v7391
    %v8221 = vpop.f32.mrf.mxu0
    %v8222 = vadd.f32 %v7527, %v8221
    %v8223 = vpop.f32.mrf.mxu0
    %v8224 = vadd.f32 %v7527, %v8223
    %8225 = vdwg.mxu0
    %8226 = vmatpush.bf16.msra.mxu0 %v8056
    %8227 = vmatpush.bf16.msra.mxu0 %v8040
    %8228 = vmatpush.bf16.msra.mxu0 %v8024
    %8229 = vmatpush.bf16.msra.mxu0 %v8008
    %8230 = vmatpush.bf16.msra.mxu0 %v7992
    %8231 = vmatpush.bf16.msra.mxu0 %v7976
    %8232 = vmatpush.bf16.msra.mxu0 %v7960
    %8233 = vmatpush.bf16.msra.mxu0 %v7944
    %8234 = vmatmul.bf16.gmra.mxu0 %v7391
    %v8235 = vpop.f32.mrf.mxu0
    %v8236 = vadd.f32 %v7528, %v8235
    %v8237 = vpop.f32.mrf.mxu0
    %v8238 = vadd.f32 %v7528, %v8237
    %8239 = vdwg.mxu0
    %8240 = vmatpush.bf16.msra.mxu0 %v8057
    %8241 = vmatpush.bf16.msra.mxu0 %v8041
    %8242 = vmatpush.bf16.msra.mxu0 %v8025
    %8243 = vmatpush.bf16.msra.mxu0 %v8009
    %8244 = vmatpush.bf16.msra.mxu0 %v7993
    %8245 = vmatpush.bf16.msra.mxu0 %v7977
    %8246 = vmatpush.bf16.msra.mxu0 %v7961
    %8247 = vmatpush.bf16.msra.mxu0 %v7945
    %8248 = vmatmul.bf16.gmra.mxu0 %v7391
    %v8249 = vpop.f32.mrf.mxu0
    %v8250 = vadd.f32 %v7529, %v8249
    %v8251 = vpop.f32.mrf.mxu0
    %v8252 = vadd.f32 %v7529, %v8251
    %8253 = vdwg.mxu0
    %8254 = vmatpush.bf16.msra.mxu0 %v8058
    %8255 = vmatpush.bf16.msra.mxu0 %v8042
    %8256 = vmatpush.bf16.msra.mxu0 %v8026
    %8257 = vmatpush.bf16.msra.mxu0 %v8010
    %8258 = vmatpush.bf16.msra.mxu0 %v7994
    %8259 = vmatpush.bf16.msra.mxu0 %v7978
    %8260 = vmatpush.bf16.msra.mxu0 %v7962
    %8261 = vmatpush.bf16.msra.mxu0 %v7946
    %8262 = vmatmul.bf16.gmra.mxu0 %v7391
    %v8263 = vpop.f32.mrf.mxu0
    %v8264 = vadd.f32 %v7530, %v8263
    %v8265 = vpop.f32.mrf.mxu0
    %v8266 = vadd.f32 %v7530, %v8265
    %8267 = vdwg.mxu0
    %8268 = vmatpush.bf16.msra.mxu0 %v8059
    %8269 = vmatpush.bf16.msra.mxu0 %v8043
    %8270 = vmatpush.bf16.msra.mxu0 %v8027
    %8271 = vmatpush.bf16.msra.mxu0 %v8011
    %8272 = vmatpush.bf16.msra.mxu0 %v7995
    %8273 = vmatpush.bf16.msra.mxu0 %v7979
    %8274 = vmatpush.bf16.msra.mxu0 %v7963
    %8275 = vmatpush.bf16.msra.mxu0 %v7947
    %8276 = vmatmul.bf16.gmra.mxu0 %v7391
    %v8277 = vpop.f32.mrf.mxu0
    %v8278 = vadd.f32 %v7531, %v8277
    %v8279 = vpop.f32.mrf.mxu0
    %v8280 = vadd.f32 %v7531, %v8279
    %8281 = vdwg.mxu0
    %8282 = vmatpush.bf16.msra.mxu0 %v8060
    %8283 = vmatpush.bf16.msra.mxu0 %v8044
    %8284 = vmatpush.bf16.msra.mxu0 %v8028
    %8285 = vmatpush.bf16.msra.mxu0 %v8012
    %8286 = vmatpush.bf16.msra.mxu0 %v7996
    %8287 = vmatpush.bf16.msra.mxu0 %v7980
    %8288 = vmatpush.bf16.msra.mxu0 %v7964
    %8289 = vmatpush.bf16.msra.mxu0 %v7948
    %8290 = vmatmul.bf16.gmra.mxu0 %v7391
    %v8291 = vpop.f32.mrf.mxu0
    %v8292 = vadd.f32 %v7532, %v8291
    %v8293 = vpop.f32.mrf.mxu0
    %v8294 = vadd.f32 %v7532, %v8293
    %8295 = vdwg.mxu0
    %8296 = vmatpush.bf16.msra.mxu0 %v8061
    %8297 = vmatpush.bf16.msra.mxu0 %v8045
    %8298 = vmatpush.bf16.msra.mxu0 %v8029
    %8299 = vmatpush.bf16.msra.mxu0 %v8013
    %8300 = vmatpush.bf16.msra.mxu0 %v7997
    %8301 = vmatpush.bf16.msra.mxu0 %v7981
    %8302 = vmatpush.bf16.msra.mxu0 %v7965
    %8303 = vmatpush.bf16.msra.mxu0 %v7949
    %8304 = vmatmul.bf16.gmra.mxu0 %v7391
    %v8305 = vpop.f32.mrf.mxu0
    %v8306 = vadd.f32 %v7533, %v8305
    %v8307 = vpop.f32.mrf.mxu0
    %v8308 = vadd.f32 %v7533, %v8307
    %8309 = vdwg.mxu0
    %8310 = vmatpush.bf16.msra.mxu0 %v8062
    %8311 = vmatpush.bf16.msra.mxu0 %v8046
    %8312 = vmatpush.bf16.msra.mxu0 %v8030
    %8313 = vmatpush.bf16.msra.mxu0 %v8014
    %8314 = vmatpush.bf16.msra.mxu0 %v7998
    %8315 = vmatpush.bf16.msra.mxu0 %v7982
    %8316 = vmatpush.bf16.msra.mxu0 %v7966
    %8317 = vmatpush.bf16.msra.mxu0 %v7950
    %8318 = vmatmul.bf16.gmra.mxu0 %v7391
    %v8319 = vpop.f32.mrf.mxu0
    %v8320 = vadd.f32 %v7534, %v8319
    %v8321 = vpop.f32.mrf.mxu0
    %v8322 = vadd.f32 %v7534, %v8321
    %8323 = vdwg.mxu0
    %8324 = vmatpush.bf16.msra.mxu0 %v8063
    %8325 = vmatpush.bf16.msra.mxu0 %v8047
    %8326 = vmatpush.bf16.msra.mxu0 %v8031
    %8327 = vmatpush.bf16.msra.mxu0 %v8015
    %8328 = vmatpush.bf16.msra.mxu0 %v7999
    %8329 = vmatpush.bf16.msra.mxu0 %v7983
    %8330 = vmatpush.bf16.msra.mxu0 %v7967
    %8331 = vmatpush.bf16.msra.mxu0 %v7951
    %8332 = vmatmul.bf16.gmra.mxu0 %v7391
    %v8333 = vpop.f32.mrf.mxu0
    %v8334 = vadd.f32 %v7535, %v8333
    %v8335 = vpop.f32.mrf.mxu0
    %v8336 = vadd.f32 %v7535, %v8335
    %8337 = vdwg.mxu0
    %8338 = vmatpush.bf16.msra.mxu0 %v8064
    %8339 = vmatpush.bf16.msra.mxu0 %v8048
    %8340 = vmatpush.bf16.msra.mxu0 %v8032
    %8341 = vmatpush.bf16.msra.mxu0 %v8016
    %8342 = vmatpush.bf16.msra.mxu0 %v8000
    %8343 = vmatpush.bf16.msra.mxu0 %v7984
    %8344 = vmatpush.bf16.msra.mxu0 %v7968
    %8345 = vmatpush.bf16.msra.mxu0 %v7952
    %8346 = vmatmul.bf16.gmra.mxu0 %v7391
    %v8347 = vpop.f32.mrf.mxu0
    %v8348 = vadd.f32 %v7536, %v8347
    %v8349 = vpop.f32.mrf.mxu0
    %v8350 = vadd.f32 %v7536, %v8349
    %8351 = vdwg.mxu0
    %8352 = vmatpush.bf16.msra.mxu0 %v8065
    %8353 = vmatpush.bf16.msra.mxu0 %v8049
    %8354 = vmatpush.bf16.msra.mxu0 %v8033
    %8355 = vmatpush.bf16.msra.mxu0 %v8017
    %8356 = vmatpush.bf16.msra.mxu0 %v8001
    %8357 = vmatpush.bf16.msra.mxu0 %v7985
    %8358 = vmatpush.bf16.msra.mxu0 %v7969
    %8359 = vmatpush.bf16.msra.mxu0 %v7953
    %8360 = vmatmul.bf16.gmra.mxu0 %v7391
    %v8361 = vpop.f32.mrf.mxu0
    %v8362 = vadd.f32 %v7537, %v8361
    %v8363 = vpop.f32.mrf.mxu0
    %v8364 = vadd.f32 %v7537, %v8363
    %8365 = vdwg.mxu0
    %8366 = vmatpush.bf16.msra.mxu0 %v8066
    %8367 = vmatpush.bf16.msra.mxu0 %v8050
    %8368 = vmatpush.bf16.msra.mxu0 %v8034
    %8369 = vmatpush.bf16.msra.mxu0 %v8018
    %8370 = vmatpush.bf16.msra.mxu0 %v8002
    %8371 = vmatpush.bf16.msra.mxu0 %v7986
    %8372 = vmatpush.bf16.msra.mxu0 %v7970
    %8373 = vmatpush.bf16.msra.mxu0 %v7954
    %8374 = vmatmul.bf16.gmra.mxu0 %v7391
    %v8375 = vpop.f32.mrf.mxu0
    %v8376 = vadd.f32 %v7538, %v8375
    %v8377 = vpop.f32.mrf.mxu0
    %v8378 = vadd.f32 %v7538, %v8377
    %8379 = vdwg.mxu0
    %8380 = vmatpush.bf16.msra.mxu0 %v8067
    %8381 = vmatpush.bf16.msra.mxu0 %v8051
    %8382 = vmatpush.bf16.msra.mxu0 %v8035
    %8383 = vmatpush.bf16.msra.mxu0 %v8019
    %8384 = vmatpush.bf16.msra.mxu0 %v8003
    %8385 = vmatpush.bf16.msra.mxu0 %v7987
    %8386 = vmatpush.bf16.msra.mxu0 %v7971
    %8387 = vmatpush.bf16.msra.mxu0 %v7955
    %8388 = vmatmul.bf16.gmra.mxu0 %v7391
    %v8389 = vpop.f32.mrf.mxu0
    %v8390 = vadd.f32 %v7539, %v8389
    %v8391 = vpop.f32.mrf.mxu0
    %v8392 = vadd.f32 %v7539, %v8391
    %8393 = vdwg.mxu0
    %8394 = vmatpush.bf16.msra.mxu0 %v8068
    %8395 = vmatpush.bf16.msra.mxu0 %v8052
    %8396 = vmatpush.bf16.msra.mxu0 %v8036
    %8397 = vmatpush.bf16.msra.mxu0 %v8020
    %8398 = vmatpush.bf16.msra.mxu0 %v8004
    %8399 = vmatpush.bf16.msra.mxu0 %v7988
    %8400 = vmatpush.bf16.msra.mxu0 %v7972
    %8401 = vmatpush.bf16.msra.mxu0 %v7956
    %8402 = vmatmul.bf16.gmra.mxu0 %v7391
    %v8403 = vpop.f32.mrf.mxu0
    %v8404 = vadd.f32 %v7540, %v8403
    %v8405 = vpop.f32.mrf.mxu0
    %v8406 = vadd.f32 %v7540, %v8405
    %8407 = vdwg.mxu0
    %8408 = vmatpush.bf16.msra.mxu0 %v8069
    %8409 = vmatpush.bf16.msra.mxu0 %v8053
    %8410 = vmatpush.bf16.msra.mxu0 %v8037
    %8411 = vmatpush.bf16.msra.mxu0 %v8021
    %8412 = vmatpush.bf16.msra.mxu0 %v8005
    %8413 = vmatpush.bf16.msra.mxu0 %v7989
    %8414 = vmatpush.bf16.msra.mxu0 %v7973
    %8415 = vmatpush.bf16.msra.mxu0 %v7957
    %8416 = vmatmul.bf16.gmra.mxu0 %v7391
    %v8417 = vpop.f32.mrf.mxu0
    %v8418 = vadd.f32 %v7541, %v8417
    %v8419 = vpop.f32.mrf.mxu0
    %v8420 = vadd.f32 %v7541, %v8419
    %8421 = vdwg.mxu0
    %v8422 = vmax.f32 %v8208, 0.0
    %v8423 = vmax.f32 %v8222, 0.0
    %v8424 = vmax.f32 %v8236, 0.0
    %v8425 = vmax.f32 %v8250, 0.0
    %v8426 = vmax.f32 %v8264, 0.0
    %v8427 = vmax.f32 %v8278, 0.0
    %v8428 = vmax.f32 %v8292, 0.0
    %v8429 = vmax.f32 %v8306, 0.0
    %v8430 = vmax.f32 %v8320, 0.0
    %v8431 = vmax.f32 %v8334, 0.0
    %v8432 = vmax.f32 %v8348, 0.0
    %v8433 = vmax.f32 %v8362, 0.0
    %v8434 = vmax.f32 %v8376, 0.0
    %v8435 = vmax.f32 %v8390, 0.0
    %v8436 = vmax.f32 %v8404, 0.0
    %v8437 = vmax.f32 %v8418, 0.0
    %v8438 = vmax.f32 %v8210, 0.0
    %v8439 = vmax.f32 %v8224, 0.0
    %v8440 = vmax.f32 %v8238, 0.0
    %v8441 = vmax.f32 %v8252, 0.0
    %v8442 = vmax.f32 %v8266, 0.0
    %v8443 = vmax.f32 %v8280, 0.0
    %v8444 = vmax.f32 %v8294, 0.0
    %v8445 = vmax.f32 %v8308, 0.0
    %v8446 = vmax.f32 %v8322, 0.0
    %v8447 = vmax.f32 %v8336, 0.0
    %v8448 = vmax.f32 %v8350, 0.0
    %v8449 = vmax.f32 %v8364, 0.0
    %v8450 = vmax.f32 %v8378, 0.0
    %v8451 = vmax.f32 %v8392, 0.0
    %v8452 = vmax.f32 %v8406, 0.0
    %v8453 = vmax.f32 %v8420, 0.0
    %v8454 = vpack.c.bf16 %v8438, %v8422
    %v8455 = vpack.c.bf16 %v8439, %v8423
    %v8456 = vpack.c.bf16 %v8440, %v8424
    %v8457 = vpack.c.bf16 %v8441, %v8425
    %v8458 = vpack.c.bf16 %v8442, %v8426
    %v8459 = vpack.c.bf16 %v8443, %v8427
    %v8460 = vpack.c.bf16 %v8444, %v8428
    %v8461 = vpack.c.bf16 %v8445, %v8429
    %v8462 = vpack.c.bf16 %v8446, %v8430
    %v8463 = vpack.c.bf16 %v8447, %v8431
    %v8464 = vpack.c.bf16 %v8448, %v8432
    %v8465 = vpack.c.bf16 %v8449, %v8433
    %v8466 = vpack.c.bf16 %v8450, %v8434
    %v8467 = vpack.c.bf16 %v8451, %v8435
    %v8468 = vpack.c.bf16 %v8452, %v8436
    %v8469 = vpack.c.bf16 %v8453, %v8437
    %s8470 = scalar_lea.vmem [#allocation13], 1024
    %v8471 = vld [vmem:[%s8470] sm:$0xf]
    %v8472 = vld [vmem:[%s8470 + $0x4] sm:$0xf]
    %v8473 = vld [vmem:[%s8470 + $0x8] sm:$0xf]
    %v8474 = vld [vmem:[%s8470 + $0xc] sm:$0xf]
    %v8475 = vld [vmem:[%s8470 + $0x10] sm:$0xf]
    %v8476 = vld [vmem:[%s8470 + $0x14] sm:$0xf]
    %v8477 = vld [vmem:[%s8470 + $0x18] sm:$0xf]
    %v8478 = vld [vmem:[%s8470 + $0x1c] sm:$0xf]
    %v8479 = vld [vmem:[%s8470 + $0x20] sm:$0xf]
    %v8480 = vld [vmem:[%s8470 + $0x24] sm:$0xf]
    %v8481 = vld [vmem:[%s8470 + $0x28] sm:$0xf]
    %v8482 = vld [vmem:[%s8470 + $0x2c] sm:$0xf]
    %v8483 = vld [vmem:[%s8470 + $0x30] sm:$0xf]
    %v8484 = vld [vmem:[%s8470 + $0x34] sm:$0xf]
    %v8485 = vld [vmem:[%s8470 + $0x38] sm:$0xf]
    %v8486 = vld [vmem:[%s8470 + $0x3c] sm:$0xf]
    %v8487 = vld [vmem:[%s8470 + $0x40] sm:$0xf]
    %v8488 = vld [vmem:[%s8470 + $0x44] sm:$0xf]
    %v8489 = vld [vmem:[%s8470 + $0x48] sm:$0xf]
    %v8490 = vld [vmem:[%s8470 + $0x4c] sm:$0xf]
    %v8491 = vld [vmem:[%s8470 + $0x50] sm:$0xf]
    %v8492 = vld [vmem:[%s8470 + $0x54] sm:$0xf]
    %v8493 = vld [vmem:[%s8470 + $0x58] sm:$0xf]
    %v8494 = vld [vmem:[%s8470 + $0x5c] sm:$0xf]
    %v8495 = vld [vmem:[%s8470 + $0x60] sm:$0xf]
    %v8496 = vld [vmem:[%s8470 + $0x64] sm:$0xf]
    %v8497 = vld [vmem:[%s8470 + $0x68] sm:$0xf]
    %v8498 = vld [vmem:[%s8470 + $0x6c] sm:$0xf]
    %v8499 = vld [vmem:[%s8470 + $0x70] sm:$0xf]
    %v8500 = vld [vmem:[%s8470 + $0x74] sm:$0xf]
    %v8501 = vld [vmem:[%s8470 + $0x78] sm:$0xf]
    %v8502 = vld [vmem:[%s8470 + $0x7c] sm:$0xf]
    %v8503 = vld [vmem:[%s8470 + $0x80] sm:$0xf]
    %v8504 = vld [vmem:[%s8470 + $0x84] sm:$0xf]
    %v8505 = vld [vmem:[%s8470 + $0x88] sm:$0xf]
    %v8506 = vld [vmem:[%s8470 + $0x8c] sm:$0xf]
    %v8507 = vld [vmem:[%s8470 + $0x90] sm:$0xf]
    %v8508 = vld [vmem:[%s8470 + $0x94] sm:$0xf]
    %v8509 = vld [vmem:[%s8470 + $0x98] sm:$0xf]
    %v8510 = vld [vmem:[%s8470 + $0x9c] sm:$0xf]
    %v8511 = vld [vmem:[%s8470 + $0xa0] sm:$0xf]
    %v8512 = vld [vmem:[%s8470 + $0xa4] sm:$0xf]
    %v8513 = vld [vmem:[%s8470 + $0xa8] sm:$0xf]
    %v8514 = vld [vmem:[%s8470 + $0xac] sm:$0xf]
    %v8515 = vld [vmem:[%s8470 + $0xb0] sm:$0xf]
    %v8516 = vld [vmem:[%s8470 + $0xb4] sm:$0xf]
    %v8517 = vld [vmem:[%s8470 + $0xb8] sm:$0xf]
    %v8518 = vld [vmem:[%s8470 + $0xbc] sm:$0xf]
    %v8519 = vld [vmem:[%s8470 + $0xc0] sm:$0xf]
    %v8520 = vld [vmem:[%s8470 + $0xc4] sm:$0xf]
    %v8521 = vld [vmem:[%s8470 + $0xc8] sm:$0xf]
    %v8522 = vld [vmem:[%s8470 + $0xcc] sm:$0xf]
    %v8523 = vld [vmem:[%s8470 + $0xd0] sm:$0xf]
    %v8524 = vld [vmem:[%s8470 + $0xd4] sm:$0xf]
    %v8525 = vld [vmem:[%s8470 + $0xd8] sm:$0xf]
    %v8526 = vld [vmem:[%s8470 + $0xdc] sm:$0xf]
    %v8527 = vld [vmem:[%s8470 + $0xe0] sm:$0xf]
    %v8528 = vld [vmem:[%s8470 + $0xe4] sm:$0xf]
    %v8529 = vld [vmem:[%s8470 + $0xe8] sm:$0xf]
    %v8530 = vld [vmem:[%s8470 + $0xec] sm:$0xf]
    %v8531 = vld [vmem:[%s8470 + $0xf0] sm:$0xf]
    %v8532 = vld [vmem:[%s8470 + $0xf4] sm:$0xf]
    %v8533 = vld [vmem:[%s8470 + $0xf8] sm:$0xf]
    %v8534 = vld [vmem:[%s8470 + $0xfc] sm:$0xf]
    %v8535 = vld [vmem:[%s8470 + $0x100] sm:$0xf]
    %v8536 = vld [vmem:[%s8470 + $0x104] sm:$0xf]
    %v8537 = vld [vmem:[%s8470 + $0x108] sm:$0xf]
    %v8538 = vld [vmem:[%s8470 + $0x10c] sm:$0xf]
    %v8539 = vld [vmem:[%s8470 + $0x110] sm:$0xf]
    %v8540 = vld [vmem:[%s8470 + $0x114] sm:$0xf]
    %v8541 = vld [vmem:[%s8470 + $0x118] sm:$0xf]
    %v8542 = vld [vmem:[%s8470 + $0x11c] sm:$0xf]
    %v8543 = vld [vmem:[%s8470 + $0x120] sm:$0xf]
    %v8544 = vld [vmem:[%s8470 + $0x124] sm:$0xf]
    %v8545 = vld [vmem:[%s8470 + $0x128] sm:$0xf]
    %v8546 = vld [vmem:[%s8470 + $0x12c] sm:$0xf]
    %v8547 = vld [vmem:[%s8470 + $0x130] sm:$0xf]
    %v8548 = vld [vmem:[%s8470 + $0x134] sm:$0xf]
    %v8549 = vld [vmem:[%s8470 + $0x138] sm:$0xf]
    %v8550 = vld [vmem:[%s8470 + $0x13c] sm:$0xf]
    %v8551 = vld [vmem:[%s8470 + $0x140] sm:$0xf]
    %v8552 = vld [vmem:[%s8470 + $0x144] sm:$0xf]
    %v8553 = vld [vmem:[%s8470 + $0x148] sm:$0xf]
    %v8554 = vld [vmem:[%s8470 + $0x14c] sm:$0xf]
    %v8555 = vld [vmem:[%s8470 + $0x150] sm:$0xf]
    %v8556 = vld [vmem:[%s8470 + $0x154] sm:$0xf]
    %v8557 = vld [vmem:[%s8470 + $0x158] sm:$0xf]
    %v8558 = vld [vmem:[%s8470 + $0x15c] sm:$0xf]
    %v8559 = vld [vmem:[%s8470 + $0x160] sm:$0xf]
    %v8560 = vld [vmem:[%s8470 + $0x164] sm:$0xf]
    %v8561 = vld [vmem:[%s8470 + $0x168] sm:$0xf]
    %v8562 = vld [vmem:[%s8470 + $0x16c] sm:$0xf]
    %v8563 = vld [vmem:[%s8470 + $0x170] sm:$0xf]
    %v8564 = vld [vmem:[%s8470 + $0x174] sm:$0xf]
    %v8565 = vld [vmem:[%s8470 + $0x178] sm:$0xf]
    %v8566 = vld [vmem:[%s8470 + $0x17c] sm:$0xf]
    %v8567 = vld [vmem:[%s8470 + $0x180] sm:$0xf]
    %v8568 = vld [vmem:[%s8470 + $0x184] sm:$0xf]
    %v8569 = vld [vmem:[%s8470 + $0x188] sm:$0xf]
    %v8570 = vld [vmem:[%s8470 + $0x18c] sm:$0xf]
    %v8571 = vld [vmem:[%s8470 + $0x190] sm:$0xf]
    %v8572 = vld [vmem:[%s8470 + $0x194] sm:$0xf]
    %v8573 = vld [vmem:[%s8470 + $0x198] sm:$0xf]
    %v8574 = vld [vmem:[%s8470 + $0x19c] sm:$0xf]
    %v8575 = vld [vmem:[%s8470 + $0x1a0] sm:$0xf]
    %v8576 = vld [vmem:[%s8470 + $0x1a4] sm:$0xf]
    %v8577 = vld [vmem:[%s8470 + $0x1a8] sm:$0xf]
    %v8578 = vld [vmem:[%s8470 + $0x1ac] sm:$0xf]
    %v8579 = vld [vmem:[%s8470 + $0x1b0] sm:$0xf]
    %v8580 = vld [vmem:[%s8470 + $0x1b4] sm:$0xf]
    %v8581 = vld [vmem:[%s8470 + $0x1b8] sm:$0xf]
    %v8582 = vld [vmem:[%s8470 + $0x1bc] sm:$0xf]
    %v8583 = vld [vmem:[%s8470 + $0x1c0] sm:$0xf]
    %v8584 = vld [vmem:[%s8470 + $0x1c4] sm:$0xf]
    %v8585 = vld [vmem:[%s8470 + $0x1c8] sm:$0xf]
    %v8586 = vld [vmem:[%s8470 + $0x1cc] sm:$0xf]
    %v8587 = vld [vmem:[%s8470 + $0x1d0] sm:$0xf]
    %v8588 = vld [vmem:[%s8470 + $0x1d4] sm:$0xf]
    %v8589 = vld [vmem:[%s8470 + $0x1d8] sm:$0xf]
    %v8590 = vld [vmem:[%s8470 + $0x1dc] sm:$0xf]
    %v8591 = vld [vmem:[%s8470 + $0x1e0] sm:$0xf]
    %v8592 = vld [vmem:[%s8470 + $0x1e4] sm:$0xf]
    %v8593 = vld [vmem:[%s8470 + $0x1e8] sm:$0xf]
    %v8594 = vld [vmem:[%s8470 + $0x1ec] sm:$0xf]
    %v8595 = vld [vmem:[%s8470 + $0x1f0] sm:$0xf]
    %v8596 = vld [vmem:[%s8470 + $0x1f4] sm:$0xf]
    %v8597 = vld [vmem:[%s8470 + $0x1f8] sm:$0xf]
    %v8598 = vld [vmem:[%s8470 + $0x1fc] sm:$0xf]
    %v8599 = vld [vmem:[%s8470 + $0x200] sm:$0xf]
    %v8600 = vld [vmem:[%s8470 + $0x204] sm:$0xf]
    %v8601 = vld [vmem:[%s8470 + $0x208] sm:$0xf]
    %v8602 = vld [vmem:[%s8470 + $0x20c] sm:$0xf]
    %v8603 = vld [vmem:[%s8470 + $0x210] sm:$0xf]
    %v8604 = vld [vmem:[%s8470 + $0x214] sm:$0xf]
    %v8605 = vld [vmem:[%s8470 + $0x218] sm:$0xf]
    %v8606 = vld [vmem:[%s8470 + $0x21c] sm:$0xf]
    %v8607 = vld [vmem:[%s8470 + $0x220] sm:$0xf]
    %v8608 = vld [vmem:[%s8470 + $0x224] sm:$0xf]
    %v8609 = vld [vmem:[%s8470 + $0x228] sm:$0xf]
    %v8610 = vld [vmem:[%s8470 + $0x22c] sm:$0xf]
    %v8611 = vld [vmem:[%s8470 + $0x230] sm:$0xf]
    %v8612 = vld [vmem:[%s8470 + $0x234] sm:$0xf]
    %v8613 = vld [vmem:[%s8470 + $0x238] sm:$0xf]
    %v8614 = vld [vmem:[%s8470 + $0x23c] sm:$0xf]
    %v8615 = vld [vmem:[%s8470 + $0x240] sm:$0xf]
    %v8616 = vld [vmem:[%s8470 + $0x244] sm:$0xf]
    %v8617 = vld [vmem:[%s8470 + $0x248] sm:$0xf]
    %v8618 = vld [vmem:[%s8470 + $0x24c] sm:$0xf]
    %v8619 = vld [vmem:[%s8470 + $0x250] sm:$0xf]
    %v8620 = vld [vmem:[%s8470 + $0x254] sm:$0xf]
    %v8621 = vld [vmem:[%s8470 + $0x258] sm:$0xf]
    %v8622 = vld [vmem:[%s8470 + $0x25c] sm:$0xf]
    %v8623 = vld [vmem:[%s8470 + $0x260] sm:$0xf]
    %v8624 = vld [vmem:[%s8470 + $0x264] sm:$0xf]
    %v8625 = vld [vmem:[%s8470 + $0x268] sm:$0xf]
    %v8626 = vld [vmem:[%s8470 + $0x26c] sm:$0xf]
    %v8627 = vld [vmem:[%s8470 + $0x270] sm:$0xf]
    %v8628 = vld [vmem:[%s8470 + $0x274] sm:$0xf]
    %v8629 = vld [vmem:[%s8470 + $0x278] sm:$0xf]
    %v8630 = vld [vmem:[%s8470 + $0x27c] sm:$0xf]
    %v8631 = vld [vmem:[%s8470 + $0x280] sm:$0xf]
    %v8632 = vld [vmem:[%s8470 + $0x284] sm:$0xf]
    %v8633 = vld [vmem:[%s8470 + $0x288] sm:$0xf]
    %v8634 = vld [vmem:[%s8470 + $0x28c] sm:$0xf]
    %v8635 = vld [vmem:[%s8470 + $0x290] sm:$0xf]
    %v8636 = vld [vmem:[%s8470 + $0x294] sm:$0xf]
    %v8637 = vld [vmem:[%s8470 + $0x298] sm:$0xf]
    %v8638 = vld [vmem:[%s8470 + $0x29c] sm:$0xf]
    %v8639 = vld [vmem:[%s8470 + $0x2a0] sm:$0xf]
    %v8640 = vld [vmem:[%s8470 + $0x2a4] sm:$0xf]
    %v8641 = vld [vmem:[%s8470 + $0x2a8] sm:$0xf]
    %v8642 = vld [vmem:[%s8470 + $0x2ac] sm:$0xf]
    %v8643 = vld [vmem:[%s8470 + $0x2b0] sm:$0xf]
    %v8644 = vld [vmem:[%s8470 + $0x2b4] sm:$0xf]
    %v8645 = vld [vmem:[%s8470 + $0x2b8] sm:$0xf]
    %v8646 = vld [vmem:[%s8470 + $0x2bc] sm:$0xf]
    %v8647 = vld [vmem:[%s8470 + $0x2c0] sm:$0xf]
    %v8648 = vld [vmem:[%s8470 + $0x2c4] sm:$0xf]
    %v8649 = vld [vmem:[%s8470 + $0x2c8] sm:$0xf]
    %v8650 = vld [vmem:[%s8470 + $0x2cc] sm:$0xf]
    %v8651 = vld [vmem:[%s8470 + $0x2d0] sm:$0xf]
    %v8652 = vld [vmem:[%s8470 + $0x2d4] sm:$0xf]
    %v8653 = vld [vmem:[%s8470 + $0x2d8] sm:$0xf]
    %v8654 = vld [vmem:[%s8470 + $0x2dc] sm:$0xf]
    %v8655 = vld [vmem:[%s8470 + $0x2e0] sm:$0xf]
    %v8656 = vld [vmem:[%s8470 + $0x2e4] sm:$0xf]
    %v8657 = vld [vmem:[%s8470 + $0x2e8] sm:$0xf]
    %v8658 = vld [vmem:[%s8470 + $0x2ec] sm:$0xf]
    %v8659 = vld [vmem:[%s8470 + $0x2f0] sm:$0xf]
    %v8660 = vld [vmem:[%s8470 + $0x2f4] sm:$0xf]
    %v8661 = vld [vmem:[%s8470 + $0x2f8] sm:$0xf]
    %v8662 = vld [vmem:[%s8470 + $0x2fc] sm:$0xf]
    %v8663 = vld [vmem:[%s8470 + $0x300] sm:$0xf]
    %v8664 = vld [vmem:[%s8470 + $0x304] sm:$0xf]
    %v8665 = vld [vmem:[%s8470 + $0x308] sm:$0xf]
    %v8666 = vld [vmem:[%s8470 + $0x30c] sm:$0xf]
    %v8667 = vld [vmem:[%s8470 + $0x310] sm:$0xf]
    %v8668 = vld [vmem:[%s8470 + $0x314] sm:$0xf]
    %v8669 = vld [vmem:[%s8470 + $0x318] sm:$0xf]
    %v8670 = vld [vmem:[%s8470 + $0x31c] sm:$0xf]
    %v8671 = vld [vmem:[%s8470 + $0x320] sm:$0xf]
    %v8672 = vld [vmem:[%s8470 + $0x324] sm:$0xf]
    %v8673 = vld [vmem:[%s8470 + $0x328] sm:$0xf]
    %v8674 = vld [vmem:[%s8470 + $0x32c] sm:$0xf]
    %v8675 = vld [vmem:[%s8470 + $0x330] sm:$0xf]
    %v8676 = vld [vmem:[%s8470 + $0x334] sm:$0xf]
    %v8677 = vld [vmem:[%s8470 + $0x338] sm:$0xf]
    %v8678 = vld [vmem:[%s8470 + $0x33c] sm:$0xf]
    %v8679 = vld [vmem:[%s8470 + $0x340] sm:$0xf]
    %v8680 = vld [vmem:[%s8470 + $0x344] sm:$0xf]
    %v8681 = vld [vmem:[%s8470 + $0x348] sm:$0xf]
    %v8682 = vld [vmem:[%s8470 + $0x34c] sm:$0xf]
    %v8683 = vld [vmem:[%s8470 + $0x350] sm:$0xf]
    %v8684 = vld [vmem:[%s8470 + $0x354] sm:$0xf]
    %v8685 = vld [vmem:[%s8470 + $0x358] sm:$0xf]
    %v8686 = vld [vmem:[%s8470 + $0x35c] sm:$0xf]
    %v8687 = vld [vmem:[%s8470 + $0x360] sm:$0xf]
    %v8688 = vld [vmem:[%s8470 + $0x364] sm:$0xf]
    %v8689 = vld [vmem:[%s8470 + $0x368] sm:$0xf]
    %v8690 = vld [vmem:[%s8470 + $0x36c] sm:$0xf]
    %v8691 = vld [vmem:[%s8470 + $0x370] sm:$0xf]
    %v8692 = vld [vmem:[%s8470 + $0x374] sm:$0xf]
    %v8693 = vld [vmem:[%s8470 + $0x378] sm:$0xf]
    %v8694 = vld [vmem:[%s8470 + $0x37c] sm:$0xf]
    %v8695 = vld [vmem:[%s8470 + $0x380] sm:$0xf]
    %v8696 = vld [vmem:[%s8470 + $0x384] sm:$0xf]
    %v8697 = vld [vmem:[%s8470 + $0x388] sm:$0xf]
    %v8698 = vld [vmem:[%s8470 + $0x38c] sm:$0xf]
    %v8699 = vld [vmem:[%s8470 + $0x390] sm:$0xf]
    %v8700 = vld [vmem:[%s8470 + $0x394] sm:$0xf]
    %v8701 = vld [vmem:[%s8470 + $0x398] sm:$0xf]
    %v8702 = vld [vmem:[%s8470 + $0x39c] sm:$0xf]
    %v8703 = vld [vmem:[%s8470 + $0x3a0] sm:$0xf]
    %v8704 = vld [vmem:[%s8470 + $0x3a4] sm:$0xf]
    %v8705 = vld [vmem:[%s8470 + $0x3a8] sm:$0xf]
    %v8706 = vld [vmem:[%s8470 + $0x3ac] sm:$0xf]
    %v8707 = vld [vmem:[%s8470 + $0x3b0] sm:$0xf]
    %v8708 = vld [vmem:[%s8470 + $0x3b4] sm:$0xf]
    %v8709 = vld [vmem:[%s8470 + $0x3b8] sm:$0xf]
    %v8710 = vld [vmem:[%s8470 + $0x3bc] sm:$0xf]
    %v8711 = vld [vmem:[%s8470 + $0x3c0] sm:$0xf]
    %v8712 = vld [vmem:[%s8470 + $0x3c4] sm:$0xf]
    %v8713 = vld [vmem:[%s8470 + $0x3c8] sm:$0xf]
    %v8714 = vld [vmem:[%s8470 + $0x3cc] sm:$0xf]
    %v8715 = vld [vmem:[%s8470 + $0x3d0] sm:$0xf]
    %v8716 = vld [vmem:[%s8470 + $0x3d4] sm:$0xf]
    %v8717 = vld [vmem:[%s8470 + $0x3d8] sm:$0xf]
    %v8718 = vld [vmem:[%s8470 + $0x3dc] sm:$0xf]
    %v8719 = vld [vmem:[%s8470 + $0x3e0] sm:$0xf]
    %v8720 = vld [vmem:[%s8470 + $0x3e4] sm:$0xf]
    %v8721 = vld [vmem:[%s8470 + $0x3e8] sm:$0xf]
    %v8722 = vld [vmem:[%s8470 + $0x3ec] sm:$0xf]
    %v8723 = vld [vmem:[%s8470 + $0x3f0] sm:$0xf]
    %v8724 = vld [vmem:[%s8470 + $0x3f4] sm:$0xf]
    %v8725 = vld [vmem:[%s8470 + $0x3f8] sm:$0xf]
    %v8726 = vld [vmem:[%s8470 + $0x3fc] sm:$0xf]
    %s8727 = scalar_lea.vmem [#allocation16], 11
    %v8728 = vld [vmem:[%s8727] sm:$0x1]
    %v8730 = vperm.slane %v8728, 0
    %v8988 = vunpack.c.l.b16 %v8471
    %v8989 = vunpack.c.l.b16 %v8472
    %v8990 = vunpack.c.l.b16 %v8473
    %v8991 = vunpack.c.l.b16 %v8474
    %v8992 = vunpack.c.l.b16 %v8475
    %v8993 = vunpack.c.l.b16 %v8476
    %v8994 = vunpack.c.l.b16 %v8477
    %v8995 = vunpack.c.l.b16 %v8478
    %v8996 = vunpack.c.l.b16 %v8479
    %v8997 = vunpack.c.l.b16 %v8480
    %v8998 = vunpack.c.l.b16 %v8481
    %v8999 = vunpack.c.l.b16 %v8482
    %v9000 = vunpack.c.l.b16 %v8483
    %v9001 = vunpack.c.l.b16 %v8484
    %v9002 = vunpack.c.l.b16 %v8485
    %v9003 = vunpack.c.l.b16 %v8486
    %v9004 = vunpack.c.l.b16 %v8487
    %v9005 = vunpack.c.l.b16 %v8488
    %v9006 = vunpack.c.l.b16 %v8489
    %v9007 = vunpack.c.l.b16 %v8490
    %v9008 = vunpack.c.l.b16 %v8491
    %v9009 = vunpack.c.l.b16 %v8492
    %v9010 = vunpack.c.l.b16 %v8493
    %v9011 = vunpack.c.l.b16 %v8494
    %v9012 = vunpack.c.l.b16 %v8495
    %v9013 = vunpack.c.l.b16 %v8496
    %v9014 = vunpack.c.l.b16 %v8497
    %v9015 = vunpack.c.l.b16 %v8498
    %v9016 = vunpack.c.l.b16 %v8499
    %v9017 = vunpack.c.l.b16 %v8500
    %v9018 = vunpack.c.l.b16 %v8501
    %v9019 = vunpack.c.l.b16 %v8502
    %v9020 = vunpack.c.l.b16 %v8503
    %v9021 = vunpack.c.l.b16 %v8504
    %v9022 = vunpack.c.l.b16 %v8505
    %v9023 = vunpack.c.l.b16 %v8506
    %v9024 = vunpack.c.l.b16 %v8507
    %v9025 = vunpack.c.l.b16 %v8508
    %v9026 = vunpack.c.l.b16 %v8509
    %v9027 = vunpack.c.l.b16 %v8510
    %v9028 = vunpack.c.l.b16 %v8511
    %v9029 = vunpack.c.l.b16 %v8512
    %v9030 = vunpack.c.l.b16 %v8513
    %v9031 = vunpack.c.l.b16 %v8514
    %v9032 = vunpack.c.l.b16 %v8515
    %v9033 = vunpack.c.l.b16 %v8516
    %v9034 = vunpack.c.l.b16 %v8517
    %v9035 = vunpack.c.l.b16 %v8518
    %v9036 = vunpack.c.l.b16 %v8519
    %v9037 = vunpack.c.l.b16 %v8520
    %v9038 = vunpack.c.l.b16 %v8521
    %v9039 = vunpack.c.l.b16 %v8522
    %v9040 = vunpack.c.l.b16 %v8523
    %v9041 = vunpack.c.l.b16 %v8524
    %v9042 = vunpack.c.l.b16 %v8525
    %v9043 = vunpack.c.l.b16 %v8526
    %v9044 = vunpack.c.l.b16 %v8527
    %v9045 = vunpack.c.l.b16 %v8528
    %v9046 = vunpack.c.l.b16 %v8529
    %v9047 = vunpack.c.l.b16 %v8530
    %v9048 = vunpack.c.l.b16 %v8531
    %v9049 = vunpack.c.l.b16 %v8532
    %v9050 = vunpack.c.l.b16 %v8533
    %v9051 = vunpack.c.l.b16 %v8534
    %v9052 = vunpack.c.l.b16 %v8535
    %v9053 = vunpack.c.l.b16 %v8536
    %v9054 = vunpack.c.l.b16 %v8537
    %v9055 = vunpack.c.l.b16 %v8538
    %v9056 = vunpack.c.l.b16 %v8539
    %v9057 = vunpack.c.l.b16 %v8540
    %v9058 = vunpack.c.l.b16 %v8541
    %v9059 = vunpack.c.l.b16 %v8542
    %v9060 = vunpack.c.l.b16 %v8543
    %v9061 = vunpack.c.l.b16 %v8544
    %v9062 = vunpack.c.l.b16 %v8545
    %v9063 = vunpack.c.l.b16 %v8546
    %v9064 = vunpack.c.l.b16 %v8547
    %v9065 = vunpack.c.l.b16 %v8548
    %v9066 = vunpack.c.l.b16 %v8549
    %v9067 = vunpack.c.l.b16 %v8550
    %v9068 = vunpack.c.l.b16 %v8551
    %v9069 = vunpack.c.l.b16 %v8552
    %v9070 = vunpack.c.l.b16 %v8553
    %v9071 = vunpack.c.l.b16 %v8554
    %v9072 = vunpack.c.l.b16 %v8555
    %v9073 = vunpack.c.l.b16 %v8556
    %v9074 = vunpack.c.l.b16 %v8557
    %v9075 = vunpack.c.l.b16 %v8558
    %v9076 = vunpack.c.l.b16 %v8559
    %v9077 = vunpack.c.l.b16 %v8560
    %v9078 = vunpack.c.l.b16 %v8561
    %v9079 = vunpack.c.l.b16 %v8562
    %v9080 = vunpack.c.l.b16 %v8563
    %v9081 = vunpack.c.l.b16 %v8564
    %v9082 = vunpack.c.l.b16 %v8565
    %v9083 = vunpack.c.l.b16 %v8566
    %v9084 = vunpack.c.l.b16 %v8567
    %v9085 = vunpack.c.l.b16 %v8568
    %v9086 = vunpack.c.l.b16 %v8569
    %v9087 = vunpack.c.l.b16 %v8570
    %v9088 = vunpack.c.l.b16 %v8571
    %v9089 = vunpack.c.l.b16 %v8572
    %v9090 = vunpack.c.l.b16 %v8573
    %v9091 = vunpack.c.l.b16 %v8574
    %v9092 = vunpack.c.l.b16 %v8575
    %v9093 = vunpack.c.l.b16 %v8576
    %v9094 = vunpack.c.l.b16 %v8577
    %v9095 = vunpack.c.l.b16 %v8578
    %v9096 = vunpack.c.l.b16 %v8579
    %v9097 = vunpack.c.l.b16 %v8580
    %v9098 = vunpack.c.l.b16 %v8581
    %v9099 = vunpack.c.l.b16 %v8582
    %v9100 = vunpack.c.l.b16 %v8583
    %v9101 = vunpack.c.l.b16 %v8584
    %v9102 = vunpack.c.l.b16 %v8585
    %v9103 = vunpack.c.l.b16 %v8586
    %v9104 = vunpack.c.l.b16 %v8587
    %v9105 = vunpack.c.l.b16 %v8588
    %v9106 = vunpack.c.l.b16 %v8589
    %v9107 = vunpack.c.l.b16 %v8590
    %v9108 = vunpack.c.l.b16 %v8591
    %v9109 = vunpack.c.l.b16 %v8592
    %v9110 = vunpack.c.l.b16 %v8593
    %v9111 = vunpack.c.l.b16 %v8594
    %v9112 = vunpack.c.l.b16 %v8595
    %v9113 = vunpack.c.l.b16 %v8596
    %v9114 = vunpack.c.l.b16 %v8597
    %v9115 = vunpack.c.l.b16 %v8598
    %v9116 = vunpack.c.l.b16 %v8599
    %v9117 = vunpack.c.l.b16 %v8600
    %v9118 = vunpack.c.l.b16 %v8601
    %v9119 = vunpack.c.l.b16 %v8602
    %v9120 = vunpack.c.l.b16 %v8603
    %v9121 = vunpack.c.l.b16 %v8604
    %v9122 = vunpack.c.l.b16 %v8605
    %v9123 = vunpack.c.l.b16 %v8606
    %v9124 = vunpack.c.l.b16 %v8607
    %v9125 = vunpack.c.l.b16 %v8608
    %v9126 = vunpack.c.l.b16 %v8609
    %v9127 = vunpack.c.l.b16 %v8610
    %v9128 = vunpack.c.l.b16 %v8611
    %v9129 = vunpack.c.l.b16 %v8612
    %v9130 = vunpack.c.l.b16 %v8613
    %v9131 = vunpack.c.l.b16 %v8614
    %v9132 = vunpack.c.l.b16 %v8615
    %v9133 = vunpack.c.l.b16 %v8616
    %v9134 = vunpack.c.l.b16 %v8617
    %v9135 = vunpack.c.l.b16 %v8618
    %v9136 = vunpack.c.l.b16 %v8619
    %v9137 = vunpack.c.l.b16 %v8620
    %v9138 = vunpack.c.l.b16 %v8621
    %v9139 = vunpack.c.l.b16 %v8622
    %v9140 = vunpack.c.l.b16 %v8623
    %v9141 = vunpack.c.l.b16 %v8624
    %v9142 = vunpack.c.l.b16 %v8625
    %v9143 = vunpack.c.l.b16 %v8626
    %v9144 = vunpack.c.l.b16 %v8627
    %v9145 = vunpack.c.l.b16 %v8628
    %v9146 = vunpack.c.l.b16 %v8629
    %v9147 = vunpack.c.l.b16 %v8630
    %v9148 = vunpack.c.l.b16 %v8631
    %v9149 = vunpack.c.l.b16 %v8632
    %v9150 = vunpack.c.l.b16 %v8633
    %v9151 = vunpack.c.l.b16 %v8634
    %v9152 = vunpack.c.l.b16 %v8635
    %v9153 = vunpack.c.l.b16 %v8636
    %v9154 = vunpack.c.l.b16 %v8637
    %v9155 = vunpack.c.l.b16 %v8638
    %v9156 = vunpack.c.l.b16 %v8639
    %v9157 = vunpack.c.l.b16 %v8640
    %v9158 = vunpack.c.l.b16 %v8641
    %v9159 = vunpack.c.l.b16 %v8642
    %v9160 = vunpack.c.l.b16 %v8643
    %v9161 = vunpack.c.l.b16 %v8644
    %v9162 = vunpack.c.l.b16 %v8645
    %v9163 = vunpack.c.l.b16 %v8646
    %v9164 = vunpack.c.l.b16 %v8647
    %v9165 = vunpack.c.l.b16 %v8648
    %v9166 = vunpack.c.l.b16 %v8649
    %v9167 = vunpack.c.l.b16 %v8650
    %v9168 = vunpack.c.l.b16 %v8651
    %v9169 = vunpack.c.l.b16 %v8652
    %v9170 = vunpack.c.l.b16 %v8653
    %v9171 = vunpack.c.l.b16 %v8654
    %v9172 = vunpack.c.l.b16 %v8655
    %v9173 = vunpack.c.l.b16 %v8656
    %v9174 = vunpack.c.l.b16 %v8657
    %v9175 = vunpack.c.l.b16 %v8658
    %v9176 = vunpack.c.l.b16 %v8659
    %v9177 = vunpack.c.l.b16 %v8660
    %v9178 = vunpack.c.l.b16 %v8661
    %v9179 = vunpack.c.l.b16 %v8662
    %v9180 = vunpack.c.l.b16 %v8663
    %v9181 = vunpack.c.l.b16 %v8664
    %v9182 = vunpack.c.l.b16 %v8665
    %v9183 = vunpack.c.l.b16 %v8666
    %v9184 = vunpack.c.l.b16 %v8667
    %v9185 = vunpack.c.l.b16 %v8668
    %v9186 = vunpack.c.l.b16 %v8669
    %v9187 = vunpack.c.l.b16 %v8670
    %v9188 = vunpack.c.l.b16 %v8671
    %v9189 = vunpack.c.l.b16 %v8672
    %v9190 = vunpack.c.l.b16 %v8673
    %v9191 = vunpack.c.l.b16 %v8674
    %v9192 = vunpack.c.l.b16 %v8675
    %v9193 = vunpack.c.l.b16 %v8676
    %v9194 = vunpack.c.l.b16 %v8677
    %v9195 = vunpack.c.l.b16 %v8678
    %v9196 = vunpack.c.l.b16 %v8679
    %v9197 = vunpack.c.l.b16 %v8680
    %v9198 = vunpack.c.l.b16 %v8681
    %v9199 = vunpack.c.l.b16 %v8682
    %v9200 = vunpack.c.l.b16 %v8683
    %v9201 = vunpack.c.l.b16 %v8684
    %v9202 = vunpack.c.l.b16 %v8685
    %v9203 = vunpack.c.l.b16 %v8686
    %v9204 = vunpack.c.l.b16 %v8687
    %v9205 = vunpack.c.l.b16 %v8688
    %v9206 = vunpack.c.l.b16 %v8689
    %v9207 = vunpack.c.l.b16 %v8690
    %v9208 = vunpack.c.l.b16 %v8691
    %v9209 = vunpack.c.l.b16 %v8692
    %v9210 = vunpack.c.l.b16 %v8693
    %v9211 = vunpack.c.l.b16 %v8694
    %v9212 = vunpack.c.l.b16 %v8695
    %v9213 = vunpack.c.l.b16 %v8696
    %v9214 = vunpack.c.l.b16 %v8697
    %v9215 = vunpack.c.l.b16 %v8698
    %v9216 = vunpack.c.l.b16 %v8699
    %v9217 = vunpack.c.l.b16 %v8700
    %v9218 = vunpack.c.l.b16 %v8701
    %v9219 = vunpack.c.l.b16 %v8702
    %v9220 = vunpack.c.l.b16 %v8703
    %v9221 = vunpack.c.l.b16 %v8704
    %v9222 = vunpack.c.l.b16 %v8705
    %v9223 = vunpack.c.l.b16 %v8706
    %v9224 = vunpack.c.l.b16 %v8707
    %v9225 = vunpack.c.l.b16 %v8708
    %v9226 = vunpack.c.l.b16 %v8709
    %v9227 = vunpack.c.l.b16 %v8710
    %v9228 = vunpack.c.l.b16 %v8711
    %v9229 = vunpack.c.l.b16 %v8712
    %v9230 = vunpack.c.l.b16 %v8713
    %v9231 = vunpack.c.l.b16 %v8714
    %v9232 = vunpack.c.l.b16 %v8715
    %v9233 = vunpack.c.l.b16 %v8716
    %v9234 = vunpack.c.l.b16 %v8717
    %v9235 = vunpack.c.l.b16 %v8718
    %v9236 = vunpack.c.l.b16 %v8719
    %v9237 = vunpack.c.l.b16 %v8720
    %v9238 = vunpack.c.l.b16 %v8721
    %v9239 = vunpack.c.l.b16 %v8722
    %v9240 = vunpack.c.l.b16 %v8723
    %v9241 = vunpack.c.l.b16 %v8724
    %v9242 = vunpack.c.l.b16 %v8725
    %v9243 = vunpack.c.l.b16 %v8726
    %v9244 = vpack.c.b16 %v8989, %v8988
    %v9245 = vpack.c.b16 %v8991, %v8990
    %v9246 = vpack.c.b16 %v8993, %v8992
    %v9247 = vpack.c.b16 %v8995, %v8994
    %v9248 = vpack.c.b16 %v8997, %v8996
    %v9249 = vpack.c.b16 %v8999, %v8998
    %v9250 = vpack.c.b16 %v9001, %v9000
    %v9251 = vpack.c.b16 %v9003, %v9002
    %v9252 = vpack.c.b16 %v9005, %v9004
    %v9253 = vpack.c.b16 %v9007, %v9006
    %v9254 = vpack.c.b16 %v9009, %v9008
    %v9255 = vpack.c.b16 %v9011, %v9010
    %v9256 = vpack.c.b16 %v9013, %v9012
    %v9257 = vpack.c.b16 %v9015, %v9014
    %v9258 = vpack.c.b16 %v9017, %v9016
    %v9259 = vpack.c.b16 %v9019, %v9018
    %v9260 = vpack.c.b16 %v9021, %v9020
    %v9261 = vpack.c.b16 %v9023, %v9022
    %v9262 = vpack.c.b16 %v9025, %v9024
    %v9263 = vpack.c.b16 %v9027, %v9026
    %v9264 = vpack.c.b16 %v9029, %v9028
    %v9265 = vpack.c.b16 %v9031, %v9030
    %v9266 = vpack.c.b16 %v9033, %v9032
    %v9267 = vpack.c.b16 %v9035, %v9034
    %v9268 = vpack.c.b16 %v9037, %v9036
    %v9269 = vpack.c.b16 %v9039, %v9038
    %v9270 = vpack.c.b16 %v9041, %v9040
    %v9271 = vpack.c.b16 %v9043, %v9042
    %v9272 = vpack.c.b16 %v9045, %v9044
    %v9273 = vpack.c.b16 %v9047, %v9046
    %v9274 = vpack.c.b16 %v9049, %v9048
    %v9275 = vpack.c.b16 %v9051, %v9050
    %v9276 = vpack.c.b16 %v9053, %v9052
    %v9277 = vpack.c.b16 %v9055, %v9054
    %v9278 = vpack.c.b16 %v9057, %v9056
    %v9279 = vpack.c.b16 %v9059, %v9058
    %v9280 = vpack.c.b16 %v9061, %v9060
    %v9281 = vpack.c.b16 %v9063, %v9062
    %v9282 = vpack.c.b16 %v9065, %v9064
    %v9283 = vpack.c.b16 %v9067, %v9066
    %v9284 = vpack.c.b16 %v9069, %v9068
    %v9285 = vpack.c.b16 %v9071, %v9070
    %v9286 = vpack.c.b16 %v9073, %v9072
    %v9287 = vpack.c.b16 %v9075, %v9074
    %v9288 = vpack.c.b16 %v9077, %v9076
    %v9289 = vpack.c.b16 %v9079, %v9078
    %v9290 = vpack.c.b16 %v9081, %v9080
    %v9291 = vpack.c.b16 %v9083, %v9082
    %v9292 = vpack.c.b16 %v9085, %v9084
    %v9293 = vpack.c.b16 %v9087, %v9086
    %v9294 = vpack.c.b16 %v9089, %v9088
    %v9295 = vpack.c.b16 %v9091, %v9090
    %v9296 = vpack.c.b16 %v9093, %v9092
    %v9297 = vpack.c.b16 %v9095, %v9094
    %v9298 = vpack.c.b16 %v9097, %v9096
    %v9299 = vpack.c.b16 %v9099, %v9098
    %v9300 = vpack.c.b16 %v9101, %v9100
    %v9301 = vpack.c.b16 %v9103, %v9102
    %v9302 = vpack.c.b16 %v9105, %v9104
    %v9303 = vpack.c.b16 %v9107, %v9106
    %v9304 = vpack.c.b16 %v9109, %v9108
    %v9305 = vpack.c.b16 %v9111, %v9110
    %v9306 = vpack.c.b16 %v9113, %v9112
    %v9307 = vpack.c.b16 %v9115, %v9114
    %v9308 = vpack.c.b16 %v9117, %v9116
    %v9309 = vpack.c.b16 %v9119, %v9118
    %v9310 = vpack.c.b16 %v9121, %v9120
    %v9311 = vpack.c.b16 %v9123, %v9122
    %v9312 = vpack.c.b16 %v9125, %v9124
    %v9313 = vpack.c.b16 %v9127, %v9126
    %v9314 = vpack.c.b16 %v9129, %v9128
    %v9315 = vpack.c.b16 %v9131, %v9130
    %v9316 = vpack.c.b16 %v9133, %v9132
    %v9317 = vpack.c.b16 %v9135, %v9134
    %v9318 = vpack.c.b16 %v9137, %v9136
    %v9319 = vpack.c.b16 %v9139, %v9138
    %v9320 = vpack.c.b16 %v9141, %v9140
    %v9321 = vpack.c.b16 %v9143, %v9142
    %v9322 = vpack.c.b16 %v9145, %v9144
    %v9323 = vpack.c.b16 %v9147, %v9146
    %v9324 = vpack.c.b16 %v9149, %v9148
    %v9325 = vpack.c.b16 %v9151, %v9150
    %v9326 = vpack.c.b16 %v9153, %v9152
    %v9327 = vpack.c.b16 %v9155, %v9154
    %v9328 = vpack.c.b16 %v9157, %v9156
    %v9329 = vpack.c.b16 %v9159, %v9158
    %v9330 = vpack.c.b16 %v9161, %v9160
    %v9331 = vpack.c.b16 %v9163, %v9162
    %v9332 = vpack.c.b16 %v9165, %v9164
    %v9333 = vpack.c.b16 %v9167, %v9166
    %v9334 = vpack.c.b16 %v9169, %v9168
    %v9335 = vpack.c.b16 %v9171, %v9170
    %v9336 = vpack.c.b16 %v9173, %v9172
    %v9337 = vpack.c.b16 %v9175, %v9174
    %v9338 = vpack.c.b16 %v9177, %v9176
    %v9339 = vpack.c.b16 %v9179, %v9178
    %v9340 = vpack.c.b16 %v9181, %v9180
    %v9341 = vpack.c.b16 %v9183, %v9182
    %v9342 = vpack.c.b16 %v9185, %v9184
    %v9343 = vpack.c.b16 %v9187, %v9186
    %v9344 = vpack.c.b16 %v9189, %v9188
    %v9345 = vpack.c.b16 %v9191, %v9190
    %v9346 = vpack.c.b16 %v9193, %v9192
    %v9347 = vpack.c.b16 %v9195, %v9194
    %v9348 = vpack.c.b16 %v9197, %v9196
    %v9349 = vpack.c.b16 %v9199, %v9198
    %v9350 = vpack.c.b16 %v9201, %v9200
    %v9351 = vpack.c.b16 %v9203, %v9202
    %v9352 = vpack.c.b16 %v9205, %v9204
    %v9353 = vpack.c.b16 %v9207, %v9206
    %v9354 = vpack.c.b16 %v9209, %v9208
    %v9355 = vpack.c.b16 %v9211, %v9210
    %v9356 = vpack.c.b16 %v9213, %v9212
    %v9357 = vpack.c.b16 %v9215, %v9214
    %v9358 = vpack.c.b16 %v9217, %v9216
    %v9359 = vpack.c.b16 %v9219, %v9218
    %v9360 = vpack.c.b16 %v9221, %v9220
    %v9361 = vpack.c.b16 %v9223, %v9222
    %v9362 = vpack.c.b16 %v9225, %v9224
    %v9363 = vpack.c.b16 %v9227, %v9226
    %v9364 = vpack.c.b16 %v9229, %v9228
    %v9365 = vpack.c.b16 %v9231, %v9230
    %v9366 = vpack.c.b16 %v9233, %v9232
    %v9367 = vpack.c.b16 %v9235, %v9234
    %v9368 = vpack.c.b16 %v9237, %v9236
    %v9369 = vpack.c.b16 %v9239, %v9238
    %v9370 = vpack.c.b16 %v9241, %v9240
    %v9371 = vpack.c.b16 %v9243, %v9242
    %9500 = vmatpush.bf16.msra.mxu0 %v9251
    %9501 = vmatpush.bf16.msra.mxu0 %v9250
    %9502 = vmatpush.bf16.msra.mxu0 %v9249
    %9503 = vmatpush.bf16.msra.mxu0 %v9248
    %9504 = vmatpush.bf16.msra.mxu0 %v9247
    %9505 = vmatpush.bf16.msra.mxu0 %v9246
    %9506 = vmatpush.bf16.msra.mxu0 %v9245
    %9507 = vmatpush.bf16.msra.mxu0 %v9244
    %9508 = vmatmul.bf16.gmra.mxu0 %v8454
    %v9509 = vpop.f32.mrf.mxu0
    %v9510 = vadd.f32 %v8730, %v9509
    %v9511 = vpop.f32.mrf.mxu0
    %v9512 = vadd.f32 %v8730, %v9511
    %9513 = vdwg.mxu0
    %9514 = vmatpush.bf16.msra.mxu0 %v9259
    %9515 = vmatpush.bf16.msra.mxu0 %v9258
    %9516 = vmatpush.bf16.msra.mxu0 %v9257
    %9517 = vmatpush.bf16.msra.mxu0 %v9256
    %9518 = vmatpush.bf16.msra.mxu0 %v9255
    %9519 = vmatpush.bf16.msra.mxu0 %v9254
    %9520 = vmatpush.bf16.msra.mxu0 %v9253
    %9521 = vmatpush.bf16.msra.mxu0 %v9252
    %9522 = vmatmul.bf16.gmra.mxu0 %v8455
    %v9523 = vpop.f32.mrf.mxu0
    %v9524 = vadd.f32 %v9510, %v9523
    %v9525 = vpop.f32.mrf.mxu0
    %v9526 = vadd.f32 %v9512, %v9525
    %9527 = vdwg.mxu0
    %9528 = vmatpush.bf16.msra.mxu0 %v9267
    %9529 = vmatpush.bf16.msra.mxu0 %v9266
    %9530 = vmatpush.bf16.msra.mxu0 %v9265
    %9531 = vmatpush.bf16.msra.mxu0 %v9264
    %9532 = vmatpush.bf16.msra.mxu0 %v9263
    %9533 = vmatpush.bf16.msra.mxu0 %v9262
    %9534 = vmatpush.bf16.msra.mxu0 %v9261
    %9535 = vmatpush.bf16.msra.mxu0 %v9260
    %9536 = vmatmul.bf16.gmra.mxu0 %v8456
    %v9537 = vpop.f32.mrf.mxu0
    %v9538 = vadd.f32 %v9524, %v9537
    %v9539 = vpop.f32.mrf.mxu0
    %v9540 = vadd.f32 %v9526, %v9539
    %9541 = vdwg.mxu0
    %9542 = vmatpush.bf16.msra.mxu0 %v9275
    %9543 = vmatpush.bf16.msra.mxu0 %v9274
    %9544 = vmatpush.bf16.msra.mxu0 %v9273
    %9545 = vmatpush.bf16.msra.mxu0 %v9272
    %9546 = vmatpush.bf16.msra.mxu0 %v9271
    %9547 = vmatpush.bf16.msra.mxu0 %v9270
    %9548 = vmatpush.bf16.msra.mxu0 %v9269
    %9549 = vmatpush.bf16.msra.mxu0 %v9268
    %9550 = vmatmul.bf16.gmra.mxu0 %v8457
    %v9551 = vpop.f32.mrf.mxu0
    %v9552 = vadd.f32 %v9538, %v9551
    %v9553 = vpop.f32.mrf.mxu0
    %v9554 = vadd.f32 %v9540, %v9553
    %9555 = vdwg.mxu0
    %9556 = vmatpush.bf16.msra.mxu0 %v9283
    %9557 = vmatpush.bf16.msra.mxu0 %v9282
    %9558 = vmatpush.bf16.msra.mxu0 %v9281
    %9559 = vmatpush.bf16.msra.mxu0 %v9280
    %9560 = vmatpush.bf16.msra.mxu0 %v9279
    %9561 = vmatpush.bf16.msra.mxu0 %v9278
    %9562 = vmatpush.bf16.msra.mxu0 %v9277
    %9563 = vmatpush.bf16.msra.mxu0 %v9276
    %9564 = vmatmul.bf16.gmra.mxu0 %v8458
    %v9565 = vpop.f32.mrf.mxu0
    %v9566 = vadd.f32 %v9552, %v9565
    %v9567 = vpop.f32.mrf.mxu0
    %v9568 = vadd.f32 %v9554, %v9567
    %9569 = vdwg.mxu0
    %9570 = vmatpush.bf16.msra.mxu0 %v9291
    %9571 = vmatpush.bf16.msra.mxu0 %v9290
    %9572 = vmatpush.bf16.msra.mxu0 %v9289
    %9573 = vmatpush.bf16.msra.mxu0 %v9288
    %9574 = vmatpush.bf16.msra.mxu0 %v9287
    %9575 = vmatpush.bf16.msra.mxu0 %v9286
    %9576 = vmatpush.bf16.msra.mxu0 %v9285
    %9577 = vmatpush.bf16.msra.mxu0 %v9284
    %9578 = vmatmul.bf16.gmra.mxu0 %v8459
    %v9579 = vpop.f32.mrf.mxu0
    %v9580 = vadd.f32 %v9566, %v9579
    %v9581 = vpop.f32.mrf.mxu0
    %v9582 = vadd.f32 %v9568, %v9581
    %9583 = vdwg.mxu0
    %9584 = vmatpush.bf16.msra.mxu0 %v9299
    %9585 = vmatpush.bf16.msra.mxu0 %v9298
    %9586 = vmatpush.bf16.msra.mxu0 %v9297
    %9587 = vmatpush.bf16.msra.mxu0 %v9296
    %9588 = vmatpush.bf16.msra.mxu0 %v9295
    %9589 = vmatpush.bf16.msra.mxu0 %v9294
    %9590 = vmatpush.bf16.msra.mxu0 %v9293
    %9591 = vmatpush.bf16.msra.mxu0 %v9292
    %9592 = vmatmul.bf16.gmra.mxu0 %v8460
    %v9593 = vpop.f32.mrf.mxu0
    %v9594 = vadd.f32 %v9580, %v9593
    %v9595 = vpop.f32.mrf.mxu0
    %v9596 = vadd.f32 %v9582, %v9595
    %9597 = vdwg.mxu0
    %9598 = vmatpush.bf16.msra.mxu0 %v9307
    %9599 = vmatpush.bf16.msra.mxu0 %v9306
    %9600 = vmatpush.bf16.msra.mxu0 %v9305
    %9601 = vmatpush.bf16.msra.mxu0 %v9304
    %9602 = vmatpush.bf16.msra.mxu0 %v9303
    %9603 = vmatpush.bf16.msra.mxu0 %v9302
    %9604 = vmatpush.bf16.msra.mxu0 %v9301
    %9605 = vmatpush.bf16.msra.mxu0 %v9300
    %9606 = vmatmul.bf16.gmra.mxu0 %v8461
    %v9607 = vpop.f32.mrf.mxu0
    %v9608 = vadd.f32 %v9594, %v9607
    %v9609 = vpop.f32.mrf.mxu0
    %v9610 = vadd.f32 %v9596, %v9609
    %9611 = vdwg.mxu0
    %9612 = vmatpush.bf16.msra.mxu0 %v9315
    %9613 = vmatpush.bf16.msra.mxu0 %v9314
    %9614 = vmatpush.bf16.msra.mxu0 %v9313
    %9615 = vmatpush.bf16.msra.mxu0 %v9312
    %9616 = vmatpush.bf16.msra.mxu0 %v9311
    %9617 = vmatpush.bf16.msra.mxu0 %v9310
    %9618 = vmatpush.bf16.msra.mxu0 %v9309
    %9619 = vmatpush.bf16.msra.mxu0 %v9308
    %9620 = vmatmul.bf16.gmra.mxu0 %v8462
    %v9621 = vpop.f32.mrf.mxu0
    %v9622 = vadd.f32 %v9608, %v9621
    %v9623 = vpop.f32.mrf.mxu0
    %v9624 = vadd.f32 %v9610, %v9623
    %9625 = vdwg.mxu0
    %9626 = vmatpush.bf16.msra.mxu0 %v9323
    %9627 = vmatpush.bf16.msra.mxu0 %v9322
    %9628 = vmatpush.bf16.msra.mxu0 %v9321
    %9629 = vmatpush.bf16.msra.mxu0 %v9320
    %9630 = vmatpush.bf16.msra.mxu0 %v9319
    %9631 = vmatpush.bf16.msra.mxu0 %v9318
    %9632 = vmatpush.bf16.msra.mxu0 %v9317
    %9633 = vmatpush.bf16.msra.mxu0 %v9316
    %9634 = vmatmul.bf16.gmra.mxu0 %v8463
    %v9635 = vpop.f32.mrf.mxu0
    %v9636 = vadd.f32 %v9622, %v9635
    %v9637 = vpop.f32.mrf.mxu0
    %v9638 = vadd.f32 %v9624, %v9637
    %9639 = vdwg.mxu0
    %9640 = vmatpush.bf16.msra.mxu0 %v9331
    %9641 = vmatpush.bf16.msra.mxu0 %v9330
    %9642 = vmatpush.bf16.msra.mxu0 %v9329
    %9643 = vmatpush.bf16.msra.mxu0 %v9328
    %9644 = vmatpush.bf16.msra.mxu0 %v9327
    %9645 = vmatpush.bf16.msra.mxu0 %v9326
    %9646 = vmatpush.bf16.msra.mxu0 %v9325
    %9647 = vmatpush.bf16.msra.mxu0 %v9324
    %9648 = vmatmul.bf16.gmra.mxu0 %v8464
    %v9649 = vpop.f32.mrf.mxu0
    %v9650 = vadd.f32 %v9636, %v9649
    %v9651 = vpop.f32.mrf.mxu0
    %v9652 = vadd.f32 %v9638, %v9651
    %9653 = vdwg.mxu0
    %9654 = vmatpush.bf16.msra.mxu0 %v9339
    %9655 = vmatpush.bf16.msra.mxu0 %v9338
    %9656 = vmatpush.bf16.msra.mxu0 %v9337
    %9657 = vmatpush.bf16.msra.mxu0 %v9336
    %9658 = vmatpush.bf16.msra.mxu0 %v9335
    %9659 = vmatpush.bf16.msra.mxu0 %v9334
    %9660 = vmatpush.bf16.msra.mxu0 %v9333
    %9661 = vmatpush.bf16.msra.mxu0 %v9332
    %9662 = vmatmul.bf16.gmra.mxu0 %v8465
    %v9663 = vpop.f32.mrf.mxu0
    %v9664 = vadd.f32 %v9650, %v9663
    %v9665 = vpop.f32.mrf.mxu0
    %v9666 = vadd.f32 %v9652, %v9665
    %9667 = vdwg.mxu0
    %9668 = vmatpush.bf16.msra.mxu0 %v9347
    %9669 = vmatpush.bf16.msra.mxu0 %v9346
    %9670 = vmatpush.bf16.msra.mxu0 %v9345
    %9671 = vmatpush.bf16.msra.mxu0 %v9344
    %9672 = vmatpush.bf16.msra.mxu0 %v9343
    %9673 = vmatpush.bf16.msra.mxu0 %v9342
    %9674 = vmatpush.bf16.msra.mxu0 %v9341
    %9675 = vmatpush.bf16.msra.mxu0 %v9340
    %9676 = vmatmul.bf16.gmra.mxu0 %v8466
    %v9677 = vpop.f32.mrf.mxu0
    %v9678 = vadd.f32 %v9664, %v9677
    %v9679 = vpop.f32.mrf.mxu0
    %v9680 = vadd.f32 %v9666, %v9679
    %9681 = vdwg.mxu0
    %9682 = vmatpush.bf16.msra.mxu0 %v9355
    %9683 = vmatpush.bf16.msra.mxu0 %v9354
    %9684 = vmatpush.bf16.msra.mxu0 %v9353
    %9685 = vmatpush.bf16.msra.mxu0 %v9352
    %9686 = vmatpush.bf16.msra.mxu0 %v9351
    %9687 = vmatpush.bf16.msra.mxu0 %v9350
    %9688 = vmatpush.bf16.msra.mxu0 %v9349
    %9689 = vmatpush.bf16.msra.mxu0 %v9348
    %9690 = vmatmul.bf16.gmra.mxu0 %v8467
    %v9691 = vpop.f32.mrf.mxu0
    %v9692 = vadd.f32 %v9678, %v9691
    %v9693 = vpop.f32.mrf.mxu0
    %v9694 = vadd.f32 %v9680, %v9693
    %9695 = vdwg.mxu0
    %9696 = vmatpush.bf16.msra.mxu0 %v9363
    %9697 = vmatpush.bf16.msra.mxu0 %v9362
    %9698 = vmatpush.bf16.msra.mxu0 %v9361
    %9699 = vmatpush.bf16.msra.mxu0 %v9360
    %9700 = vmatpush.bf16.msra.mxu0 %v9359
    %9701 = vmatpush.bf16.msra.mxu0 %v9358
    %9702 = vmatpush.bf16.msra.mxu0 %v9357
    %9703 = vmatpush.bf16.msra.mxu0 %v9356
    %9704 = vmatmul.bf16.gmra.mxu0 %v8468
    %v9705 = vpop.f32.mrf.mxu0
    %v9706 = vadd.f32 %v9692, %v9705
    %v9707 = vpop.f32.mrf.mxu0
    %v9708 = vadd.f32 %v9694, %v9707
    %9709 = vdwg.mxu0
    %9710 = vmatpush.bf16.msra.mxu0 %v9371
    %9711 = vmatpush.bf16.msra.mxu0 %v9370
    %9712 = vmatpush.bf16.msra.mxu0 %v9369
    %9713 = vmatpush.bf16.msra.mxu0 %v9368
    %9714 = vmatpush.bf16.msra.mxu0 %v9367
    %9715 = vmatpush.bf16.msra.mxu0 %v9366
    %9716 = vmatpush.bf16.msra.mxu0 %v9365
    %9717 = vmatpush.bf16.msra.mxu0 %v9364
    %9718 = vmatmul.bf16.gmra.mxu0 %v8469
    %v9719 = vpop.f32.mrf.mxu0
    %v9720 = vadd.f32 %v9706, %v9719
    %v9721 = vpop.f32.mrf.mxu0
    %v9722 = vadd.f32 %v9708, %v9721
    %9723 = vdwg.mxu0
    %v9724 = vadd.f32 %v7389, %v9720
    %v9725 = vadd.f32 %v7390, %v9722
    %9726 = vadd.xlane.f32.xlu0 %v9724
    %v9727 = vpop.xlane.xlu0 %9726
    %9728 = vadd.xlane.f32.xlu0 %v9725
    %v9729 = vpop.xlane.xlu0 %9728
    %v9730 = vmul.f32 %v9727, 0.009803922
    %v9731 = vmul.f32 %v9729, 0.009803922
    %v9732 = vsub.f32 %v9724, %v9730
    %v9733 = vsub.f32 %v9725, %v9731
    %v9734 = vmul.f32 %v9732, %v224
    %v9735 = vmul.f32 %v9733, %v224
    %v9736 = vmul.f32 %v9734, %v9734
    %v9737 = vmul.f32 %v9735, %v9735
    %9738 = vadd.xlane.f32.xlu0 %v9736
    %v9739 = vpop.xlane.xlu0 %9738
    %9740 = vadd.xlane.f32.xlu0 %v9737
    %v9741 = vpop.xlane.xlu0 %9740
    %v9742 = vmul.f32 %v9739, 0.009803922
    %v9743 = vmul.f32 %v9741, 0.009803922
    %v9744 = vadd.f32 %v9742, 1e-05
    %v9745 = vadd.f32 %v9743, 1e-05
    %v9746 = vrsqrt.pop %v9744
    %v9747 = vmul.f32 %v9746, %v9744
    %v9748 = vmul.f32 %v9747, %v9746
    %v9749 = vmul.f32 0.5, %v9748
    %v9750 = vsub.f32 1.5, %v9749
    %v9751 = vmul.f32 %v9746, %v9750
    %vm9752 = vweird.f32 %v9744
    %vm9753 = vweird.f32 %v9746
    %vm9754 = vmor %vm9752, %vm9753
    %v9755 = vsel %vm9754, %v9746, %v9751
    %v9756 = vrsqrt.pop %v9745
    %v9757 = vmul.f32 %v9756, %v9745
    %v9758 = vmul.f32 %v9757, %v9756
    %v9759 = vmul.f32 0.5, %v9758
    %v9760 = vsub.f32 1.5, %v9759
    %v9761 = vmul.f32 %v9756, %v9760
    %vm9762 = vweird.f32 %v9745
    %vm9763 = vweird.f32 %v9756
    %vm9764 = vmor %vm9762, %vm9763
    %v9765 = vsel %vm9764, %v9756, %v9761
    %v9766 = vmul.f32 %v9734, %v9755
    %v9767 = vmul.f32 %v9735, %v9765
    %s9768 = scalar_lea.vmem [#allocation16], 16
    %v9769 = vld [vmem:[%s9768] sm:$0x1]
    %v9771 = vperm.slane %v9769, 0
    %v9773 = vmul.f32 %v9766, %v9771
    %v9774 = vmul.f32 %v9767, %v9771
    %s9775 = scalar_lea.vmem [#allocation16], 17
    %v9776 = vld [vmem:[%s9775] sm:$0x1]
    %v9778 = vperm.slane %v9776, 0
    %v9780 = vadd.f32 %v9773, %v9778
    %v9781 = vadd.f32 %v9774, %v9778
    %v9782 = vpack.c.bf16 %v9781, %v9780
    %v9783 = vld [vmem:[#allocation14] sm:$0xf]
    %v9784 = vld [vmem:[#allocation14 + $0x4] sm:$0xf]
    %v9785 = vld [vmem:[#allocation14 + $0x8] sm:$0xf]
    %v9786 = vld [vmem:[#allocation14 + $0xc] sm:$0xf]
    %v9787 = vld [vmem:[#allocation14 + $0x10] sm:$0xf]
    %v9788 = vld [vmem:[#allocation14 + $0x14] sm:$0xf]
    %v9789 = vld [vmem:[#allocation14 + $0x18] sm:$0xf]
    %v9790 = vld [vmem:[#allocation14 + $0x1c] sm:$0xf]
    %v9791 = vld [vmem:[#allocation14 + $0x20] sm:$0xf]
    %v9792 = vld [vmem:[#allocation14 + $0x24] sm:$0xf]
    %v9793 = vld [vmem:[#allocation14 + $0x28] sm:$0xf]
    %v9794 = vld [vmem:[#allocation14 + $0x2c] sm:$0xf]
    %v9795 = vld [vmem:[#allocation14 + $0x30] sm:$0xf]
    %v9796 = vld [vmem:[#allocation14 + $0x34] sm:$0xf]
    %v9797 = vld [vmem:[#allocation14 + $0x38] sm:$0xf]
    %v9798 = vld [vmem:[#allocation14 + $0x3c] sm:$0xf]
    %s9799 = scalar_lea.vmem [#allocation16], 18
    %v9800 = vld [vmem:[%s9799] sm:$0x1]
    %v9802 = vperm.slane %v9800, 0
    %v9820 = vunpack.c.l.b16 %v9783
    %v9821 = vunpack.c.l.b16 %v9784
    %v9822 = vunpack.c.l.b16 %v9785
    %v9823 = vunpack.c.l.b16 %v9786
    %v9824 = vunpack.c.l.b16 %v9787
    %v9825 = vunpack.c.l.b16 %v9788
    %v9826 = vunpack.c.l.b16 %v9789
    %v9827 = vunpack.c.l.b16 %v9790
    %v9828 = vunpack.c.l.b16 %v9791
    %v9829 = vunpack.c.l.b16 %v9792
    %v9830 = vunpack.c.l.b16 %v9793
    %v9831 = vunpack.c.l.b16 %v9794
    %v9832 = vunpack.c.l.b16 %v9795
    %v9833 = vunpack.c.l.b16 %v9796
    %v9834 = vunpack.c.l.b16 %v9797
    %v9835 = vunpack.c.l.b16 %v9798
    %v9836 = vpack.c.b16 %v9821, %v9820
    %v9837 = vpack.c.b16 %v9823, %v9822
    %v9838 = vpack.c.b16 %v9825, %v9824
    %v9839 = vpack.c.b16 %v9827, %v9826
    %v9840 = vpack.c.b16 %v9829, %v9828
    %v9841 = vpack.c.b16 %v9831, %v9830
    %v9842 = vpack.c.b16 %v9833, %v9832
    %v9843 = vpack.c.b16 %v9835, %v9834
    %9852 = vmatpush.bf16.msra.mxu0 %v9843
    %9853 = vmatpush.bf16.msra.mxu0 %v9842
    %9854 = vmatpush.bf16.msra.mxu0 %v9841
    %9855 = vmatpush.bf16.msra.mxu0 %v9840
    %9856 = vmatpush.bf16.msra.mxu0 %v9839
    %9857 = vmatpush.bf16.msra.mxu0 %v9838
    %9858 = vmatpush.bf16.msra.mxu0 %v9837
    %9859 = vmatpush.bf16.msra.mxu0 %v9836
    %9860 = vmatmul.bf16.gmra.mxu0 %v9782
    %v9861 = vpop.f32.mrf.mxu0
    %v9862 = vadd.f32 %v9802, %v9861
    %v9863 = vpop.f32.mrf.mxu0
    %v9864 = vadd.f32 %v9802, %v9863
    %9865 = vdwg.mxu0
    %9866 = vst [vmem:[#allocation17] sm:$0xff] %v9862
    %9867 = vst [vmem:[#allocation17 + $0x8] sm:$0xff] %v9864
    // Predicated region
    $region94: #{fused_forward.1} parent=1 // pred_check
      _
    $region95: #{fused_forward.1} parent=1 // pred_check_branch
      %9869 = sbr.rel (0) target = $region97
    $region96: #{fused_forward.1} parent=1 // pred_region
      %9871 = vsyncadd [#allocation4], 0
      %s9872 = sshll.u32 [#allocation17], 4
      %s9873 = int_to_ptr.vmem [resolvable:$true] %s9872
      %s9874 = sshll.u32 %s14, 4
      %s9875 = int_to_ptr.hbm [resolvable:$true] %s9874
      %9880 = dma.vmem_to_hbm [thread:$0]  %s9873, 256, %s9875, [#allocation4], 128, 128, 8
    $region97: #{fused_forward.1} parent=1 // pred_fallthru
      _
    // Predicated region
    $region98: #{fused_forward.1} parent=1 // pred_check
      _
    $region99: #{fused_forward.1} parent=1 // pred_check_branch
      %9882 = sbr.rel (0) target = $region101
    $region100: #{fused_forward.1} parent=1 // pred_region
      %9884 = dma.done [#allocation4], 256
    $region101: #{fused_forward.1} parent=1 // pred_fallthru
      _
    %9885 = vsyncpa [#allocation3], 1
    %9886 = vsyncpa [#allocation6], 1
    %9887 = vsyncpa [#allocation9], 1
    %9888 = vsyncpa [#allocation12], 1
    %9889 = vsyncpa [#allocation15], 1
    %9890 = vsyncpa [#allocation4], 1

</llo_original>
